<compile_context>
chip_gen: v6e
topology: v6e:2x2x1
jax: 0.10.0
libtpu: 0.0.40
codegen_flags: <defaults>
</compile_context>

<pallas_src>
import functools

import jax
import jax.numpy as jnp
import numpy as np
from jax.experimental import pallas as pl
from jax.experimental.pallas import tpu as pltpu

SMOOTH_L1_BETA = 1.0
TEMPERATURE = 2.0      # module default
SOFT_LAMBDA = 0.9      # module default
COS_EPS = 1e-8
LOG_EPS = 1e-7


def _rnc_kernel(feat_ref, feat_blk_ref, colsq_ref, lab_ref, lab_blk_ref,   # inputs
                out_ref,                                                    # (8,128) partial
                logits_ref, w_ref, rotd_ref, transd_ref,                    # VMEM scratch
                *, n_valid, n_pad, tile_i, jb,
                inv_t, soft_lambda, beta, label_diff):
    """One grid step owns the TILE_I anchor columns i in [i0, i0 + tile_i).

    Every (n_pad, tile_i) working matrix is transposed w.r.t. the PyTorch code:
    entry [j, r] refers to anchor i = i0 + r (lane axis) and contrast sample j
    (sublane axis).
    """
    i0 = pl.program_id(0) * tile_i

    f_all = feat_ref[...]          # (n_pad, D)    all features (padded rows are zero)
    f_blk = feat_blk_ref[...]      # (D, tile_i)   this block's anchor features^T
    col_n2 = colsq_ref[...]        # (n_pad, 1)    precomputed ||f_j||^2 (hoisted to wrapper)
    lab_all = lab_ref[...]         # (n_pad, 9)    [rot_green | rot_red | trans]
    lab_blk = lab_blk_ref[...]     # (9, tile_i)

    # ---------------- FeatureSimilarity('l2') via Gram matmul on the MXU -----------
    # dist2[j, r] = ||f_j||^2 + ||f_{i0+r}||^2 - 2 * f_j . f_{i0+r}
    # TODO(synk): for large D, cast the Gram operands to bf16 (keep f32 accumulate)
    # after re-validating the <= ranking tolerance.
    row_n2 = jnp.sum(f_blk * f_blk, axis=0, keepdims=True)             # (1, tile_i)
    gram = jnp.dot(f_all, f_blk, preferred_element_type=jnp.float32)   # (n_pad, tile_i)
    dist2 = jnp.maximum(col_n2 + row_n2 - 2.0 * gram, 0.0)             # clamp fp cancellation
    logits = -jnp.sqrt(dist2) * inv_t
    # per-anchor max over all contrast j  ==  axis-0 reduce in this transposed layout
    logits = logits - jnp.max(logits, axis=0, keepdims=True)
    exp_logits = jnp.exp(logits)

    jj = jax.lax.broadcasted_iota(jnp.int32, (n_pad, tile_i), 0)
    ii = i0 + jax.lax.broadcasted_iota(jnp.int32, (n_pad, tile_i), 1)
    # w(i,k) = exp(logits(i,k)) for k != i and k a real (un-padded) sample, else 0.
    w_valid = jnp.logical_and(jj != ii, jj < n_valid)

    logits_ref[...] = logits
    w_ref[...] = jnp.where(w_valid, exp_logits, 0.0)

    # ---------------- pairwise label differences (coords unrolled, lane dense) ------
    def sl1_mean(base):
        acc = jnp.zeros((n_pad, tile_i), jnp.float32)
        for c in range(3):
            x = lab_all[:, base + c:base + c + 1] - lab_blk[base + c:base + c + 1, :]
            ax = jnp.abs(x)
            acc = acc + jnp.where(ax < beta, (0.5 / beta) * x * x, ax - 0.5 * beta)
        return acc * (1.0 / 3.0)

    def one_minus_cos(base):
        dots = jnp.zeros((n_pad, tile_i), jnp.float32)
        cn2 = jnp.zeros((n_pad, 1), jnp.float32)
        rn2 = jnp.zeros((1, tile_i), jnp.float32)
        for c in range(3):
            col = lab_all[:, base + c:base + c + 1]
            row = lab_blk[base + c:base + c + 1, :]
            dots = dots + col * row
            cn2 = cn2 + col * col
            rn2 = rn2 + row * row
        denom = jnp.maximum(jnp.sqrt(cn2 * rn2), COS_EPS)
        return 1.0 - dots / denom

    if label_diff == "l1":              # module default: LabelDifference_rot('l1')
        rotd_ref[...] = sl1_mean(0) + sl1_mean(3)
    elif label_diff == "cos":
        rotd_ref[...] = one_minus_cos(0) + one_minus_cos(3)
    else:
        raise ValueError(f"unsupported label_diff: {label_diff}")
    transd_ref[...] = sl1_mean(6)       # LabelDifference_trans('l1')

    # ---------------- O(N^3) neg-mask denominators, register accumulators ----------
    # denom_rot (i,j) = sum_k [rot_d(i,j)  <= rot_d(i,k)]                              * w(i,k)
    # denom_hard(i,j) = sum_k [rot_d(i,j) <= rot_d(i,k)] [trans_d(i,j) <= trans_d(i,k)] * w(i,k)
    # j is blocked into jb-row chunks held in vregs; dr/dh accumulate in registers for
    # the whole k sweep.  k is blocked by 8: one (8, tile_i) slab load per array per
    # 8 k's, rows peeled statically.  No full-tile VMEM traffic inside the cubic loop.
    # TODO(synk): for N >~ 2K replace with per-anchor sort of rot_d/trans_d + suffix
    # sums of w (O(N^2 log N)).
    n_jblocks = n_pad // jb
    n_kslabs = n_pad // 8

    # Hoisted iotas / masks (do not re-create broadcasts inside the loops).
    jj_base = jax.lax.broadcasted_iota(jnp.int32, (jb, tile_i), 0)      # 0..jb-1 per sublane
    ii_blk = i0 + jax.lax.broadcasted_iota(jnp.int32, (jb, tile_i), 1)  # anchor index per lane
    i_ok = ii_blk < n_valid

    def jblock_body(b, lane_acc):
        j0 = pl.multiple_of(b * jb, jb)
        rot_j = rotd_ref[pl.ds(j0, jb), :]        # (jb, tile_i), lives in vregs over k sweep
        trans_j = transd_ref[pl.ds(j0, jb), :]

        def kslab_body(s, carry):
            dr, dh = carry
            k0 = pl.multiple_of(s * 8, 8)
            rot_s = rotd_ref[pl.ds(k0, 8), :]     # (8, tile_i) slab (1 vreg at tile_i=128)
            trans_s = transd_ref[pl.ds(k0, 8), :]
            w_s = w_ref[pl.ds(k0, 8), :]
            for c in range(8):                    # static peel; w==0 kills k==i & padded k
                wr = jnp.where(rot_j <= rot_s[c:c + 1, :], w_s[c:c + 1, :], 0.0)
                dr = dr + wr
                dh = dh + jnp.where(trans_j <= trans_s[c:c + 1, :], wr, 0.0)
            return dr, dh

        zeros = jnp.zeros((jb, tile_i), jnp.float32)
        dr, dh = jax.lax.fori_loop(0, n_kslabs, kslab_body, (zeros, zeros))

        # Per-j-block log-prob contribution (replaces the old dr/dh scratch tiles).
        lg_j = logits_ref[pl.ds(j0, jb), :]
        pos = (lg_j - jnp.log(dh + LOG_EPS)) + soft_lambda * (lg_j - jnp.log(dr + LOG_EPS))
        jj_b = jj_base + j0
        m = jnp.logical_and(jnp.logical_and(jj_b != ii_blk, jj_b < n_valid), i_ok)
        return lane_acc + jnp.sum(jnp.where(m, pos, 0.0), axis=0, keepdims=True)

    lane_acc = jax.lax.fori_loop(0, n_jblocks, jblock_body,
                                 jnp.zeros((1, tile_i), jnp.float32))

    scale = -1.0 / float(n_valid * (n_valid - 1))
    partial = jnp.sum(lane_acc) * scale
    # Broadcast the per-block partial over the (8, 128) padded output block; the
    # wrapper picks element [0, 0] of each block and sums.
    out_ref[...] = jnp.zeros((8, 128), jnp.float32) + partial


def rnc_loss_rot_nonsym_mix(rot_feat, rot_green, rot_red, trans, *,
                            temperature=TEMPERATURE, soft_lambda=SOFT_LAMBDA,
                            label_diff="l1", feature_sim="l2",
                            smooth_l1_beta=SMOOTH_L1_BETA):
    """Forward pass of RnCLoss_rot_nonSym_mix (defaults: label 'l1', feature 'l2')."""
    if feature_sim != "l2":
        # TODO(synk): feature_sim='cos' (normalized Gram) not implemented; module default is 'l2'.
        raise NotImplementedError("only feature_sim='l2' is implemented")

    n, d = rot_feat.shape
    f = rot_feat.astype(jnp.float32)
    labels = jnp.concatenate([rot_green, rot_red, trans], axis=1).astype(jnp.float32)  # (n, 9)

    # Pad N up to a multiple of 128 so the lane-dense tiled path is used for every N.
    # Padded rows get zero weight in the denominators and are masked out of the sum.
    n_pad = ((n + 127) // 128) * 128
    if n_pad != n:
        pad = n_pad - n
        f = jnp.pad(f, ((0, pad), (0, 0)))
        labels = jnp.pad(labels, ((0, pad), (0, 0)))

    col_sq = jnp.sum(f * f, axis=1, keepdims=True)   # ||f_j||^2, computed once (hoisted)
    f_t = jnp.transpose(f)                           # (D, n_pad)
    labels_t = jnp.transpose(labels)                 # (9, n_pad)

    try:
        vmem_cap = int(pltpu.get_tpu_info().vmem_capacity_bytes)
    except Exception:
        vmem_cap = 64 * 1024 * 1024                  # conservative (v7x per-TC)

    # Anchor-lane tile: 128 keeps >= 2 grid steps and fits the 64 MiB v7x budget;
    # bump to 256 on 128 MiB chips (v5e/v6e) when N is large enough that the wider
    # tile halves the number of grid steps without starving the grid.
    tile_i = 128
    if (vmem_cap >= 100 * 1024 * 1024 and n_pad % 256 == 0 and n_pad // 256 >= 2
            and 4 * n_pad * 256 * 4 < vmem_cap // 3):
        tile_i = 256
    g = n_pad // tile_i
    jb = max(8, 8192 // tile_i)          # j-block rows: 8 vregs per (jb, tile_i) f32 array

    vmem_limit = int(min(120 * 1024 * 1024, (vmem_cap * 3) // 4))

    kernel = functools.partial(
        _rnc_kernel, n_valid=n, n_pad=n_pad, tile_i=tile_i, jb=jb,
        inv_t=1.0 / float(temperature), soft_lambda=float(soft_lambda),
        beta=float(smooth_l1_beta), label_diff=label_diff)

    # TODO(synk): on v7x, pltpu.CORE_PARALLEL on the anchor-tile axis and
    # pipeline_mode=pl.Buffered(1) on the two constant-index resident inputs would
    # guarantee 2-TC sharding and halve their VMEM; kept portable here.
    out = pl.pallas_call(
        kernel,
        out_shape=jax.ShapeDtypeStruct((g * 8, 128), jnp.float32),
        grid_spec=pltpu.PrefetchScalarGridSpec(
            num_scalar_prefetch=0,
            grid=(g,),
            in_specs=[
                pl.BlockSpec((n_pad, d), lambda i: (0, 0)),      # all features (resident)
                pl.BlockSpec((d, tile_i), lambda i: (0, i)),     # this block's anchor features^T
                pl.BlockSpec((n_pad, 1), lambda i: (0, 0)),      # ||f_j||^2 (resident)
                pl.BlockSpec((n_pad, 9), lambda i: (0, 0)),      # all labels (resident)
                pl.BlockSpec((9, tile_i), lambda i: (0, i)),     # this block's anchor labels^T
            ],
            out_specs=pl.BlockSpec((8, 128), lambda i: (i, 0)),
            scratch_shapes=[pltpu.VMEM((n_pad, tile_i), jnp.float32)] * 4,
        ),
        compiler_params=pltpu.CompilerParams(
            dimension_semantics=("parallel",),
            vmem_limit_bytes=vmem_limit),
    )(f, f_t, col_sq, labels, labels_t)

    # Per-block partial losses sit at rows 0, 8, 16, ... of the padded output.
    loss = jnp.sum(out[0::8, 0])
    # TODO(synk): the PyTorch module returns Python None on NaN/Inf (host-side control
    # flow); callers that need that behavior must gate on jnp.isfinite(loss) outside.
    return loss


# ---------------- pure-numpy reference (mirrors the PyTorch code path) ------------
def _ref_loss(rot_feat, rot_green, rot_red, trans,
              temperature=TEMPERATURE, soft_lambda=SOFT_LAMBDA, beta=SMOOTH_L1_BETA):
    f = np.asarray(rot_feat, np.float64)
    rg = np.asarray(rot_green, np.float64)
    rr = np.asarray(rot_red, np.float64)
    tr = np.asarray(trans, np.float64)
    n = f.shape[0]

    def sl1(x):
        ax = np.abs(x)
        return np.where(ax < beta, 0.5 * x * x / beta, ax - 0.5 * beta)

    rot_diff = sl1(rg[:, None, :] - rg[None, :, :]).mean(-1) \
             + sl1(rr[:, None, :] - rr[None, :, :]).mean(-1)
    trans_diff = sl1(tr[:, None, :] - tr[None, :, :]).mean(-1)

    dist = np.linalg.norm(f[:, None, :] - f[None, :, :], axis=-1)
    logits = -dist / temperature
    logits = logits - logits.max(axis=1, keepdims=True)
    expl = np.exp(logits)

    offd = ~np.eye(n, dtype=bool)
    L = logits[offd].reshape(n, n - 1)
    E = expl[offd].reshape(n, n - 1)
    RD = rot_diff[offd].reshape(n, n - 1)
    TD = trans_diff[offd].reshape(n, n - 1)

    eps = 1e-7
    tot_hard = 0.0
    tot_rot = 0.0
    for i in range(n):                                  # row loop keeps memory O(n^2)
        cmp_r = RD[i][:, None] <= RD[i][None, :]
        cmp_t = TD[i][:, None] <= TD[i][None, :]
        d_rot = (cmp_r * E[i][None, :]).sum(-1)
        d_hard = ((cmp_r & cmp_t) * E[i][None, :]).sum(-1)
        tot_rot += (L[i] - np.log(d_rot + eps)).sum()
        tot_hard += (L[i] - np.log(d_hard + eps)).sum()
    s = n * (n - 1)
    return -(tot_hard / s) + soft_lambda * (-(tot_rot / s))


if __name__ == "__main__":
    key = jax.random.PRNGKey(0)
    k1, k2, k3, k4 = jax.random.split(key, 4)

    # Case 1: N = 256 exercises the real tiling path (tile_i = 128 -> grid of 2).
    N, D = 256, 64
    rot_feat = jax.random.normal(k1, (N, D), jnp.float32)
    rot_green = jax.random.normal(k2, (N, 3), jnp.float32)
    rot_red = jax.random.normal(k3, (N, 3), jnp.float32)
    trans = jax.random.normal(k4, (N, 3), jnp.float32)

    loss = jax.block_until_ready(
        rnc_loss_rot_nonsym_mix(rot_feat, rot_green, rot_red, trans))
    ref = _ref_loss(np.asarray(rot_feat), np.asarray(rot_green),
                    np.asarray(rot_red), np.asarray(trans))
    np.testing.assert_allclose(float(loss), float(ref), rtol=1e-2, atol=1e-2)

    # Case 2: N = 72 exercises the padding path (n_pad = 128, masked padded rows).
    N2, D2 = 72, 32
    rf2 = jax.random.normal(k1, (N2, D2), jnp.float32)
    rg2 = jax.random.normal(k2, (N2, 3), jnp.float32)
    rr2 = jax.random.normal(k3, (N2, 3), jnp.float32)
    tr2 = jax.random.normal(k4, (N2, 3), jnp.float32)

    loss2 = jax.block_until_ready(rnc_loss_rot_nonsym_mix(rf2, rg2, rr2, tr2))
    ref2 = _ref_loss(np.asarray(rf2), np.asarray(rg2), np.asarray(rr2), np.asarray(tr2))
    np.testing.assert_allclose(float(loss2), float(ref2), rtol=1e-2, atol=1e-2)

    print("KERNEL_OK")
</pallas_src>

<mosaic_0001>
module attributes {stable_mosaic.version = 11 : i64} {
  func.func @_rnc_kernel(%arg0: i32, %arg1: memref<256x64xf32, #tpu.memory_space<vmem>>, %arg2: memref<64x128xf32, #tpu.memory_space<vmem>>, %arg3: memref<256x1xf32, #tpu.memory_space<vmem>>, %arg4: memref<256x9xf32, #tpu.memory_space<vmem>>, %arg5: memref<9x128xf32, #tpu.memory_space<vmem>>, %arg6: memref<8x128xf32, #tpu.memory_space<vmem>>, %arg7: memref<256x128xf32, #tpu.memory_space<vmem>>, %arg8: memref<256x128xf32, #tpu.memory_space<vmem>>, %arg9: memref<256x128xf32, #tpu.memory_space<vmem>>, %arg10: memref<256x128xf32, #tpu.memory_space<vmem>>) attributes {dimension_semantics = [#tpu.dimension_semantics<parallel>], iteration_bounds = array<i64: 2>, scalar_prefetch = 0 : i64, scratch_operands = 4 : i64, tpu.core_type = #tpu.core_type<tc>, window_params = [{pipeline_mode = #tpu.pipeline_mode<synchronous>, transform_indices = @transform_0, window_bounds = array<i64: 256, 64>}, {transform_indices = @transform_1, window_bounds = array<i64: 64, 128>}, {pipeline_mode = #tpu.pipeline_mode<synchronous>, transform_indices = @transform_2, window_bounds = array<i64: 256, 1>}, {pipeline_mode = #tpu.pipeline_mode<synchronous>, transform_indices = @transform_3, window_bounds = array<i64: 256, 9>}, {transform_indices = @transform_4, window_bounds = array<i64: 9, 128>}, {transform_indices = @transform_5, window_bounds = array<i64: 8, 128>}]} {
    %c128_i32 = arith.constant 128 : i32
    %0 = arith.muli %arg0, %c128_i32 : i32
    %c0 = arith.constant 0 : index
    %c0_0 = arith.constant 0 : index
    %1 = vector.load %arg1[%c0, %c0_0] : memref<256x64xf32, #tpu.memory_space<vmem>>, vector<256x64xf32>
    %c0_1 = arith.constant 0 : index
    %c0_2 = arith.constant 0 : index
    %2 = vector.load %arg2[%c0_1, %c0_2] : memref<64x128xf32, #tpu.memory_space<vmem>>, vector<64x128xf32>
    %c0_3 = arith.constant 0 : index
    %c0_4 = arith.constant 0 : index
    %3 = vector.load %arg3[%c0_3, %c0_4] : memref<256x1xf32, #tpu.memory_space<vmem>>, vector<256x1xf32>
    %c0_5 = arith.constant 0 : index
    %c0_6 = arith.constant 0 : index
    %4 = vector.load %arg4[%c0_5, %c0_6] : memref<256x9xf32, #tpu.memory_space<vmem>>, vector<256x9xf32>
    %c0_7 = arith.constant 0 : index
    %c0_8 = arith.constant 0 : index
    %5 = vector.load %arg5[%c0_7, %c0_8] : memref<9x128xf32, #tpu.memory_space<vmem>>, vector<9x128xf32>
    %6 = arith.mulf %2, %2 : vector<64x128xf32>
    %cst = arith.constant dense<0.000000e+00> : vector<128xf32>
    %7 = vector.multi_reduction <add>, %6, %cst [0] : vector<64x128xf32> to vector<128xf32>
    %8 = vector.shape_cast %7 : vector<128xf32> to vector<1x128xf32>
    %cst_9 = arith.constant dense<0.000000e+00> : vector<256x128xf32>
    %9 = tpu.matmul %1, %2, %cst_9 {dimension_numbers = #tpu.dot_dimension_numbers<[1], [0], [0], [1], [0, 0, 1, 1], [], []>} : vector<256x64xf32>, vector<64x128xf32>, vector<256x128xf32> -> vector<256x128xf32>
    %10 = vector.broadcast %3 : vector<256x1xf32> to vector<256x128xf32>
    %11 = vector.broadcast %8 : vector<1x128xf32> to vector<256x128xf32>
    %12 = arith.addf %10, %11 : vector<256x128xf32>
    %cst_10 = arith.constant 2.000000e+00 : f32
    %13 = vector.broadcast %cst_10 : f32 to vector<256x128xf32>
    %14 = arith.mulf %13, %9 : vector<256x128xf32>
    %15 = arith.subf %12, %14 : vector<256x128xf32>
    %cst_11 = arith.constant 0.000000e+00 : f32
    %16 = vector.broadcast %cst_11 : f32 to vector<256x128xf32>
    %17 = arith.maximumf %15, %16 : vector<256x128xf32>
    %18 = math.sqrt %17 : vector<256x128xf32>
    %cst_12 = arith.constant 0.000000e+00 : f32
    %19 = vector.broadcast %cst_12 : f32 to vector<256x128xf32>
    %20 = arith.subf %19, %18 : vector<256x128xf32>
    %cst_13 = arith.constant 5.000000e-01 : f32
    %21 = vector.broadcast %cst_13 : f32 to vector<256x128xf32>
    %22 = arith.mulf %20, %21 : vector<256x128xf32>
    %cst_14 = arith.constant dense<0xFF800000> : vector<128xf32>
    %23 = vector.multi_reduction <maximumf>, %22, %cst_14 [0] : vector<256x128xf32> to vector<128xf32>
    %24 = vector.shape_cast %23 : vector<128xf32> to vector<1x128xf32>
    %25 = vector.broadcast %24 : vector<1x128xf32> to vector<256x128xf32>
    %26 = arith.subf %22, %25 : vector<256x128xf32>
    %27 = math.exp %26 : vector<256x128xf32>
    %28 = tpu.iota {dimensions = array<i32: 0>} : vector<256x128xi32>
    %29 = tpu.iota {dimensions = array<i32: 1>} : vector<256x128xi32>
    %30 = vector.broadcast %0 : i32 to vector<256x128xi32>
    %31 = arith.addi %30, %29 : vector<256x128xi32>
    %32 = arith.cmpi ne, %28, %31 : vector<256x128xi32>
    %c256_i32 = arith.constant 256 : i32
    %33 = vector.broadcast %c256_i32 : i32 to vector<256x128xi32>
    %34 = arith.cmpi slt, %28, %33 : vector<256x128xi32>
    %35 = arith.andi %32, %34 : vector<256x128xi1>
    %c0_15 = arith.constant 0 : index
    %c0_16 = arith.constant 0 : index
    %36 = vector.load %arg7[%c0_15, %c0_16] : memref<256x128xf32, #tpu.memory_space<vmem>>, vector<256x128xf32>
    tpu.vector_store %arg7[%c0_15, %c0_16], %26 {strides = array<i32>} : memref<256x128xf32, #tpu.memory_space<vmem>>, vector<256x128xf32>,
    %cst_17 = arith.constant 0.000000e+00 : f32
    %37 = vector.broadcast %cst_17 : f32 to vector<256x128xf32>
    %38 = arith.select %35, %27, %37 : vector<256x128xi1>, vector<256x128xf32>
    %c0_18 = arith.constant 0 : index
    %c0_19 = arith.constant 0 : index
    %39 = vector.load %arg8[%c0_18, %c0_19] : memref<256x128xf32, #tpu.memory_space<vmem>>, vector<256x128xf32>
    tpu.vector_store %arg8[%c0_18, %c0_19], %38 {strides = array<i32>} : memref<256x128xf32, #tpu.memory_space<vmem>>, vector<256x128xf32>,
    %cst_20 = arith.constant 0.000000e+00 : f32
    %40 = vector.broadcast %cst_20 : f32 to vector<256x128xf32>
    %41 = vector.extract_strided_slice %4 {offsets = [0, 0], sizes = [256, 1], strides = [1, 1]} : vector<256x9xf32> to vector<256x1xf32>
    %42 = vector.extract_strided_slice %5 {offsets = [0, 0], sizes = [1, 128], strides = [1, 1]} : vector<9x128xf32> to vector<1x128xf32>
    %43 = vector.broadcast %41 : vector<256x1xf32> to vector<256x128xf32>
    %44 = vector.broadcast %42 : vector<1x128xf32> to vector<256x128xf32>
    %45 = arith.subf %43, %44 : vector<256x128xf32>
    %46 = math.absf %45 : vector<256x128xf32>
    %cst_21 = arith.constant 1.000000e+00 : f32
    %47 = vector.broadcast %cst_21 : f32 to vector<256x128xf32>
    %48 = arith.cmpf olt, %46, %47 : vector<256x128xf32>
    %cst_22 = arith.constant 5.000000e-01 : f32
    %49 = vector.broadcast %cst_22 : f32 to vector<256x128xf32>
    %50 = arith.mulf %49, %45 : vector<256x128xf32>
    %51 = arith.mulf %50, %45 : vector<256x128xf32>
    %cst_23 = arith.constant 5.000000e-01 : f32
    %52 = vector.broadcast %cst_23 : f32 to vector<256x128xf32>
    %53 = arith.subf %46, %52 : vector<256x128xf32>
    %54 = arith.select %48, %51, %53 : vector<256x128xi1>, vector<256x128xf32>
    %55 = arith.addf %40, %54 : vector<256x128xf32>
    %56 = vector.extract_strided_slice %4 {offsets = [0, 1], sizes = [256, 1], strides = [1, 1]} : vector<256x9xf32> to vector<256x1xf32>
    %57 = vector.extract_strided_slice %5 {offsets = [1, 0], sizes = [1, 128], strides = [1, 1]} : vector<9x128xf32> to vector<1x128xf32>
    %58 = vector.broadcast %56 : vector<256x1xf32> to vector<256x128xf32>
    %59 = vector.broadcast %57 : vector<1x128xf32> to vector<256x128xf32>
    %60 = arith.subf %58, %59 : vector<256x128xf32>
    %61 = math.absf %60 : vector<256x128xf32>
    %cst_24 = arith.constant 1.000000e+00 : f32
    %62 = vector.broadcast %cst_24 : f32 to vector<256x128xf32>
    %63 = arith.cmpf olt, %61, %62 : vector<256x128xf32>
    %cst_25 = arith.constant 5.000000e-01 : f32
    %64 = vector.broadcast %cst_25 : f32 to vector<256x128xf32>
    %65 = arith.mulf %64, %60 : vector<256x128xf32>
    %66 = arith.mulf %65, %60 : vector<256x128xf32>
    %cst_26 = arith.constant 5.000000e-01 : f32
    %67 = vector.broadcast %cst_26 : f32 to vector<256x128xf32>
    %68 = arith.subf %61, %67 : vector<256x128xf32>
    %69 = arith.select %63, %66, %68 : vector<256x128xi1>, vector<256x128xf32>
    %70 = arith.addf %55, %69 : vector<256x128xf32>
    %71 = vector.extract_strided_slice %4 {offsets = [0, 2], sizes = [256, 1], strides = [1, 1]} : vector<256x9xf32> to vector<256x1xf32>
    %72 = vector.extract_strided_slice %5 {offsets = [2, 0], sizes = [1, 128], strides = [1, 1]} : vector<9x128xf32> to vector<1x128xf32>
    %73 = vector.broadcast %71 : vector<256x1xf32> to vector<256x128xf32>
    %74 = vector.broadcast %72 : vector<1x128xf32> to vector<256x128xf32>
    %75 = arith.subf %73, %74 : vector<256x128xf32>
    %76 = math.absf %75 : vector<256x128xf32>
    %cst_27 = arith.constant 1.000000e+00 : f32
    %77 = vector.broadcast %cst_27 : f32 to vector<256x128xf32>
    %78 = arith.cmpf olt, %76, %77 : vector<256x128xf32>
    %cst_28 = arith.constant 5.000000e-01 : f32
    %79 = vector.broadcast %cst_28 : f32 to vector<256x128xf32>
    %80 = arith.mulf %79, %75 : vector<256x128xf32>
    %81 = arith.mulf %80, %75 : vector<256x128xf32>
    %cst_29 = arith.constant 5.000000e-01 : f32
    %82 = vector.broadcast %cst_29 : f32 to vector<256x128xf32>
    %83 = arith.subf %76, %82 : vector<256x128xf32>
    %84 = arith.select %78, %81, %83 : vector<256x128xi1>, vector<256x128xf32>
    %85 = arith.addf %70, %84 : vector<256x128xf32>
    %cst_30 = arith.constant 0.333333343 : f32
    %86 = vector.broadcast %cst_30 : f32 to vector<256x128xf32>
    %87 = arith.mulf %85, %86 : vector<256x128xf32>
    %cst_31 = arith.constant 0.000000e+00 : f32
    %88 = vector.broadcast %cst_31 : f32 to vector<256x128xf32>
    %89 = vector.extract_strided_slice %4 {offsets = [0, 3], sizes = [256, 1], strides = [1, 1]} : vector<256x9xf32> to vector<256x1xf32>
    %90 = vector.extract_strided_slice %5 {offsets = [3, 0], sizes = [1, 128], strides = [1, 1]} : vector<9x128xf32> to vector<1x128xf32>
    %91 = vector.broadcast %89 : vector<256x1xf32> to vector<256x128xf32>
    %92 = vector.broadcast %90 : vector<1x128xf32> to vector<256x128xf32>
    %93 = arith.subf %91, %92 : vector<256x128xf32>
    %94 = math.absf %93 : vector<256x128xf32>
    %cst_32 = arith.constant 1.000000e+00 : f32
    %95 = vector.broadcast %cst_32 : f32 to vector<256x128xf32>
    %96 = arith.cmpf olt, %94, %95 : vector<256x128xf32>
    %cst_33 = arith.constant 5.000000e-01 : f32
    %97 = vector.broadcast %cst_33 : f32 to vector<256x128xf32>
    %98 = arith.mulf %97, %93 : vector<256x128xf32>
    %99 = arith.mulf %98, %93 : vector<256x128xf32>
    %cst_34 = arith.constant 5.000000e-01 : f32
    %100 = vector.broadcast %cst_34 : f32 to vector<256x128xf32>
    %101 = arith.subf %94, %100 : vector<256x128xf32>
    %102 = arith.select %96, %99, %101 : vector<256x128xi1>, vector<256x128xf32>
    %103 = arith.addf %88, %102 : vector<256x128xf32>
    %104 = vector.extract_strided_slice %4 {offsets = [0, 4], sizes = [256, 1], strides = [1, 1]} : vector<256x9xf32> to vector<256x1xf32>
    %105 = vector.extract_strided_slice %5 {offsets = [4, 0], sizes = [1, 128], strides = [1, 1]} : vector<9x128xf32> to vector<1x128xf32>
    %106 = vector.broadcast %104 : vector<256x1xf32> to vector<256x128xf32>
    %107 = vector.broadcast %105 : vector<1x128xf32> to vector<256x128xf32>
    %108 = arith.subf %106, %107 : vector<256x128xf32>
    %109 = math.absf %108 : vector<256x128xf32>
    %cst_35 = arith.constant 1.000000e+00 : f32
    %110 = vector.broadcast %cst_35 : f32 to vector<256x128xf32>
    %111 = arith.cmpf olt, %109, %110 : vector<256x128xf32>
    %cst_36 = arith.constant 5.000000e-01 : f32
    %112 = vector.broadcast %cst_36 : f32 to vector<256x128xf32>
    %113 = arith.mulf %112, %108 : vector<256x128xf32>
    %114 = arith.mulf %113, %108 : vector<256x128xf32>
    %cst_37 = arith.constant 5.000000e-01 : f32
    %115 = vector.broadcast %cst_37 : f32 to vector<256x128xf32>
    %116 = arith.subf %109, %115 : vector<256x128xf32>
    %117 = arith.select %111, %114, %116 : vector<256x128xi1>, vector<256x128xf32>
    %118 = arith.addf %103, %117 : vector<256x128xf32>
    %119 = vector.extract_strided_slice %4 {offsets = [0, 5], sizes = [256, 1], strides = [1, 1]} : vector<256x9xf32> to vector<256x1xf32>
    %120 = vector.extract_strided_slice %5 {offsets = [5, 0], sizes = [1, 128], strides = [1, 1]} : vector<9x128xf32> to vector<1x128xf32>
    %121 = vector.broadcast %119 : vector<256x1xf32> to vector<256x128xf32>
    %122 = vector.broadcast %120 : vector<1x128xf32> to vector<256x128xf32>
    %123 = arith.subf %121, %122 : vector<256x128xf32>
    %124 = math.absf %123 : vector<256x128xf32>
    %cst_38 = arith.constant 1.000000e+00 : f32
    %125 = vector.broadcast %cst_38 : f32 to vector<256x128xf32>
    %126 = arith.cmpf olt, %124, %125 : vector<256x128xf32>
    %cst_39 = arith.constant 5.000000e-01 : f32
    %127 = vector.broadcast %cst_39 : f32 to vector<256x128xf32>
    %128 = arith.mulf %127, %123 : vector<256x128xf32>
    %129 = arith.mulf %128, %123 : vector<256x128xf32>
    %cst_40 = arith.constant 5.000000e-01 : f32
    %130 = vector.broadcast %cst_40 : f32 to vector<256x128xf32>
    %131 = arith.subf %124, %130 : vector<256x128xf32>
    %132 = arith.select %126, %129, %131 : vector<256x128xi1>, vector<256x128xf32>
    %133 = arith.addf %118, %132 : vector<256x128xf32>
    %cst_41 = arith.constant 0.333333343 : f32
    %134 = vector.broadcast %cst_41 : f32 to vector<256x128xf32>
    %135 = arith.mulf %133, %134 : vector<256x128xf32>
    %136 = arith.addf %87, %135 : vector<256x128xf32>
    %c0_42 = arith.constant 0 : index
    %c0_43 = arith.constant 0 : index
    %137 = vector.load %arg9[%c0_42, %c0_43] : memref<256x128xf32, #tpu.memory_space<vmem>>, vector<256x128xf32>
    tpu.vector_store %arg9[%c0_42, %c0_43], %136 {strides = array<i32>} : memref<256x128xf32, #tpu.memory_space<vmem>>, vector<256x128xf32>,
    %cst_44 = arith.constant 0.000000e+00 : f32
    %138 = vector.broadcast %cst_44 : f32 to vector<256x128xf32>
    %139 = vector.extract_strided_slice %4 {offsets = [0, 6], sizes = [256, 1], strides = [1, 1]} : vector<256x9xf32> to vector<256x1xf32>
    %140 = vector.extract_strided_slice %5 {offsets = [6, 0], sizes = [1, 128], strides = [1, 1]} : vector<9x128xf32> to vector<1x128xf32>
    %141 = vector.broadcast %139 : vector<256x1xf32> to vector<256x128xf32>
    %142 = vector.broadcast %140 : vector<1x128xf32> to vector<256x128xf32>
    %143 = arith.subf %141, %142 : vector<256x128xf32>
    %144 = math.absf %143 : vector<256x128xf32>
    %cst_45 = arith.constant 1.000000e+00 : f32
    %145 = vector.broadcast %cst_45 : f32 to vector<256x128xf32>
    %146 = arith.cmpf olt, %144, %145 : vector<256x128xf32>
    %cst_46 = arith.constant 5.000000e-01 : f32
    %147 = vector.broadcast %cst_46 : f32 to vector<256x128xf32>
    %148 = arith.mulf %147, %143 : vector<256x128xf32>
    %149 = arith.mulf %148, %143 : vector<256x128xf32>
    %cst_47 = arith.constant 5.000000e-01 : f32
    %150 = vector.broadcast %cst_47 : f32 to vector<256x128xf32>
    %151 = arith.subf %144, %150 : vector<256x128xf32>
    %152 = arith.select %146, %149, %151 : vector<256x128xi1>, vector<256x128xf32>
    %153 = arith.addf %138, %152 : vector<256x128xf32>
    %154 = vector.extract_strided_slice %4 {offsets = [0, 7], sizes = [256, 1], strides = [1, 1]} : vector<256x9xf32> to vector<256x1xf32>
    %155 = vector.extract_strided_slice %5 {offsets = [7, 0], sizes = [1, 128], strides = [1, 1]} : vector<9x128xf32> to vector<1x128xf32>
    %156 = vector.broadcast %154 : vector<256x1xf32> to vector<256x128xf32>
    %157 = vector.broadcast %155 : vector<1x128xf32> to vector<256x128xf32>
    %158 = arith.subf %156, %157 : vector<256x128xf32>
    %159 = math.absf %158 : vector<256x128xf32>
    %cst_48 = arith.constant 1.000000e+00 : f32
    %160 = vector.broadcast %cst_48 : f32 to vector<256x128xf32>
    %161 = arith.cmpf olt, %159, %160 : vector<256x128xf32>
    %cst_49 = arith.constant 5.000000e-01 : f32
    %162 = vector.broadcast %cst_49 : f32 to vector<256x128xf32>
    %163 = arith.mulf %162, %158 : vector<256x128xf32>
    %164 = arith.mulf %163, %158 : vector<256x128xf32>
    %cst_50 = arith.constant 5.000000e-01 : f32
    %165 = vector.broadcast %cst_50 : f32 to vector<256x128xf32>
    %166 = arith.subf %159, %165 : vector<256x128xf32>
    %167 = arith.select %161, %164, %166 : vector<256x128xi1>, vector<256x128xf32>
    %168 = arith.addf %153, %167 : vector<256x128xf32>
    %169 = vector.extract_strided_slice %4 {offsets = [0, 8], sizes = [256, 1], strides = [1, 1]} : vector<256x9xf32> to vector<256x1xf32>
    %170 = vector.extract_strided_slice %5 {offsets = [8, 0], sizes = [1, 128], strides = [1, 1]} : vector<9x128xf32> to vector<1x128xf32>
    %171 = vector.broadcast %169 : vector<256x1xf32> to vector<256x128xf32>
    %172 = vector.broadcast %170 : vector<1x128xf32> to vector<256x128xf32>
    %173 = arith.subf %171, %172 : vector<256x128xf32>
    %174 = math.absf %173 : vector<256x128xf32>
    %cst_51 = arith.constant 1.000000e+00 : f32
    %175 = vector.broadcast %cst_51 : f32 to vector<256x128xf32>
    %176 = arith.cmpf olt, %174, %175 : vector<256x128xf32>
    %cst_52 = arith.constant 5.000000e-01 : f32
    %177 = vector.broadcast %cst_52 : f32 to vector<256x128xf32>
    %178 = arith.mulf %177, %173 : vector<256x128xf32>
    %179 = arith.mulf %178, %173 : vector<256x128xf32>
    %cst_53 = arith.constant 5.000000e-01 : f32
    %180 = vector.broadcast %cst_53 : f32 to vector<256x128xf32>
    %181 = arith.subf %174, %180 : vector<256x128xf32>
    %182 = arith.select %176, %179, %181 : vector<256x128xi1>, vector<256x128xf32>
    %183 = arith.addf %168, %182 : vector<256x128xf32>
    %cst_54 = arith.constant 0.333333343 : f32
    %184 = vector.broadcast %cst_54 : f32 to vector<256x128xf32>
    %185 = arith.mulf %183, %184 : vector<256x128xf32>
    %c0_55 = arith.constant 0 : index
    %c0_56 = arith.constant 0 : index
    %186 = vector.load %arg10[%c0_55, %c0_56] : memref<256x128xf32, #tpu.memory_space<vmem>>, vector<256x128xf32>
    tpu.vector_store %arg10[%c0_55, %c0_56], %185 {strides = array<i32>} : memref<256x128xf32, #tpu.memory_space<vmem>>, vector<256x128xf32>,
    %187 = tpu.iota {dimensions = array<i32: 0>} : vector<64x128xi32>
    %188 = tpu.iota {dimensions = array<i32: 1>} : vector<64x128xi32>
    %189 = vector.broadcast %0 : i32 to vector<64x128xi32>
    %190 = arith.addi %189, %188 : vector<64x128xi32>
    %c256_i32_57 = arith.constant 256 : i32
    %191 = vector.broadcast %c256_i32_57 : i32 to vector<64x128xi32>
    %192 = arith.cmpi slt, %190, %191 : vector<64x128xi32>
    %cst_58 = arith.constant 0.000000e+00 : f32
    %193 = vector.broadcast %cst_58 : f32 to vector<1x128xf32>
    %c0_i32 = arith.constant 0 : i32
    %c4_i32 = arith.constant 4 : i32
    %194 = arith.addi %c0_i32, %c4_i32 : i32
    %c1_i32 = arith.constant 1 : i32
    %195 = scf.for %arg11 = %c0_i32 to %194 step %c1_i32 iter_args(%arg12 = %193) -> (vector<1x128xf32>)  : i32 {
      %c64_i32 = arith.constant 64 : i32
      %205 = arith.muli %arg11, %c64_i32 : i32
      %206 = tpu.assume_multiple %205, 64 : i32
      %207 = arith.index_cast %206 : i32 to index
      %c0_65 = arith.constant 0 : index
      %208 = vector.load %arg9[%207, %c0_65] : memref<256x128xf32, #tpu.memory_space<vmem>>, vector<64x128xf32>
      %209 = arith.index_cast %206 : i32 to index
      %c0_66 = arith.constant 0 : index
      %210 = vector.load %arg10[%209, %c0_66] : memref<256x128xf32, #tpu.memory_space<vmem>>, vector<64x128xf32>
      %cst_67 = arith.constant 0.000000e+00 : f32
      %211 = vector.broadcast %cst_67 : f32 to vector<64x128xf32>
      %c0_i32_68 = arith.constant 0 : i32
      %c32_i32 = arith.constant 32 : i32
      %212 = arith.addi %c0_i32_68, %c32_i32 : i32
      %c1_i32_69 = arith.constant 1 : i32
      %213:2 = scf.for %arg13 = %c0_i32_68 to %212 step %c1_i32_69 iter_args(%arg14 = %211, %arg15 = %211) -> (vector<64x128xf32>, vector<64x128xf32>)  : i32 {
        %c8_i32 = arith.constant 8 : i32
        %239 = arith.muli %arg13, %c8_i32 : i32
        %240 = tpu.assume_multiple %239, 8 : i32
        %241 = arith.index_cast %240 : i32 to index
        %c0_78 = arith.constant 0 : index
        %242 = vector.load %arg9[%241, %c0_78] : memref<256x128xf32, #tpu.memory_space<vmem>>, vector<8x128xf32>
        %243 = arith.index_cast %240 : i32 to index
        %c0_79 = arith.constant 0 : index
        %244 = vector.load %arg10[%243, %c0_79] : memref<256x128xf32, #tpu.memory_space<vmem>>, vector<8x128xf32>
        %245 = arith.index_cast %240 : i32 to index
        %c0_80 = arith.constant 0 : index
        %246 = vector.load %arg8[%245, %c0_80] : memref<256x128xf32, #tpu.memory_space<vmem>>, vector<8x128xf32>
        %247 = vector.extract_strided_slice %242 {offsets = [0, 0], sizes = [1, 128], strides = [1, 1]} : vector<8x128xf32> to vector<1x128xf32>
        %248 = vector.broadcast %247 : vector<1x128xf32> to vector<64x128xf32>
        %249 = arith.cmpf ole, %208, %248 : vector<64x128xf32>
        %250 = vector.extract_strided_slice %246 {offsets = [0, 0], sizes = [1, 128], strides = [1, 1]} : vector<8x128xf32> to vector<1x128xf32>
        %cst_81 = arith.constant 0.000000e+00 : f32
        %251 = vector.shape_cast %250 : vector<1x128xf32> to vector<1x128xf32>
        %252 = vector.broadcast %251 : vector<1x128xf32> to vector<64x128xf32>
        %253 = vector.broadcast %cst_81 : f32 to vector<64x128xf32>
        %254 = arith.select %249, %252, %253 : vector<64x128xi1>, vector<64x128xf32>
        %255 = arith.addf %arg14, %254 : vector<64x128xf32>
        %256 = vector.extract_strided_slice %244 {offsets = [0, 0], sizes = [1, 128], strides = [1, 1]} : vector<8x128xf32> to vector<1x128xf32>
        %257 = vector.broadcast %256 : vector<1x128xf32> to vector<64x128xf32>
        %258 = arith.cmpf ole, %210, %257 : vector<64x128xf32>
        %cst_82 = arith.constant 0.000000e+00 : f32
        %259 = vector.broadcast %cst_82 : f32 to vector<64x128xf32>
        %260 = arith.select %258, %254, %259 : vector<64x128xi1>, vector<64x128xf32>
        %261 = arith.addf %arg15, %260 : vector<64x128xf32>
        %262 = vector.extract_strided_slice %242 {offsets = [1, 0], sizes = [1, 128], strides = [1, 1]} : vector<8x128xf32> to vector<1x128xf32>
        %263 = vector.broadcast %262 : vector<1x128xf32> to vector<64x128xf32>
        %264 = arith.cmpf ole, %208, %263 : vector<64x128xf32>
        %265 = vector.extract_strided_slice %246 {offsets = [1, 0], sizes = [1, 128], strides = [1, 1]} : vector<8x128xf32> to vector<1x128xf32>
        %cst_83 = arith.constant 0.000000e+00 : f32
        %266 = vector.shape_cast %265 : vector<1x128xf32> to vector<1x128xf32>
        %267 = vector.broadcast %266 : vector<1x128xf32> to vector<64x128xf32>
        %268 = vector.broadcast %cst_83 : f32 to vector<64x128xf32>
        %269 = arith.select %264, %267, %268 : vector<64x128xi1>, vector<64x128xf32>
        %270 = arith.addf %255, %269 : vector<64x128xf32>
        %271 = vector.extract_strided_slice %244 {offsets = [1, 0], sizes = [1, 128], strides = [1, 1]} : vector<8x128xf32> to vector<1x128xf32>
        %272 = vector.broadcast %271 : vector<1x128xf32> to vector<64x128xf32>
        %273 = arith.cmpf ole, %210, %272 : vector<64x128xf32>
        %cst_84 = arith.constant 0.000000e+00 : f32
        %274 = vector.broadcast %cst_84 : f32 to vector<64x128xf32>
        %275 = arith.select %273, %269, %274 : vector<64x128xi1>, vector<64x128xf32>
        %276 = arith.addf %261, %275 : vector<64x128xf32>
        %277 = vector.extract_strided_slice %242 {offsets = [2, 0], sizes = [1, 128], strides = [1, 1]} : vector<8x128xf32> to vector<1x128xf32>
        %278 = vector.broadcast %277 : vector<1x128xf32> to vector<64x128xf32>
        %279 = arith.cmpf ole, %208, %278 : vector<64x128xf32>
        %280 = vector.extract_strided_slice %246 {offsets = [2, 0], sizes = [1, 128], strides = [1, 1]} : vector<8x128xf32> to vector<1x128xf32>
        %cst_85 = arith.constant 0.000000e+00 : f32
        %281 = vector.shape_cast %280 : vector<1x128xf32> to vector<1x128xf32>
        %282 = vector.broadcast %281 : vector<1x128xf32> to vector<64x128xf32>
        %283 = vector.broadcast %cst_85 : f32 to vector<64x128xf32>
        %284 = arith.select %279, %282, %283 : vector<64x128xi1>, vector<64x128xf32>
        %285 = arith.addf %270, %284 : vector<64x128xf32>
        %286 = vector.extract_strided_slice %244 {offsets = [2, 0], sizes = [1, 128], strides = [1, 1]} : vector<8x128xf32> to vector<1x128xf32>
        %287 = vector.broadcast %286 : vector<1x128xf32> to vector<64x128xf32>
        %288 = arith.cmpf ole, %210, %287 : vector<64x128xf32>
        %cst_86 = arith.constant 0.000000e+00 : f32
        %289 = vector.broadcast %cst_86 : f32 to vector<64x128xf32>
        %290 = arith.select %288, %284, %289 : vector<64x128xi1>, vector<64x128xf32>
        %291 = arith.addf %276, %290 : vector<64x128xf32>
        %292 = vector.extract_strided_slice %242 {offsets = [3, 0], sizes = [1, 128], strides = [1, 1]} : vector<8x128xf32> to vector<1x128xf32>
        %293 = vector.broadcast %292 : vector<1x128xf32> to vector<64x128xf32>
        %294 = arith.cmpf ole, %208, %293 : vector<64x128xf32>
        %295 = vector.extract_strided_slice %246 {offsets = [3, 0], sizes = [1, 128], strides = [1, 1]} : vector<8x128xf32> to vector<1x128xf32>
        %cst_87 = arith.constant 0.000000e+00 : f32
        %296 = vector.shape_cast %295 : vector<1x128xf32> to vector<1x128xf32>
        %297 = vector.broadcast %296 : vector<1x128xf32> to vector<64x128xf32>
        %298 = vector.broadcast %cst_87 : f32 to vector<64x128xf32>
        %299 = arith.select %294, %297, %298 : vector<64x128xi1>, vector<64x128xf32>
        %300 = arith.addf %285, %299 : vector<64x128xf32>
        %301 = vector.extract_strided_slice %244 {offsets = [3, 0], sizes = [1, 128], strides = [1, 1]} : vector<8x128xf32> to vector<1x128xf32>
        %302 = vector.broadcast %301 : vector<1x128xf32> to vector<64x128xf32>
        %303 = arith.cmpf ole, %210, %302 : vector<64x128xf32>
        %cst_88 = arith.constant 0.000000e+00 : f32
        %304 = vector.broadcast %cst_88 : f32 to vector<64x128xf32>
        %305 = arith.select %303, %299, %304 : vector<64x128xi1>, vector<64x128xf32>
        %306 = arith.addf %291, %305 : vector<64x128xf32>
        %307 = vector.extract_strided_slice %242 {offsets = [4, 0], sizes = [1, 128], strides = [1, 1]} : vector<8x128xf32> to vector<1x128xf32>
        %308 = vector.broadcast %307 : vector<1x128xf32> to vector<64x128xf32>
        %309 = arith.cmpf ole, %208, %308 : vector<64x128xf32>
        %310 = vector.extract_strided_slice %246 {offsets = [4, 0], sizes = [1, 128], strides = [1, 1]} : vector<8x128xf32> to vector<1x128xf32>
        %cst_89 = arith.constant 0.000000e+00 : f32
        %311 = vector.shape_cast %310 : vector<1x128xf32> to vector<1x128xf32>
        %312 = vector.broadcast %311 : vector<1x128xf32> to vector<64x128xf32>
        %313 = vector.broadcast %cst_89 : f32 to vector<64x128xf32>
        %314 = arith.select %309, %312, %313 : vector<64x128xi1>, vector<64x128xf32>
        %315 = arith.addf %300, %314 : vector<64x128xf32>
        %316 = vector.extract_strided_slice %244 {offsets = [4, 0], sizes = [1, 128], strides = [1, 1]} : vector<8x128xf32> to vector<1x128xf32>
        %317 = vector.broadcast %316 : vector<1x128xf32> to vector<64x128xf32>
        %318 = arith.cmpf ole, %210, %317 : vector<64x128xf32>
        %cst_90 = arith.constant 0.000000e+00 : f32
        %319 = vector.broadcast %cst_90 : f32 to vector<64x128xf32>
        %320 = arith.select %318, %314, %319 : vector<64x128xi1>, vector<64x128xf32>
        %321 = arith.addf %306, %320 : vector<64x128xf32>
        %322 = vector.extract_strided_slice %242 {offsets = [5, 0], sizes = [1, 128], strides = [1, 1]} : vector<8x128xf32> to vector<1x128xf32>
        %323 = vector.broadcast %322 : vector<1x128xf32> to vector<64x128xf32>
        %324 = arith.cmpf ole, %208, %323 : vector<64x128xf32>
        %325 = vector.extract_strided_slice %246 {offsets = [5, 0], sizes = [1, 128], strides = [1, 1]} : vector<8x128xf32> to vector<1x128xf32>
        %cst_91 = arith.constant 0.000000e+00 : f32
        %326 = vector.shape_cast %325 : vector<1x128xf32> to vector<1x128xf32>
        %327 = vector.broadcast %326 : vector<1x128xf32> to vector<64x128xf32>
        %328 = vector.broadcast %cst_91 : f32 to vector<64x128xf32>
        %329 = arith.select %324, %327, %328 : vector<64x128xi1>, vector<64x128xf32>
        %330 = arith.addf %315, %329 : vector<64x128xf32>
        %331 = vector.extract_strided_slice %244 {offsets = [5, 0], sizes = [1, 128], strides = [1, 1]} : vector<8x128xf32> to vector<1x128xf32>
        %332 = vector.broadcast %331 : vector<1x128xf32> to vector<64x128xf32>
        %333 = arith.cmpf ole, %210, %332 : vector<64x128xf32>
        %cst_92 = arith.constant 0.000000e+00 : f32
        %334 = vector.broadcast %cst_92 : f32 to vector<64x128xf32>
        %335 = arith.select %333, %329, %334 : vector<64x128xi1>, vector<64x128xf32>
        %336 = arith.addf %321, %335 : vector<64x128xf32>
        %337 = vector.extract_strided_slice %242 {offsets = [6, 0], sizes = [1, 128], strides = [1, 1]} : vector<8x128xf32> to vector<1x128xf32>
        %338 = vector.broadcast %337 : vector<1x128xf32> to vector<64x128xf32>
        %339 = arith.cmpf ole, %208, %338 : vector<64x128xf32>
        %340 = vector.extract_strided_slice %246 {offsets = [6, 0], sizes = [1, 128], strides = [1, 1]} : vector<8x128xf32> to vector<1x128xf32>
        %cst_93 = arith.constant 0.000000e+00 : f32
        %341 = vector.shape_cast %340 : vector<1x128xf32> to vector<1x128xf32>
        %342 = vector.broadcast %341 : vector<1x128xf32> to vector<64x128xf32>
        %343 = vector.broadcast %cst_93 : f32 to vector<64x128xf32>
        %344 = arith.select %339, %342, %343 : vector<64x128xi1>, vector<64x128xf32>
        %345 = arith.addf %330, %344 : vector<64x128xf32>
        %346 = vector.extract_strided_slice %244 {offsets = [6, 0], sizes = [1, 128], strides = [1, 1]} : vector<8x128xf32> to vector<1x128xf32>
        %347 = vector.broadcast %346 : vector<1x128xf32> to vector<64x128xf32>
        %348 = arith.cmpf ole, %210, %347 : vector<64x128xf32>
        %cst_94 = arith.constant 0.000000e+00 : f32
        %349 = vector.broadcast %cst_94 : f32 to vector<64x128xf32>
        %350 = arith.select %348, %344, %349 : vector<64x128xi1>, vector<64x128xf32>
        %351 = arith.addf %336, %350 : vector<64x128xf32>
        %352 = vector.extract_strided_slice %242 {offsets = [7, 0], sizes = [1, 128], strides = [1, 1]} : vector<8x128xf32> to vector<1x128xf32>
        %353 = vector.broadcast %352 : vector<1x128xf32> to vector<64x128xf32>
        %354 = arith.cmpf ole, %208, %353 : vector<64x128xf32>
        %355 = vector.extract_strided_slice %246 {offsets = [7, 0], sizes = [1, 128], strides = [1, 1]} : vector<8x128xf32> to vector<1x128xf32>
        %cst_95 = arith.constant 0.000000e+00 : f32
        %356 = vector.shape_cast %355 : vector<1x128xf32> to vector<1x128xf32>
        %357 = vector.broadcast %356 : vector<1x128xf32> to vector<64x128xf32>
        %358 = vector.broadcast %cst_95 : f32 to vector<64x128xf32>
        %359 = arith.select %354, %357, %358 : vector<64x128xi1>, vector<64x128xf32>
        %360 = arith.addf %345, %359 : vector<64x128xf32>
        %361 = vector.extract_strided_slice %244 {offsets = [7, 0], sizes = [1, 128], strides = [1, 1]} : vector<8x128xf32> to vector<1x128xf32>
        %362 = vector.broadcast %361 : vector<1x128xf32> to vector<64x128xf32>
        %363 = arith.cmpf ole, %210, %362 : vector<64x128xf32>
        %cst_96 = arith.constant 0.000000e+00 : f32
        %364 = vector.broadcast %cst_96 : f32 to vector<64x128xf32>
        %365 = arith.select %363, %359, %364 : vector<64x128xi1>, vector<64x128xf32>
        %366 = arith.addf %351, %365 : vector<64x128xf32>
        scf.yield %360, %366 : vector<64x128xf32>, vector<64x128xf32>
      }
      %c32_i32_70 = arith.constant 32 : i32
      %214 = arith.index_cast %206 : i32 to index
      %c0_71 = arith.constant 0 : index
      %215 = vector.load %arg7[%214, %c0_71] : memref<256x128xf32, #tpu.memory_space<vmem>>, vector<64x128xf32>
      %cst_72 = arith.constant 1.000000e-07 : f32
      %216 = vector.broadcast %cst_72 : f32 to vector<64x128xf32>
      %217 = arith.addf %213#1, %216 : vector<64x128xf32>
      %218 = math.log %217 : vector<64x128xf32>
      %219 = arith.subf %215, %218 : vector<64x128xf32>
      %cst_73 = arith.constant 1.000000e-07 : f32
      %220 = vector.broadcast %cst_73 : f32 to vector<64x128xf32>
      %221 = arith.addf %213#0, %220 : vector<64x128xf32>
      %222 = math.log %221 : vector<64x128xf32>
      %223 = arith.subf %215, %222 : vector<64x128xf32>
      %cst_74 = arith.constant 0.899999976 : f32
      %224 = vector.broadcast %cst_74 : f32 to vector<64x128xf32>
      %225 = arith.mulf %224, %223 : vector<64x128xf32>
      %226 = arith.addf %219, %225 : vector<64x128xf32>
      %227 = vector.broadcast %206 : i32 to vector<64x128xi32>
      %228 = arith.addi %187, %227 : vector<64x128xi32>
      %229 = arith.cmpi ne, %228, %190 : vector<64x128xi32>
      %c256_i32_75 = arith.constant 256 : i32
      %230 = vector.broadcast %c256_i32_75 : i32 to vector<64x128xi32>
      %231 = arith.cmpi slt, %228, %230 : vector<64x128xi32>
      %232 = arith.andi %229, %231 : vector<64x128xi1>
      %233 = arith.andi %232, %192 : vector<64x128xi1>
      %cst_76 = arith.constant 0.000000e+00 : f32
      %234 = vector.broadcast %cst_76 : f32 to vector<64x128xf32>
      %235 = arith.select %233, %226, %234 : vector<64x128xi1>, vector<64x128xf32>
      %cst_77 = arith.constant dense<0.000000e+00> : vector<128xf32>
      %236 = vector.multi_reduction <add>, %235, %cst_77 [0] : vector<64x128xf32> to vector<128xf32>
      %237 = vector.shape_cast %236 : vector<128xf32> to vector<1x128xf32>
      %238 = arith.addf %arg12, %237 : vector<1x128xf32>
      scf.yield %238 : vector<1x128xf32>
    }
    %c4_i32_59 = arith.constant 4 : i32
    %196 = vector.shape_cast %195 : vector<1x128xf32> to vector<1x1x128xf32>
    %cst_60 = arith.constant dense<0.000000e+00> : vector<1xf32>
    %197 = vector.multi_reduction <add>, %196, %cst_60 [1, 2] : vector<1x1x128xf32> to vector<1xf32>
    %198 = vector.shape_cast %197 : vector<1xf32> to vector<1x1x1xf32>
    %199 = vector.extract %198[0, 0, 0] : f32 from vector<1x1x1xf32>
    %cst_61 = arith.constant -1.53186284E-5 : f32
    %200 = arith.mulf %199, %cst_61 : f32
    %cst_62 = arith.constant 0.000000e+00 : f32
    %201 = vector.broadcast %cst_62 : f32 to vector<8x128xf32>
    %202 = vector.broadcast %200 : f32 to vector<8x128xf32>
    %203 = arith.addf %201, %202 : vector<8x128xf32>
    %c0_63 = arith.constant 0 : index
    %c0_64 = arith.constant 0 : index
    %204 = vector.load %arg6[%c0_63, %c0_64] : memref<8x128xf32, #tpu.memory_space<vmem>>, vector<8x128xf32>
    tpu.vector_store %arg6[%c0_63, %c0_64], %203 {strides = array<i32>} : memref<8x128xf32, #tpu.memory_space<vmem>>, vector<8x128xf32>,
    return
  }
  func.func @transform_0(%arg0: i32) -> (i32, i32) {
    %c0_i32 = arith.constant 0 : i32
    %c0_i32_0 = arith.constant 0 : i32
    %c0_i32_1 = arith.constant 0 : i32
    return %c0_i32, %c0_i32_0 : i32, i32
  }
  func.func @transform_1(%arg0: i32) -> (i32, i32) {
    %c0_i32 = arith.constant 0 : i32
    %c0_i32_0 = arith.constant 0 : i32
    return %c0_i32, %arg0 : i32, i32
  }
  func.func @transform_2(%arg0: i32) -> (i32, i32) {
    %c0_i32 = arith.constant 0 : i32
    %c0_i32_0 = arith.constant 0 : i32
    %c0_i32_1 = arith.constant 0 : i32
    return %c0_i32, %c0_i32_0 : i32, i32
  }
  func.func @transform_3(%arg0: i32) -> (i32, i32) {
    %c0_i32 = arith.constant 0 : i32
    %c0_i32_0 = arith.constant 0 : i32
    %c0_i32_1 = arith.constant 0 : i32
    return %c0_i32, %c0_i32_0 : i32, i32
  }
  func.func @transform_4(%arg0: i32) -> (i32, i32) {
    %c0_i32 = arith.constant 0 : i32
    %c0_i32_0 = arith.constant 0 : i32
    return %c0_i32, %arg0 : i32, i32
  }
  func.func @transform_5(%arg0: i32) -> (i32, i32) {
    %c0_i32 = arith.constant 0 : i32
    %c0_i32_0 = arith.constant 0 : i32
    return %arg0, %c0_i32 : i32, i32
  }
}

</mosaic_0001>

<llo_original>
// kernel: tpu_custom_call.1
$region0: #{tpu_custom_call.1}
  #allocation0 [shape = 'u32[]', space=smem, size = 0x4, offset = 0x4, fixed_abs, tag = 'smem constant byte address 0x4 - core index']
  #allocation1 [shape = 'u32[144,128]{1,0:T(1,128)}', space=vmem, size = 0x12000, scoped, tag = 'internal scratch']
  #allocation2 [shape = 'f32[256,128]{1,0:T(8,128)}', space=vmem, size = 0x20000, scoped, tag = 'scratch operand']
  #allocation3 [shape = 'f32[256,128]{1,0:T(8,128)}', space=vmem, size = 0x20000, scoped, tag = 'scratch operand']
  #allocation4 [shape = 'f32[256,128]{1,0:T(8,128)}', space=vmem, size = 0x20000, scoped, tag = 'scratch operand']
  #allocation5 [shape = 'f32[256,128]{1,0:T(8,128)}', space=vmem, size = 0x20000, scoped, tag = 'scratch operand']
  %s0 = inlined_call_operand.vmem [shape: f32[256,64], index: 0, kind: input, shape index: {}]
  %s1 = inlined_call_operand.vmem [shape: f32[64,256], index: 1, kind: input, shape index: {}]
  %s2 = inlined_call_operand.vmem [shape: f32[256,1], index: 2, kind: input, shape index: {}]
  %s3 = inlined_call_operand.vmem [shape: f32[256,9], index: 3, kind: input, shape index: {}]
  %s4 = inlined_call_operand.vmem [shape: f32[9,256], index: 4, kind: input, shape index: {}]
  %s5 = inlined_call_operand.hbm [shape: f32[16,128], index: 5, kind: output, shape index: {}]
  %s6 = sld [smem:[#allocation0]]
  $region143: #{tpu_custom_call.1} parent=0
    _
  %s8 = ssub.s32 1, %s6
  %s9 = scalar_select 0, %s8, %s6
  $region1: #{tpu_custom_call.1} parent=0
    #allocation6 [shape = 'u8[65536]{0}', space=vmem, size = 0x10000, scoped, tag = 'input window, operand 1']
    #allocation7 [shape = 'u8[16384]{0}', space=vmem, size = 0x4000, scoped, tag = 'input window, operand 4']
    #allocation8 [shape = 'u8[8192]{0}', space=vmem, size = 0x2000, scoped, tag = 'output window, operand 0']
    #allocation9 [shape = 's32[2]{0}', space=sflag, size = 0x8, scoped, tag = 'scoped memory for tpu_custom_call.1']
    %10 = vsyncpa [#allocation9], 0
    %s11 = scalar_lea.sflag [#allocation9], 1
    %12 = vsyncpa %s11, 0
    loop: start=0, step=1, limit=4
    $region2: #{tpu_custom_call.1} parent=1 // loop_pre_header
      _
    $region3: #{tpu_custom_call.1} parent=1 // loop_header
      %s14 = sphi 0, %s18
      %p15 = scmp.ge.s32.totalorder %s14, 4
      %s22 = sphi 0, %s22
      %s24 = sphi 0, %s22
      %s25 = sphi 0, %s24
      %s39 = sphi 0, %s25
      %s45 = sphi 0, %s47
      %s48 = sphi 0, %s45
      %s49 = sphi 0, %s48
      %s65 = sphi 0, %s49
      %s69 = sphi 0, %s69
      %s71 = sphi 0, %s69
      %s72 = sphi 0, %s71
      %s86 = sphi 0, %s72
      %s90 = sphi 0, %s90
      %s92 = sphi 0, %s90
      %s93 = sphi 0, %s92
      %s107 = sphi 0, %s93
      %s113 = sphi 0, %s115
      %s116 = sphi 0, %s113
      %s117 = sphi 0, %s116
      %s133 = sphi 0, %s117
      %s139 = sphi 0, %s141
      %s142 = sphi 0, %s139
      %s143 = sphi 0, %s142
      %s159 = sphi 0, %s143
    $region4: #{tpu_custom_call.1} parent=1 // loop_header_branch
      %17 = sbr.rel (%p15) target = $region8
    $region5: #{tpu_custom_call.1} parent=1 // loop_body
      %s19 = ssub.s32 %s14, 1
      %s20 = ssub.s32 %s14, 2
      %s21 = sadd.s32 %s14, 1
      %s23 = sadd.s32 %s22, 1
      %p26 = scmp.eq.s32.totalorder %s14, 1
      %p27 = scmp.ne.s32.totalorder %s22, %s24
      %p28 = scmp.eq.s32.totalorder %s14, 0
      %p29 = por %p27, %p28
      %p30 = scmp.ne.s32.totalorder %s22, %s24
      %p31 = scmp.eq.s32.totalorder %s19, 1
      %p32 = por %p30, %p31
      %p33 = scmp.ne.s32.totalorder %s24, %s25
      %p34 = scmp.eq.s32.totalorder %s19, 0
      %p35 = por %p33, %p34
      %p36 = scmp.ne.s32.totalorder %s24, %s25
      %p37 = scmp.eq.s32.totalorder %s20, 1
      %p38 = por %p36, %p37
      %p40 = scmp.ne.s32.totalorder %s25, %s39
      %p41 = scmp.eq.s32.totalorder %s20, 0
      %p42 = por %p40, %p41
      %s43 = ssub.s32 %s14, %s21
      %p44 = scmp.eq.s32.totalorder %s43, 0
      %s46 = sadd.s32 %s45, 1
      %s47 = scalar_select %p44, %s45, %s46
      %p50 = pneg %p44
      %p51 = scmp.eq.s32.totalorder %s14, 1
      %p52 = por %p50, %p51
      %p53 = scmp.ne.s32.totalorder %s45, %s48
      %p54 = scmp.eq.s32.totalorder %s14, 0
      %p55 = por %p53, %p54
      %p56 = scmp.ne.s32.totalorder %s45, %s48
      %p57 = scmp.eq.s32.totalorder %s19, 1
      %p58 = por %p56, %p57
      %p59 = scmp.ne.s32.totalorder %s48, %s49
      %p60 = scmp.eq.s32.totalorder %s19, 0
      %p61 = por %p59, %p60
      %p62 = scmp.ne.s32.totalorder %s48, %s49
      %p63 = scmp.eq.s32.totalorder %s20, 1
      %p64 = por %p62, %p63
      %p66 = scmp.ne.s32.totalorder %s49, %s65
      %p67 = scmp.eq.s32.totalorder %s20, 0
      %p68 = por %p66, %p67
      %s70 = sadd.s32 %s69, 1
      %p73 = scmp.eq.s32.totalorder %s14, 1
      %p74 = scmp.ne.s32.totalorder %s69, %s71
      %p75 = scmp.eq.s32.totalorder %s14, 0
      %p76 = por %p74, %p75
      %p77 = scmp.ne.s32.totalorder %s69, %s71
      %p78 = scmp.eq.s32.totalorder %s19, 1
      %p79 = por %p77, %p78
      %p80 = scmp.ne.s32.totalorder %s71, %s72
      %p81 = scmp.eq.s32.totalorder %s19, 0
      %p82 = por %p80, %p81
      %p83 = scmp.ne.s32.totalorder %s71, %s72
      %p84 = scmp.eq.s32.totalorder %s20, 1
      %p85 = por %p83, %p84
      %p87 = scmp.ne.s32.totalorder %s72, %s86
      %p88 = scmp.eq.s32.totalorder %s20, 0
      %p89 = por %p87, %p88
      %s91 = sadd.s32 %s90, 1
      %p94 = scmp.eq.s32.totalorder %s14, 1
      %p95 = scmp.ne.s32.totalorder %s90, %s92
      %p96 = scmp.eq.s32.totalorder %s14, 0
      %p97 = por %p95, %p96
      %p98 = scmp.ne.s32.totalorder %s90, %s92
      %p99 = scmp.eq.s32.totalorder %s19, 1
      %p100 = por %p98, %p99
      %p101 = scmp.ne.s32.totalorder %s92, %s93
      %p102 = scmp.eq.s32.totalorder %s19, 0
      %p103 = por %p101, %p102
      %p104 = scmp.ne.s32.totalorder %s92, %s93
      %p105 = scmp.eq.s32.totalorder %s20, 1
      %p106 = por %p104, %p105
      %p108 = scmp.ne.s32.totalorder %s93, %s107
      %p109 = scmp.eq.s32.totalorder %s20, 0
      %p110 = por %p108, %p109
      %s111 = ssub.s32 %s14, %s21
      %p112 = scmp.eq.s32.totalorder %s111, 0
      %s114 = sadd.s32 %s113, 1
      %s115 = scalar_select %p112, %s113, %s114
      %p118 = pneg %p112
      %p119 = scmp.eq.s32.totalorder %s14, 1
      %p120 = por %p118, %p119
      %p121 = scmp.ne.s32.totalorder %s113, %s116
      %p122 = scmp.eq.s32.totalorder %s14, 0
      %p123 = por %p121, %p122
      %p124 = scmp.ne.s32.totalorder %s113, %s116
      %p125 = scmp.eq.s32.totalorder %s19, 1
      %p126 = por %p124, %p125
      %p127 = scmp.ne.s32.totalorder %s116, %s117
      %p128 = scmp.eq.s32.totalorder %s19, 0
      %p129 = por %p127, %p128
      %p130 = scmp.ne.s32.totalorder %s116, %s117
      %p131 = scmp.eq.s32.totalorder %s20, 1
      %p132 = por %p130, %p131
      %p134 = scmp.ne.s32.totalorder %s117, %s133
      %p135 = scmp.eq.s32.totalorder %s20, 0
      %p136 = por %p134, %p135
      %s137 = ssub.s32 %s14, %s21
      %p138 = scmp.eq.s32.totalorder %s137, 0
      %s140 = sadd.s32 %s139, 1
      %s141 = scalar_select %p138, %s139, %s140
      %p144 = pneg %p138
      %p145 = scmp.eq.s32.totalorder %s14, 1
      %p146 = por %p144, %p145
      %p147 = scmp.ne.s32.totalorder %s139, %s142
      %p148 = scmp.eq.s32.totalorder %s14, 0
      %p149 = por %p147, %p148
      %p150 = scmp.ne.s32.totalorder %s139, %s142
      %p151 = scmp.eq.s32.totalorder %s19, 1
      %p152 = por %p150, %p151
      %p153 = scmp.ne.s32.totalorder %s142, %s143
      %p154 = scmp.eq.s32.totalorder %s19, 0
      %p155 = por %p153, %p154
      %p156 = scmp.ne.s32.totalorder %s142, %s143
      %p157 = scmp.eq.s32.totalorder %s20, 1
      %p158 = por %p156, %p157
      %p160 = scmp.ne.s32.totalorder %s143, %s159
      %p161 = scmp.eq.s32.totalorder %s20, 0
      %p162 = por %p160, %p161
      %p163 = scmp.le.s32.totalorder 1, %s14
      %p164 = scmp.lt.s32.totalorder %s14, 3
      %p165 = pnand %p163, %p164
      %p166 = pneg %p165
      // Predicated region
      $region9: #{tpu_custom_call.1} parent=5 // pred_check
        _
      $region10: #{tpu_custom_call.1} parent=5 // pred_check_branch
        %168 = sbr.rel (%p165) target = $region12
      $region11: #{tpu_custom_call.1} parent=5 // pred_region
        %s169 = ssub.s32 %s14, 1
        // Predicated region
        $region13: #{tpu_custom_call.1} parent=11 // pred_check
          %p170 = pneg %p35
        $region14: #{tpu_custom_call.1} parent=11 // pred_check_branch
          %172 = sbr.rel (%p170) target = $region16
        $region15: #{tpu_custom_call.1} parent=11 // pred_region
          _
        $region16: #{tpu_custom_call.1} parent=11 // pred_fallthru
          _
        // Predicated region
        $region17: #{tpu_custom_call.1} parent=11 // pred_check
          %p173 = pneg %p82
        $region18: #{tpu_custom_call.1} parent=11 // pred_check_branch
          %175 = sbr.rel (%p173) target = $region20
        $region19: #{tpu_custom_call.1} parent=11 // pred_region
          _
        $region20: #{tpu_custom_call.1} parent=11 // pred_fallthru
          _
        // Predicated region
        $region21: #{tpu_custom_call.1} parent=11 // pred_check
          %p176 = pneg %p103
        $region22: #{tpu_custom_call.1} parent=11 // pred_check_branch
          %178 = sbr.rel (%p176) target = $region24
        $region23: #{tpu_custom_call.1} parent=11 // pred_region
          _
        $region24: #{tpu_custom_call.1} parent=11 // pred_fallthru
          _
      $region12: #{tpu_custom_call.1} parent=5 // pred_fallthru
        _
      %p179 = scmp.lt.s32.totalorder %s14, 2
      // Predicated region
      $region25: #{tpu_custom_call.1} parent=5 // pred_check
        %p180 = pneg %p179
      $region26: #{tpu_custom_call.1} parent=5 // pred_check_branch
        %182 = sbr.rel (%p180) target = $region28
      $region27: #{tpu_custom_call.1} parent=5 // pred_region
        // Predicated region
        $region29: #{tpu_custom_call.1} parent=27 // pred_check
          %p183 = pneg %p55
        $region30: #{tpu_custom_call.1} parent=27 // pred_check_branch
          %185 = sbr.rel (%p183) target = $region32
        $region31: #{tpu_custom_call.1} parent=27 // pred_region
          %s186 = sand.u32 %s45, 1
          %s187 = sand.u32 %s45, 1
          %s188 = smul.addr %s187, 64
          %s189 = scalar_lea.vmem [#allocation6], %s188
          %s190 = smul.addr %s14, 8
          %s191 = scalar_lea.vmem %s1, %s190
          // Predicated region
          $region33: #{tpu_custom_call.1} parent=31 // pred_check
            _
          $region34: #{tpu_custom_call.1} parent=31 // pred_check_branch
            %193 = sbr.rel (0) target = $region36
          $region35: #{tpu_custom_call.1} parent=31 // pred_region
            // Predicated region
            $region37: #{tpu_custom_call.1} parent=35 // pred_check
              _
            $region38: #{tpu_custom_call.1} parent=35 // pred_check_branch
              %195 = sbr.rel (0) target = $region40
            $region39: #{tpu_custom_call.1} parent=35 // pred_region
              // Predicated region
              $region52: #{tpu_custom_call.1} parent=39 // pred_check
                _
              $region53: #{tpu_custom_call.1} parent=39 // pred_check_branch
                %225 = sbr.rel (0) target = $region55
              $region54: #{tpu_custom_call.1} parent=39 // pred_region
                loop: start=0, step=1, limit=1
                $region56: #{tpu_custom_call.1} parent=54 // loop_pre_header
                  _
                $region57: #{tpu_custom_call.1} parent=54 // loop_header
                  %s227 = sphi 0, %s231
                  %p228 = scmp.ge.s32.totalorder %s227, 1
                  %s232 = sphi %s191, %s191
                  %s233 = sphi %s189, %s189
                $region58: #{tpu_custom_call.1} parent=54 // loop_header_branch
                  %230 = sbr.rel (%p228) target = $region62
                $region59: #{tpu_custom_call.1} parent=54 // loop_body
                  %v234 = vld [vmem:[%s232] sm:$0xff]
                  %235 = vst [vmem:[%s233] sm:$0xff] %v234
                  %v236 = vld [vmem:[%s232 + $0x10] sm:$0xff]
                  %237 = vst [vmem:[%s233 + $0x8] sm:$0xff] %v236
                  %v238 = vld [vmem:[%s232 + $0x20] sm:$0xff]
                  %239 = vst [vmem:[%s233 + $0x10] sm:$0xff] %v238
                  %v240 = vld [vmem:[%s232 + $0x30] sm:$0xff]
                  %241 = vst [vmem:[%s233 + $0x18] sm:$0xff] %v240
                  %v242 = vld [vmem:[%s232 + $0x40] sm:$0xff]
                  %243 = vst [vmem:[%s233 + $0x20] sm:$0xff] %v242
                  %v244 = vld [vmem:[%s232 + $0x50] sm:$0xff]
                  %245 = vst [vmem:[%s233 + $0x28] sm:$0xff] %v244
                  %v246 = vld [vmem:[%s232 + $0x60] sm:$0xff]
                  %247 = vst [vmem:[%s233 + $0x30] sm:$0xff] %v246
                  %v248 = vld [vmem:[%s232 + $0x70] sm:$0xff]
                  %249 = vst [vmem:[%s233 + $0x38] sm:$0xff] %v248
                $region60: #{tpu_custom_call.1} parent=54 // loop_footer
                  %s231 = sadd.s32 1, %s227
                $region61: #{tpu_custom_call.1} parent=54 // loop_footer_branch
                  %226 = sbr.rel target = $region57
                $region62: #{tpu_custom_call.1} parent=54 // loop_exit
                  _
              $region55: #{tpu_custom_call.1} parent=39 // pred_fallthru
                _
              // Predicated region
              $region63: #{tpu_custom_call.1} parent=39 // pred_check
                _
              $region64: #{tpu_custom_call.1} parent=39 // pred_check_branch
                %251 = sbr.rel target = $region66
              $region65: #{tpu_custom_call.1} parent=39 // pred_region
                _
              $region66: #{tpu_custom_call.1} parent=39 // pred_fallthru
                _
            $region40: #{tpu_custom_call.1} parent=35 // pred_fallthru
              _
            // Predicated region
            $region41: #{tpu_custom_call.1} parent=35 // pred_check
              _
            $region42: #{tpu_custom_call.1} parent=35 // pred_check_branch
              %197 = sbr.rel target = $region44
            $region43: #{tpu_custom_call.1} parent=35 // pred_region
              %s199 = ssub.s32 256, 1
              loop: start=0, step=1, limit=1
              $region45: #{tpu_custom_call.1} parent=43 // loop_pre_header
                _
              $region46: #{tpu_custom_call.1} parent=43 // loop_header
                %s201 = sphi 0, %s205
                %p202 = scmp.ge.s32.totalorder %s201, 1
                %s206 = sphi %s191, %s191
                %s207 = sphi %s189, %s189
              $region47: #{tpu_custom_call.1} parent=43 // loop_header_branch
                %204 = sbr.rel (%p202) target = $region51
              $region48: #{tpu_custom_call.1} parent=43 // loop_body
                %v208 = vld [vmem:[%s206] sm:%s199]
                %209 = vst [vmem:[%s207] sm:%s199] %v208
                %v210 = vld [vmem:[%s206 + $0x10] sm:%s199]
                %211 = vst [vmem:[%s207 + $0x8] sm:%s199] %v210
                %v212 = vld [vmem:[%s206 + $0x20] sm:%s199]
                %213 = vst [vmem:[%s207 + $0x10] sm:%s199] %v212
                %v214 = vld [vmem:[%s206 + $0x30] sm:%s199]
                %215 = vst [vmem:[%s207 + $0x18] sm:%s199] %v214
                %v216 = vld [vmem:[%s206 + $0x40] sm:%s199]
                %217 = vst [vmem:[%s207 + $0x20] sm:%s199] %v216
                %v218 = vld [vmem:[%s206 + $0x50] sm:%s199]
                %219 = vst [vmem:[%s207 + $0x28] sm:%s199] %v218
                %v220 = vld [vmem:[%s206 + $0x60] sm:%s199]
                %221 = vst [vmem:[%s207 + $0x30] sm:%s199] %v220
                %v222 = vld [vmem:[%s206 + $0x70] sm:%s199]
                %223 = vst [vmem:[%s207 + $0x38] sm:%s199] %v222
              $region49: #{tpu_custom_call.1} parent=43 // loop_footer
                %s205 = sadd.s32 1, %s201
              $region50: #{tpu_custom_call.1} parent=43 // loop_footer_branch
                %200 = sbr.rel target = $region46
              $region51: #{tpu_custom_call.1} parent=43 // loop_exit
                _
            $region44: #{tpu_custom_call.1} parent=35 // pred_fallthru
              _
          $region36: #{tpu_custom_call.1} parent=31 // pred_fallthru
            _
          %252 = vnop
        $region32: #{tpu_custom_call.1} parent=27 // pred_fallthru
          _
        // Predicated region
        $region67: #{tpu_custom_call.1} parent=27 // pred_check
          %p253 = pneg %p123
        $region68: #{tpu_custom_call.1} parent=27 // pred_check_branch
          %255 = sbr.rel (%p253) target = $region70
        $region69: #{tpu_custom_call.1} parent=27 // pred_region
          %s256 = sand.u32 %s113, 1
          %s257 = sand.u32 %s113, 1
          %s258 = smul.addr %s257, 16
          %s259 = scalar_lea.vmem [#allocation7], %s258
          %s260 = smul.addr %s14, 8
          %s261 = scalar_lea.vmem %s4, %s260
          // Predicated region
          $region71: #{tpu_custom_call.1} parent=69 // pred_check
            _
          $region72: #{tpu_custom_call.1} parent=69 // pred_check_branch
            %263 = sbr.rel (0) target = $region74
          $region73: #{tpu_custom_call.1} parent=69 // pred_region
            // Predicated region
            $region75: #{tpu_custom_call.1} parent=73 // pred_check
              _
            $region76: #{tpu_custom_call.1} parent=73 // pred_check_branch
              %265 = sbr.rel (0) target = $region78
            $region77: #{tpu_custom_call.1} parent=73 // pred_region
              // Predicated region
              $region90: #{tpu_custom_call.1} parent=77 // pred_check
                _
              $region91: #{tpu_custom_call.1} parent=77 // pred_check_branch
                %283 = sbr.rel (0) target = $region93
              $region92: #{tpu_custom_call.1} parent=77 // pred_region
                loop: start=0, step=1, limit=1
                $region94: #{tpu_custom_call.1} parent=92 // loop_pre_header
                  _
                $region95: #{tpu_custom_call.1} parent=92 // loop_header
                  %s285 = sphi 0, %s289
                  %p286 = scmp.ge.s32.totalorder %s285, 1
                  %s290 = sphi %s261, %s261
                  %s291 = sphi %s259, %s259
                $region96: #{tpu_custom_call.1} parent=92 // loop_header_branch
                  %288 = sbr.rel (%p286) target = $region100
                $region97: #{tpu_custom_call.1} parent=92 // loop_body
                  %v292 = vld [vmem:[%s290] sm:$0xff]
                  %293 = vst [vmem:[%s291] sm:$0xff] %v292
                  %v294 = vld [vmem:[%s290 + $0x10] sm:$0xff]
                  %295 = vst [vmem:[%s291 + $0x8] sm:$0xff] %v294
                $region98: #{tpu_custom_call.1} parent=92 // loop_footer
                  %s289 = sadd.s32 1, %s285
                $region99: #{tpu_custom_call.1} parent=92 // loop_footer_branch
                  %284 = sbr.rel target = $region95
                $region100: #{tpu_custom_call.1} parent=92 // loop_exit
                  _
              $region93: #{tpu_custom_call.1} parent=77 // pred_fallthru
                _
              // Predicated region
              $region101: #{tpu_custom_call.1} parent=77 // pred_check
                _
              $region102: #{tpu_custom_call.1} parent=77 // pred_check_branch
                %297 = sbr.rel target = $region104
              $region103: #{tpu_custom_call.1} parent=77 // pred_region
                _
              $region104: #{tpu_custom_call.1} parent=77 // pred_fallthru
                _
            $region78: #{tpu_custom_call.1} parent=73 // pred_fallthru
              _
            // Predicated region
            $region79: #{tpu_custom_call.1} parent=73 // pred_check
              _
            $region80: #{tpu_custom_call.1} parent=73 // pred_check_branch
              %267 = sbr.rel target = $region82
            $region81: #{tpu_custom_call.1} parent=73 // pred_region
              %s269 = ssub.s32 256, 1
              loop: start=0, step=1, limit=1
              $region83: #{tpu_custom_call.1} parent=81 // loop_pre_header
                _
              $region84: #{tpu_custom_call.1} parent=81 // loop_header
                %s271 = sphi 0, %s275
                %p272 = scmp.ge.s32.totalorder %s271, 1
                %s276 = sphi %s261, %s261
                %s277 = sphi %s259, %s259
              $region85: #{tpu_custom_call.1} parent=81 // loop_header_branch
                %274 = sbr.rel (%p272) target = $region89
              $region86: #{tpu_custom_call.1} parent=81 // loop_body
                %v278 = vld [vmem:[%s276] sm:%s269]
                %279 = vst [vmem:[%s277] sm:%s269] %v278
                %v280 = vld [vmem:[%s276 + $0x10] sm:%s269]
                %281 = vst [vmem:[%s277 + $0x8] sm:%s269] %v280
              $region87: #{tpu_custom_call.1} parent=81 // loop_footer
                %s275 = sadd.s32 1, %s271
              $region88: #{tpu_custom_call.1} parent=81 // loop_footer_branch
                %270 = sbr.rel target = $region84
              $region89: #{tpu_custom_call.1} parent=81 // loop_exit
                _
            $region82: #{tpu_custom_call.1} parent=73 // pred_fallthru
              _
          $region74: #{tpu_custom_call.1} parent=69 // pred_fallthru
            _
          %298 = vnop
        $region70: #{tpu_custom_call.1} parent=27 // pred_fallthru
          _
      $region28: #{tpu_custom_call.1} parent=5 // pred_fallthru
        _
      %p299 = scmp.le.s32.totalorder 1, %s14
      %p300 = scmp.lt.s32.totalorder %s14, 3
      %p301 = pnand %p299, %p300
      %p302 = pneg %p301
      // Predicated region
      $region105: #{tpu_custom_call.1} parent=5 // pred_check
        _
      $region106: #{tpu_custom_call.1} parent=5 // pred_check_branch
        %304 = sbr.rel (%p301) target = $region108
      $region107: #{tpu_custom_call.1} parent=5 // pred_region
        %s305 = ssub.s32 %s14, 1
        %s306 = sand.u32 %s48, 1
        %s307 = sand.u32 %s48, 1
        %s308 = smul.addr %s307, 64
        %s309 = scalar_lea.vmem [#allocation6], %s308
        // Predicated region
        $region109: #{tpu_custom_call.1} parent=107 // pred_check
          %p310 = pneg %p61
        $region110: #{tpu_custom_call.1} parent=107 // pred_check_branch
          %312 = sbr.rel (%p310) target = $region112
        $region111: #{tpu_custom_call.1} parent=107 // pred_region
          _
        $region112: #{tpu_custom_call.1} parent=107 // pred_fallthru
          _
        %s313 = sand.u32 %s116, 1
        %s314 = sand.u32 %s116, 1
        %s315 = smul.addr %s314, 16
        %s316 = scalar_lea.vmem [#allocation7], %s315
        // Predicated region
        $region113: #{tpu_custom_call.1} parent=107 // pred_check
          %p317 = pneg %p129
        $region114: #{tpu_custom_call.1} parent=107 // pred_check_branch
          %319 = sbr.rel (%p317) target = $region116
        $region115: #{tpu_custom_call.1} parent=107 // pred_region
          _
        $region116: #{tpu_custom_call.1} parent=107 // pred_fallthru
          _
        %p320 = pneg %p35
        %p321 = pneg %p32
        %s322 = sand.u32 %s48, 1
        %s323 = sand.u32 %s48, 1
        %s324 = smul.addr %s323, 64
        %s325 = scalar_lea.vmem [#allocation6], %s324
        %p326 = pneg %p61
        %p327 = pneg %p58
        %p328 = pneg %p82
        %p329 = pneg %p79
        %p330 = pneg %p103
        %p331 = pneg %p100
        %s332 = sand.u32 %s116, 1
        %s333 = sand.u32 %s116, 1
        %s334 = smul.addr %s333, 16
        %s335 = scalar_lea.vmem [#allocation7], %s334
        %p336 = pneg %p129
        %p337 = pneg %p126
        %p338 = pneg %p155
        %p339 = pneg %p152
        %s340 = sand.u32 %s142, 1
        %s341 = scalar_lea.sflag [#allocation9], %s340
        %s342 = sand.u32 %s142, 1
        %s343 = smul.addr %s342, 8
        %s344 = scalar_lea.vmem [#allocation8], %s343
        %s345 = smul.u32 %s19, 128
        %v346 = vld [vmem:[%s0] sm:$0xff]
        %v347 = vld [vmem:[%s0 + $0x8] sm:$0xff]
        %v348 = vld [vmem:[%s0 + $0x10] sm:$0xff]
        %v349 = vld [vmem:[%s0 + $0x18] sm:$0xff]
        %v350 = vld [vmem:[%s0 + $0x20] sm:$0xff]
        %v351 = vld [vmem:[%s0 + $0x28] sm:$0xff]
        %v352 = vld [vmem:[%s0 + $0x30] sm:$0xff]
        %v353 = vld [vmem:[%s0 + $0x38] sm:$0xff]
        %v354 = vld [vmem:[%s0 + $0x40] sm:$0xff]
        %v355 = vld [vmem:[%s0 + $0x48] sm:$0xff]
        %v356 = vld [vmem:[%s0 + $0x50] sm:$0xff]
        %v357 = vld [vmem:[%s0 + $0x58] sm:$0xff]
        %v358 = vld [vmem:[%s0 + $0x60] sm:$0xff]
        %v359 = vld [vmem:[%s0 + $0x68] sm:$0xff]
        %v360 = vld [vmem:[%s0 + $0x70] sm:$0xff]
        %v361 = vld [vmem:[%s0 + $0x78] sm:$0xff]
        %v362 = vld [vmem:[%s0 + $0x80] sm:$0xff]
        %v363 = vld [vmem:[%s0 + $0x88] sm:$0xff]
        %v364 = vld [vmem:[%s0 + $0x90] sm:$0xff]
        %v365 = vld [vmem:[%s0 + $0x98] sm:$0xff]
        %v366 = vld [vmem:[%s0 + $0xa0] sm:$0xff]
        %v367 = vld [vmem:[%s0 + $0xa8] sm:$0xff]
        %v368 = vld [vmem:[%s0 + $0xb0] sm:$0xff]
        %v369 = vld [vmem:[%s0 + $0xb8] sm:$0xff]
        %v370 = vld [vmem:[%s0 + $0xc0] sm:$0xff]
        %v371 = vld [vmem:[%s0 + $0xc8] sm:$0xff]
        %v372 = vld [vmem:[%s0 + $0xd0] sm:$0xff]
        %v373 = vld [vmem:[%s0 + $0xd8] sm:$0xff]
        %v374 = vld [vmem:[%s0 + $0xe0] sm:$0xff]
        %v375 = vld [vmem:[%s0 + $0xe8] sm:$0xff]
        %v376 = vld [vmem:[%s0 + $0xf0] sm:$0xff]
        %v377 = vld [vmem:[%s0 + $0xf8] sm:$0xff]
        %v378 = vld [vmem:[%s309] sm:$0xff]
        %v379 = vld [vmem:[%s309 + $0x8] sm:$0xff]
        %v380 = vld [vmem:[%s309 + $0x10] sm:$0xff]
        %v381 = vld [vmem:[%s309 + $0x18] sm:$0xff]
        %v382 = vld [vmem:[%s309 + $0x20] sm:$0xff]
        %v383 = vld [vmem:[%s309 + $0x28] sm:$0xff]
        %v384 = vld [vmem:[%s309 + $0x30] sm:$0xff]
        %v385 = vld [vmem:[%s309 + $0x38] sm:$0xff]
        %v386 = vld [vmem:[%s2] sm:$0xff]
        %v387 = vld [vmem:[%s2 + $0x8] sm:$0xff]
        %v388 = vld [vmem:[%s2 + $0x10] sm:$0xff]
        %v389 = vld [vmem:[%s2 + $0x18] sm:$0xff]
        %v390 = vld [vmem:[%s2 + $0x20] sm:$0xff]
        %v391 = vld [vmem:[%s2 + $0x28] sm:$0xff]
        %v392 = vld [vmem:[%s2 + $0x30] sm:$0xff]
        %v393 = vld [vmem:[%s2 + $0x38] sm:$0xff]
        %v394 = vld [vmem:[%s2 + $0x40] sm:$0xff]
        %v395 = vld [vmem:[%s2 + $0x48] sm:$0xff]
        %v396 = vld [vmem:[%s2 + $0x50] sm:$0xff]
        %v397 = vld [vmem:[%s2 + $0x58] sm:$0xff]
        %v398 = vld [vmem:[%s2 + $0x60] sm:$0xff]
        %v399 = vld [vmem:[%s2 + $0x68] sm:$0xff]
        %v400 = vld [vmem:[%s2 + $0x70] sm:$0xff]
        %v401 = vld [vmem:[%s2 + $0x78] sm:$0xff]
        %v402 = vld [vmem:[%s2 + $0x80] sm:$0xff]
        %v403 = vld [vmem:[%s2 + $0x88] sm:$0xff]
        %v404 = vld [vmem:[%s2 + $0x90] sm:$0xff]
        %v405 = vld [vmem:[%s2 + $0x98] sm:$0xff]
        %v406 = vld [vmem:[%s2 + $0xa0] sm:$0xff]
        %v407 = vld [vmem:[%s2 + $0xa8] sm:$0xff]
        %v408 = vld [vmem:[%s2 + $0xb0] sm:$0xff]
        %v409 = vld [vmem:[%s2 + $0xb8] sm:$0xff]
        %v410 = vld [vmem:[%s2 + $0xc0] sm:$0xff]
        %v411 = vld [vmem:[%s2 + $0xc8] sm:$0xff]
        %v412 = vld [vmem:[%s2 + $0xd0] sm:$0xff]
        %v413 = vld [vmem:[%s2 + $0xd8] sm:$0xff]
        %v414 = vld [vmem:[%s2 + $0xe0] sm:$0xff]
        %v415 = vld [vmem:[%s2 + $0xe8] sm:$0xff]
        %v416 = vld [vmem:[%s2 + $0xf0] sm:$0xff]
        %v417 = vld [vmem:[%s2 + $0xf8] sm:$0xff]
        %v418 = vld [vmem:[%s3] sm:$0xff]
        %v419 = vld [vmem:[%s3 + $0x8] sm:$0xff]
        %v420 = vld [vmem:[%s3 + $0x10] sm:$0xff]
        %v421 = vld [vmem:[%s3 + $0x18] sm:$0xff]
        %v422 = vld [vmem:[%s3 + $0x20] sm:$0xff]
        %v423 = vld [vmem:[%s3 + $0x28] sm:$0xff]
        %v424 = vld [vmem:[%s3 + $0x30] sm:$0xff]
        %v425 = vld [vmem:[%s3 + $0x38] sm:$0xff]
        %v426 = vld [vmem:[%s3 + $0x40] sm:$0xff]
        %v427 = vld [vmem:[%s3 + $0x48] sm:$0xff]
        %v428 = vld [vmem:[%s3 + $0x50] sm:$0xff]
        %v429 = vld [vmem:[%s3 + $0x58] sm:$0xff]
        %v430 = vld [vmem:[%s3 + $0x60] sm:$0xff]
        %v431 = vld [vmem:[%s3 + $0x68] sm:$0xff]
        %v432 = vld [vmem:[%s3 + $0x70] sm:$0xff]
        %v433 = vld [vmem:[%s3 + $0x78] sm:$0xff]
        %v434 = vld [vmem:[%s3 + $0x80] sm:$0xff]
        %v435 = vld [vmem:[%s3 + $0x88] sm:$0xff]
        %v436 = vld [vmem:[%s3 + $0x90] sm:$0xff]
        %v437 = vld [vmem:[%s3 + $0x98] sm:$0xff]
        %v438 = vld [vmem:[%s3 + $0xa0] sm:$0xff]
        %v439 = vld [vmem:[%s3 + $0xa8] sm:$0xff]
        %v440 = vld [vmem:[%s3 + $0xb0] sm:$0xff]
        %v441 = vld [vmem:[%s3 + $0xb8] sm:$0xff]
        %v442 = vld [vmem:[%s3 + $0xc0] sm:$0xff]
        %v443 = vld [vmem:[%s3 + $0xc8] sm:$0xff]
        %v444 = vld [vmem:[%s3 + $0xd0] sm:$0xff]
        %v445 = vld [vmem:[%s3 + $0xd8] sm:$0xff]
        %v446 = vld [vmem:[%s3 + $0xe0] sm:$0xff]
        %v447 = vld [vmem:[%s3 + $0xe8] sm:$0xff]
        %v448 = vld [vmem:[%s3 + $0xf0] sm:$0xff]
        %v449 = vld [vmem:[%s3 + $0xf8] sm:$0xff]
        %v450 = vld [vmem:[%s316] sm:$0xff]
        %v451 = vld [vmem:[%s316 + $0x8] sm:$0x1]
        %v452 = vmul.f32 %v378, %v378
        %v453 = vmul.f32 %v379, %v379
        %v454 = vmul.f32 %v380, %v380
        %v455 = vmul.f32 %v381, %v381
        %v456 = vmul.f32 %v382, %v382
        %v457 = vmul.f32 %v383, %v383
        %v458 = vmul.f32 %v384, %v384
        %v459 = vmul.f32 %v385, %v385
        %v460 = vadd.f32 %v452, %v453
        %v461 = vadd.f32 %v460, %v454
        %v462 = vadd.f32 %v461, %v455
        %v463 = vadd.f32 %v462, %v456
        %v464 = vadd.f32 %v463, %v457
        %v465 = vadd.f32 %v464, %v458
        %v466 = vadd.f32 %v465, %v459
        %v467 = vrot.slane %v466, 4
        %v468 = vadd.f32 %v466, %v467
        %v469 = vrot.slane %v468, 2
        %v470 = vadd.f32 %v468, %v469
        %v471 = vrot.slane %v470, 1
        %v472 = vadd.f32 %v470, %v471
        %vm473 = vcmask 523264
        %v475 = vsel %vm473, %v346, 0
        %v478 = vsel %vm473, %v347, 0
        %v481 = vsel %vm473, %v348, 0
        %v484 = vsel %vm473, %v349, 0
        %v487 = vsel %vm473, %v350, 0
        %v490 = vsel %vm473, %v351, 0
        %v493 = vsel %vm473, %v352, 0
        %v496 = vsel %vm473, %v353, 0
        %v499 = vsel %vm473, %v354, 0
        %v502 = vsel %vm473, %v355, 0
        %v505 = vsel %vm473, %v356, 0
        %v508 = vsel %vm473, %v357, 0
        %v511 = vsel %vm473, %v358, 0
        %v514 = vsel %vm473, %v359, 0
        %v517 = vsel %vm473, %v360, 0
        %v520 = vsel %vm473, %v361, 0
        %v523 = vsel %vm473, %v362, 0
        %v526 = vsel %vm473, %v363, 0
        %v529 = vsel %vm473, %v364, 0
        %v532 = vsel %vm473, %v365, 0
        %v535 = vsel %vm473, %v366, 0
        %v538 = vsel %vm473, %v367, 0
        %v541 = vsel %vm473, %v368, 0
        %v544 = vsel %vm473, %v369, 0
        %v547 = vsel %vm473, %v370, 0
        %v550 = vsel %vm473, %v371, 0
        %v553 = vsel %vm473, %v372, 0
        %v556 = vsel %vm473, %v373, 0
        %v559 = vsel %vm473, %v374, 0
        %v562 = vsel %vm473, %v375, 0
        %v565 = vsel %vm473, %v376, 0
        %v568 = vsel %vm473, %v377, 0
        %570 = vmatprep.subr.mxu0 0.0
        %571 = vmatpush1.msra.mxu0 0.0
        %572 = vmatprep.subr.mxu0 0.0
        %573 = vmatpush1.msra.mxu0 0.0
        %574 = vmatprep.subr.mxu0 0.0
        %575 = vmatpush1.msra.mxu0 0.0
        %576 = vmatprep.subr.mxu0 0.0
        %577 = vmatpush1.msra.mxu0 0.0
        %578 = vmatprep.subr.mxu0 0.0
        %579 = vmatpush1.msra.mxu0 0.0
        %580 = vmatprep.subr.mxu0 0.0
        %581 = vmatpush1.msra.mxu0 0.0
        %582 = vmatprep.subr.mxu0 0.0
        %583 = vmatpush1.msra.mxu0 0.0
        %584 = vmatprep.subr.mxu0 0.0
        %585 = vmatpush1.msra.mxu0 0.0
        %586 = vmatprep.subr.mxu0 0.0
        %587 = vmatpush1.msra.mxu0 %v385
        %588 = vmatprep.subr.mxu0 0.0
        %589 = vmatpush1.msra.mxu0 %v384
        %590 = vmatprep.subr.mxu0 0.0
        %591 = vmatpush1.msra.mxu0 %v383
        %592 = vmatprep.subr.mxu0 0.0
        %593 = vmatpush1.msra.mxu0 %v382
        %594 = vmatprep.subr.mxu0 0.0
        %595 = vmatpush1.msra.mxu0 %v381
        %596 = vmatprep.subr.mxu0 0.0
        %597 = vmatpush1.msra.mxu0 %v380
        %598 = vmatprep.subr.mxu0 0.0
        %599 = vmatpush1.msra.mxu0 %v379
        %600 = vmatprep.subr.mxu0 0.0
        %601 = vmatpush1.msra.mxu0 %v378
        %602 = vmatprep.subr.mxu0 0.0
        %603 = vmatpush2.msra.mxu0 0.0
        %604 = vmatprep.subr.mxu0 0.0
        %605 = vmatpush2.msra.mxu0 0.0
        %606 = vmatprep.subr.mxu0 0.0
        %607 = vmatpush2.msra.mxu0 0.0
        %608 = vmatprep.subr.mxu0 0.0
        %609 = vmatpush2.msra.mxu0 0.0
        %610 = vmatprep.subr.mxu0 0.0
        %611 = vmatpush2.msra.mxu0 0.0
        %612 = vmatprep.subr.mxu0 0.0
        %613 = vmatpush2.msra.mxu0 0.0
        %614 = vmatprep.subr.mxu0 0.0
        %615 = vmatpush2.msra.mxu0 0.0
        %616 = vmatprep.subr.mxu0 0.0
        %617 = vmatpush2.msra.mxu0 0.0
        %618 = vmatprep.subr.mxu0 0.0
        %619 = vmatpush2.msra.mxu0 0.0
        %620 = vmatprep.subr.mxu0 0.0
        %621 = vmatpush2.msra.mxu0 0.0
        %622 = vmatprep.subr.mxu0 0.0
        %623 = vmatpush2.msra.mxu0 0.0
        %624 = vmatprep.subr.mxu0 0.0
        %625 = vmatpush2.msra.mxu0 0.0
        %626 = vmatprep.subr.mxu0 0.0
        %627 = vmatpush2.msra.mxu0 0.0
        %628 = vmatprep.subr.mxu0 0.0
        %629 = vmatpush2.msra.mxu0 0.0
        %630 = vmatprep.subr.mxu0 0.0
        %631 = vmatpush2.msra.mxu0 0.0
        %632 = vmatprep.subr.mxu0 0.0
        %633 = vmatpush2.msra.mxu0 0.0
        %634 = vmatprep.mubr.f32.mxu0 0.0
        %635 = vmatmul.mubr.f32.gmra.mxu0 %v475
        %v636 = vpop.f32.mrf.mxu0
        %v637 = vadd.f32 0.0, %v636
        %v638 = vpop.f32.mrf.mxu0
        %639 = vmatprep.mubr.f32.mxu0 0.0
        %640 = vmatmul.mubr.f32.gmra.mxu0 %v478
        %v641 = vpop.f32.mrf.mxu0
        %v642 = vadd.f32 0.0, %v641
        %v643 = vpop.f32.mrf.mxu0
        %644 = vmatprep.mubr.f32.mxu0 0.0
        %645 = vmatmul.mubr.f32.gmra.mxu0 %v481
        %v646 = vpop.f32.mrf.mxu0
        %v647 = vadd.f32 0.0, %v646
        %v648 = vpop.f32.mrf.mxu0
        %649 = vmatprep.mubr.f32.mxu0 0.0
        %650 = vmatmul.mubr.f32.gmra.mxu0 %v484
        %v651 = vpop.f32.mrf.mxu0
        %v652 = vadd.f32 0.0, %v651
        %v653 = vpop.f32.mrf.mxu0
        %654 = vmatprep.mubr.f32.mxu0 0.0
        %655 = vmatmul.mubr.f32.gmra.mxu0 %v487
        %v656 = vpop.f32.mrf.mxu0
        %v657 = vadd.f32 0.0, %v656
        %v658 = vpop.f32.mrf.mxu0
        %659 = vmatprep.mubr.f32.mxu0 0.0
        %660 = vmatmul.mubr.f32.gmra.mxu0 %v490
        %v661 = vpop.f32.mrf.mxu0
        %v662 = vadd.f32 0.0, %v661
        %v663 = vpop.f32.mrf.mxu0
        %664 = vmatprep.mubr.f32.mxu0 0.0
        %665 = vmatmul.mubr.f32.gmra.mxu0 %v493
        %v666 = vpop.f32.mrf.mxu0
        %v667 = vadd.f32 0.0, %v666
        %v668 = vpop.f32.mrf.mxu0
        %669 = vmatprep.mubr.f32.mxu0 0.0
        %670 = vmatmul.mubr.f32.gmra.mxu0 %v496
        %v671 = vpop.f32.mrf.mxu0
        %v672 = vadd.f32 0.0, %v671
        %v673 = vpop.f32.mrf.mxu0
        %674 = vmatprep.mubr.f32.mxu0 0.0
        %675 = vmatmul.mubr.f32.gmra.mxu0 %v499
        %v676 = vpop.f32.mrf.mxu0
        %v677 = vadd.f32 0.0, %v676
        %v678 = vpop.f32.mrf.mxu0
        %679 = vmatprep.mubr.f32.mxu0 0.0
        %680 = vmatmul.mubr.f32.gmra.mxu0 %v502
        %v681 = vpop.f32.mrf.mxu0
        %v682 = vadd.f32 0.0, %v681
        %v683 = vpop.f32.mrf.mxu0
        %684 = vmatprep.mubr.f32.mxu0 0.0
        %685 = vmatmul.mubr.f32.gmra.mxu0 %v505
        %v686 = vpop.f32.mrf.mxu0
        %v687 = vadd.f32 0.0, %v686
        %v688 = vpop.f32.mrf.mxu0
        %689 = vmatprep.mubr.f32.mxu0 0.0
        %690 = vmatmul.mubr.f32.gmra.mxu0 %v508
        %v691 = vpop.f32.mrf.mxu0
        %v692 = vadd.f32 0.0, %v691
        %v693 = vpop.f32.mrf.mxu0
        %694 = vmatprep.mubr.f32.mxu0 0.0
        %695 = vmatmul.mubr.f32.gmra.mxu0 %v511
        %v696 = vpop.f32.mrf.mxu0
        %v697 = vadd.f32 0.0, %v696
        %v698 = vpop.f32.mrf.mxu0
        %699 = vmatprep.mubr.f32.mxu0 0.0
        %700 = vmatmul.mubr.f32.gmra.mxu0 %v514
        %v701 = vpop.f32.mrf.mxu0
        %v702 = vadd.f32 0.0, %v701
        %v703 = vpop.f32.mrf.mxu0
        %704 = vmatprep.mubr.f32.mxu0 0.0
        %705 = vmatmul.mubr.f32.gmra.mxu0 %v517
        %v706 = vpop.f32.mrf.mxu0
        %v707 = vadd.f32 0.0, %v706
        %v708 = vpop.f32.mrf.mxu0
        %709 = vmatprep.mubr.f32.mxu0 0.0
        %710 = vmatmul.mubr.f32.gmra.mxu0 %v520
        %v711 = vpop.f32.mrf.mxu0
        %v712 = vadd.f32 0.0, %v711
        %v713 = vpop.f32.mrf.mxu0
        %714 = vmatprep.mubr.f32.mxu0 0.0
        %715 = vmatmul.mubr.f32.gmra.mxu0 %v523
        %v716 = vpop.f32.mrf.mxu0
        %v717 = vadd.f32 0.0, %v716
        %v718 = vpop.f32.mrf.mxu0
        %719 = vmatprep.mubr.f32.mxu0 0.0
        %720 = vmatmul.mubr.f32.gmra.mxu0 %v526
        %v721 = vpop.f32.mrf.mxu0
        %v722 = vadd.f32 0.0, %v721
        %v723 = vpop.f32.mrf.mxu0
        %724 = vmatprep.mubr.f32.mxu0 0.0
        %725 = vmatmul.mubr.f32.gmra.mxu0 %v529
        %v726 = vpop.f32.mrf.mxu0
        %v727 = vadd.f32 0.0, %v726
        %v728 = vpop.f32.mrf.mxu0
        %729 = vmatprep.mubr.f32.mxu0 0.0
        %730 = vmatmul.mubr.f32.gmra.mxu0 %v532
        %v731 = vpop.f32.mrf.mxu0
        %v732 = vadd.f32 0.0, %v731
        %v733 = vpop.f32.mrf.mxu0
        %734 = vmatprep.mubr.f32.mxu0 0.0
        %735 = vmatmul.mubr.f32.gmra.mxu0 %v535
        %v736 = vpop.f32.mrf.mxu0
        %v737 = vadd.f32 0.0, %v736
        %v738 = vpop.f32.mrf.mxu0
        %739 = vmatprep.mubr.f32.mxu0 0.0
        %740 = vmatmul.mubr.f32.gmra.mxu0 %v538
        %v741 = vpop.f32.mrf.mxu0
        %v742 = vadd.f32 0.0, %v741
        %v743 = vpop.f32.mrf.mxu0
        %744 = vmatprep.mubr.f32.mxu0 0.0
        %745 = vmatmul.mubr.f32.gmra.mxu0 %v541
        %v746 = vpop.f32.mrf.mxu0
        %v747 = vadd.f32 0.0, %v746
        %v748 = vpop.f32.mrf.mxu0
        %749 = vmatprep.mubr.f32.mxu0 0.0
        %750 = vmatmul.mubr.f32.gmra.mxu0 %v544
        %v751 = vpop.f32.mrf.mxu0
        %v752 = vadd.f32 0.0, %v751
        %v753 = vpop.f32.mrf.mxu0
        %754 = vmatprep.mubr.f32.mxu0 0.0
        %755 = vmatmul.mubr.f32.gmra.mxu0 %v547
        %v756 = vpop.f32.mrf.mxu0
        %v757 = vadd.f32 0.0, %v756
        %v758 = vpop.f32.mrf.mxu0
        %759 = vmatprep.mubr.f32.mxu0 0.0
        %760 = vmatmul.mubr.f32.gmra.mxu0 %v550
        %v761 = vpop.f32.mrf.mxu0
        %v762 = vadd.f32 0.0, %v761
        %v763 = vpop.f32.mrf.mxu0
        %764 = vmatprep.mubr.f32.mxu0 0.0
        %765 = vmatmul.mubr.f32.gmra.mxu0 %v553
        %v766 = vpop.f32.mrf.mxu0
        %v767 = vadd.f32 0.0, %v766
        %v768 = vpop.f32.mrf.mxu0
        %769 = vmatprep.mubr.f32.mxu0 0.0
        %770 = vmatmul.mubr.f32.gmra.mxu0 %v556
        %v771 = vpop.f32.mrf.mxu0
        %v772 = vadd.f32 0.0, %v771
        %v773 = vpop.f32.mrf.mxu0
        %774 = vmatprep.mubr.f32.mxu0 0.0
        %775 = vmatmul.mubr.f32.gmra.mxu0 %v559
        %v776 = vpop.f32.mrf.mxu0
        %v777 = vadd.f32 0.0, %v776
        %v778 = vpop.f32.mrf.mxu0
        %779 = vmatprep.mubr.f32.mxu0 0.0
        %780 = vmatmul.mubr.f32.gmra.mxu0 %v562
        %v781 = vpop.f32.mrf.mxu0
        %v782 = vadd.f32 0.0, %v781
        %v783 = vpop.f32.mrf.mxu0
        %784 = vmatprep.mubr.f32.mxu0 0.0
        %785 = vmatmul.mubr.f32.gmra.mxu0 %v565
        %v786 = vpop.f32.mrf.mxu0
        %v787 = vadd.f32 0.0, %v786
        %v788 = vpop.f32.mrf.mxu0
        %789 = vmatprep.mubr.f32.mxu0 0.0
        %790 = vmatmul.mubr.f32.gmra.mxu0 %v568
        %v791 = vpop.f32.mrf.mxu0
        %v792 = vadd.f32 0.0, %v791
        %v793 = vpop.f32.mrf.mxu0
        %794 = vdwg.mxu0
        %796 = vset.pattern.permute.xlu0 0
        %797 = vperm.xlu0 %796, %v386
        %v798 = vpop.permute.xlu0 %797
        %801 = vset.pattern.permute.xlu0 0
        %802 = vperm.xlu0 %801, %v387
        %v803 = vpop.permute.xlu0 %802
        %806 = vset.pattern.permute.xlu0 0
        %807 = vperm.xlu0 %806, %v388
        %v808 = vpop.permute.xlu0 %807
        %811 = vset.pattern.permute.xlu0 0
        %812 = vperm.xlu0 %811, %v389
        %v813 = vpop.permute.xlu0 %812
        %816 = vset.pattern.permute.xlu0 0
        %817 = vperm.xlu0 %816, %v390
        %v818 = vpop.permute.xlu0 %817
        %821 = vset.pattern.permute.xlu0 0
        %822 = vperm.xlu0 %821, %v391
        %v823 = vpop.permute.xlu0 %822
        %826 = vset.pattern.permute.xlu0 0
        %827 = vperm.xlu0 %826, %v392
        %v828 = vpop.permute.xlu0 %827
        %831 = vset.pattern.permute.xlu0 0
        %832 = vperm.xlu0 %831, %v393
        %v833 = vpop.permute.xlu0 %832
        %836 = vset.pattern.permute.xlu0 0
        %837 = vperm.xlu0 %836, %v394
        %v838 = vpop.permute.xlu0 %837
        %841 = vset.pattern.permute.xlu0 0
        %842 = vperm.xlu0 %841, %v395
        %v843 = vpop.permute.xlu0 %842
        %846 = vset.pattern.permute.xlu0 0
        %847 = vperm.xlu0 %846, %v396
        %v848 = vpop.permute.xlu0 %847
        %851 = vset.pattern.permute.xlu0 0
        %852 = vperm.xlu0 %851, %v397
        %v853 = vpop.permute.xlu0 %852
        %856 = vset.pattern.permute.xlu0 0
        %857 = vperm.xlu0 %856, %v398
        %v858 = vpop.permute.xlu0 %857
        %861 = vset.pattern.permute.xlu0 0
        %862 = vperm.xlu0 %861, %v399
        %v863 = vpop.permute.xlu0 %862
        %866 = vset.pattern.permute.xlu0 0
        %867 = vperm.xlu0 %866, %v400
        %v868 = vpop.permute.xlu0 %867
        %871 = vset.pattern.permute.xlu0 0
        %872 = vperm.xlu0 %871, %v401
        %v873 = vpop.permute.xlu0 %872
        %876 = vset.pattern.permute.xlu0 0
        %877 = vperm.xlu0 %876, %v402
        %v878 = vpop.permute.xlu0 %877
        %881 = vset.pattern.permute.xlu0 0
        %882 = vperm.xlu0 %881, %v403
        %v883 = vpop.permute.xlu0 %882
        %886 = vset.pattern.permute.xlu0 0
        %887 = vperm.xlu0 %886, %v404
        %v888 = vpop.permute.xlu0 %887
        %891 = vset.pattern.permute.xlu0 0
        %892 = vperm.xlu0 %891, %v405
        %v893 = vpop.permute.xlu0 %892
        %896 = vset.pattern.permute.xlu0 0
        %897 = vperm.xlu0 %896, %v406
        %v898 = vpop.permute.xlu0 %897
        %901 = vset.pattern.permute.xlu0 0
        %902 = vperm.xlu0 %901, %v407
        %v903 = vpop.permute.xlu0 %902
        %906 = vset.pattern.permute.xlu0 0
        %907 = vperm.xlu0 %906, %v408
        %v908 = vpop.permute.xlu0 %907
        %911 = vset.pattern.permute.xlu0 0
        %912 = vperm.xlu0 %911, %v409
        %v913 = vpop.permute.xlu0 %912
        %916 = vset.pattern.permute.xlu0 0
        %917 = vperm.xlu0 %916, %v410
        %v918 = vpop.permute.xlu0 %917
        %921 = vset.pattern.permute.xlu0 0
        %922 = vperm.xlu0 %921, %v411
        %v923 = vpop.permute.xlu0 %922
        %926 = vset.pattern.permute.xlu0 0
        %927 = vperm.xlu0 %926, %v412
        %v928 = vpop.permute.xlu0 %927
        %931 = vset.pattern.permute.xlu0 0
        %932 = vperm.xlu0 %931, %v413
        %v933 = vpop.permute.xlu0 %932
        %936 = vset.pattern.permute.xlu0 0
        %937 = vperm.xlu0 %936, %v414
        %v938 = vpop.permute.xlu0 %937
        %941 = vset.pattern.permute.xlu0 0
        %942 = vperm.xlu0 %941, %v415
        %v943 = vpop.permute.xlu0 %942
        %946 = vset.pattern.permute.xlu0 0
        %947 = vperm.xlu0 %946, %v416
        %v948 = vpop.permute.xlu0 %947
        %951 = vset.pattern.permute.xlu0 0
        %952 = vperm.xlu0 %951, %v417
        %v953 = vpop.permute.xlu0 %952
        %v955 = vadd.f32 %v798, %v472
        %v956 = vadd.f32 %v803, %v472
        %v957 = vadd.f32 %v808, %v472
        %v958 = vadd.f32 %v813, %v472
        %v959 = vadd.f32 %v818, %v472
        %v960 = vadd.f32 %v823, %v472
        %v961 = vadd.f32 %v828, %v472
        %v962 = vadd.f32 %v833, %v472
        %v963 = vadd.f32 %v838, %v472
        %v964 = vadd.f32 %v843, %v472
        %v965 = vadd.f32 %v848, %v472
        %v966 = vadd.f32 %v853, %v472
        %v967 = vadd.f32 %v858, %v472
        %v968 = vadd.f32 %v863, %v472
        %v969 = vadd.f32 %v868, %v472
        %v970 = vadd.f32 %v873, %v472
        %v971 = vadd.f32 %v878, %v472
        %v972 = vadd.f32 %v883, %v472
        %v973 = vadd.f32 %v888, %v472
        %v974 = vadd.f32 %v893, %v472
        %v975 = vadd.f32 %v898, %v472
        %v976 = vadd.f32 %v903, %v472
        %v977 = vadd.f32 %v908, %v472
        %v978 = vadd.f32 %v913, %v472
        %v979 = vadd.f32 %v918, %v472
        %v980 = vadd.f32 %v923, %v472
        %v981 = vadd.f32 %v928, %v472
        %v982 = vadd.f32 %v933, %v472
        %v983 = vadd.f32 %v938, %v472
        %v984 = vadd.f32 %v943, %v472
        %v985 = vadd.f32 %v948, %v472
        %v986 = vadd.f32 %v953, %v472
        %v987 = vmul.f32 %v637, 2.0
        %v988 = vmul.f32 %v642, 2.0
        %v989 = vmul.f32 %v647, 2.0
        %v990 = vmul.f32 %v652, 2.0
        %v991 = vmul.f32 %v657, 2.0
        %v992 = vmul.f32 %v662, 2.0
        %v993 = vmul.f32 %v667, 2.0
        %v994 = vmul.f32 %v672, 2.0
        %v995 = vmul.f32 %v677, 2.0
        %v996 = vmul.f32 %v682, 2.0
        %v997 = vmul.f32 %v687, 2.0
        %v998 = vmul.f32 %v692, 2.0
        %v999 = vmul.f32 %v697, 2.0
        %v1000 = vmul.f32 %v702, 2.0
        %v1001 = vmul.f32 %v707, 2.0
        %v1002 = vmul.f32 %v712, 2.0
        %v1003 = vmul.f32 %v717, 2.0
        %v1004 = vmul.f32 %v722, 2.0
        %v1005 = vmul.f32 %v727, 2.0
        %v1006 = vmul.f32 %v732, 2.0
        %v1007 = vmul.f32 %v737, 2.0
        %v1008 = vmul.f32 %v742, 2.0
        %v1009 = vmul.f32 %v747, 2.0
        %v1010 = vmul.f32 %v752, 2.0
        %v1011 = vmul.f32 %v757, 2.0
        %v1012 = vmul.f32 %v762, 2.0
        %v1013 = vmul.f32 %v767, 2.0
        %v1014 = vmul.f32 %v772, 2.0
        %v1015 = vmul.f32 %v777, 2.0
        %v1016 = vmul.f32 %v782, 2.0
        %v1017 = vmul.f32 %v787, 2.0
        %v1018 = vmul.f32 %v792, 2.0
        %v1019 = vsub.f32 %v955, %v987
        %v1020 = vsub.f32 %v956, %v988
        %v1021 = vsub.f32 %v957, %v989
        %v1022 = vsub.f32 %v958, %v990
        %v1023 = vsub.f32 %v959, %v991
        %v1024 = vsub.f32 %v960, %v992
        %v1025 = vsub.f32 %v961, %v993
        %v1026 = vsub.f32 %v962, %v994
        %v1027 = vsub.f32 %v963, %v995
        %v1028 = vsub.f32 %v964, %v996
        %v1029 = vsub.f32 %v965, %v997
        %v1030 = vsub.f32 %v966, %v998
        %v1031 = vsub.f32 %v967, %v999
        %v1032 = vsub.f32 %v968, %v1000
        %v1033 = vsub.f32 %v969, %v1001
        %v1034 = vsub.f32 %v970, %v1002
        %v1035 = vsub.f32 %v971, %v1003
        %v1036 = vsub.f32 %v972, %v1004
        %v1037 = vsub.f32 %v973, %v1005
        %v1038 = vsub.f32 %v974, %v1006
        %v1039 = vsub.f32 %v975, %v1007
        %v1040 = vsub.f32 %v976, %v1008
        %v1041 = vsub.f32 %v977, %v1009
        %v1042 = vsub.f32 %v978, %v1010
        %v1043 = vsub.f32 %v979, %v1011
        %v1044 = vsub.f32 %v980, %v1012
        %v1045 = vsub.f32 %v981, %v1013
        %v1046 = vsub.f32 %v982, %v1014
        %v1047 = vsub.f32 %v983, %v1015
        %v1048 = vsub.f32 %v984, %v1016
        %v1049 = vsub.f32 %v985, %v1017
        %v1050 = vsub.f32 %v986, %v1018
        %v1051 = vmax.f32 %v1019, 0.0
        %v1052 = vmax.f32 %v1020, 0.0
        %v1053 = vmax.f32 %v1021, 0.0
        %v1054 = vmax.f32 %v1022, 0.0
        %v1055 = vmax.f32 %v1023, 0.0
        %v1056 = vmax.f32 %v1024, 0.0
        %v1057 = vmax.f32 %v1025, 0.0
        %v1058 = vmax.f32 %v1026, 0.0
        %v1059 = vmax.f32 %v1027, 0.0
        %v1060 = vmax.f32 %v1028, 0.0
        %v1061 = vmax.f32 %v1029, 0.0
        %v1062 = vmax.f32 %v1030, 0.0
        %v1063 = vmax.f32 %v1031, 0.0
        %v1064 = vmax.f32 %v1032, 0.0
        %v1065 = vmax.f32 %v1033, 0.0
        %v1066 = vmax.f32 %v1034, 0.0
        %v1067 = vmax.f32 %v1035, 0.0
        %v1068 = vmax.f32 %v1036, 0.0
        %v1069 = vmax.f32 %v1037, 0.0
        %v1070 = vmax.f32 %v1038, 0.0
        %v1071 = vmax.f32 %v1039, 0.0
        %v1072 = vmax.f32 %v1040, 0.0
        %v1073 = vmax.f32 %v1041, 0.0
        %v1074 = vmax.f32 %v1042, 0.0
        %v1075 = vmax.f32 %v1043, 0.0
        %v1076 = vmax.f32 %v1044, 0.0
        %v1077 = vmax.f32 %v1045, 0.0
        %v1078 = vmax.f32 %v1046, 0.0
        %v1079 = vmax.f32 %v1047, 0.0
        %v1080 = vmax.f32 %v1048, 0.0
        %v1081 = vmax.f32 %v1049, 0.0
        %v1082 = vmax.f32 %v1050, 0.0
        %v1083 = vrsqrt.pop %v1051
        %v1084 = vmul.f32 %v1051, %v1083
        %vm1085 = vcmp.eq.f32.partialorder %v1051, inf
        %v1086 = vsel %vm1085, %v1051, %v1084
        %vm1087 = vcmp.eq.f32.partialorder %v1051, 0.0
        %v1088 = vand.u32 %v1051, 2147483648
        %v1089 = vsel %vm1087, %v1088, %v1086
        %v1090 = vrsqrt.pop %v1052
        %v1091 = vmul.f32 %v1052, %v1090
        %vm1092 = vcmp.eq.f32.partialorder %v1052, inf
        %v1093 = vsel %vm1092, %v1052, %v1091
        %vm1094 = vcmp.eq.f32.partialorder %v1052, 0.0
        %v1095 = vand.u32 %v1052, 2147483648
        %v1096 = vsel %vm1094, %v1095, %v1093
        %v1097 = vrsqrt.pop %v1053
        %v1098 = vmul.f32 %v1053, %v1097
        %vm1099 = vcmp.eq.f32.partialorder %v1053, inf
        %v1100 = vsel %vm1099, %v1053, %v1098
        %vm1101 = vcmp.eq.f32.partialorder %v1053, 0.0
        %v1102 = vand.u32 %v1053, 2147483648
        %v1103 = vsel %vm1101, %v1102, %v1100
        %v1104 = vrsqrt.pop %v1054
        %v1105 = vmul.f32 %v1054, %v1104
        %vm1106 = vcmp.eq.f32.partialorder %v1054, inf
        %v1107 = vsel %vm1106, %v1054, %v1105
        %vm1108 = vcmp.eq.f32.partialorder %v1054, 0.0
        %v1109 = vand.u32 %v1054, 2147483648
        %v1110 = vsel %vm1108, %v1109, %v1107
        %v1111 = vrsqrt.pop %v1055
        %v1112 = vmul.f32 %v1055, %v1111
        %vm1113 = vcmp.eq.f32.partialorder %v1055, inf
        %v1114 = vsel %vm1113, %v1055, %v1112
        %vm1115 = vcmp.eq.f32.partialorder %v1055, 0.0
        %v1116 = vand.u32 %v1055, 2147483648
        %v1117 = vsel %vm1115, %v1116, %v1114
        %v1118 = vrsqrt.pop %v1056
        %v1119 = vmul.f32 %v1056, %v1118
        %vm1120 = vcmp.eq.f32.partialorder %v1056, inf
        %v1121 = vsel %vm1120, %v1056, %v1119
        %vm1122 = vcmp.eq.f32.partialorder %v1056, 0.0
        %v1123 = vand.u32 %v1056, 2147483648
        %v1124 = vsel %vm1122, %v1123, %v1121
        %v1125 = vrsqrt.pop %v1057
        %v1126 = vmul.f32 %v1057, %v1125
        %vm1127 = vcmp.eq.f32.partialorder %v1057, inf
        %v1128 = vsel %vm1127, %v1057, %v1126
        %vm1129 = vcmp.eq.f32.partialorder %v1057, 0.0
        %v1130 = vand.u32 %v1057, 2147483648
        %v1131 = vsel %vm1129, %v1130, %v1128
        %v1132 = vrsqrt.pop %v1058
        %v1133 = vmul.f32 %v1058, %v1132
        %vm1134 = vcmp.eq.f32.partialorder %v1058, inf
        %v1135 = vsel %vm1134, %v1058, %v1133
        %vm1136 = vcmp.eq.f32.partialorder %v1058, 0.0
        %v1137 = vand.u32 %v1058, 2147483648
        %v1138 = vsel %vm1136, %v1137, %v1135
        %v1139 = vrsqrt.pop %v1059
        %v1140 = vmul.f32 %v1059, %v1139
        %vm1141 = vcmp.eq.f32.partialorder %v1059, inf
        %v1142 = vsel %vm1141, %v1059, %v1140
        %vm1143 = vcmp.eq.f32.partialorder %v1059, 0.0
        %v1144 = vand.u32 %v1059, 2147483648
        %v1145 = vsel %vm1143, %v1144, %v1142
        %v1146 = vrsqrt.pop %v1060
        %v1147 = vmul.f32 %v1060, %v1146
        %vm1148 = vcmp.eq.f32.partialorder %v1060, inf
        %v1149 = vsel %vm1148, %v1060, %v1147
        %vm1150 = vcmp.eq.f32.partialorder %v1060, 0.0
        %v1151 = vand.u32 %v1060, 2147483648
        %v1152 = vsel %vm1150, %v1151, %v1149
        %v1153 = vrsqrt.pop %v1061
        %v1154 = vmul.f32 %v1061, %v1153
        %vm1155 = vcmp.eq.f32.partialorder %v1061, inf
        %v1156 = vsel %vm1155, %v1061, %v1154
        %vm1157 = vcmp.eq.f32.partialorder %v1061, 0.0
        %v1158 = vand.u32 %v1061, 2147483648
        %v1159 = vsel %vm1157, %v1158, %v1156
        %v1160 = vrsqrt.pop %v1062
        %v1161 = vmul.f32 %v1062, %v1160
        %vm1162 = vcmp.eq.f32.partialorder %v1062, inf
        %v1163 = vsel %vm1162, %v1062, %v1161
        %vm1164 = vcmp.eq.f32.partialorder %v1062, 0.0
        %v1165 = vand.u32 %v1062, 2147483648
        %v1166 = vsel %vm1164, %v1165, %v1163
        %v1167 = vrsqrt.pop %v1063
        %v1168 = vmul.f32 %v1063, %v1167
        %vm1169 = vcmp.eq.f32.partialorder %v1063, inf
        %v1170 = vsel %vm1169, %v1063, %v1168
        %vm1171 = vcmp.eq.f32.partialorder %v1063, 0.0
        %v1172 = vand.u32 %v1063, 2147483648
        %v1173 = vsel %vm1171, %v1172, %v1170
        %v1174 = vrsqrt.pop %v1064
        %v1175 = vmul.f32 %v1064, %v1174
        %vm1176 = vcmp.eq.f32.partialorder %v1064, inf
        %v1177 = vsel %vm1176, %v1064, %v1175
        %vm1178 = vcmp.eq.f32.partialorder %v1064, 0.0
        %v1179 = vand.u32 %v1064, 2147483648
        %v1180 = vsel %vm1178, %v1179, %v1177
        %v1181 = vrsqrt.pop %v1065
        %v1182 = vmul.f32 %v1065, %v1181
        %vm1183 = vcmp.eq.f32.partialorder %v1065, inf
        %v1184 = vsel %vm1183, %v1065, %v1182
        %vm1185 = vcmp.eq.f32.partialorder %v1065, 0.0
        %v1186 = vand.u32 %v1065, 2147483648
        %v1187 = vsel %vm1185, %v1186, %v1184
        %v1188 = vrsqrt.pop %v1066
        %v1189 = vmul.f32 %v1066, %v1188
        %vm1190 = vcmp.eq.f32.partialorder %v1066, inf
        %v1191 = vsel %vm1190, %v1066, %v1189
        %vm1192 = vcmp.eq.f32.partialorder %v1066, 0.0
        %v1193 = vand.u32 %v1066, 2147483648
        %v1194 = vsel %vm1192, %v1193, %v1191
        %v1195 = vrsqrt.pop %v1067
        %v1196 = vmul.f32 %v1067, %v1195
        %vm1197 = vcmp.eq.f32.partialorder %v1067, inf
        %v1198 = vsel %vm1197, %v1067, %v1196
        %vm1199 = vcmp.eq.f32.partialorder %v1067, 0.0
        %v1200 = vand.u32 %v1067, 2147483648
        %v1201 = vsel %vm1199, %v1200, %v1198
        %v1202 = vrsqrt.pop %v1068
        %v1203 = vmul.f32 %v1068, %v1202
        %vm1204 = vcmp.eq.f32.partialorder %v1068, inf
        %v1205 = vsel %vm1204, %v1068, %v1203
        %vm1206 = vcmp.eq.f32.partialorder %v1068, 0.0
        %v1207 = vand.u32 %v1068, 2147483648
        %v1208 = vsel %vm1206, %v1207, %v1205
        %v1209 = vrsqrt.pop %v1069
        %v1210 = vmul.f32 %v1069, %v1209
        %vm1211 = vcmp.eq.f32.partialorder %v1069, inf
        %v1212 = vsel %vm1211, %v1069, %v1210
        %vm1213 = vcmp.eq.f32.partialorder %v1069, 0.0
        %v1214 = vand.u32 %v1069, 2147483648
        %v1215 = vsel %vm1213, %v1214, %v1212
        %v1216 = vrsqrt.pop %v1070
        %v1217 = vmul.f32 %v1070, %v1216
        %vm1218 = vcmp.eq.f32.partialorder %v1070, inf
        %v1219 = vsel %vm1218, %v1070, %v1217
        %vm1220 = vcmp.eq.f32.partialorder %v1070, 0.0
        %v1221 = vand.u32 %v1070, 2147483648
        %v1222 = vsel %vm1220, %v1221, %v1219
        %v1223 = vrsqrt.pop %v1071
        %v1224 = vmul.f32 %v1071, %v1223
        %vm1225 = vcmp.eq.f32.partialorder %v1071, inf
        %v1226 = vsel %vm1225, %v1071, %v1224
        %vm1227 = vcmp.eq.f32.partialorder %v1071, 0.0
        %v1228 = vand.u32 %v1071, 2147483648
        %v1229 = vsel %vm1227, %v1228, %v1226
        %v1230 = vrsqrt.pop %v1072
        %v1231 = vmul.f32 %v1072, %v1230
        %vm1232 = vcmp.eq.f32.partialorder %v1072, inf
        %v1233 = vsel %vm1232, %v1072, %v1231
        %vm1234 = vcmp.eq.f32.partialorder %v1072, 0.0
        %v1235 = vand.u32 %v1072, 2147483648
        %v1236 = vsel %vm1234, %v1235, %v1233
        %v1237 = vrsqrt.pop %v1073
        %v1238 = vmul.f32 %v1073, %v1237
        %vm1239 = vcmp.eq.f32.partialorder %v1073, inf
        %v1240 = vsel %vm1239, %v1073, %v1238
        %vm1241 = vcmp.eq.f32.partialorder %v1073, 0.0
        %v1242 = vand.u32 %v1073, 2147483648
        %v1243 = vsel %vm1241, %v1242, %v1240
        %v1244 = vrsqrt.pop %v1074
        %v1245 = vmul.f32 %v1074, %v1244
        %vm1246 = vcmp.eq.f32.partialorder %v1074, inf
        %v1247 = vsel %vm1246, %v1074, %v1245
        %vm1248 = vcmp.eq.f32.partialorder %v1074, 0.0
        %v1249 = vand.u32 %v1074, 2147483648
        %v1250 = vsel %vm1248, %v1249, %v1247
        %v1251 = vrsqrt.pop %v1075
        %v1252 = vmul.f32 %v1075, %v1251
        %vm1253 = vcmp.eq.f32.partialorder %v1075, inf
        %v1254 = vsel %vm1253, %v1075, %v1252
        %vm1255 = vcmp.eq.f32.partialorder %v1075, 0.0
        %v1256 = vand.u32 %v1075, 2147483648
        %v1257 = vsel %vm1255, %v1256, %v1254
        %v1258 = vrsqrt.pop %v1076
        %v1259 = vmul.f32 %v1076, %v1258
        %vm1260 = vcmp.eq.f32.partialorder %v1076, inf
        %v1261 = vsel %vm1260, %v1076, %v1259
        %vm1262 = vcmp.eq.f32.partialorder %v1076, 0.0
        %v1263 = vand.u32 %v1076, 2147483648
        %v1264 = vsel %vm1262, %v1263, %v1261
        %v1265 = vrsqrt.pop %v1077
        %v1266 = vmul.f32 %v1077, %v1265
        %vm1267 = vcmp.eq.f32.partialorder %v1077, inf
        %v1268 = vsel %vm1267, %v1077, %v1266
        %vm1269 = vcmp.eq.f32.partialorder %v1077, 0.0
        %v1270 = vand.u32 %v1077, 2147483648
        %v1271 = vsel %vm1269, %v1270, %v1268
        %v1272 = vrsqrt.pop %v1078
        %v1273 = vmul.f32 %v1078, %v1272
        %vm1274 = vcmp.eq.f32.partialorder %v1078, inf
        %v1275 = vsel %vm1274, %v1078, %v1273
        %vm1276 = vcmp.eq.f32.partialorder %v1078, 0.0
        %v1277 = vand.u32 %v1078, 2147483648
        %v1278 = vsel %vm1276, %v1277, %v1275
        %v1279 = vrsqrt.pop %v1079
        %v1280 = vmul.f32 %v1079, %v1279
        %vm1281 = vcmp.eq.f32.partialorder %v1079, inf
        %v1282 = vsel %vm1281, %v1079, %v1280
        %vm1283 = vcmp.eq.f32.partialorder %v1079, 0.0
        %v1284 = vand.u32 %v1079, 2147483648
        %v1285 = vsel %vm1283, %v1284, %v1282
        %v1286 = vrsqrt.pop %v1080
        %v1287 = vmul.f32 %v1080, %v1286
        %vm1288 = vcmp.eq.f32.partialorder %v1080, inf
        %v1289 = vsel %vm1288, %v1080, %v1287
        %vm1290 = vcmp.eq.f32.partialorder %v1080, 0.0
        %v1291 = vand.u32 %v1080, 2147483648
        %v1292 = vsel %vm1290, %v1291, %v1289
        %v1293 = vrsqrt.pop %v1081
        %v1294 = vmul.f32 %v1081, %v1293
        %vm1295 = vcmp.eq.f32.partialorder %v1081, inf
        %v1296 = vsel %vm1295, %v1081, %v1294
        %vm1297 = vcmp.eq.f32.partialorder %v1081, 0.0
        %v1298 = vand.u32 %v1081, 2147483648
        %v1299 = vsel %vm1297, %v1298, %v1296
        %v1300 = vrsqrt.pop %v1082
        %v1301 = vmul.f32 %v1082, %v1300
        %vm1302 = vcmp.eq.f32.partialorder %v1082, inf
        %v1303 = vsel %vm1302, %v1082, %v1301
        %vm1304 = vcmp.eq.f32.partialorder %v1082, 0.0
        %v1305 = vand.u32 %v1082, 2147483648
        %v1306 = vsel %vm1304, %v1305, %v1303
        %v1307 = vsub.f32 0.0, %v1089
        %v1308 = vsub.f32 0.0, %v1096
        %v1309 = vsub.f32 0.0, %v1103
        %v1310 = vsub.f32 0.0, %v1110
        %v1311 = vsub.f32 0.0, %v1117
        %v1312 = vsub.f32 0.0, %v1124
        %v1313 = vsub.f32 0.0, %v1131
        %v1314 = vsub.f32 0.0, %v1138
        %v1315 = vsub.f32 0.0, %v1145
        %v1316 = vsub.f32 0.0, %v1152
        %v1317 = vsub.f32 0.0, %v1159
        %v1318 = vsub.f32 0.0, %v1166
        %v1319 = vsub.f32 0.0, %v1173
        %v1320 = vsub.f32 0.0, %v1180
        %v1321 = vsub.f32 0.0, %v1187
        %v1322 = vsub.f32 0.0, %v1194
        %v1323 = vsub.f32 0.0, %v1201
        %v1324 = vsub.f32 0.0, %v1208
        %v1325 = vsub.f32 0.0, %v1215
        %v1326 = vsub.f32 0.0, %v1222
        %v1327 = vsub.f32 0.0, %v1229
        %v1328 = vsub.f32 0.0, %v1236
        %v1329 = vsub.f32 0.0, %v1243
        %v1330 = vsub.f32 0.0, %v1250
        %v1331 = vsub.f32 0.0, %v1257
        %v1332 = vsub.f32 0.0, %v1264
        %v1333 = vsub.f32 0.0, %v1271
        %v1334 = vsub.f32 0.0, %v1278
        %v1335 = vsub.f32 0.0, %v1285
        %v1336 = vsub.f32 0.0, %v1292
        %v1337 = vsub.f32 0.0, %v1299
        %v1338 = vsub.f32 0.0, %v1306
        %v1339 = vmul.f32 %v1307, 0.5
        %v1340 = vmul.f32 %v1308, 0.5
        %v1341 = vmul.f32 %v1309, 0.5
        %v1342 = vmul.f32 %v1310, 0.5
        %v1343 = vmul.f32 %v1311, 0.5
        %v1344 = vmul.f32 %v1312, 0.5
        %v1345 = vmul.f32 %v1313, 0.5
        %v1346 = vmul.f32 %v1314, 0.5
        %v1347 = vmul.f32 %v1315, 0.5
        %v1348 = vmul.f32 %v1316, 0.5
        %v1349 = vmul.f32 %v1317, 0.5
        %v1350 = vmul.f32 %v1318, 0.5
        %v1351 = vmul.f32 %v1319, 0.5
        %v1352 = vmul.f32 %v1320, 0.5
        %v1353 = vmul.f32 %v1321, 0.5
        %v1354 = vmul.f32 %v1322, 0.5
        %v1355 = vmul.f32 %v1323, 0.5
        %v1356 = vmul.f32 %v1324, 0.5
        %v1357 = vmul.f32 %v1325, 0.5
        %v1358 = vmul.f32 %v1326, 0.5
        %v1359 = vmul.f32 %v1327, 0.5
        %v1360 = vmul.f32 %v1328, 0.5
        %v1361 = vmul.f32 %v1329, 0.5
        %v1362 = vmul.f32 %v1330, 0.5
        %v1363 = vmul.f32 %v1331, 0.5
        %v1364 = vmul.f32 %v1332, 0.5
        %v1365 = vmul.f32 %v1333, 0.5
        %v1366 = vmul.f32 %v1334, 0.5
        %v1367 = vmul.f32 %v1335, 0.5
        %v1368 = vmul.f32 %v1336, 0.5
        %v1369 = vmul.f32 %v1337, 0.5
        %v1370 = vmul.f32 %v1338, 0.5
        %v1371 = vmax.f32 %v1339, %v1343
        %v1372 = vmax.f32 %v1340, %v1344
        %v1373 = vmax.f32 %v1341, %v1345
        %v1374 = vmax.f32 %v1342, %v1346
        %v1375 = vmax.f32 %v1371, %v1347
        %v1376 = vmax.f32 %v1372, %v1348
        %v1377 = vmax.f32 %v1373, %v1349
        %v1378 = vmax.f32 %v1374, %v1350
        %v1379 = vmax.f32 %v1375, %v1351
        %v1380 = vmax.f32 %v1376, %v1352
        %v1381 = vmax.f32 %v1377, %v1353
        %v1382 = vmax.f32 %v1378, %v1354
        %v1383 = vmax.f32 %v1379, %v1355
        %v1384 = vmax.f32 %v1380, %v1356
        %v1385 = vmax.f32 %v1381, %v1357
        %v1386 = vmax.f32 %v1382, %v1358
        %v1387 = vmax.f32 %v1383, %v1359
        %v1388 = vmax.f32 %v1384, %v1360
        %v1389 = vmax.f32 %v1385, %v1361
        %v1390 = vmax.f32 %v1386, %v1362
        %v1391 = vmax.f32 %v1387, %v1363
        %v1392 = vmax.f32 %v1388, %v1364
        %v1393 = vmax.f32 %v1389, %v1365
        %v1394 = vmax.f32 %v1390, %v1366
        %v1395 = vmax.f32 %v1391, %v1367
        %v1396 = vmax.f32 %v1392, %v1368
        %v1397 = vmax.f32 %v1393, %v1369
        %v1398 = vmax.f32 %v1394, %v1370
        %v1399 = vmax.f32 %v1395, %v1396
        %v1400 = vmax.f32 %v1397, %v1398
        %v1401 = vmax.f32 %v1399, %v1400
        %v1402 = vrot.slane %v1401, 4
        %v1403 = vmax.f32 %v1401, %v1402
        %v1404 = vrot.slane %v1403, 2
        %v1405 = vmax.f32 %v1403, %v1404
        %v1406 = vrot.slane %v1405, 1
        %v1407 = vmax.f32 %v1405, %v1406
        %v1408 = vsub.f32 %v1339, %v1407
        %v1409 = vsub.f32 %v1340, %v1407
        %v1410 = vsub.f32 %v1341, %v1407
        %v1411 = vsub.f32 %v1342, %v1407
        %v1412 = vsub.f32 %v1343, %v1407
        %v1413 = vsub.f32 %v1344, %v1407
        %v1414 = vsub.f32 %v1345, %v1407
        %v1415 = vsub.f32 %v1346, %v1407
        %v1416 = vsub.f32 %v1347, %v1407
        %v1417 = vsub.f32 %v1348, %v1407
        %v1418 = vsub.f32 %v1349, %v1407
        %v1419 = vsub.f32 %v1350, %v1407
        %v1420 = vsub.f32 %v1351, %v1407
        %v1421 = vsub.f32 %v1352, %v1407
        %v1422 = vsub.f32 %v1353, %v1407
        %v1423 = vsub.f32 %v1354, %v1407
        %v1424 = vsub.f32 %v1355, %v1407
        %v1425 = vsub.f32 %v1356, %v1407
        %v1426 = vsub.f32 %v1357, %v1407
        %v1427 = vsub.f32 %v1358, %v1407
        %v1428 = vsub.f32 %v1359, %v1407
        %v1429 = vsub.f32 %v1360, %v1407
        %v1430 = vsub.f32 %v1361, %v1407
        %v1431 = vsub.f32 %v1362, %v1407
        %v1432 = vsub.f32 %v1363, %v1407
        %v1433 = vsub.f32 %v1364, %v1407
        %v1434 = vsub.f32 %v1365, %v1407
        %v1435 = vsub.f32 %v1366, %v1407
        %v1436 = vsub.f32 %v1367, %v1407
        %v1437 = vsub.f32 %v1368, %v1407
        %v1438 = vsub.f32 %v1369, %v1407
        %v1439 = vsub.f32 %v1370, %v1407
        %v1440 = vmul.f32 %v1408, 1.442695
        %v1441 = vpow.pop %v1440
        %v1442 = vmul.f32 %v1409, 1.442695
        %v1443 = vpow.pop %v1442
        %v1444 = vmul.f32 %v1410, 1.442695
        %v1445 = vpow.pop %v1444
        %v1446 = vmul.f32 %v1411, 1.442695
        %v1447 = vpow.pop %v1446
        %v1448 = vmul.f32 %v1412, 1.442695
        %v1449 = vpow.pop %v1448
        %v1450 = vmul.f32 %v1413, 1.442695
        %v1451 = vpow.pop %v1450
        %v1452 = vmul.f32 %v1414, 1.442695
        %v1453 = vpow.pop %v1452
        %v1454 = vmul.f32 %v1415, 1.442695
        %v1455 = vpow.pop %v1454
        %v1456 = vmul.f32 %v1416, 1.442695
        %v1457 = vpow.pop %v1456
        %v1458 = vmul.f32 %v1417, 1.442695
        %v1459 = vpow.pop %v1458
        %v1460 = vmul.f32 %v1418, 1.442695
        %v1461 = vpow.pop %v1460
        %v1462 = vmul.f32 %v1419, 1.442695
        %v1463 = vpow.pop %v1462
        %v1464 = vmul.f32 %v1420, 1.442695
        %v1465 = vpow.pop %v1464
        %v1466 = vmul.f32 %v1421, 1.442695
        %v1467 = vpow.pop %v1466
        %v1468 = vmul.f32 %v1422, 1.442695
        %v1469 = vpow.pop %v1468
        %v1470 = vmul.f32 %v1423, 1.442695
        %v1471 = vpow.pop %v1470
        %v1472 = vmul.f32 %v1424, 1.442695
        %v1473 = vpow.pop %v1472
        %v1474 = vmul.f32 %v1425, 1.442695
        %v1475 = vpow.pop %v1474
        %v1476 = vmul.f32 %v1426, 1.442695
        %v1477 = vpow.pop %v1476
        %v1478 = vmul.f32 %v1427, 1.442695
        %v1479 = vpow.pop %v1478
        %v1480 = vmul.f32 %v1428, 1.442695
        %v1481 = vpow.pop %v1480
        %v1482 = vmul.f32 %v1429, 1.442695
        %v1483 = vpow.pop %v1482
        %v1484 = vmul.f32 %v1430, 1.442695
        %v1485 = vpow.pop %v1484
        %v1486 = vmul.f32 %v1431, 1.442695
        %v1487 = vpow.pop %v1486
        %v1488 = vmul.f32 %v1432, 1.442695
        %v1489 = vpow.pop %v1488
        %v1490 = vmul.f32 %v1433, 1.442695
        %v1491 = vpow.pop %v1490
        %v1492 = vmul.f32 %v1434, 1.442695
        %v1493 = vpow.pop %v1492
        %v1494 = vmul.f32 %v1435, 1.442695
        %v1495 = vpow.pop %v1494
        %v1496 = vmul.f32 %v1436, 1.442695
        %v1497 = vpow.pop %v1496
        %v1498 = vmul.f32 %v1437, 1.442695
        %v1499 = vpow.pop %v1498
        %v1500 = vmul.f32 %v1438, 1.442695
        %v1501 = vpow.pop %v1500
        %v1502 = vmul.f32 %v1439, 1.442695
        %v1503 = vpow.pop %v1502
        %v1504 = vlaneseq
        %v1505 = vshrl.u32 %v1504, 7
        %v1506 = vadd.s32 %v1505, 8
        %v1507 = vadd.s32 %v1505, 16
        %v1508 = vadd.s32 %v1505, 24
        %v1509 = vadd.s32 %v1505, 32
        %v1510 = vadd.s32 %v1505, 40
        %v1511 = vadd.s32 %v1505, 48
        %v1512 = vadd.s32 %v1505, 56
        %v1513 = vadd.s32 %v1505, 64
        %v1514 = vadd.s32 %v1505, 72
        %v1515 = vadd.s32 %v1505, 80
        %v1516 = vadd.s32 %v1505, 88
        %v1517 = vadd.s32 %v1505, 96
        %v1518 = vadd.s32 %v1505, 104
        %v1519 = vadd.s32 %v1505, 112
        %v1520 = vadd.s32 %v1505, 120
        %v1521 = vadd.s32 %v1505, 128
        %v1522 = vadd.s32 %v1505, 136
        %v1523 = vadd.s32 %v1505, 144
        %v1524 = vadd.s32 %v1505, 152
        %v1525 = vadd.s32 %v1505, 160
        %v1526 = vadd.s32 %v1505, 168
        %v1527 = vadd.s32 %v1505, 176
        %v1528 = vadd.s32 %v1505, 184
        %v1529 = vadd.s32 %v1505, 192
        %v1530 = vadd.s32 %v1505, 200
        %v1531 = vadd.s32 %v1505, 208
        %v1532 = vadd.s32 %v1505, 216
        %v1533 = vadd.s32 %v1505, 224
        %v1534 = vadd.s32 %v1505, 232
        %v1535 = vadd.s32 %v1505, 240
        %v1536 = vadd.s32 %v1505, 248
        %v1537 = vlaneseq
        %v1538 = vand.u32 %v1537, 127
        %v1539 = vstv %s345
        %v1540 = vadd.s32 %v1539, %v1538
        %vm1541 = vcmp.ne.s32.totalorder %v1505, %v1540
        %vm1542 = vcmp.ne.s32.totalorder %v1506, %v1540
        %vm1543 = vcmp.ne.s32.totalorder %v1507, %v1540
        %vm1544 = vcmp.ne.s32.totalorder %v1508, %v1540
        %vm1545 = vcmp.ne.s32.totalorder %v1509, %v1540
        %vm1546 = vcmp.ne.s32.totalorder %v1510, %v1540
        %vm1547 = vcmp.ne.s32.totalorder %v1511, %v1540
        %vm1548 = vcmp.ne.s32.totalorder %v1512, %v1540
        %vm1549 = vcmp.ne.s32.totalorder %v1513, %v1540
        %vm1550 = vcmp.ne.s32.totalorder %v1514, %v1540
        %vm1551 = vcmp.ne.s32.totalorder %v1515, %v1540
        %vm1552 = vcmp.ne.s32.totalorder %v1516, %v1540
        %vm1553 = vcmp.ne.s32.totalorder %v1517, %v1540
        %vm1554 = vcmp.ne.s32.totalorder %v1518, %v1540
        %vm1555 = vcmp.ne.s32.totalorder %v1519, %v1540
        %vm1556 = vcmp.ne.s32.totalorder %v1520, %v1540
        %vm1557 = vcmp.ne.s32.totalorder %v1521, %v1540
        %vm1558 = vcmp.ne.s32.totalorder %v1522, %v1540
        %vm1559 = vcmp.ne.s32.totalorder %v1523, %v1540
        %vm1560 = vcmp.ne.s32.totalorder %v1524, %v1540
        %vm1561 = vcmp.ne.s32.totalorder %v1525, %v1540
        %vm1562 = vcmp.ne.s32.totalorder %v1526, %v1540
        %vm1563 = vcmp.ne.s32.totalorder %v1527, %v1540
        %vm1564 = vcmp.ne.s32.totalorder %v1528, %v1540
        %vm1565 = vcmp.ne.s32.totalorder %v1529, %v1540
        %vm1566 = vcmp.ne.s32.totalorder %v1530, %v1540
        %vm1567 = vcmp.ne.s32.totalorder %v1531, %v1540
        %vm1568 = vcmp.ne.s32.totalorder %v1532, %v1540
        %vm1569 = vcmp.ne.s32.totalorder %v1533, %v1540
        %vm1570 = vcmp.ne.s32.totalorder %v1534, %v1540
        %vm1571 = vcmp.ne.s32.totalorder %v1535, %v1540
        %vm1572 = vcmp.ne.s32.totalorder %v1536, %v1540
        %vm1573 = vcmp.lt.s32.totalorder %v1505, 256
        %vm1574 = vcmp.lt.s32.totalorder %v1506, 256
        %vm1575 = vcmp.lt.s32.totalorder %v1507, 256
        %vm1576 = vcmp.lt.s32.totalorder %v1508, 256
        %vm1577 = vcmp.lt.s32.totalorder %v1509, 256
        %vm1578 = vcmp.lt.s32.totalorder %v1510, 256
        %vm1579 = vcmp.lt.s32.totalorder %v1511, 256
        %vm1580 = vcmp.lt.s32.totalorder %v1512, 256
        %vm1581 = vcmp.lt.s32.totalorder %v1513, 256
        %vm1582 = vcmp.lt.s32.totalorder %v1514, 256
        %vm1583 = vcmp.lt.s32.totalorder %v1515, 256
        %vm1584 = vcmp.lt.s32.totalorder %v1516, 256
        %vm1585 = vcmp.lt.s32.totalorder %v1517, 256
        %vm1586 = vcmp.lt.s32.totalorder %v1518, 256
        %vm1587 = vcmp.lt.s32.totalorder %v1519, 256
        %vm1588 = vcmp.lt.s32.totalorder %v1520, 256
        %vm1589 = vcmp.lt.s32.totalorder %v1521, 256
        %vm1590 = vcmp.lt.s32.totalorder %v1522, 256
        %vm1591 = vcmp.lt.s32.totalorder %v1523, 256
        %vm1592 = vcmp.lt.s32.totalorder %v1524, 256
        %vm1593 = vcmp.lt.s32.totalorder %v1525, 256
        %vm1594 = vcmp.lt.s32.totalorder %v1526, 256
        %vm1595 = vcmp.lt.s32.totalorder %v1527, 256
        %vm1596 = vcmp.lt.s32.totalorder %v1528, 256
        %vm1597 = vcmp.lt.s32.totalorder %v1529, 256
        %vm1598 = vcmp.lt.s32.totalorder %v1530, 256
        %vm1599 = vcmp.lt.s32.totalorder %v1531, 256
        %vm1600 = vcmp.lt.s32.totalorder %v1532, 256
        %vm1601 = vcmp.lt.s32.totalorder %v1533, 256
        %vm1602 = vcmp.lt.s32.totalorder %v1534, 256
        %vm1603 = vcmp.lt.s32.totalorder %v1535, 256
        %vm1604 = vcmp.lt.s32.totalorder %v1536, 256
        %vm1605 = vmand %vm1541, %vm1573
        %vm1606 = vmand %vm1542, %vm1574
        %vm1607 = vmand %vm1543, %vm1575
        %vm1608 = vmand %vm1544, %vm1576
        %vm1609 = vmand %vm1545, %vm1577
        %vm1610 = vmand %vm1546, %vm1578
        %vm1611 = vmand %vm1547, %vm1579
        %vm1612 = vmand %vm1548, %vm1580
        %vm1613 = vmand %vm1549, %vm1581
        %vm1614 = vmand %vm1550, %vm1582
        %vm1615 = vmand %vm1551, %vm1583
        %vm1616 = vmand %vm1552, %vm1584
        %vm1617 = vmand %vm1553, %vm1585
        %vm1618 = vmand %vm1554, %vm1586
        %vm1619 = vmand %vm1555, %vm1587
        %vm1620 = vmand %vm1556, %vm1588
        %vm1621 = vmand %vm1557, %vm1589
        %vm1622 = vmand %vm1558, %vm1590
        %vm1623 = vmand %vm1559, %vm1591
        %vm1624 = vmand %vm1560, %vm1592
        %vm1625 = vmand %vm1561, %vm1593
        %vm1626 = vmand %vm1562, %vm1594
        %vm1627 = vmand %vm1563, %vm1595
        %vm1628 = vmand %vm1564, %vm1596
        %vm1629 = vmand %vm1565, %vm1597
        %vm1630 = vmand %vm1566, %vm1598
        %vm1631 = vmand %vm1567, %vm1599
        %vm1632 = vmand %vm1568, %vm1600
        %vm1633 = vmand %vm1569, %vm1601
        %vm1634 = vmand %vm1570, %vm1602
        %vm1635 = vmand %vm1571, %vm1603
        %vm1636 = vmand %vm1572, %vm1604
        %1637 = vst [vmem:[#allocation2] sm:$0xff] %v1408
        %1638 = vst [vmem:[#allocation2 + $0x8] sm:$0xff] %v1409
        %1639 = vst [vmem:[#allocation2 + $0x10] sm:$0xff] %v1410
        %1640 = vst [vmem:[#allocation2 + $0x18] sm:$0xff] %v1411
        %1641 = vst [vmem:[#allocation2 + $0x20] sm:$0xff] %v1412
        %1642 = vst [vmem:[#allocation2 + $0x28] sm:$0xff] %v1413
        %1643 = vst [vmem:[#allocation2 + $0x30] sm:$0xff] %v1414
        %1644 = vst [vmem:[#allocation2 + $0x38] sm:$0xff] %v1415
        %1645 = vst [vmem:[#allocation2 + $0x40] sm:$0xff] %v1416
        %1646 = vst [vmem:[#allocation2 + $0x48] sm:$0xff] %v1417
        %1647 = vst [vmem:[#allocation2 + $0x50] sm:$0xff] %v1418
        %1648 = vst [vmem:[#allocation2 + $0x58] sm:$0xff] %v1419
        %1649 = vst [vmem:[#allocation2 + $0x60] sm:$0xff] %v1420
        %1650 = vst [vmem:[#allocation2 + $0x68] sm:$0xff] %v1421
        %1651 = vst [vmem:[#allocation2 + $0x70] sm:$0xff] %v1422
        %1652 = vst [vmem:[#allocation2 + $0x78] sm:$0xff] %v1423
        %1653 = vst [vmem:[#allocation2 + $0x80] sm:$0xff] %v1424
        %1654 = vst [vmem:[#allocation2 + $0x88] sm:$0xff] %v1425
        %1655 = vst [vmem:[#allocation2 + $0x90] sm:$0xff] %v1426
        %1656 = vst [vmem:[#allocation2 + $0x98] sm:$0xff] %v1427
        %1657 = vst [vmem:[#allocation2 + $0xa0] sm:$0xff] %v1428
        %1658 = vst [vmem:[#allocation2 + $0xa8] sm:$0xff] %v1429
        %1659 = vst [vmem:[#allocation2 + $0xb0] sm:$0xff] %v1430
        %1660 = vst [vmem:[#allocation2 + $0xb8] sm:$0xff] %v1431
        %1661 = vst [vmem:[#allocation2 + $0xc0] sm:$0xff] %v1432
        %1662 = vst [vmem:[#allocation2 + $0xc8] sm:$0xff] %v1433
        %1663 = vst [vmem:[#allocation2 + $0xd0] sm:$0xff] %v1434
        %1664 = vst [vmem:[#allocation2 + $0xd8] sm:$0xff] %v1435
        %1665 = vst [vmem:[#allocation2 + $0xe0] sm:$0xff] %v1436
        %1666 = vst [vmem:[#allocation2 + $0xe8] sm:$0xff] %v1437
        %1667 = vst [vmem:[#allocation2 + $0xf0] sm:$0xff] %v1438
        %1668 = vst [vmem:[#allocation2 + $0xf8] sm:$0xff] %v1439
        %v1669 = vsel %vm1605, %v1441, 0.0
        %v1670 = vsel %vm1606, %v1443, 0.0
        %v1671 = vsel %vm1607, %v1445, 0.0
        %v1672 = vsel %vm1608, %v1447, 0.0
        %v1673 = vsel %vm1609, %v1449, 0.0
        %v1674 = vsel %vm1610, %v1451, 0.0
        %v1675 = vsel %vm1611, %v1453, 0.0
        %v1676 = vsel %vm1612, %v1455, 0.0
        %v1677 = vsel %vm1613, %v1457, 0.0
        %v1678 = vsel %vm1614, %v1459, 0.0
        %v1679 = vsel %vm1615, %v1461, 0.0
        %v1680 = vsel %vm1616, %v1463, 0.0
        %v1681 = vsel %vm1617, %v1465, 0.0
        %v1682 = vsel %vm1618, %v1467, 0.0
        %v1683 = vsel %vm1619, %v1469, 0.0
        %v1684 = vsel %vm1620, %v1471, 0.0
        %v1685 = vsel %vm1621, %v1473, 0.0
        %v1686 = vsel %vm1622, %v1475, 0.0
        %v1687 = vsel %vm1623, %v1477, 0.0
        %v1688 = vsel %vm1624, %v1479, 0.0
        %v1689 = vsel %vm1625, %v1481, 0.0
        %v1690 = vsel %vm1626, %v1483, 0.0
        %v1691 = vsel %vm1627, %v1485, 0.0
        %v1692 = vsel %vm1628, %v1487, 0.0
        %v1693 = vsel %vm1629, %v1489, 0.0
        %v1694 = vsel %vm1630, %v1491, 0.0
        %v1695 = vsel %vm1631, %v1493, 0.0
        %v1696 = vsel %vm1632, %v1495, 0.0
        %v1697 = vsel %vm1633, %v1497, 0.0
        %v1698 = vsel %vm1634, %v1499, 0.0
        %v1699 = vsel %vm1635, %v1501, 0.0
        %v1700 = vsel %vm1636, %v1503, 0.0
        %1701 = vst [vmem:[#allocation3] sm:$0xff] %v1669
        %1702 = vst [vmem:[#allocation3 + $0x8] sm:$0xff] %v1670
        %1703 = vst [vmem:[#allocation3 + $0x10] sm:$0xff] %v1671
        %1704 = vst [vmem:[#allocation3 + $0x18] sm:$0xff] %v1672
        %1705 = vst [vmem:[#allocation3 + $0x20] sm:$0xff] %v1673
        %1706 = vst [vmem:[#allocation3 + $0x28] sm:$0xff] %v1674
        %1707 = vst [vmem:[#allocation3 + $0x30] sm:$0xff] %v1675
        %1708 = vst [vmem:[#allocation3 + $0x38] sm:$0xff] %v1676
        %1709 = vst [vmem:[#allocation3 + $0x40] sm:$0xff] %v1677
        %1710 = vst [vmem:[#allocation3 + $0x48] sm:$0xff] %v1678
        %1711 = vst [vmem:[#allocation3 + $0x50] sm:$0xff] %v1679
        %1712 = vst [vmem:[#allocation3 + $0x58] sm:$0xff] %v1680
        %1713 = vst [vmem:[#allocation3 + $0x60] sm:$0xff] %v1681
        %1714 = vst [vmem:[#allocation3 + $0x68] sm:$0xff] %v1682
        %1715 = vst [vmem:[#allocation3 + $0x70] sm:$0xff] %v1683
        %1716 = vst [vmem:[#allocation3 + $0x78] sm:$0xff] %v1684
        %1717 = vst [vmem:[#allocation3 + $0x80] sm:$0xff] %v1685
        %1718 = vst [vmem:[#allocation3 + $0x88] sm:$0xff] %v1686
        %1719 = vst [vmem:[#allocation3 + $0x90] sm:$0xff] %v1687
        %1720 = vst [vmem:[#allocation3 + $0x98] sm:$0xff] %v1688
        %1721 = vst [vmem:[#allocation3 + $0xa0] sm:$0xff] %v1689
        %1722 = vst [vmem:[#allocation3 + $0xa8] sm:$0xff] %v1690
        %1723 = vst [vmem:[#allocation3 + $0xb0] sm:$0xff] %v1691
        %1724 = vst [vmem:[#allocation3 + $0xb8] sm:$0xff] %v1692
        %1725 = vst [vmem:[#allocation3 + $0xc0] sm:$0xff] %v1693
        %1726 = vst [vmem:[#allocation3 + $0xc8] sm:$0xff] %v1694
        %1727 = vst [vmem:[#allocation3 + $0xd0] sm:$0xff] %v1695
        %1728 = vst [vmem:[#allocation3 + $0xd8] sm:$0xff] %v1696
        %1729 = vst [vmem:[#allocation3 + $0xe0] sm:$0xff] %v1697
        %1730 = vst [vmem:[#allocation3 + $0xe8] sm:$0xff] %v1698
        %1731 = vst [vmem:[#allocation3 + $0xf0] sm:$0xff] %v1699
        %1732 = vst [vmem:[#allocation3 + $0xf8] sm:$0xff] %v1700
        %1734 = vset.pattern.permute.xlu0 0
        %1735 = vperm.xlu0 %1734, %v418
        %v1736 = vpop.permute.xlu0 %1735
        %1739 = vset.pattern.permute.xlu0 0
        %1740 = vperm.xlu0 %1739, %v419
        %v1741 = vpop.permute.xlu0 %1740
        %1744 = vset.pattern.permute.xlu0 0
        %1745 = vperm.xlu0 %1744, %v420
        %v1746 = vpop.permute.xlu0 %1745
        %1749 = vset.pattern.permute.xlu0 0
        %1750 = vperm.xlu0 %1749, %v421
        %v1751 = vpop.permute.xlu0 %1750
        %1754 = vset.pattern.permute.xlu0 0
        %1755 = vperm.xlu0 %1754, %v422
        %v1756 = vpop.permute.xlu0 %1755
        %1759 = vset.pattern.permute.xlu0 0
        %1760 = vperm.xlu0 %1759, %v423
        %v1761 = vpop.permute.xlu0 %1760
        %1764 = vset.pattern.permute.xlu0 0
        %1765 = vperm.xlu0 %1764, %v424
        %v1766 = vpop.permute.xlu0 %1765
        %1769 = vset.pattern.permute.xlu0 0
        %1770 = vperm.xlu0 %1769, %v425
        %v1771 = vpop.permute.xlu0 %1770
        %1774 = vset.pattern.permute.xlu0 0
        %1775 = vperm.xlu0 %1774, %v426
        %v1776 = vpop.permute.xlu0 %1775
        %1779 = vset.pattern.permute.xlu0 0
        %1780 = vperm.xlu0 %1779, %v427
        %v1781 = vpop.permute.xlu0 %1780
        %1784 = vset.pattern.permute.xlu0 0
        %1785 = vperm.xlu0 %1784, %v428
        %v1786 = vpop.permute.xlu0 %1785
        %1789 = vset.pattern.permute.xlu0 0
        %1790 = vperm.xlu0 %1789, %v429
        %v1791 = vpop.permute.xlu0 %1790
        %1794 = vset.pattern.permute.xlu0 0
        %1795 = vperm.xlu0 %1794, %v430
        %v1796 = vpop.permute.xlu0 %1795
        %1799 = vset.pattern.permute.xlu0 0
        %1800 = vperm.xlu0 %1799, %v431
        %v1801 = vpop.permute.xlu0 %1800
        %1804 = vset.pattern.permute.xlu0 0
        %1805 = vperm.xlu0 %1804, %v432
        %v1806 = vpop.permute.xlu0 %1805
        %1809 = vset.pattern.permute.xlu0 0
        %1810 = vperm.xlu0 %1809, %v433
        %v1811 = vpop.permute.xlu0 %1810
        %1814 = vset.pattern.permute.xlu0 0
        %1815 = vperm.xlu0 %1814, %v434
        %v1816 = vpop.permute.xlu0 %1815
        %1819 = vset.pattern.permute.xlu0 0
        %1820 = vperm.xlu0 %1819, %v435
        %v1821 = vpop.permute.xlu0 %1820
        %1824 = vset.pattern.permute.xlu0 0
        %1825 = vperm.xlu0 %1824, %v436
        %v1826 = vpop.permute.xlu0 %1825
        %1829 = vset.pattern.permute.xlu0 0
        %1830 = vperm.xlu0 %1829, %v437
        %v1831 = vpop.permute.xlu0 %1830
        %1834 = vset.pattern.permute.xlu0 0
        %1835 = vperm.xlu0 %1834, %v438
        %v1836 = vpop.permute.xlu0 %1835
        %1839 = vset.pattern.permute.xlu0 0
        %1840 = vperm.xlu0 %1839, %v439
        %v1841 = vpop.permute.xlu0 %1840
        %1844 = vset.pattern.permute.xlu0 0
        %1845 = vperm.xlu0 %1844, %v440
        %v1846 = vpop.permute.xlu0 %1845
        %1849 = vset.pattern.permute.xlu0 0
        %1850 = vperm.xlu0 %1849, %v441
        %v1851 = vpop.permute.xlu0 %1850
        %1854 = vset.pattern.permute.xlu0 0
        %1855 = vperm.xlu0 %1854, %v442
        %v1856 = vpop.permute.xlu0 %1855
        %1859 = vset.pattern.permute.xlu0 0
        %1860 = vperm.xlu0 %1859, %v443
        %v1861 = vpop.permute.xlu0 %1860
        %1864 = vset.pattern.permute.xlu0 0
        %1865 = vperm.xlu0 %1864, %v444
        %v1866 = vpop.permute.xlu0 %1865
        %1869 = vset.pattern.permute.xlu0 0
        %1870 = vperm.xlu0 %1869, %v445
        %v1871 = vpop.permute.xlu0 %1870
        %1874 = vset.pattern.permute.xlu0 0
        %1875 = vperm.xlu0 %1874, %v446
        %v1876 = vpop.permute.xlu0 %1875
        %1879 = vset.pattern.permute.xlu0 0
        %1880 = vperm.xlu0 %1879, %v447
        %v1881 = vpop.permute.xlu0 %1880
        %1884 = vset.pattern.permute.xlu0 0
        %1885 = vperm.xlu0 %1884, %v448
        %v1886 = vpop.permute.xlu0 %1885
        %1889 = vset.pattern.permute.xlu0 0
        %1890 = vperm.xlu0 %1889, %v449
        %v1891 = vpop.permute.xlu0 %1890
        %v1893 = vlaneseq
        %v1894 = vshrl.u32 %v1893, 7
        %v1895 = vsub.s32 0, %v1894
        %v1896 = vrot.slane %v450, %v1895
        %v1897 = vsub.f32 %v1736, %v1896
        %v1898 = vsub.f32 %v1741, %v1896
        %v1899 = vsub.f32 %v1746, %v1896
        %v1900 = vsub.f32 %v1751, %v1896
        %v1901 = vsub.f32 %v1756, %v1896
        %v1902 = vsub.f32 %v1761, %v1896
        %v1903 = vsub.f32 %v1766, %v1896
        %v1904 = vsub.f32 %v1771, %v1896
        %v1905 = vsub.f32 %v1776, %v1896
        %v1906 = vsub.f32 %v1781, %v1896
        %v1907 = vsub.f32 %v1786, %v1896
        %v1908 = vsub.f32 %v1791, %v1896
        %v1909 = vsub.f32 %v1796, %v1896
        %v1910 = vsub.f32 %v1801, %v1896
        %v1911 = vsub.f32 %v1806, %v1896
        %v1912 = vsub.f32 %v1811, %v1896
        %v1913 = vsub.f32 %v1816, %v1896
        %v1914 = vsub.f32 %v1821, %v1896
        %v1915 = vsub.f32 %v1826, %v1896
        %v1916 = vsub.f32 %v1831, %v1896
        %v1917 = vsub.f32 %v1836, %v1896
        %v1918 = vsub.f32 %v1841, %v1896
        %v1919 = vsub.f32 %v1846, %v1896
        %v1920 = vsub.f32 %v1851, %v1896
        %v1921 = vsub.f32 %v1856, %v1896
        %v1922 = vsub.f32 %v1861, %v1896
        %v1923 = vsub.f32 %v1866, %v1896
        %v1924 = vsub.f32 %v1871, %v1896
        %v1925 = vsub.f32 %v1876, %v1896
        %v1926 = vsub.f32 %v1881, %v1896
        %v1927 = vsub.f32 %v1886, %v1896
        %v1928 = vsub.f32 %v1891, %v1896
        %v1929 = vand.u32 2147483647, %v1897
        %v1930 = vand.u32 2147483647, %v1898
        %v1931 = vand.u32 2147483647, %v1899
        %v1932 = vand.u32 2147483647, %v1900
        %v1933 = vand.u32 2147483647, %v1901
        %v1934 = vand.u32 2147483647, %v1902
        %v1935 = vand.u32 2147483647, %v1903
        %v1936 = vand.u32 2147483647, %v1904
        %v1937 = vand.u32 2147483647, %v1905
        %v1938 = vand.u32 2147483647, %v1906
        %v1939 = vand.u32 2147483647, %v1907
        %v1940 = vand.u32 2147483647, %v1908
        %v1941 = vand.u32 2147483647, %v1909
        %v1942 = vand.u32 2147483647, %v1910
        %v1943 = vand.u32 2147483647, %v1911
        %v1944 = vand.u32 2147483647, %v1912
        %v1945 = vand.u32 2147483647, %v1913
        %v1946 = vand.u32 2147483647, %v1914
        %v1947 = vand.u32 2147483647, %v1915
        %v1948 = vand.u32 2147483647, %v1916
        %v1949 = vand.u32 2147483647, %v1917
        %v1950 = vand.u32 2147483647, %v1918
        %v1951 = vand.u32 2147483647, %v1919
        %v1952 = vand.u32 2147483647, %v1920
        %v1953 = vand.u32 2147483647, %v1921
        %v1954 = vand.u32 2147483647, %v1922
        %v1955 = vand.u32 2147483647, %v1923
        %v1956 = vand.u32 2147483647, %v1924
        %v1957 = vand.u32 2147483647, %v1925
        %v1958 = vand.u32 2147483647, %v1926
        %v1959 = vand.u32 2147483647, %v1927
        %v1960 = vand.u32 2147483647, %v1928
        %vm1961 = vcmp.lt.f32.partialorder %v1929, 1.0
        %vm1962 = vcmp.lt.f32.partialorder %v1930, 1.0
        %vm1963 = vcmp.lt.f32.partialorder %v1931, 1.0
        %vm1964 = vcmp.lt.f32.partialorder %v1932, 1.0
        %vm1965 = vcmp.lt.f32.partialorder %v1933, 1.0
        %vm1966 = vcmp.lt.f32.partialorder %v1934, 1.0
        %vm1967 = vcmp.lt.f32.partialorder %v1935, 1.0
        %vm1968 = vcmp.lt.f32.partialorder %v1936, 1.0
        %vm1969 = vcmp.lt.f32.partialorder %v1937, 1.0
        %vm1970 = vcmp.lt.f32.partialorder %v1938, 1.0
        %vm1971 = vcmp.lt.f32.partialorder %v1939, 1.0
        %vm1972 = vcmp.lt.f32.partialorder %v1940, 1.0
        %vm1973 = vcmp.lt.f32.partialorder %v1941, 1.0
        %vm1974 = vcmp.lt.f32.partialorder %v1942, 1.0
        %vm1975 = vcmp.lt.f32.partialorder %v1943, 1.0
        %vm1976 = vcmp.lt.f32.partialorder %v1944, 1.0
        %vm1977 = vcmp.lt.f32.partialorder %v1945, 1.0
        %vm1978 = vcmp.lt.f32.partialorder %v1946, 1.0
        %vm1979 = vcmp.lt.f32.partialorder %v1947, 1.0
        %vm1980 = vcmp.lt.f32.partialorder %v1948, 1.0
        %vm1981 = vcmp.lt.f32.partialorder %v1949, 1.0
        %vm1982 = vcmp.lt.f32.partialorder %v1950, 1.0
        %vm1983 = vcmp.lt.f32.partialorder %v1951, 1.0
        %vm1984 = vcmp.lt.f32.partialorder %v1952, 1.0
        %vm1985 = vcmp.lt.f32.partialorder %v1953, 1.0
        %vm1986 = vcmp.lt.f32.partialorder %v1954, 1.0
        %vm1987 = vcmp.lt.f32.partialorder %v1955, 1.0
        %vm1988 = vcmp.lt.f32.partialorder %v1956, 1.0
        %vm1989 = vcmp.lt.f32.partialorder %v1957, 1.0
        %vm1990 = vcmp.lt.f32.partialorder %v1958, 1.0
        %vm1991 = vcmp.lt.f32.partialorder %v1959, 1.0
        %vm1992 = vcmp.lt.f32.partialorder %v1960, 1.0
        %v1993 = vmul.f32 %v1897, 0.5
        %v1994 = vmul.f32 %v1898, 0.5
        %v1995 = vmul.f32 %v1899, 0.5
        %v1996 = vmul.f32 %v1900, 0.5
        %v1997 = vmul.f32 %v1901, 0.5
        %v1998 = vmul.f32 %v1902, 0.5
        %v1999 = vmul.f32 %v1903, 0.5
        %v2000 = vmul.f32 %v1904, 0.5
        %v2001 = vmul.f32 %v1905, 0.5
        %v2002 = vmul.f32 %v1906, 0.5
        %v2003 = vmul.f32 %v1907, 0.5
        %v2004 = vmul.f32 %v1908, 0.5
        %v2005 = vmul.f32 %v1909, 0.5
        %v2006 = vmul.f32 %v1910, 0.5
        %v2007 = vmul.f32 %v1911, 0.5
        %v2008 = vmul.f32 %v1912, 0.5
        %v2009 = vmul.f32 %v1913, 0.5
        %v2010 = vmul.f32 %v1914, 0.5
        %v2011 = vmul.f32 %v1915, 0.5
        %v2012 = vmul.f32 %v1916, 0.5
        %v2013 = vmul.f32 %v1917, 0.5
        %v2014 = vmul.f32 %v1918, 0.5
        %v2015 = vmul.f32 %v1919, 0.5
        %v2016 = vmul.f32 %v1920, 0.5
        %v2017 = vmul.f32 %v1921, 0.5
        %v2018 = vmul.f32 %v1922, 0.5
        %v2019 = vmul.f32 %v1923, 0.5
        %v2020 = vmul.f32 %v1924, 0.5
        %v2021 = vmul.f32 %v1925, 0.5
        %v2022 = vmul.f32 %v1926, 0.5
        %v2023 = vmul.f32 %v1927, 0.5
        %v2024 = vmul.f32 %v1928, 0.5
        %v2025 = vmul.f32 %v1993, %v1897
        %v2026 = vmul.f32 %v1994, %v1898
        %v2027 = vmul.f32 %v1995, %v1899
        %v2028 = vmul.f32 %v1996, %v1900
        %v2029 = vmul.f32 %v1997, %v1901
        %v2030 = vmul.f32 %v1998, %v1902
        %v2031 = vmul.f32 %v1999, %v1903
        %v2032 = vmul.f32 %v2000, %v1904
        %v2033 = vmul.f32 %v2001, %v1905
        %v2034 = vmul.f32 %v2002, %v1906
        %v2035 = vmul.f32 %v2003, %v1907
        %v2036 = vmul.f32 %v2004, %v1908
        %v2037 = vmul.f32 %v2005, %v1909
        %v2038 = vmul.f32 %v2006, %v1910
        %v2039 = vmul.f32 %v2007, %v1911
        %v2040 = vmul.f32 %v2008, %v1912
        %v2041 = vmul.f32 %v2009, %v1913
        %v2042 = vmul.f32 %v2010, %v1914
        %v2043 = vmul.f32 %v2011, %v1915
        %v2044 = vmul.f32 %v2012, %v1916
        %v2045 = vmul.f32 %v2013, %v1917
        %v2046 = vmul.f32 %v2014, %v1918
        %v2047 = vmul.f32 %v2015, %v1919
        %v2048 = vmul.f32 %v2016, %v1920
        %v2049 = vmul.f32 %v2017, %v1921
        %v2050 = vmul.f32 %v2018, %v1922
        %v2051 = vmul.f32 %v2019, %v1923
        %v2052 = vmul.f32 %v2020, %v1924
        %v2053 = vmul.f32 %v2021, %v1925
        %v2054 = vmul.f32 %v2022, %v1926
        %v2055 = vmul.f32 %v2023, %v1927
        %v2056 = vmul.f32 %v2024, %v1928
        %v2057 = vsub.f32 %v1929, 0.5
        %v2058 = vsub.f32 %v1930, 0.5
        %v2059 = vsub.f32 %v1931, 0.5
        %v2060 = vsub.f32 %v1932, 0.5
        %v2061 = vsub.f32 %v1933, 0.5
        %v2062 = vsub.f32 %v1934, 0.5
        %v2063 = vsub.f32 %v1935, 0.5
        %v2064 = vsub.f32 %v1936, 0.5
        %v2065 = vsub.f32 %v1937, 0.5
        %v2066 = vsub.f32 %v1938, 0.5
        %v2067 = vsub.f32 %v1939, 0.5
        %v2068 = vsub.f32 %v1940, 0.5
        %v2069 = vsub.f32 %v1941, 0.5
        %v2070 = vsub.f32 %v1942, 0.5
        %v2071 = vsub.f32 %v1943, 0.5
        %v2072 = vsub.f32 %v1944, 0.5
        %v2073 = vsub.f32 %v1945, 0.5
        %v2074 = vsub.f32 %v1946, 0.5
        %v2075 = vsub.f32 %v1947, 0.5
        %v2076 = vsub.f32 %v1948, 0.5
        %v2077 = vsub.f32 %v1949, 0.5
        %v2078 = vsub.f32 %v1950, 0.5
        %v2079 = vsub.f32 %v1951, 0.5
        %v2080 = vsub.f32 %v1952, 0.5
        %v2081 = vsub.f32 %v1953, 0.5
        %v2082 = vsub.f32 %v1954, 0.5
        %v2083 = vsub.f32 %v1955, 0.5
        %v2084 = vsub.f32 %v1956, 0.5
        %v2085 = vsub.f32 %v1957, 0.5
        %v2086 = vsub.f32 %v1958, 0.5
        %v2087 = vsub.f32 %v1959, 0.5
        %v2088 = vsub.f32 %v1960, 0.5
        %v2089 = vsel %vm1961, %v2025, %v2057
        %v2090 = vsel %vm1962, %v2026, %v2058
        %v2091 = vsel %vm1963, %v2027, %v2059
        %v2092 = vsel %vm1964, %v2028, %v2060
        %v2093 = vsel %vm1965, %v2029, %v2061
        %v2094 = vsel %vm1966, %v2030, %v2062
        %v2095 = vsel %vm1967, %v2031, %v2063
        %v2096 = vsel %vm1968, %v2032, %v2064
        %v2097 = vsel %vm1969, %v2033, %v2065
        %v2098 = vsel %vm1970, %v2034, %v2066
        %v2099 = vsel %vm1971, %v2035, %v2067
        %v2100 = vsel %vm1972, %v2036, %v2068
        %v2101 = vsel %vm1973, %v2037, %v2069
        %v2102 = vsel %vm1974, %v2038, %v2070
        %v2103 = vsel %vm1975, %v2039, %v2071
        %v2104 = vsel %vm1976, %v2040, %v2072
        %v2105 = vsel %vm1977, %v2041, %v2073
        %v2106 = vsel %vm1978, %v2042, %v2074
        %v2107 = vsel %vm1979, %v2043, %v2075
        %v2108 = vsel %vm1980, %v2044, %v2076
        %v2109 = vsel %vm1981, %v2045, %v2077
        %v2110 = vsel %vm1982, %v2046, %v2078
        %v2111 = vsel %vm1983, %v2047, %v2079
        %v2112 = vsel %vm1984, %v2048, %v2080
        %v2113 = vsel %vm1985, %v2049, %v2081
        %v2114 = vsel %vm1986, %v2050, %v2082
        %v2115 = vsel %vm1987, %v2051, %v2083
        %v2116 = vsel %vm1988, %v2052, %v2084
        %v2117 = vsel %vm1989, %v2053, %v2085
        %v2118 = vsel %vm1990, %v2054, %v2086
        %v2119 = vsel %vm1991, %v2055, %v2087
        %v2120 = vsel %vm1992, %v2056, %v2088
        %v2121 = vadd.f32 %v2089, 0.0
        %v2122 = vadd.f32 %v2090, 0.0
        %v2123 = vadd.f32 %v2091, 0.0
        %v2124 = vadd.f32 %v2092, 0.0
        %v2125 = vadd.f32 %v2093, 0.0
        %v2126 = vadd.f32 %v2094, 0.0
        %v2127 = vadd.f32 %v2095, 0.0
        %v2128 = vadd.f32 %v2096, 0.0
        %v2129 = vadd.f32 %v2097, 0.0
        %v2130 = vadd.f32 %v2098, 0.0
        %v2131 = vadd.f32 %v2099, 0.0
        %v2132 = vadd.f32 %v2100, 0.0
        %v2133 = vadd.f32 %v2101, 0.0
        %v2134 = vadd.f32 %v2102, 0.0
        %v2135 = vadd.f32 %v2103, 0.0
        %v2136 = vadd.f32 %v2104, 0.0
        %v2137 = vadd.f32 %v2105, 0.0
        %v2138 = vadd.f32 %v2106, 0.0
        %v2139 = vadd.f32 %v2107, 0.0
        %v2140 = vadd.f32 %v2108, 0.0
        %v2141 = vadd.f32 %v2109, 0.0
        %v2142 = vadd.f32 %v2110, 0.0
        %v2143 = vadd.f32 %v2111, 0.0
        %v2144 = vadd.f32 %v2112, 0.0
        %v2145 = vadd.f32 %v2113, 0.0
        %v2146 = vadd.f32 %v2114, 0.0
        %v2147 = vadd.f32 %v2115, 0.0
        %v2148 = vadd.f32 %v2116, 0.0
        %v2149 = vadd.f32 %v2117, 0.0
        %v2150 = vadd.f32 %v2118, 0.0
        %v2151 = vadd.f32 %v2119, 0.0
        %v2152 = vadd.f32 %v2120, 0.0
        %2153 = vset.pattern.permute.xlu0 1
        %2154 = vperm.xlu0 %2153, %v418
        %v2155 = vpop.permute.xlu0 %2154
        %2157 = vset.pattern.permute.xlu0 1
        %2158 = vperm.xlu0 %2157, %v419
        %v2159 = vpop.permute.xlu0 %2158
        %2161 = vset.pattern.permute.xlu0 1
        %2162 = vperm.xlu0 %2161, %v420
        %v2163 = vpop.permute.xlu0 %2162
        %2165 = vset.pattern.permute.xlu0 1
        %2166 = vperm.xlu0 %2165, %v421
        %v2167 = vpop.permute.xlu0 %2166
        %2169 = vset.pattern.permute.xlu0 1
        %2170 = vperm.xlu0 %2169, %v422
        %v2171 = vpop.permute.xlu0 %2170
        %2173 = vset.pattern.permute.xlu0 1
        %2174 = vperm.xlu0 %2173, %v423
        %v2175 = vpop.permute.xlu0 %2174
        %2177 = vset.pattern.permute.xlu0 1
        %2178 = vperm.xlu0 %2177, %v424
        %v2179 = vpop.permute.xlu0 %2178
        %2181 = vset.pattern.permute.xlu0 1
        %2182 = vperm.xlu0 %2181, %v425
        %v2183 = vpop.permute.xlu0 %2182
        %2185 = vset.pattern.permute.xlu0 1
        %2186 = vperm.xlu0 %2185, %v426
        %v2187 = vpop.permute.xlu0 %2186
        %2189 = vset.pattern.permute.xlu0 1
        %2190 = vperm.xlu0 %2189, %v427
        %v2191 = vpop.permute.xlu0 %2190
        %2193 = vset.pattern.permute.xlu0 1
        %2194 = vperm.xlu0 %2193, %v428
        %v2195 = vpop.permute.xlu0 %2194
        %2197 = vset.pattern.permute.xlu0 1
        %2198 = vperm.xlu0 %2197, %v429
        %v2199 = vpop.permute.xlu0 %2198
        %2201 = vset.pattern.permute.xlu0 1
        %2202 = vperm.xlu0 %2201, %v430
        %v2203 = vpop.permute.xlu0 %2202
        %2205 = vset.pattern.permute.xlu0 1
        %2206 = vperm.xlu0 %2205, %v431
        %v2207 = vpop.permute.xlu0 %2206
        %2209 = vset.pattern.permute.xlu0 1
        %2210 = vperm.xlu0 %2209, %v432
        %v2211 = vpop.permute.xlu0 %2210
        %2213 = vset.pattern.permute.xlu0 1
        %2214 = vperm.xlu0 %2213, %v433
        %v2215 = vpop.permute.xlu0 %2214
        %2217 = vset.pattern.permute.xlu0 1
        %2218 = vperm.xlu0 %2217, %v434
        %v2219 = vpop.permute.xlu0 %2218
        %2221 = vset.pattern.permute.xlu0 1
        %2222 = vperm.xlu0 %2221, %v435
        %v2223 = vpop.permute.xlu0 %2222
        %2225 = vset.pattern.permute.xlu0 1
        %2226 = vperm.xlu0 %2225, %v436
        %v2227 = vpop.permute.xlu0 %2226
        %2229 = vset.pattern.permute.xlu0 1
        %2230 = vperm.xlu0 %2229, %v437
        %v2231 = vpop.permute.xlu0 %2230
        %2233 = vset.pattern.permute.xlu0 1
        %2234 = vperm.xlu0 %2233, %v438
        %v2235 = vpop.permute.xlu0 %2234
        %2237 = vset.pattern.permute.xlu0 1
        %2238 = vperm.xlu0 %2237, %v439
        %v2239 = vpop.permute.xlu0 %2238
        %2241 = vset.pattern.permute.xlu0 1
        %2242 = vperm.xlu0 %2241, %v440
        %v2243 = vpop.permute.xlu0 %2242
        %2245 = vset.pattern.permute.xlu0 1
        %2246 = vperm.xlu0 %2245, %v441
        %v2247 = vpop.permute.xlu0 %2246
        %2249 = vset.pattern.permute.xlu0 1
        %2250 = vperm.xlu0 %2249, %v442
        %v2251 = vpop.permute.xlu0 %2250
        %2253 = vset.pattern.permute.xlu0 1
        %2254 = vperm.xlu0 %2253, %v443
        %v2255 = vpop.permute.xlu0 %2254
        %2257 = vset.pattern.permute.xlu0 1
        %2258 = vperm.xlu0 %2257, %v444
        %v2259 = vpop.permute.xlu0 %2258
        %2261 = vset.pattern.permute.xlu0 1
        %2262 = vperm.xlu0 %2261, %v445
        %v2263 = vpop.permute.xlu0 %2262
        %2265 = vset.pattern.permute.xlu0 1
        %2266 = vperm.xlu0 %2265, %v446
        %v2267 = vpop.permute.xlu0 %2266
        %2269 = vset.pattern.permute.xlu0 1
        %2270 = vperm.xlu0 %2269, %v447
        %v2271 = vpop.permute.xlu0 %2270
        %2273 = vset.pattern.permute.xlu0 1
        %2274 = vperm.xlu0 %2273, %v448
        %v2275 = vpop.permute.xlu0 %2274
        %2277 = vset.pattern.permute.xlu0 1
        %2278 = vperm.xlu0 %2277, %v449
        %v2279 = vpop.permute.xlu0 %2278
        %v2281 = vlaneseq
        %v2282 = vshrl.u32 %v2281, 7
        %v2283 = vsub.s32 1, %v2282
        %v2284 = vrot.slane %v450, %v2283
        %v2285 = vsub.f32 %v2155, %v2284
        %v2286 = vsub.f32 %v2159, %v2284
        %v2287 = vsub.f32 %v2163, %v2284
        %v2288 = vsub.f32 %v2167, %v2284
        %v2289 = vsub.f32 %v2171, %v2284
        %v2290 = vsub.f32 %v2175, %v2284
        %v2291 = vsub.f32 %v2179, %v2284
        %v2292 = vsub.f32 %v2183, %v2284
        %v2293 = vsub.f32 %v2187, %v2284
        %v2294 = vsub.f32 %v2191, %v2284
        %v2295 = vsub.f32 %v2195, %v2284
        %v2296 = vsub.f32 %v2199, %v2284
        %v2297 = vsub.f32 %v2203, %v2284
        %v2298 = vsub.f32 %v2207, %v2284
        %v2299 = vsub.f32 %v2211, %v2284
        %v2300 = vsub.f32 %v2215, %v2284
        %v2301 = vsub.f32 %v2219, %v2284
        %v2302 = vsub.f32 %v2223, %v2284
        %v2303 = vsub.f32 %v2227, %v2284
        %v2304 = vsub.f32 %v2231, %v2284
        %v2305 = vsub.f32 %v2235, %v2284
        %v2306 = vsub.f32 %v2239, %v2284
        %v2307 = vsub.f32 %v2243, %v2284
        %v2308 = vsub.f32 %v2247, %v2284
        %v2309 = vsub.f32 %v2251, %v2284
        %v2310 = vsub.f32 %v2255, %v2284
        %v2311 = vsub.f32 %v2259, %v2284
        %v2312 = vsub.f32 %v2263, %v2284
        %v2313 = vsub.f32 %v2267, %v2284
        %v2314 = vsub.f32 %v2271, %v2284
        %v2315 = vsub.f32 %v2275, %v2284
        %v2316 = vsub.f32 %v2279, %v2284
        %v2317 = vand.u32 2147483647, %v2285
        %v2318 = vand.u32 2147483647, %v2286
        %v2319 = vand.u32 2147483647, %v2287
        %v2320 = vand.u32 2147483647, %v2288
        %v2321 = vand.u32 2147483647, %v2289
        %v2322 = vand.u32 2147483647, %v2290
        %v2323 = vand.u32 2147483647, %v2291
        %v2324 = vand.u32 2147483647, %v2292
        %v2325 = vand.u32 2147483647, %v2293
        %v2326 = vand.u32 2147483647, %v2294
        %v2327 = vand.u32 2147483647, %v2295
        %v2328 = vand.u32 2147483647, %v2296
        %v2329 = vand.u32 2147483647, %v2297
        %v2330 = vand.u32 2147483647, %v2298
        %v2331 = vand.u32 2147483647, %v2299
        %v2332 = vand.u32 2147483647, %v2300
        %v2333 = vand.u32 2147483647, %v2301
        %v2334 = vand.u32 2147483647, %v2302
        %v2335 = vand.u32 2147483647, %v2303
        %v2336 = vand.u32 2147483647, %v2304
        %v2337 = vand.u32 2147483647, %v2305
        %v2338 = vand.u32 2147483647, %v2306
        %v2339 = vand.u32 2147483647, %v2307
        %v2340 = vand.u32 2147483647, %v2308
        %v2341 = vand.u32 2147483647, %v2309
        %v2342 = vand.u32 2147483647, %v2310
        %v2343 = vand.u32 2147483647, %v2311
        %v2344 = vand.u32 2147483647, %v2312
        %v2345 = vand.u32 2147483647, %v2313
        %v2346 = vand.u32 2147483647, %v2314
        %v2347 = vand.u32 2147483647, %v2315
        %v2348 = vand.u32 2147483647, %v2316
        %vm2349 = vcmp.lt.f32.partialorder %v2317, 1.0
        %vm2350 = vcmp.lt.f32.partialorder %v2318, 1.0
        %vm2351 = vcmp.lt.f32.partialorder %v2319, 1.0
        %vm2352 = vcmp.lt.f32.partialorder %v2320, 1.0
        %vm2353 = vcmp.lt.f32.partialorder %v2321, 1.0
        %vm2354 = vcmp.lt.f32.partialorder %v2322, 1.0
        %vm2355 = vcmp.lt.f32.partialorder %v2323, 1.0
        %vm2356 = vcmp.lt.f32.partialorder %v2324, 1.0
        %vm2357 = vcmp.lt.f32.partialorder %v2325, 1.0
        %vm2358 = vcmp.lt.f32.partialorder %v2326, 1.0
        %vm2359 = vcmp.lt.f32.partialorder %v2327, 1.0
        %vm2360 = vcmp.lt.f32.partialorder %v2328, 1.0
        %vm2361 = vcmp.lt.f32.partialorder %v2329, 1.0
        %vm2362 = vcmp.lt.f32.partialorder %v2330, 1.0
        %vm2363 = vcmp.lt.f32.partialorder %v2331, 1.0
        %vm2364 = vcmp.lt.f32.partialorder %v2332, 1.0
        %vm2365 = vcmp.lt.f32.partialorder %v2333, 1.0
        %vm2366 = vcmp.lt.f32.partialorder %v2334, 1.0
        %vm2367 = vcmp.lt.f32.partialorder %v2335, 1.0
        %vm2368 = vcmp.lt.f32.partialorder %v2336, 1.0
        %vm2369 = vcmp.lt.f32.partialorder %v2337, 1.0
        %vm2370 = vcmp.lt.f32.partialorder %v2338, 1.0
        %vm2371 = vcmp.lt.f32.partialorder %v2339, 1.0
        %vm2372 = vcmp.lt.f32.partialorder %v2340, 1.0
        %vm2373 = vcmp.lt.f32.partialorder %v2341, 1.0
        %vm2374 = vcmp.lt.f32.partialorder %v2342, 1.0
        %vm2375 = vcmp.lt.f32.partialorder %v2343, 1.0
        %vm2376 = vcmp.lt.f32.partialorder %v2344, 1.0
        %vm2377 = vcmp.lt.f32.partialorder %v2345, 1.0
        %vm2378 = vcmp.lt.f32.partialorder %v2346, 1.0
        %vm2379 = vcmp.lt.f32.partialorder %v2347, 1.0
        %vm2380 = vcmp.lt.f32.partialorder %v2348, 1.0
        %v2381 = vmul.f32 %v2285, 0.5
        %v2382 = vmul.f32 %v2286, 0.5
        %v2383 = vmul.f32 %v2287, 0.5
        %v2384 = vmul.f32 %v2288, 0.5
        %v2385 = vmul.f32 %v2289, 0.5
        %v2386 = vmul.f32 %v2290, 0.5
        %v2387 = vmul.f32 %v2291, 0.5
        %v2388 = vmul.f32 %v2292, 0.5
        %v2389 = vmul.f32 %v2293, 0.5
        %v2390 = vmul.f32 %v2294, 0.5
        %v2391 = vmul.f32 %v2295, 0.5
        %v2392 = vmul.f32 %v2296, 0.5
        %v2393 = vmul.f32 %v2297, 0.5
        %v2394 = vmul.f32 %v2298, 0.5
        %v2395 = vmul.f32 %v2299, 0.5
        %v2396 = vmul.f32 %v2300, 0.5
        %v2397 = vmul.f32 %v2301, 0.5
        %v2398 = vmul.f32 %v2302, 0.5
        %v2399 = vmul.f32 %v2303, 0.5
        %v2400 = vmul.f32 %v2304, 0.5
        %v2401 = vmul.f32 %v2305, 0.5
        %v2402 = vmul.f32 %v2306, 0.5
        %v2403 = vmul.f32 %v2307, 0.5
        %v2404 = vmul.f32 %v2308, 0.5
        %v2405 = vmul.f32 %v2309, 0.5
        %v2406 = vmul.f32 %v2310, 0.5
        %v2407 = vmul.f32 %v2311, 0.5
        %v2408 = vmul.f32 %v2312, 0.5
        %v2409 = vmul.f32 %v2313, 0.5
        %v2410 = vmul.f32 %v2314, 0.5
        %v2411 = vmul.f32 %v2315, 0.5
        %v2412 = vmul.f32 %v2316, 0.5
        %v2413 = vmul.f32 %v2381, %v2285
        %v2414 = vmul.f32 %v2382, %v2286
        %v2415 = vmul.f32 %v2383, %v2287
        %v2416 = vmul.f32 %v2384, %v2288
        %v2417 = vmul.f32 %v2385, %v2289
        %v2418 = vmul.f32 %v2386, %v2290
        %v2419 = vmul.f32 %v2387, %v2291
        %v2420 = vmul.f32 %v2388, %v2292
        %v2421 = vmul.f32 %v2389, %v2293
        %v2422 = vmul.f32 %v2390, %v2294
        %v2423 = vmul.f32 %v2391, %v2295
        %v2424 = vmul.f32 %v2392, %v2296
        %v2425 = vmul.f32 %v2393, %v2297
        %v2426 = vmul.f32 %v2394, %v2298
        %v2427 = vmul.f32 %v2395, %v2299
        %v2428 = vmul.f32 %v2396, %v2300
        %v2429 = vmul.f32 %v2397, %v2301
        %v2430 = vmul.f32 %v2398, %v2302
        %v2431 = vmul.f32 %v2399, %v2303
        %v2432 = vmul.f32 %v2400, %v2304
        %v2433 = vmul.f32 %v2401, %v2305
        %v2434 = vmul.f32 %v2402, %v2306
        %v2435 = vmul.f32 %v2403, %v2307
        %v2436 = vmul.f32 %v2404, %v2308
        %v2437 = vmul.f32 %v2405, %v2309
        %v2438 = vmul.f32 %v2406, %v2310
        %v2439 = vmul.f32 %v2407, %v2311
        %v2440 = vmul.f32 %v2408, %v2312
        %v2441 = vmul.f32 %v2409, %v2313
        %v2442 = vmul.f32 %v2410, %v2314
        %v2443 = vmul.f32 %v2411, %v2315
        %v2444 = vmul.f32 %v2412, %v2316
        %v2445 = vsub.f32 %v2317, 0.5
        %v2446 = vsub.f32 %v2318, 0.5
        %v2447 = vsub.f32 %v2319, 0.5
        %v2448 = vsub.f32 %v2320, 0.5
        %v2449 = vsub.f32 %v2321, 0.5
        %v2450 = vsub.f32 %v2322, 0.5
        %v2451 = vsub.f32 %v2323, 0.5
        %v2452 = vsub.f32 %v2324, 0.5
        %v2453 = vsub.f32 %v2325, 0.5
        %v2454 = vsub.f32 %v2326, 0.5
        %v2455 = vsub.f32 %v2327, 0.5
        %v2456 = vsub.f32 %v2328, 0.5
        %v2457 = vsub.f32 %v2329, 0.5
        %v2458 = vsub.f32 %v2330, 0.5
        %v2459 = vsub.f32 %v2331, 0.5
        %v2460 = vsub.f32 %v2332, 0.5
        %v2461 = vsub.f32 %v2333, 0.5
        %v2462 = vsub.f32 %v2334, 0.5
        %v2463 = vsub.f32 %v2335, 0.5
        %v2464 = vsub.f32 %v2336, 0.5
        %v2465 = vsub.f32 %v2337, 0.5
        %v2466 = vsub.f32 %v2338, 0.5
        %v2467 = vsub.f32 %v2339, 0.5
        %v2468 = vsub.f32 %v2340, 0.5
        %v2469 = vsub.f32 %v2341, 0.5
        %v2470 = vsub.f32 %v2342, 0.5
        %v2471 = vsub.f32 %v2343, 0.5
        %v2472 = vsub.f32 %v2344, 0.5
        %v2473 = vsub.f32 %v2345, 0.5
        %v2474 = vsub.f32 %v2346, 0.5
        %v2475 = vsub.f32 %v2347, 0.5
        %v2476 = vsub.f32 %v2348, 0.5
        %v2477 = vsel %vm2349, %v2413, %v2445
        %v2478 = vsel %vm2350, %v2414, %v2446
        %v2479 = vsel %vm2351, %v2415, %v2447
        %v2480 = vsel %vm2352, %v2416, %v2448
        %v2481 = vsel %vm2353, %v2417, %v2449
        %v2482 = vsel %vm2354, %v2418, %v2450
        %v2483 = vsel %vm2355, %v2419, %v2451
        %v2484 = vsel %vm2356, %v2420, %v2452
        %v2485 = vsel %vm2357, %v2421, %v2453
        %v2486 = vsel %vm2358, %v2422, %v2454
        %v2487 = vsel %vm2359, %v2423, %v2455
        %v2488 = vsel %vm2360, %v2424, %v2456
        %v2489 = vsel %vm2361, %v2425, %v2457
        %v2490 = vsel %vm2362, %v2426, %v2458
        %v2491 = vsel %vm2363, %v2427, %v2459
        %v2492 = vsel %vm2364, %v2428, %v2460
        %v2493 = vsel %vm2365, %v2429, %v2461
        %v2494 = vsel %vm2366, %v2430, %v2462
        %v2495 = vsel %vm2367, %v2431, %v2463
        %v2496 = vsel %vm2368, %v2432, %v2464
        %v2497 = vsel %vm2369, %v2433, %v2465
        %v2498 = vsel %vm2370, %v2434, %v2466
        %v2499 = vsel %vm2371, %v2435, %v2467
        %v2500 = vsel %vm2372, %v2436, %v2468
        %v2501 = vsel %vm2373, %v2437, %v2469
        %v2502 = vsel %vm2374, %v2438, %v2470
        %v2503 = vsel %vm2375, %v2439, %v2471
        %v2504 = vsel %vm2376, %v2440, %v2472
        %v2505 = vsel %vm2377, %v2441, %v2473
        %v2506 = vsel %vm2378, %v2442, %v2474
        %v2507 = vsel %vm2379, %v2443, %v2475
        %v2508 = vsel %vm2380, %v2444, %v2476
        %v2509 = vadd.f32 %v2121, %v2477
        %v2510 = vadd.f32 %v2122, %v2478
        %v2511 = vadd.f32 %v2123, %v2479
        %v2512 = vadd.f32 %v2124, %v2480
        %v2513 = vadd.f32 %v2125, %v2481
        %v2514 = vadd.f32 %v2126, %v2482
        %v2515 = vadd.f32 %v2127, %v2483
        %v2516 = vadd.f32 %v2128, %v2484
        %v2517 = vadd.f32 %v2129, %v2485
        %v2518 = vadd.f32 %v2130, %v2486
        %v2519 = vadd.f32 %v2131, %v2487
        %v2520 = vadd.f32 %v2132, %v2488
        %v2521 = vadd.f32 %v2133, %v2489
        %v2522 = vadd.f32 %v2134, %v2490
        %v2523 = vadd.f32 %v2135, %v2491
        %v2524 = vadd.f32 %v2136, %v2492
        %v2525 = vadd.f32 %v2137, %v2493
        %v2526 = vadd.f32 %v2138, %v2494
        %v2527 = vadd.f32 %v2139, %v2495
        %v2528 = vadd.f32 %v2140, %v2496
        %v2529 = vadd.f32 %v2141, %v2497
        %v2530 = vadd.f32 %v2142, %v2498
        %v2531 = vadd.f32 %v2143, %v2499
        %v2532 = vadd.f32 %v2144, %v2500
        %v2533 = vadd.f32 %v2145, %v2501
        %v2534 = vadd.f32 %v2146, %v2502
        %v2535 = vadd.f32 %v2147, %v2503
        %v2536 = vadd.f32 %v2148, %v2504
        %v2537 = vadd.f32 %v2149, %v2505
        %v2538 = vadd.f32 %v2150, %v2506
        %v2539 = vadd.f32 %v2151, %v2507
        %v2540 = vadd.f32 %v2152, %v2508
        %2541 = vset.pattern.permute.xlu0 2
        %2542 = vperm.xlu0 %2541, %v418
        %v2543 = vpop.permute.xlu0 %2542
        %2545 = vset.pattern.permute.xlu0 2
        %2546 = vperm.xlu0 %2545, %v419
        %v2547 = vpop.permute.xlu0 %2546
        %2549 = vset.pattern.permute.xlu0 2
        %2550 = vperm.xlu0 %2549, %v420
        %v2551 = vpop.permute.xlu0 %2550
        %2553 = vset.pattern.permute.xlu0 2
        %2554 = vperm.xlu0 %2553, %v421
        %v2555 = vpop.permute.xlu0 %2554
        %2557 = vset.pattern.permute.xlu0 2
        %2558 = vperm.xlu0 %2557, %v422
        %v2559 = vpop.permute.xlu0 %2558
        %2561 = vset.pattern.permute.xlu0 2
        %2562 = vperm.xlu0 %2561, %v423
        %v2563 = vpop.permute.xlu0 %2562
        %2565 = vset.pattern.permute.xlu0 2
        %2566 = vperm.xlu0 %2565, %v424
        %v2567 = vpop.permute.xlu0 %2566
        %2569 = vset.pattern.permute.xlu0 2
        %2570 = vperm.xlu0 %2569, %v425
        %v2571 = vpop.permute.xlu0 %2570
        %2573 = vset.pattern.permute.xlu0 2
        %2574 = vperm.xlu0 %2573, %v426
        %v2575 = vpop.permute.xlu0 %2574
        %2577 = vset.pattern.permute.xlu0 2
        %2578 = vperm.xlu0 %2577, %v427
        %v2579 = vpop.permute.xlu0 %2578
        %2581 = vset.pattern.permute.xlu0 2
        %2582 = vperm.xlu0 %2581, %v428
        %v2583 = vpop.permute.xlu0 %2582
        %2585 = vset.pattern.permute.xlu0 2
        %2586 = vperm.xlu0 %2585, %v429
        %v2587 = vpop.permute.xlu0 %2586
        %2589 = vset.pattern.permute.xlu0 2
        %2590 = vperm.xlu0 %2589, %v430
        %v2591 = vpop.permute.xlu0 %2590
        %2593 = vset.pattern.permute.xlu0 2
        %2594 = vperm.xlu0 %2593, %v431
        %v2595 = vpop.permute.xlu0 %2594
        %2597 = vset.pattern.permute.xlu0 2
        %2598 = vperm.xlu0 %2597, %v432
        %v2599 = vpop.permute.xlu0 %2598
        %2601 = vset.pattern.permute.xlu0 2
        %2602 = vperm.xlu0 %2601, %v433
        %v2603 = vpop.permute.xlu0 %2602
        %2605 = vset.pattern.permute.xlu0 2
        %2606 = vperm.xlu0 %2605, %v434
        %v2607 = vpop.permute.xlu0 %2606
        %2609 = vset.pattern.permute.xlu0 2
        %2610 = vperm.xlu0 %2609, %v435
        %v2611 = vpop.permute.xlu0 %2610
        %2613 = vset.pattern.permute.xlu0 2
        %2614 = vperm.xlu0 %2613, %v436
        %v2615 = vpop.permute.xlu0 %2614
        %2617 = vset.pattern.permute.xlu0 2
        %2618 = vperm.xlu0 %2617, %v437
        %v2619 = vpop.permute.xlu0 %2618
        %2621 = vset.pattern.permute.xlu0 2
        %2622 = vperm.xlu0 %2621, %v438
        %v2623 = vpop.permute.xlu0 %2622
        %2625 = vset.pattern.permute.xlu0 2
        %2626 = vperm.xlu0 %2625, %v439
        %v2627 = vpop.permute.xlu0 %2626
        %2629 = vset.pattern.permute.xlu0 2
        %2630 = vperm.xlu0 %2629, %v440
        %v2631 = vpop.permute.xlu0 %2630
        %2633 = vset.pattern.permute.xlu0 2
        %2634 = vperm.xlu0 %2633, %v441
        %v2635 = vpop.permute.xlu0 %2634
        %2637 = vset.pattern.permute.xlu0 2
        %2638 = vperm.xlu0 %2637, %v442
        %v2639 = vpop.permute.xlu0 %2638
        %2641 = vset.pattern.permute.xlu0 2
        %2642 = vperm.xlu0 %2641, %v443
        %v2643 = vpop.permute.xlu0 %2642
        %2645 = vset.pattern.permute.xlu0 2
        %2646 = vperm.xlu0 %2645, %v444
        %v2647 = vpop.permute.xlu0 %2646
        %2649 = vset.pattern.permute.xlu0 2
        %2650 = vperm.xlu0 %2649, %v445
        %v2651 = vpop.permute.xlu0 %2650
        %2653 = vset.pattern.permute.xlu0 2
        %2654 = vperm.xlu0 %2653, %v446
        %v2655 = vpop.permute.xlu0 %2654
        %2657 = vset.pattern.permute.xlu0 2
        %2658 = vperm.xlu0 %2657, %v447
        %v2659 = vpop.permute.xlu0 %2658
        %2661 = vset.pattern.permute.xlu0 2
        %2662 = vperm.xlu0 %2661, %v448
        %v2663 = vpop.permute.xlu0 %2662
        %2665 = vset.pattern.permute.xlu0 2
        %2666 = vperm.xlu0 %2665, %v449
        %v2667 = vpop.permute.xlu0 %2666
        %v2669 = vlaneseq
        %v2670 = vshrl.u32 %v2669, 7
        %v2671 = vsub.s32 2, %v2670
        %v2672 = vrot.slane %v450, %v2671
        %v2673 = vsub.f32 %v2543, %v2672
        %v2674 = vsub.f32 %v2547, %v2672
        %v2675 = vsub.f32 %v2551, %v2672
        %v2676 = vsub.f32 %v2555, %v2672
        %v2677 = vsub.f32 %v2559, %v2672
        %v2678 = vsub.f32 %v2563, %v2672
        %v2679 = vsub.f32 %v2567, %v2672
        %v2680 = vsub.f32 %v2571, %v2672
        %v2681 = vsub.f32 %v2575, %v2672
        %v2682 = vsub.f32 %v2579, %v2672
        %v2683 = vsub.f32 %v2583, %v2672
        %v2684 = vsub.f32 %v2587, %v2672
        %v2685 = vsub.f32 %v2591, %v2672
        %v2686 = vsub.f32 %v2595, %v2672
        %v2687 = vsub.f32 %v2599, %v2672
        %v2688 = vsub.f32 %v2603, %v2672
        %v2689 = vsub.f32 %v2607, %v2672
        %v2690 = vsub.f32 %v2611, %v2672
        %v2691 = vsub.f32 %v2615, %v2672
        %v2692 = vsub.f32 %v2619, %v2672
        %v2693 = vsub.f32 %v2623, %v2672
        %v2694 = vsub.f32 %v2627, %v2672
        %v2695 = vsub.f32 %v2631, %v2672
        %v2696 = vsub.f32 %v2635, %v2672
        %v2697 = vsub.f32 %v2639, %v2672
        %v2698 = vsub.f32 %v2643, %v2672
        %v2699 = vsub.f32 %v2647, %v2672
        %v2700 = vsub.f32 %v2651, %v2672
        %v2701 = vsub.f32 %v2655, %v2672
        %v2702 = vsub.f32 %v2659, %v2672
        %v2703 = vsub.f32 %v2663, %v2672
        %v2704 = vsub.f32 %v2667, %v2672
        %v2705 = vand.u32 2147483647, %v2673
        %v2706 = vand.u32 2147483647, %v2674
        %v2707 = vand.u32 2147483647, %v2675
        %v2708 = vand.u32 2147483647, %v2676
        %v2709 = vand.u32 2147483647, %v2677
        %v2710 = vand.u32 2147483647, %v2678
        %v2711 = vand.u32 2147483647, %v2679
        %v2712 = vand.u32 2147483647, %v2680
        %v2713 = vand.u32 2147483647, %v2681
        %v2714 = vand.u32 2147483647, %v2682
        %v2715 = vand.u32 2147483647, %v2683
        %v2716 = vand.u32 2147483647, %v2684
        %v2717 = vand.u32 2147483647, %v2685
        %v2718 = vand.u32 2147483647, %v2686
        %v2719 = vand.u32 2147483647, %v2687
        %v2720 = vand.u32 2147483647, %v2688
        %v2721 = vand.u32 2147483647, %v2689
        %v2722 = vand.u32 2147483647, %v2690
        %v2723 = vand.u32 2147483647, %v2691
        %v2724 = vand.u32 2147483647, %v2692
        %v2725 = vand.u32 2147483647, %v2693
        %v2726 = vand.u32 2147483647, %v2694
        %v2727 = vand.u32 2147483647, %v2695
        %v2728 = vand.u32 2147483647, %v2696
        %v2729 = vand.u32 2147483647, %v2697
        %v2730 = vand.u32 2147483647, %v2698
        %v2731 = vand.u32 2147483647, %v2699
        %v2732 = vand.u32 2147483647, %v2700
        %v2733 = vand.u32 2147483647, %v2701
        %v2734 = vand.u32 2147483647, %v2702
        %v2735 = vand.u32 2147483647, %v2703
        %v2736 = vand.u32 2147483647, %v2704
        %vm2737 = vcmp.lt.f32.partialorder %v2705, 1.0
        %vm2738 = vcmp.lt.f32.partialorder %v2706, 1.0
        %vm2739 = vcmp.lt.f32.partialorder %v2707, 1.0
        %vm2740 = vcmp.lt.f32.partialorder %v2708, 1.0
        %vm2741 = vcmp.lt.f32.partialorder %v2709, 1.0
        %vm2742 = vcmp.lt.f32.partialorder %v2710, 1.0
        %vm2743 = vcmp.lt.f32.partialorder %v2711, 1.0
        %vm2744 = vcmp.lt.f32.partialorder %v2712, 1.0
        %vm2745 = vcmp.lt.f32.partialorder %v2713, 1.0
        %vm2746 = vcmp.lt.f32.partialorder %v2714, 1.0
        %vm2747 = vcmp.lt.f32.partialorder %v2715, 1.0
        %vm2748 = vcmp.lt.f32.partialorder %v2716, 1.0
        %vm2749 = vcmp.lt.f32.partialorder %v2717, 1.0
        %vm2750 = vcmp.lt.f32.partialorder %v2718, 1.0
        %vm2751 = vcmp.lt.f32.partialorder %v2719, 1.0
        %vm2752 = vcmp.lt.f32.partialorder %v2720, 1.0
        %vm2753 = vcmp.lt.f32.partialorder %v2721, 1.0
        %vm2754 = vcmp.lt.f32.partialorder %v2722, 1.0
        %vm2755 = vcmp.lt.f32.partialorder %v2723, 1.0
        %vm2756 = vcmp.lt.f32.partialorder %v2724, 1.0
        %vm2757 = vcmp.lt.f32.partialorder %v2725, 1.0
        %vm2758 = vcmp.lt.f32.partialorder %v2726, 1.0
        %vm2759 = vcmp.lt.f32.partialorder %v2727, 1.0
        %vm2760 = vcmp.lt.f32.partialorder %v2728, 1.0
        %vm2761 = vcmp.lt.f32.partialorder %v2729, 1.0
        %vm2762 = vcmp.lt.f32.partialorder %v2730, 1.0
        %vm2763 = vcmp.lt.f32.partialorder %v2731, 1.0
        %vm2764 = vcmp.lt.f32.partialorder %v2732, 1.0
        %vm2765 = vcmp.lt.f32.partialorder %v2733, 1.0
        %vm2766 = vcmp.lt.f32.partialorder %v2734, 1.0
        %vm2767 = vcmp.lt.f32.partialorder %v2735, 1.0
        %vm2768 = vcmp.lt.f32.partialorder %v2736, 1.0
        %v2769 = vmul.f32 %v2673, 0.5
        %v2770 = vmul.f32 %v2674, 0.5
        %v2771 = vmul.f32 %v2675, 0.5
        %v2772 = vmul.f32 %v2676, 0.5
        %v2773 = vmul.f32 %v2677, 0.5
        %v2774 = vmul.f32 %v2678, 0.5
        %v2775 = vmul.f32 %v2679, 0.5
        %v2776 = vmul.f32 %v2680, 0.5
        %v2777 = vmul.f32 %v2681, 0.5
        %v2778 = vmul.f32 %v2682, 0.5
        %v2779 = vmul.f32 %v2683, 0.5
        %v2780 = vmul.f32 %v2684, 0.5
        %v2781 = vmul.f32 %v2685, 0.5
        %v2782 = vmul.f32 %v2686, 0.5
        %v2783 = vmul.f32 %v2687, 0.5
        %v2784 = vmul.f32 %v2688, 0.5
        %v2785 = vmul.f32 %v2689, 0.5
        %v2786 = vmul.f32 %v2690, 0.5
        %v2787 = vmul.f32 %v2691, 0.5
        %v2788 = vmul.f32 %v2692, 0.5
        %v2789 = vmul.f32 %v2693, 0.5
        %v2790 = vmul.f32 %v2694, 0.5
        %v2791 = vmul.f32 %v2695, 0.5
        %v2792 = vmul.f32 %v2696, 0.5
        %v2793 = vmul.f32 %v2697, 0.5
        %v2794 = vmul.f32 %v2698, 0.5
        %v2795 = vmul.f32 %v2699, 0.5
        %v2796 = vmul.f32 %v2700, 0.5
        %v2797 = vmul.f32 %v2701, 0.5
        %v2798 = vmul.f32 %v2702, 0.5
        %v2799 = vmul.f32 %v2703, 0.5
        %v2800 = vmul.f32 %v2704, 0.5
        %v2801 = vmul.f32 %v2769, %v2673
        %v2802 = vmul.f32 %v2770, %v2674
        %v2803 = vmul.f32 %v2771, %v2675
        %v2804 = vmul.f32 %v2772, %v2676
        %v2805 = vmul.f32 %v2773, %v2677
        %v2806 = vmul.f32 %v2774, %v2678
        %v2807 = vmul.f32 %v2775, %v2679
        %v2808 = vmul.f32 %v2776, %v2680
        %v2809 = vmul.f32 %v2777, %v2681
        %v2810 = vmul.f32 %v2778, %v2682
        %v2811 = vmul.f32 %v2779, %v2683
        %v2812 = vmul.f32 %v2780, %v2684
        %v2813 = vmul.f32 %v2781, %v2685
        %v2814 = vmul.f32 %v2782, %v2686
        %v2815 = vmul.f32 %v2783, %v2687
        %v2816 = vmul.f32 %v2784, %v2688
        %v2817 = vmul.f32 %v2785, %v2689
        %v2818 = vmul.f32 %v2786, %v2690
        %v2819 = vmul.f32 %v2787, %v2691
        %v2820 = vmul.f32 %v2788, %v2692
        %v2821 = vmul.f32 %v2789, %v2693
        %v2822 = vmul.f32 %v2790, %v2694
        %v2823 = vmul.f32 %v2791, %v2695
        %v2824 = vmul.f32 %v2792, %v2696
        %v2825 = vmul.f32 %v2793, %v2697
        %v2826 = vmul.f32 %v2794, %v2698
        %v2827 = vmul.f32 %v2795, %v2699
        %v2828 = vmul.f32 %v2796, %v2700
        %v2829 = vmul.f32 %v2797, %v2701
        %v2830 = vmul.f32 %v2798, %v2702
        %v2831 = vmul.f32 %v2799, %v2703
        %v2832 = vmul.f32 %v2800, %v2704
        %v2833 = vsub.f32 %v2705, 0.5
        %v2834 = vsub.f32 %v2706, 0.5
        %v2835 = vsub.f32 %v2707, 0.5
        %v2836 = vsub.f32 %v2708, 0.5
        %v2837 = vsub.f32 %v2709, 0.5
        %v2838 = vsub.f32 %v2710, 0.5
        %v2839 = vsub.f32 %v2711, 0.5
        %v2840 = vsub.f32 %v2712, 0.5
        %v2841 = vsub.f32 %v2713, 0.5
        %v2842 = vsub.f32 %v2714, 0.5
        %v2843 = vsub.f32 %v2715, 0.5
        %v2844 = vsub.f32 %v2716, 0.5
        %v2845 = vsub.f32 %v2717, 0.5
        %v2846 = vsub.f32 %v2718, 0.5
        %v2847 = vsub.f32 %v2719, 0.5
        %v2848 = vsub.f32 %v2720, 0.5
        %v2849 = vsub.f32 %v2721, 0.5
        %v2850 = vsub.f32 %v2722, 0.5
        %v2851 = vsub.f32 %v2723, 0.5
        %v2852 = vsub.f32 %v2724, 0.5
        %v2853 = vsub.f32 %v2725, 0.5
        %v2854 = vsub.f32 %v2726, 0.5
        %v2855 = vsub.f32 %v2727, 0.5
        %v2856 = vsub.f32 %v2728, 0.5
        %v2857 = vsub.f32 %v2729, 0.5
        %v2858 = vsub.f32 %v2730, 0.5
        %v2859 = vsub.f32 %v2731, 0.5
        %v2860 = vsub.f32 %v2732, 0.5
        %v2861 = vsub.f32 %v2733, 0.5
        %v2862 = vsub.f32 %v2734, 0.5
        %v2863 = vsub.f32 %v2735, 0.5
        %v2864 = vsub.f32 %v2736, 0.5
        %v2865 = vsel %vm2737, %v2801, %v2833
        %v2866 = vsel %vm2738, %v2802, %v2834
        %v2867 = vsel %vm2739, %v2803, %v2835
        %v2868 = vsel %vm2740, %v2804, %v2836
        %v2869 = vsel %vm2741, %v2805, %v2837
        %v2870 = vsel %vm2742, %v2806, %v2838
        %v2871 = vsel %vm2743, %v2807, %v2839
        %v2872 = vsel %vm2744, %v2808, %v2840
        %v2873 = vsel %vm2745, %v2809, %v2841
        %v2874 = vsel %vm2746, %v2810, %v2842
        %v2875 = vsel %vm2747, %v2811, %v2843
        %v2876 = vsel %vm2748, %v2812, %v2844
        %v2877 = vsel %vm2749, %v2813, %v2845
        %v2878 = vsel %vm2750, %v2814, %v2846
        %v2879 = vsel %vm2751, %v2815, %v2847
        %v2880 = vsel %vm2752, %v2816, %v2848
        %v2881 = vsel %vm2753, %v2817, %v2849
        %v2882 = vsel %vm2754, %v2818, %v2850
        %v2883 = vsel %vm2755, %v2819, %v2851
        %v2884 = vsel %vm2756, %v2820, %v2852
        %v2885 = vsel %vm2757, %v2821, %v2853
        %v2886 = vsel %vm2758, %v2822, %v2854
        %v2887 = vsel %vm2759, %v2823, %v2855
        %v2888 = vsel %vm2760, %v2824, %v2856
        %v2889 = vsel %vm2761, %v2825, %v2857
        %v2890 = vsel %vm2762, %v2826, %v2858
        %v2891 = vsel %vm2763, %v2827, %v2859
        %v2892 = vsel %vm2764, %v2828, %v2860
        %v2893 = vsel %vm2765, %v2829, %v2861
        %v2894 = vsel %vm2766, %v2830, %v2862
        %v2895 = vsel %vm2767, %v2831, %v2863
        %v2896 = vsel %vm2768, %v2832, %v2864
        %v2897 = vadd.f32 %v2509, %v2865
        %v2898 = vadd.f32 %v2510, %v2866
        %v2899 = vadd.f32 %v2511, %v2867
        %v2900 = vadd.f32 %v2512, %v2868
        %v2901 = vadd.f32 %v2513, %v2869
        %v2902 = vadd.f32 %v2514, %v2870
        %v2903 = vadd.f32 %v2515, %v2871
        %v2904 = vadd.f32 %v2516, %v2872
        %v2905 = vadd.f32 %v2517, %v2873
        %v2906 = vadd.f32 %v2518, %v2874
        %v2907 = vadd.f32 %v2519, %v2875
        %v2908 = vadd.f32 %v2520, %v2876
        %v2909 = vadd.f32 %v2521, %v2877
        %v2910 = vadd.f32 %v2522, %v2878
        %v2911 = vadd.f32 %v2523, %v2879
        %v2912 = vadd.f32 %v2524, %v2880
        %v2913 = vadd.f32 %v2525, %v2881
        %v2914 = vadd.f32 %v2526, %v2882
        %v2915 = vadd.f32 %v2527, %v2883
        %v2916 = vadd.f32 %v2528, %v2884
        %v2917 = vadd.f32 %v2529, %v2885
        %v2918 = vadd.f32 %v2530, %v2886
        %v2919 = vadd.f32 %v2531, %v2887
        %v2920 = vadd.f32 %v2532, %v2888
        %v2921 = vadd.f32 %v2533, %v2889
        %v2922 = vadd.f32 %v2534, %v2890
        %v2923 = vadd.f32 %v2535, %v2891
        %v2924 = vadd.f32 %v2536, %v2892
        %v2925 = vadd.f32 %v2537, %v2893
        %v2926 = vadd.f32 %v2538, %v2894
        %v2927 = vadd.f32 %v2539, %v2895
        %v2928 = vadd.f32 %v2540, %v2896
        %v2929 = vmul.f32 %v2897, 0.33333334
        %v2930 = vmul.f32 %v2898, 0.33333334
        %v2931 = vmul.f32 %v2899, 0.33333334
        %v2932 = vmul.f32 %v2900, 0.33333334
        %v2933 = vmul.f32 %v2901, 0.33333334
        %v2934 = vmul.f32 %v2902, 0.33333334
        %v2935 = vmul.f32 %v2903, 0.33333334
        %v2936 = vmul.f32 %v2904, 0.33333334
        %v2937 = vmul.f32 %v2905, 0.33333334
        %v2938 = vmul.f32 %v2906, 0.33333334
        %v2939 = vmul.f32 %v2907, 0.33333334
        %v2940 = vmul.f32 %v2908, 0.33333334
        %v2941 = vmul.f32 %v2909, 0.33333334
        %v2942 = vmul.f32 %v2910, 0.33333334
        %v2943 = vmul.f32 %v2911, 0.33333334
        %v2944 = vmul.f32 %v2912, 0.33333334
        %v2945 = vmul.f32 %v2913, 0.33333334
        %v2946 = vmul.f32 %v2914, 0.33333334
        %v2947 = vmul.f32 %v2915, 0.33333334
        %v2948 = vmul.f32 %v2916, 0.33333334
        %v2949 = vmul.f32 %v2917, 0.33333334
        %v2950 = vmul.f32 %v2918, 0.33333334
        %v2951 = vmul.f32 %v2919, 0.33333334
        %v2952 = vmul.f32 %v2920, 0.33333334
        %v2953 = vmul.f32 %v2921, 0.33333334
        %v2954 = vmul.f32 %v2922, 0.33333334
        %v2955 = vmul.f32 %v2923, 0.33333334
        %v2956 = vmul.f32 %v2924, 0.33333334
        %v2957 = vmul.f32 %v2925, 0.33333334
        %v2958 = vmul.f32 %v2926, 0.33333334
        %v2959 = vmul.f32 %v2927, 0.33333334
        %v2960 = vmul.f32 %v2928, 0.33333334
        %2961 = vset.pattern.permute.xlu0 3
        %2962 = vperm.xlu0 %2961, %v418
        %v2963 = vpop.permute.xlu0 %2962
        %2965 = vset.pattern.permute.xlu0 3
        %2966 = vperm.xlu0 %2965, %v419
        %v2967 = vpop.permute.xlu0 %2966
        %2969 = vset.pattern.permute.xlu0 3
        %2970 = vperm.xlu0 %2969, %v420
        %v2971 = vpop.permute.xlu0 %2970
        %2973 = vset.pattern.permute.xlu0 3
        %2974 = vperm.xlu0 %2973, %v421
        %v2975 = vpop.permute.xlu0 %2974
        %2977 = vset.pattern.permute.xlu0 3
        %2978 = vperm.xlu0 %2977, %v422
        %v2979 = vpop.permute.xlu0 %2978
        %2981 = vset.pattern.permute.xlu0 3
        %2982 = vperm.xlu0 %2981, %v423
        %v2983 = vpop.permute.xlu0 %2982
        %2985 = vset.pattern.permute.xlu0 3
        %2986 = vperm.xlu0 %2985, %v424
        %v2987 = vpop.permute.xlu0 %2986
        %2989 = vset.pattern.permute.xlu0 3
        %2990 = vperm.xlu0 %2989, %v425
        %v2991 = vpop.permute.xlu0 %2990
        %2993 = vset.pattern.permute.xlu0 3
        %2994 = vperm.xlu0 %2993, %v426
        %v2995 = vpop.permute.xlu0 %2994
        %2997 = vset.pattern.permute.xlu0 3
        %2998 = vperm.xlu0 %2997, %v427
        %v2999 = vpop.permute.xlu0 %2998
        %3001 = vset.pattern.permute.xlu0 3
        %3002 = vperm.xlu0 %3001, %v428
        %v3003 = vpop.permute.xlu0 %3002
        %3005 = vset.pattern.permute.xlu0 3
        %3006 = vperm.xlu0 %3005, %v429
        %v3007 = vpop.permute.xlu0 %3006
        %3009 = vset.pattern.permute.xlu0 3
        %3010 = vperm.xlu0 %3009, %v430
        %v3011 = vpop.permute.xlu0 %3010
        %3013 = vset.pattern.permute.xlu0 3
        %3014 = vperm.xlu0 %3013, %v431
        %v3015 = vpop.permute.xlu0 %3014
        %3017 = vset.pattern.permute.xlu0 3
        %3018 = vperm.xlu0 %3017, %v432
        %v3019 = vpop.permute.xlu0 %3018
        %3021 = vset.pattern.permute.xlu0 3
        %3022 = vperm.xlu0 %3021, %v433
        %v3023 = vpop.permute.xlu0 %3022
        %3025 = vset.pattern.permute.xlu0 3
        %3026 = vperm.xlu0 %3025, %v434
        %v3027 = vpop.permute.xlu0 %3026
        %3029 = vset.pattern.permute.xlu0 3
        %3030 = vperm.xlu0 %3029, %v435
        %v3031 = vpop.permute.xlu0 %3030
        %3033 = vset.pattern.permute.xlu0 3
        %3034 = vperm.xlu0 %3033, %v436
        %v3035 = vpop.permute.xlu0 %3034
        %3037 = vset.pattern.permute.xlu0 3
        %3038 = vperm.xlu0 %3037, %v437
        %v3039 = vpop.permute.xlu0 %3038
        %3041 = vset.pattern.permute.xlu0 3
        %3042 = vperm.xlu0 %3041, %v438
        %v3043 = vpop.permute.xlu0 %3042
        %3045 = vset.pattern.permute.xlu0 3
        %3046 = vperm.xlu0 %3045, %v439
        %v3047 = vpop.permute.xlu0 %3046
        %3049 = vset.pattern.permute.xlu0 3
        %3050 = vperm.xlu0 %3049, %v440
        %v3051 = vpop.permute.xlu0 %3050
        %3053 = vset.pattern.permute.xlu0 3
        %3054 = vperm.xlu0 %3053, %v441
        %v3055 = vpop.permute.xlu0 %3054
        %3057 = vset.pattern.permute.xlu0 3
        %3058 = vperm.xlu0 %3057, %v442
        %v3059 = vpop.permute.xlu0 %3058
        %3061 = vset.pattern.permute.xlu0 3
        %3062 = vperm.xlu0 %3061, %v443
        %v3063 = vpop.permute.xlu0 %3062
        %3065 = vset.pattern.permute.xlu0 3
        %3066 = vperm.xlu0 %3065, %v444
        %v3067 = vpop.permute.xlu0 %3066
        %3069 = vset.pattern.permute.xlu0 3
        %3070 = vperm.xlu0 %3069, %v445
        %v3071 = vpop.permute.xlu0 %3070
        %3073 = vset.pattern.permute.xlu0 3
        %3074 = vperm.xlu0 %3073, %v446
        %v3075 = vpop.permute.xlu0 %3074
        %3077 = vset.pattern.permute.xlu0 3
        %3078 = vperm.xlu0 %3077, %v447
        %v3079 = vpop.permute.xlu0 %3078
        %3081 = vset.pattern.permute.xlu0 3
        %3082 = vperm.xlu0 %3081, %v448
        %v3083 = vpop.permute.xlu0 %3082
        %3085 = vset.pattern.permute.xlu0 3
        %3086 = vperm.xlu0 %3085, %v449
        %v3087 = vpop.permute.xlu0 %3086
        %v3089 = vlaneseq
        %v3090 = vshrl.u32 %v3089, 7
        %v3091 = vsub.s32 3, %v3090
        %v3092 = vrot.slane %v450, %v3091
        %v3093 = vsub.f32 %v2963, %v3092
        %v3094 = vsub.f32 %v2967, %v3092
        %v3095 = vsub.f32 %v2971, %v3092
        %v3096 = vsub.f32 %v2975, %v3092
        %v3097 = vsub.f32 %v2979, %v3092
        %v3098 = vsub.f32 %v2983, %v3092
        %v3099 = vsub.f32 %v2987, %v3092
        %v3100 = vsub.f32 %v2991, %v3092
        %v3101 = vsub.f32 %v2995, %v3092
        %v3102 = vsub.f32 %v2999, %v3092
        %v3103 = vsub.f32 %v3003, %v3092
        %v3104 = vsub.f32 %v3007, %v3092
        %v3105 = vsub.f32 %v3011, %v3092
        %v3106 = vsub.f32 %v3015, %v3092
        %v3107 = vsub.f32 %v3019, %v3092
        %v3108 = vsub.f32 %v3023, %v3092
        %v3109 = vsub.f32 %v3027, %v3092
        %v3110 = vsub.f32 %v3031, %v3092
        %v3111 = vsub.f32 %v3035, %v3092
        %v3112 = vsub.f32 %v3039, %v3092
        %v3113 = vsub.f32 %v3043, %v3092
        %v3114 = vsub.f32 %v3047, %v3092
        %v3115 = vsub.f32 %v3051, %v3092
        %v3116 = vsub.f32 %v3055, %v3092
        %v3117 = vsub.f32 %v3059, %v3092
        %v3118 = vsub.f32 %v3063, %v3092
        %v3119 = vsub.f32 %v3067, %v3092
        %v3120 = vsub.f32 %v3071, %v3092
        %v3121 = vsub.f32 %v3075, %v3092
        %v3122 = vsub.f32 %v3079, %v3092
        %v3123 = vsub.f32 %v3083, %v3092
        %v3124 = vsub.f32 %v3087, %v3092
        %v3125 = vand.u32 2147483647, %v3093
        %v3126 = vand.u32 2147483647, %v3094
        %v3127 = vand.u32 2147483647, %v3095
        %v3128 = vand.u32 2147483647, %v3096
        %v3129 = vand.u32 2147483647, %v3097
        %v3130 = vand.u32 2147483647, %v3098
        %v3131 = vand.u32 2147483647, %v3099
        %v3132 = vand.u32 2147483647, %v3100
        %v3133 = vand.u32 2147483647, %v3101
        %v3134 = vand.u32 2147483647, %v3102
        %v3135 = vand.u32 2147483647, %v3103
        %v3136 = vand.u32 2147483647, %v3104
        %v3137 = vand.u32 2147483647, %v3105
        %v3138 = vand.u32 2147483647, %v3106
        %v3139 = vand.u32 2147483647, %v3107
        %v3140 = vand.u32 2147483647, %v3108
        %v3141 = vand.u32 2147483647, %v3109
        %v3142 = vand.u32 2147483647, %v3110
        %v3143 = vand.u32 2147483647, %v3111
        %v3144 = vand.u32 2147483647, %v3112
        %v3145 = vand.u32 2147483647, %v3113
        %v3146 = vand.u32 2147483647, %v3114
        %v3147 = vand.u32 2147483647, %v3115
        %v3148 = vand.u32 2147483647, %v3116
        %v3149 = vand.u32 2147483647, %v3117
        %v3150 = vand.u32 2147483647, %v3118
        %v3151 = vand.u32 2147483647, %v3119
        %v3152 = vand.u32 2147483647, %v3120
        %v3153 = vand.u32 2147483647, %v3121
        %v3154 = vand.u32 2147483647, %v3122
        %v3155 = vand.u32 2147483647, %v3123
        %v3156 = vand.u32 2147483647, %v3124
        %vm3157 = vcmp.lt.f32.partialorder %v3125, 1.0
        %vm3158 = vcmp.lt.f32.partialorder %v3126, 1.0
        %vm3159 = vcmp.lt.f32.partialorder %v3127, 1.0
        %vm3160 = vcmp.lt.f32.partialorder %v3128, 1.0
        %vm3161 = vcmp.lt.f32.partialorder %v3129, 1.0
        %vm3162 = vcmp.lt.f32.partialorder %v3130, 1.0
        %vm3163 = vcmp.lt.f32.partialorder %v3131, 1.0
        %vm3164 = vcmp.lt.f32.partialorder %v3132, 1.0
        %vm3165 = vcmp.lt.f32.partialorder %v3133, 1.0
        %vm3166 = vcmp.lt.f32.partialorder %v3134, 1.0
        %vm3167 = vcmp.lt.f32.partialorder %v3135, 1.0
        %vm3168 = vcmp.lt.f32.partialorder %v3136, 1.0
        %vm3169 = vcmp.lt.f32.partialorder %v3137, 1.0
        %vm3170 = vcmp.lt.f32.partialorder %v3138, 1.0
        %vm3171 = vcmp.lt.f32.partialorder %v3139, 1.0
        %vm3172 = vcmp.lt.f32.partialorder %v3140, 1.0
        %vm3173 = vcmp.lt.f32.partialorder %v3141, 1.0
        %vm3174 = vcmp.lt.f32.partialorder %v3142, 1.0
        %vm3175 = vcmp.lt.f32.partialorder %v3143, 1.0
        %vm3176 = vcmp.lt.f32.partialorder %v3144, 1.0
        %vm3177 = vcmp.lt.f32.partialorder %v3145, 1.0
        %vm3178 = vcmp.lt.f32.partialorder %v3146, 1.0
        %vm3179 = vcmp.lt.f32.partialorder %v3147, 1.0
        %vm3180 = vcmp.lt.f32.partialorder %v3148, 1.0
        %vm3181 = vcmp.lt.f32.partialorder %v3149, 1.0
        %vm3182 = vcmp.lt.f32.partialorder %v3150, 1.0
        %vm3183 = vcmp.lt.f32.partialorder %v3151, 1.0
        %vm3184 = vcmp.lt.f32.partialorder %v3152, 1.0
        %vm3185 = vcmp.lt.f32.partialorder %v3153, 1.0
        %vm3186 = vcmp.lt.f32.partialorder %v3154, 1.0
        %vm3187 = vcmp.lt.f32.partialorder %v3155, 1.0
        %vm3188 = vcmp.lt.f32.partialorder %v3156, 1.0
        %v3189 = vmul.f32 %v3093, 0.5
        %v3190 = vmul.f32 %v3094, 0.5
        %v3191 = vmul.f32 %v3095, 0.5
        %v3192 = vmul.f32 %v3096, 0.5
        %v3193 = vmul.f32 %v3097, 0.5
        %v3194 = vmul.f32 %v3098, 0.5
        %v3195 = vmul.f32 %v3099, 0.5
        %v3196 = vmul.f32 %v3100, 0.5
        %v3197 = vmul.f32 %v3101, 0.5
        %v3198 = vmul.f32 %v3102, 0.5
        %v3199 = vmul.f32 %v3103, 0.5
        %v3200 = vmul.f32 %v3104, 0.5
        %v3201 = vmul.f32 %v3105, 0.5
        %v3202 = vmul.f32 %v3106, 0.5
        %v3203 = vmul.f32 %v3107, 0.5
        %v3204 = vmul.f32 %v3108, 0.5
        %v3205 = vmul.f32 %v3109, 0.5
        %v3206 = vmul.f32 %v3110, 0.5
        %v3207 = vmul.f32 %v3111, 0.5
        %v3208 = vmul.f32 %v3112, 0.5
        %v3209 = vmul.f32 %v3113, 0.5
        %v3210 = vmul.f32 %v3114, 0.5
        %v3211 = vmul.f32 %v3115, 0.5
        %v3212 = vmul.f32 %v3116, 0.5
        %v3213 = vmul.f32 %v3117, 0.5
        %v3214 = vmul.f32 %v3118, 0.5
        %v3215 = vmul.f32 %v3119, 0.5
        %v3216 = vmul.f32 %v3120, 0.5
        %v3217 = vmul.f32 %v3121, 0.5
        %v3218 = vmul.f32 %v3122, 0.5
        %v3219 = vmul.f32 %v3123, 0.5
        %v3220 = vmul.f32 %v3124, 0.5
        %v3221 = vmul.f32 %v3189, %v3093
        %v3222 = vmul.f32 %v3190, %v3094
        %v3223 = vmul.f32 %v3191, %v3095
        %v3224 = vmul.f32 %v3192, %v3096
        %v3225 = vmul.f32 %v3193, %v3097
        %v3226 = vmul.f32 %v3194, %v3098
        %v3227 = vmul.f32 %v3195, %v3099
        %v3228 = vmul.f32 %v3196, %v3100
        %v3229 = vmul.f32 %v3197, %v3101
        %v3230 = vmul.f32 %v3198, %v3102
        %v3231 = vmul.f32 %v3199, %v3103
        %v3232 = vmul.f32 %v3200, %v3104
        %v3233 = vmul.f32 %v3201, %v3105
        %v3234 = vmul.f32 %v3202, %v3106
        %v3235 = vmul.f32 %v3203, %v3107
        %v3236 = vmul.f32 %v3204, %v3108
        %v3237 = vmul.f32 %v3205, %v3109
        %v3238 = vmul.f32 %v3206, %v3110
        %v3239 = vmul.f32 %v3207, %v3111
        %v3240 = vmul.f32 %v3208, %v3112
        %v3241 = vmul.f32 %v3209, %v3113
        %v3242 = vmul.f32 %v3210, %v3114
        %v3243 = vmul.f32 %v3211, %v3115
        %v3244 = vmul.f32 %v3212, %v3116
        %v3245 = vmul.f32 %v3213, %v3117
        %v3246 = vmul.f32 %v3214, %v3118
        %v3247 = vmul.f32 %v3215, %v3119
        %v3248 = vmul.f32 %v3216, %v3120
        %v3249 = vmul.f32 %v3217, %v3121
        %v3250 = vmul.f32 %v3218, %v3122
        %v3251 = vmul.f32 %v3219, %v3123
        %v3252 = vmul.f32 %v3220, %v3124
        %v3253 = vsub.f32 %v3125, 0.5
        %v3254 = vsub.f32 %v3126, 0.5
        %v3255 = vsub.f32 %v3127, 0.5
        %v3256 = vsub.f32 %v3128, 0.5
        %v3257 = vsub.f32 %v3129, 0.5
        %v3258 = vsub.f32 %v3130, 0.5
        %v3259 = vsub.f32 %v3131, 0.5
        %v3260 = vsub.f32 %v3132, 0.5
        %v3261 = vsub.f32 %v3133, 0.5
        %v3262 = vsub.f32 %v3134, 0.5
        %v3263 = vsub.f32 %v3135, 0.5
        %v3264 = vsub.f32 %v3136, 0.5
        %v3265 = vsub.f32 %v3137, 0.5
        %v3266 = vsub.f32 %v3138, 0.5
        %v3267 = vsub.f32 %v3139, 0.5
        %v3268 = vsub.f32 %v3140, 0.5
        %v3269 = vsub.f32 %v3141, 0.5
        %v3270 = vsub.f32 %v3142, 0.5
        %v3271 = vsub.f32 %v3143, 0.5
        %v3272 = vsub.f32 %v3144, 0.5
        %v3273 = vsub.f32 %v3145, 0.5
        %v3274 = vsub.f32 %v3146, 0.5
        %v3275 = vsub.f32 %v3147, 0.5
        %v3276 = vsub.f32 %v3148, 0.5
        %v3277 = vsub.f32 %v3149, 0.5
        %v3278 = vsub.f32 %v3150, 0.5
        %v3279 = vsub.f32 %v3151, 0.5
        %v3280 = vsub.f32 %v3152, 0.5
        %v3281 = vsub.f32 %v3153, 0.5
        %v3282 = vsub.f32 %v3154, 0.5
        %v3283 = vsub.f32 %v3155, 0.5
        %v3284 = vsub.f32 %v3156, 0.5
        %v3285 = vsel %vm3157, %v3221, %v3253
        %v3286 = vsel %vm3158, %v3222, %v3254
        %v3287 = vsel %vm3159, %v3223, %v3255
        %v3288 = vsel %vm3160, %v3224, %v3256
        %v3289 = vsel %vm3161, %v3225, %v3257
        %v3290 = vsel %vm3162, %v3226, %v3258
        %v3291 = vsel %vm3163, %v3227, %v3259
        %v3292 = vsel %vm3164, %v3228, %v3260
        %v3293 = vsel %vm3165, %v3229, %v3261
        %v3294 = vsel %vm3166, %v3230, %v3262
        %v3295 = vsel %vm3167, %v3231, %v3263
        %v3296 = vsel %vm3168, %v3232, %v3264
        %v3297 = vsel %vm3169, %v3233, %v3265
        %v3298 = vsel %vm3170, %v3234, %v3266
        %v3299 = vsel %vm3171, %v3235, %v3267
        %v3300 = vsel %vm3172, %v3236, %v3268
        %v3301 = vsel %vm3173, %v3237, %v3269
        %v3302 = vsel %vm3174, %v3238, %v3270
        %v3303 = vsel %vm3175, %v3239, %v3271
        %v3304 = vsel %vm3176, %v3240, %v3272
        %v3305 = vsel %vm3177, %v3241, %v3273
        %v3306 = vsel %vm3178, %v3242, %v3274
        %v3307 = vsel %vm3179, %v3243, %v3275
        %v3308 = vsel %vm3180, %v3244, %v3276
        %v3309 = vsel %vm3181, %v3245, %v3277
        %v3310 = vsel %vm3182, %v3246, %v3278
        %v3311 = vsel %vm3183, %v3247, %v3279
        %v3312 = vsel %vm3184, %v3248, %v3280
        %v3313 = vsel %vm3185, %v3249, %v3281
        %v3314 = vsel %vm3186, %v3250, %v3282
        %v3315 = vsel %vm3187, %v3251, %v3283
        %v3316 = vsel %vm3188, %v3252, %v3284
        %v3317 = vadd.f32 %v3285, 0.0
        %v3318 = vadd.f32 %v3286, 0.0
        %v3319 = vadd.f32 %v3287, 0.0
        %v3320 = vadd.f32 %v3288, 0.0
        %v3321 = vadd.f32 %v3289, 0.0
        %v3322 = vadd.f32 %v3290, 0.0
        %v3323 = vadd.f32 %v3291, 0.0
        %v3324 = vadd.f32 %v3292, 0.0
        %v3325 = vadd.f32 %v3293, 0.0
        %v3326 = vadd.f32 %v3294, 0.0
        %v3327 = vadd.f32 %v3295, 0.0
        %v3328 = vadd.f32 %v3296, 0.0
        %v3329 = vadd.f32 %v3297, 0.0
        %v3330 = vadd.f32 %v3298, 0.0
        %v3331 = vadd.f32 %v3299, 0.0
        %v3332 = vadd.f32 %v3300, 0.0
        %v3333 = vadd.f32 %v3301, 0.0
        %v3334 = vadd.f32 %v3302, 0.0
        %v3335 = vadd.f32 %v3303, 0.0
        %v3336 = vadd.f32 %v3304, 0.0
        %v3337 = vadd.f32 %v3305, 0.0
        %v3338 = vadd.f32 %v3306, 0.0
        %v3339 = vadd.f32 %v3307, 0.0
        %v3340 = vadd.f32 %v3308, 0.0
        %v3341 = vadd.f32 %v3309, 0.0
        %v3342 = vadd.f32 %v3310, 0.0
        %v3343 = vadd.f32 %v3311, 0.0
        %v3344 = vadd.f32 %v3312, 0.0
        %v3345 = vadd.f32 %v3313, 0.0
        %v3346 = vadd.f32 %v3314, 0.0
        %v3347 = vadd.f32 %v3315, 0.0
        %v3348 = vadd.f32 %v3316, 0.0
        %3349 = vset.pattern.permute.xlu0 4
        %3350 = vperm.xlu0 %3349, %v418
        %v3351 = vpop.permute.xlu0 %3350
        %3353 = vset.pattern.permute.xlu0 4
        %3354 = vperm.xlu0 %3353, %v419
        %v3355 = vpop.permute.xlu0 %3354
        %3357 = vset.pattern.permute.xlu0 4
        %3358 = vperm.xlu0 %3357, %v420
        %v3359 = vpop.permute.xlu0 %3358
        %3361 = vset.pattern.permute.xlu0 4
        %3362 = vperm.xlu0 %3361, %v421
        %v3363 = vpop.permute.xlu0 %3362
        %3365 = vset.pattern.permute.xlu0 4
        %3366 = vperm.xlu0 %3365, %v422
        %v3367 = vpop.permute.xlu0 %3366
        %3369 = vset.pattern.permute.xlu0 4
        %3370 = vperm.xlu0 %3369, %v423
        %v3371 = vpop.permute.xlu0 %3370
        %3373 = vset.pattern.permute.xlu0 4
        %3374 = vperm.xlu0 %3373, %v424
        %v3375 = vpop.permute.xlu0 %3374
        %3377 = vset.pattern.permute.xlu0 4
        %3378 = vperm.xlu0 %3377, %v425
        %v3379 = vpop.permute.xlu0 %3378
        %3381 = vset.pattern.permute.xlu0 4
        %3382 = vperm.xlu0 %3381, %v426
        %v3383 = vpop.permute.xlu0 %3382
        %3385 = vset.pattern.permute.xlu0 4
        %3386 = vperm.xlu0 %3385, %v427
        %v3387 = vpop.permute.xlu0 %3386
        %3389 = vset.pattern.permute.xlu0 4
        %3390 = vperm.xlu0 %3389, %v428
        %v3391 = vpop.permute.xlu0 %3390
        %3393 = vset.pattern.permute.xlu0 4
        %3394 = vperm.xlu0 %3393, %v429
        %v3395 = vpop.permute.xlu0 %3394
        %3397 = vset.pattern.permute.xlu0 4
        %3398 = vperm.xlu0 %3397, %v430
        %v3399 = vpop.permute.xlu0 %3398
        %3401 = vset.pattern.permute.xlu0 4
        %3402 = vperm.xlu0 %3401, %v431
        %v3403 = vpop.permute.xlu0 %3402
        %3405 = vset.pattern.permute.xlu0 4
        %3406 = vperm.xlu0 %3405, %v432
        %v3407 = vpop.permute.xlu0 %3406
        %3409 = vset.pattern.permute.xlu0 4
        %3410 = vperm.xlu0 %3409, %v433
        %v3411 = vpop.permute.xlu0 %3410
        %3413 = vset.pattern.permute.xlu0 4
        %3414 = vperm.xlu0 %3413, %v434
        %v3415 = vpop.permute.xlu0 %3414
        %3417 = vset.pattern.permute.xlu0 4
        %3418 = vperm.xlu0 %3417, %v435
        %v3419 = vpop.permute.xlu0 %3418
        %3421 = vset.pattern.permute.xlu0 4
        %3422 = vperm.xlu0 %3421, %v436
        %v3423 = vpop.permute.xlu0 %3422
        %3425 = vset.pattern.permute.xlu0 4
        %3426 = vperm.xlu0 %3425, %v437
        %v3427 = vpop.permute.xlu0 %3426
        %3429 = vset.pattern.permute.xlu0 4
        %3430 = vperm.xlu0 %3429, %v438
        %v3431 = vpop.permute.xlu0 %3430
        %3433 = vset.pattern.permute.xlu0 4
        %3434 = vperm.xlu0 %3433, %v439
        %v3435 = vpop.permute.xlu0 %3434
        %3437 = vset.pattern.permute.xlu0 4
        %3438 = vperm.xlu0 %3437, %v440
        %v3439 = vpop.permute.xlu0 %3438
        %3441 = vset.pattern.permute.xlu0 4
        %3442 = vperm.xlu0 %3441, %v441
        %v3443 = vpop.permute.xlu0 %3442
        %3445 = vset.pattern.permute.xlu0 4
        %3446 = vperm.xlu0 %3445, %v442
        %v3447 = vpop.permute.xlu0 %3446
        %3449 = vset.pattern.permute.xlu0 4
        %3450 = vperm.xlu0 %3449, %v443
        %v3451 = vpop.permute.xlu0 %3450
        %3453 = vset.pattern.permute.xlu0 4
        %3454 = vperm.xlu0 %3453, %v444
        %v3455 = vpop.permute.xlu0 %3454
        %3457 = vset.pattern.permute.xlu0 4
        %3458 = vperm.xlu0 %3457, %v445
        %v3459 = vpop.permute.xlu0 %3458
        %3461 = vset.pattern.permute.xlu0 4
        %3462 = vperm.xlu0 %3461, %v446
        %v3463 = vpop.permute.xlu0 %3462
        %3465 = vset.pattern.permute.xlu0 4
        %3466 = vperm.xlu0 %3465, %v447
        %v3467 = vpop.permute.xlu0 %3466
        %3469 = vset.pattern.permute.xlu0 4
        %3470 = vperm.xlu0 %3469, %v448
        %v3471 = vpop.permute.xlu0 %3470
        %3473 = vset.pattern.permute.xlu0 4
        %3474 = vperm.xlu0 %3473, %v449
        %v3475 = vpop.permute.xlu0 %3474
        %v3477 = vlaneseq
        %v3478 = vshrl.u32 %v3477, 7
        %v3479 = vsub.s32 4, %v3478
        %v3480 = vrot.slane %v450, %v3479
        %v3481 = vsub.f32 %v3351, %v3480
        %v3482 = vsub.f32 %v3355, %v3480
        %v3483 = vsub.f32 %v3359, %v3480
        %v3484 = vsub.f32 %v3363, %v3480
        %v3485 = vsub.f32 %v3367, %v3480
        %v3486 = vsub.f32 %v3371, %v3480
        %v3487 = vsub.f32 %v3375, %v3480
        %v3488 = vsub.f32 %v3379, %v3480
        %v3489 = vsub.f32 %v3383, %v3480
        %v3490 = vsub.f32 %v3387, %v3480
        %v3491 = vsub.f32 %v3391, %v3480
        %v3492 = vsub.f32 %v3395, %v3480
        %v3493 = vsub.f32 %v3399, %v3480
        %v3494 = vsub.f32 %v3403, %v3480
        %v3495 = vsub.f32 %v3407, %v3480
        %v3496 = vsub.f32 %v3411, %v3480
        %v3497 = vsub.f32 %v3415, %v3480
        %v3498 = vsub.f32 %v3419, %v3480
        %v3499 = vsub.f32 %v3423, %v3480
        %v3500 = vsub.f32 %v3427, %v3480
        %v3501 = vsub.f32 %v3431, %v3480
        %v3502 = vsub.f32 %v3435, %v3480
        %v3503 = vsub.f32 %v3439, %v3480
        %v3504 = vsub.f32 %v3443, %v3480
        %v3505 = vsub.f32 %v3447, %v3480
        %v3506 = vsub.f32 %v3451, %v3480
        %v3507 = vsub.f32 %v3455, %v3480
        %v3508 = vsub.f32 %v3459, %v3480
        %v3509 = vsub.f32 %v3463, %v3480
        %v3510 = vsub.f32 %v3467, %v3480
        %v3511 = vsub.f32 %v3471, %v3480
        %v3512 = vsub.f32 %v3475, %v3480
        %v3513 = vand.u32 2147483647, %v3481
        %v3514 = vand.u32 2147483647, %v3482
        %v3515 = vand.u32 2147483647, %v3483
        %v3516 = vand.u32 2147483647, %v3484
        %v3517 = vand.u32 2147483647, %v3485
        %v3518 = vand.u32 2147483647, %v3486
        %v3519 = vand.u32 2147483647, %v3487
        %v3520 = vand.u32 2147483647, %v3488
        %v3521 = vand.u32 2147483647, %v3489
        %v3522 = vand.u32 2147483647, %v3490
        %v3523 = vand.u32 2147483647, %v3491
        %v3524 = vand.u32 2147483647, %v3492
        %v3525 = vand.u32 2147483647, %v3493
        %v3526 = vand.u32 2147483647, %v3494
        %v3527 = vand.u32 2147483647, %v3495
        %v3528 = vand.u32 2147483647, %v3496
        %v3529 = vand.u32 2147483647, %v3497
        %v3530 = vand.u32 2147483647, %v3498
        %v3531 = vand.u32 2147483647, %v3499
        %v3532 = vand.u32 2147483647, %v3500
        %v3533 = vand.u32 2147483647, %v3501
        %v3534 = vand.u32 2147483647, %v3502
        %v3535 = vand.u32 2147483647, %v3503
        %v3536 = vand.u32 2147483647, %v3504
        %v3537 = vand.u32 2147483647, %v3505
        %v3538 = vand.u32 2147483647, %v3506
        %v3539 = vand.u32 2147483647, %v3507
        %v3540 = vand.u32 2147483647, %v3508
        %v3541 = vand.u32 2147483647, %v3509
        %v3542 = vand.u32 2147483647, %v3510
        %v3543 = vand.u32 2147483647, %v3511
        %v3544 = vand.u32 2147483647, %v3512
        %vm3545 = vcmp.lt.f32.partialorder %v3513, 1.0
        %vm3546 = vcmp.lt.f32.partialorder %v3514, 1.0
        %vm3547 = vcmp.lt.f32.partialorder %v3515, 1.0
        %vm3548 = vcmp.lt.f32.partialorder %v3516, 1.0
        %vm3549 = vcmp.lt.f32.partialorder %v3517, 1.0
        %vm3550 = vcmp.lt.f32.partialorder %v3518, 1.0
        %vm3551 = vcmp.lt.f32.partialorder %v3519, 1.0
        %vm3552 = vcmp.lt.f32.partialorder %v3520, 1.0
        %vm3553 = vcmp.lt.f32.partialorder %v3521, 1.0
        %vm3554 = vcmp.lt.f32.partialorder %v3522, 1.0
        %vm3555 = vcmp.lt.f32.partialorder %v3523, 1.0
        %vm3556 = vcmp.lt.f32.partialorder %v3524, 1.0
        %vm3557 = vcmp.lt.f32.partialorder %v3525, 1.0
        %vm3558 = vcmp.lt.f32.partialorder %v3526, 1.0
        %vm3559 = vcmp.lt.f32.partialorder %v3527, 1.0
        %vm3560 = vcmp.lt.f32.partialorder %v3528, 1.0
        %vm3561 = vcmp.lt.f32.partialorder %v3529, 1.0
        %vm3562 = vcmp.lt.f32.partialorder %v3530, 1.0
        %vm3563 = vcmp.lt.f32.partialorder %v3531, 1.0
        %vm3564 = vcmp.lt.f32.partialorder %v3532, 1.0
        %vm3565 = vcmp.lt.f32.partialorder %v3533, 1.0
        %vm3566 = vcmp.lt.f32.partialorder %v3534, 1.0
        %vm3567 = vcmp.lt.f32.partialorder %v3535, 1.0
        %vm3568 = vcmp.lt.f32.partialorder %v3536, 1.0
        %vm3569 = vcmp.lt.f32.partialorder %v3537, 1.0
        %vm3570 = vcmp.lt.f32.partialorder %v3538, 1.0
        %vm3571 = vcmp.lt.f32.partialorder %v3539, 1.0
        %vm3572 = vcmp.lt.f32.partialorder %v3540, 1.0
        %vm3573 = vcmp.lt.f32.partialorder %v3541, 1.0
        %vm3574 = vcmp.lt.f32.partialorder %v3542, 1.0
        %vm3575 = vcmp.lt.f32.partialorder %v3543, 1.0
        %vm3576 = vcmp.lt.f32.partialorder %v3544, 1.0
        %v3577 = vmul.f32 %v3481, 0.5
        %v3578 = vmul.f32 %v3482, 0.5
        %v3579 = vmul.f32 %v3483, 0.5
        %v3580 = vmul.f32 %v3484, 0.5
        %v3581 = vmul.f32 %v3485, 0.5
        %v3582 = vmul.f32 %v3486, 0.5
        %v3583 = vmul.f32 %v3487, 0.5
        %v3584 = vmul.f32 %v3488, 0.5
        %v3585 = vmul.f32 %v3489, 0.5
        %v3586 = vmul.f32 %v3490, 0.5
        %v3587 = vmul.f32 %v3491, 0.5
        %v3588 = vmul.f32 %v3492, 0.5
        %v3589 = vmul.f32 %v3493, 0.5
        %v3590 = vmul.f32 %v3494, 0.5
        %v3591 = vmul.f32 %v3495, 0.5
        %v3592 = vmul.f32 %v3496, 0.5
        %v3593 = vmul.f32 %v3497, 0.5
        %v3594 = vmul.f32 %v3498, 0.5
        %v3595 = vmul.f32 %v3499, 0.5
        %v3596 = vmul.f32 %v3500, 0.5
        %v3597 = vmul.f32 %v3501, 0.5
        %v3598 = vmul.f32 %v3502, 0.5
        %v3599 = vmul.f32 %v3503, 0.5
        %v3600 = vmul.f32 %v3504, 0.5
        %v3601 = vmul.f32 %v3505, 0.5
        %v3602 = vmul.f32 %v3506, 0.5
        %v3603 = vmul.f32 %v3507, 0.5
        %v3604 = vmul.f32 %v3508, 0.5
        %v3605 = vmul.f32 %v3509, 0.5
        %v3606 = vmul.f32 %v3510, 0.5
        %v3607 = vmul.f32 %v3511, 0.5
        %v3608 = vmul.f32 %v3512, 0.5
        %v3609 = vmul.f32 %v3577, %v3481
        %v3610 = vmul.f32 %v3578, %v3482
        %v3611 = vmul.f32 %v3579, %v3483
        %v3612 = vmul.f32 %v3580, %v3484
        %v3613 = vmul.f32 %v3581, %v3485
        %v3614 = vmul.f32 %v3582, %v3486
        %v3615 = vmul.f32 %v3583, %v3487
        %v3616 = vmul.f32 %v3584, %v3488
        %v3617 = vmul.f32 %v3585, %v3489
        %v3618 = vmul.f32 %v3586, %v3490
        %v3619 = vmul.f32 %v3587, %v3491
        %v3620 = vmul.f32 %v3588, %v3492
        %v3621 = vmul.f32 %v3589, %v3493
        %v3622 = vmul.f32 %v3590, %v3494
        %v3623 = vmul.f32 %v3591, %v3495
        %v3624 = vmul.f32 %v3592, %v3496
        %v3625 = vmul.f32 %v3593, %v3497
        %v3626 = vmul.f32 %v3594, %v3498
        %v3627 = vmul.f32 %v3595, %v3499
        %v3628 = vmul.f32 %v3596, %v3500
        %v3629 = vmul.f32 %v3597, %v3501
        %v3630 = vmul.f32 %v3598, %v3502
        %v3631 = vmul.f32 %v3599, %v3503
        %v3632 = vmul.f32 %v3600, %v3504
        %v3633 = vmul.f32 %v3601, %v3505
        %v3634 = vmul.f32 %v3602, %v3506
        %v3635 = vmul.f32 %v3603, %v3507
        %v3636 = vmul.f32 %v3604, %v3508
        %v3637 = vmul.f32 %v3605, %v3509
        %v3638 = vmul.f32 %v3606, %v3510
        %v3639 = vmul.f32 %v3607, %v3511
        %v3640 = vmul.f32 %v3608, %v3512
        %v3641 = vsub.f32 %v3513, 0.5
        %v3642 = vsub.f32 %v3514, 0.5
        %v3643 = vsub.f32 %v3515, 0.5
        %v3644 = vsub.f32 %v3516, 0.5
        %v3645 = vsub.f32 %v3517, 0.5
        %v3646 = vsub.f32 %v3518, 0.5
        %v3647 = vsub.f32 %v3519, 0.5
        %v3648 = vsub.f32 %v3520, 0.5
        %v3649 = vsub.f32 %v3521, 0.5
        %v3650 = vsub.f32 %v3522, 0.5
        %v3651 = vsub.f32 %v3523, 0.5
        %v3652 = vsub.f32 %v3524, 0.5
        %v3653 = vsub.f32 %v3525, 0.5
        %v3654 = vsub.f32 %v3526, 0.5
        %v3655 = vsub.f32 %v3527, 0.5
        %v3656 = vsub.f32 %v3528, 0.5
        %v3657 = vsub.f32 %v3529, 0.5
        %v3658 = vsub.f32 %v3530, 0.5
        %v3659 = vsub.f32 %v3531, 0.5
        %v3660 = vsub.f32 %v3532, 0.5
        %v3661 = vsub.f32 %v3533, 0.5
        %v3662 = vsub.f32 %v3534, 0.5
        %v3663 = vsub.f32 %v3535, 0.5
        %v3664 = vsub.f32 %v3536, 0.5
        %v3665 = vsub.f32 %v3537, 0.5
        %v3666 = vsub.f32 %v3538, 0.5
        %v3667 = vsub.f32 %v3539, 0.5
        %v3668 = vsub.f32 %v3540, 0.5
        %v3669 = vsub.f32 %v3541, 0.5
        %v3670 = vsub.f32 %v3542, 0.5
        %v3671 = vsub.f32 %v3543, 0.5
        %v3672 = vsub.f32 %v3544, 0.5
        %v3673 = vsel %vm3545, %v3609, %v3641
        %v3674 = vsel %vm3546, %v3610, %v3642
        %v3675 = vsel %vm3547, %v3611, %v3643
        %v3676 = vsel %vm3548, %v3612, %v3644
        %v3677 = vsel %vm3549, %v3613, %v3645
        %v3678 = vsel %vm3550, %v3614, %v3646
        %v3679 = vsel %vm3551, %v3615, %v3647
        %v3680 = vsel %vm3552, %v3616, %v3648
        %v3681 = vsel %vm3553, %v3617, %v3649
        %v3682 = vsel %vm3554, %v3618, %v3650
        %v3683 = vsel %vm3555, %v3619, %v3651
        %v3684 = vsel %vm3556, %v3620, %v3652
        %v3685 = vsel %vm3557, %v3621, %v3653
        %v3686 = vsel %vm3558, %v3622, %v3654
        %v3687 = vsel %vm3559, %v3623, %v3655
        %v3688 = vsel %vm3560, %v3624, %v3656
        %v3689 = vsel %vm3561, %v3625, %v3657
        %v3690 = vsel %vm3562, %v3626, %v3658
        %v3691 = vsel %vm3563, %v3627, %v3659
        %v3692 = vsel %vm3564, %v3628, %v3660
        %v3693 = vsel %vm3565, %v3629, %v3661
        %v3694 = vsel %vm3566, %v3630, %v3662
        %v3695 = vsel %vm3567, %v3631, %v3663
        %v3696 = vsel %vm3568, %v3632, %v3664
        %v3697 = vsel %vm3569, %v3633, %v3665
        %v3698 = vsel %vm3570, %v3634, %v3666
        %v3699 = vsel %vm3571, %v3635, %v3667
        %v3700 = vsel %vm3572, %v3636, %v3668
        %v3701 = vsel %vm3573, %v3637, %v3669
        %v3702 = vsel %vm3574, %v3638, %v3670
        %v3703 = vsel %vm3575, %v3639, %v3671
        %v3704 = vsel %vm3576, %v3640, %v3672
        %v3705 = vadd.f32 %v3317, %v3673
        %v3706 = vadd.f32 %v3318, %v3674
        %v3707 = vadd.f32 %v3319, %v3675
        %v3708 = vadd.f32 %v3320, %v3676
        %v3709 = vadd.f32 %v3321, %v3677
        %v3710 = vadd.f32 %v3322, %v3678
        %v3711 = vadd.f32 %v3323, %v3679
        %v3712 = vadd.f32 %v3324, %v3680
        %v3713 = vadd.f32 %v3325, %v3681
        %v3714 = vadd.f32 %v3326, %v3682
        %v3715 = vadd.f32 %v3327, %v3683
        %v3716 = vadd.f32 %v3328, %v3684
        %v3717 = vadd.f32 %v3329, %v3685
        %v3718 = vadd.f32 %v3330, %v3686
        %v3719 = vadd.f32 %v3331, %v3687
        %v3720 = vadd.f32 %v3332, %v3688
        %v3721 = vadd.f32 %v3333, %v3689
        %v3722 = vadd.f32 %v3334, %v3690
        %v3723 = vadd.f32 %v3335, %v3691
        %v3724 = vadd.f32 %v3336, %v3692
        %v3725 = vadd.f32 %v3337, %v3693
        %v3726 = vadd.f32 %v3338, %v3694
        %v3727 = vadd.f32 %v3339, %v3695
        %v3728 = vadd.f32 %v3340, %v3696
        %v3729 = vadd.f32 %v3341, %v3697
        %v3730 = vadd.f32 %v3342, %v3698
        %v3731 = vadd.f32 %v3343, %v3699
        %v3732 = vadd.f32 %v3344, %v3700
        %v3733 = vadd.f32 %v3345, %v3701
        %v3734 = vadd.f32 %v3346, %v3702
        %v3735 = vadd.f32 %v3347, %v3703
        %v3736 = vadd.f32 %v3348, %v3704
        %3737 = vset.pattern.permute.xlu0 5
        %3738 = vperm.xlu0 %3737, %v418
        %v3739 = vpop.permute.xlu0 %3738
        %3741 = vset.pattern.permute.xlu0 5
        %3742 = vperm.xlu0 %3741, %v419
        %v3743 = vpop.permute.xlu0 %3742
        %3745 = vset.pattern.permute.xlu0 5
        %3746 = vperm.xlu0 %3745, %v420
        %v3747 = vpop.permute.xlu0 %3746
        %3749 = vset.pattern.permute.xlu0 5
        %3750 = vperm.xlu0 %3749, %v421
        %v3751 = vpop.permute.xlu0 %3750
        %3753 = vset.pattern.permute.xlu0 5
        %3754 = vperm.xlu0 %3753, %v422
        %v3755 = vpop.permute.xlu0 %3754
        %3757 = vset.pattern.permute.xlu0 5
        %3758 = vperm.xlu0 %3757, %v423
        %v3759 = vpop.permute.xlu0 %3758
        %3761 = vset.pattern.permute.xlu0 5
        %3762 = vperm.xlu0 %3761, %v424
        %v3763 = vpop.permute.xlu0 %3762
        %3765 = vset.pattern.permute.xlu0 5
        %3766 = vperm.xlu0 %3765, %v425
        %v3767 = vpop.permute.xlu0 %3766
        %3769 = vset.pattern.permute.xlu0 5
        %3770 = vperm.xlu0 %3769, %v426
        %v3771 = vpop.permute.xlu0 %3770
        %3773 = vset.pattern.permute.xlu0 5
        %3774 = vperm.xlu0 %3773, %v427
        %v3775 = vpop.permute.xlu0 %3774
        %3777 = vset.pattern.permute.xlu0 5
        %3778 = vperm.xlu0 %3777, %v428
        %v3779 = vpop.permute.xlu0 %3778
        %3781 = vset.pattern.permute.xlu0 5
        %3782 = vperm.xlu0 %3781, %v429
        %v3783 = vpop.permute.xlu0 %3782
        %3785 = vset.pattern.permute.xlu0 5
        %3786 = vperm.xlu0 %3785, %v430
        %v3787 = vpop.permute.xlu0 %3786
        %3789 = vset.pattern.permute.xlu0 5
        %3790 = vperm.xlu0 %3789, %v431
        %v3791 = vpop.permute.xlu0 %3790
        %3793 = vset.pattern.permute.xlu0 5
        %3794 = vperm.xlu0 %3793, %v432
        %v3795 = vpop.permute.xlu0 %3794
        %3797 = vset.pattern.permute.xlu0 5
        %3798 = vperm.xlu0 %3797, %v433
        %v3799 = vpop.permute.xlu0 %3798
        %3801 = vset.pattern.permute.xlu0 5
        %3802 = vperm.xlu0 %3801, %v434
        %v3803 = vpop.permute.xlu0 %3802
        %3805 = vset.pattern.permute.xlu0 5
        %3806 = vperm.xlu0 %3805, %v435
        %v3807 = vpop.permute.xlu0 %3806
        %3809 = vset.pattern.permute.xlu0 5
        %3810 = vperm.xlu0 %3809, %v436
        %v3811 = vpop.permute.xlu0 %3810
        %3813 = vset.pattern.permute.xlu0 5
        %3814 = vperm.xlu0 %3813, %v437
        %v3815 = vpop.permute.xlu0 %3814
        %3817 = vset.pattern.permute.xlu0 5
        %3818 = vperm.xlu0 %3817, %v438
        %v3819 = vpop.permute.xlu0 %3818
        %3821 = vset.pattern.permute.xlu0 5
        %3822 = vperm.xlu0 %3821, %v439
        %v3823 = vpop.permute.xlu0 %3822
        %3825 = vset.pattern.permute.xlu0 5
        %3826 = vperm.xlu0 %3825, %v440
        %v3827 = vpop.permute.xlu0 %3826
        %3829 = vset.pattern.permute.xlu0 5
        %3830 = vperm.xlu0 %3829, %v441
        %v3831 = vpop.permute.xlu0 %3830
        %3833 = vset.pattern.permute.xlu0 5
        %3834 = vperm.xlu0 %3833, %v442
        %v3835 = vpop.permute.xlu0 %3834
        %3837 = vset.pattern.permute.xlu0 5
        %3838 = vperm.xlu0 %3837, %v443
        %v3839 = vpop.permute.xlu0 %3838
        %3841 = vset.pattern.permute.xlu0 5
        %3842 = vperm.xlu0 %3841, %v444
        %v3843 = vpop.permute.xlu0 %3842
        %3845 = vset.pattern.permute.xlu0 5
        %3846 = vperm.xlu0 %3845, %v445
        %v3847 = vpop.permute.xlu0 %3846
        %3849 = vset.pattern.permute.xlu0 5
        %3850 = vperm.xlu0 %3849, %v446
        %v3851 = vpop.permute.xlu0 %3850
        %3853 = vset.pattern.permute.xlu0 5
        %3854 = vperm.xlu0 %3853, %v447
        %v3855 = vpop.permute.xlu0 %3854
        %3857 = vset.pattern.permute.xlu0 5
        %3858 = vperm.xlu0 %3857, %v448
        %v3859 = vpop.permute.xlu0 %3858
        %3861 = vset.pattern.permute.xlu0 5
        %3862 = vperm.xlu0 %3861, %v449
        %v3863 = vpop.permute.xlu0 %3862
        %v3865 = vlaneseq
        %v3866 = vshrl.u32 %v3865, 7
        %v3867 = vsub.s32 5, %v3866
        %v3868 = vrot.slane %v450, %v3867
        %v3869 = vsub.f32 %v3739, %v3868
        %v3870 = vsub.f32 %v3743, %v3868
        %v3871 = vsub.f32 %v3747, %v3868
        %v3872 = vsub.f32 %v3751, %v3868
        %v3873 = vsub.f32 %v3755, %v3868
        %v3874 = vsub.f32 %v3759, %v3868
        %v3875 = vsub.f32 %v3763, %v3868
        %v3876 = vsub.f32 %v3767, %v3868
        %v3877 = vsub.f32 %v3771, %v3868
        %v3878 = vsub.f32 %v3775, %v3868
        %v3879 = vsub.f32 %v3779, %v3868
        %v3880 = vsub.f32 %v3783, %v3868
        %v3881 = vsub.f32 %v3787, %v3868
        %v3882 = vsub.f32 %v3791, %v3868
        %v3883 = vsub.f32 %v3795, %v3868
        %v3884 = vsub.f32 %v3799, %v3868
        %v3885 = vsub.f32 %v3803, %v3868
        %v3886 = vsub.f32 %v3807, %v3868
        %v3887 = vsub.f32 %v3811, %v3868
        %v3888 = vsub.f32 %v3815, %v3868
        %v3889 = vsub.f32 %v3819, %v3868
        %v3890 = vsub.f32 %v3823, %v3868
        %v3891 = vsub.f32 %v3827, %v3868
        %v3892 = vsub.f32 %v3831, %v3868
        %v3893 = vsub.f32 %v3835, %v3868
        %v3894 = vsub.f32 %v3839, %v3868
        %v3895 = vsub.f32 %v3843, %v3868
        %v3896 = vsub.f32 %v3847, %v3868
        %v3897 = vsub.f32 %v3851, %v3868
        %v3898 = vsub.f32 %v3855, %v3868
        %v3899 = vsub.f32 %v3859, %v3868
        %v3900 = vsub.f32 %v3863, %v3868
        %v3901 = vand.u32 2147483647, %v3869
        %v3902 = vand.u32 2147483647, %v3870
        %v3903 = vand.u32 2147483647, %v3871
        %v3904 = vand.u32 2147483647, %v3872
        %v3905 = vand.u32 2147483647, %v3873
        %v3906 = vand.u32 2147483647, %v3874
        %v3907 = vand.u32 2147483647, %v3875
        %v3908 = vand.u32 2147483647, %v3876
        %v3909 = vand.u32 2147483647, %v3877
        %v3910 = vand.u32 2147483647, %v3878
        %v3911 = vand.u32 2147483647, %v3879
        %v3912 = vand.u32 2147483647, %v3880
        %v3913 = vand.u32 2147483647, %v3881
        %v3914 = vand.u32 2147483647, %v3882
        %v3915 = vand.u32 2147483647, %v3883
        %v3916 = vand.u32 2147483647, %v3884
        %v3917 = vand.u32 2147483647, %v3885
        %v3918 = vand.u32 2147483647, %v3886
        %v3919 = vand.u32 2147483647, %v3887
        %v3920 = vand.u32 2147483647, %v3888
        %v3921 = vand.u32 2147483647, %v3889
        %v3922 = vand.u32 2147483647, %v3890
        %v3923 = vand.u32 2147483647, %v3891
        %v3924 = vand.u32 2147483647, %v3892
        %v3925 = vand.u32 2147483647, %v3893
        %v3926 = vand.u32 2147483647, %v3894
        %v3927 = vand.u32 2147483647, %v3895
        %v3928 = vand.u32 2147483647, %v3896
        %v3929 = vand.u32 2147483647, %v3897
        %v3930 = vand.u32 2147483647, %v3898
        %v3931 = vand.u32 2147483647, %v3899
        %v3932 = vand.u32 2147483647, %v3900
        %vm3933 = vcmp.lt.f32.partialorder %v3901, 1.0
        %vm3934 = vcmp.lt.f32.partialorder %v3902, 1.0
        %vm3935 = vcmp.lt.f32.partialorder %v3903, 1.0
        %vm3936 = vcmp.lt.f32.partialorder %v3904, 1.0
        %vm3937 = vcmp.lt.f32.partialorder %v3905, 1.0
        %vm3938 = vcmp.lt.f32.partialorder %v3906, 1.0
        %vm3939 = vcmp.lt.f32.partialorder %v3907, 1.0
        %vm3940 = vcmp.lt.f32.partialorder %v3908, 1.0
        %vm3941 = vcmp.lt.f32.partialorder %v3909, 1.0
        %vm3942 = vcmp.lt.f32.partialorder %v3910, 1.0
        %vm3943 = vcmp.lt.f32.partialorder %v3911, 1.0
        %vm3944 = vcmp.lt.f32.partialorder %v3912, 1.0
        %vm3945 = vcmp.lt.f32.partialorder %v3913, 1.0
        %vm3946 = vcmp.lt.f32.partialorder %v3914, 1.0
        %vm3947 = vcmp.lt.f32.partialorder %v3915, 1.0
        %vm3948 = vcmp.lt.f32.partialorder %v3916, 1.0
        %vm3949 = vcmp.lt.f32.partialorder %v3917, 1.0
        %vm3950 = vcmp.lt.f32.partialorder %v3918, 1.0
        %vm3951 = vcmp.lt.f32.partialorder %v3919, 1.0
        %vm3952 = vcmp.lt.f32.partialorder %v3920, 1.0
        %vm3953 = vcmp.lt.f32.partialorder %v3921, 1.0
        %vm3954 = vcmp.lt.f32.partialorder %v3922, 1.0
        %vm3955 = vcmp.lt.f32.partialorder %v3923, 1.0
        %vm3956 = vcmp.lt.f32.partialorder %v3924, 1.0
        %vm3957 = vcmp.lt.f32.partialorder %v3925, 1.0
        %vm3958 = vcmp.lt.f32.partialorder %v3926, 1.0
        %vm3959 = vcmp.lt.f32.partialorder %v3927, 1.0
        %vm3960 = vcmp.lt.f32.partialorder %v3928, 1.0
        %vm3961 = vcmp.lt.f32.partialorder %v3929, 1.0
        %vm3962 = vcmp.lt.f32.partialorder %v3930, 1.0
        %vm3963 = vcmp.lt.f32.partialorder %v3931, 1.0
        %vm3964 = vcmp.lt.f32.partialorder %v3932, 1.0
        %v3965 = vmul.f32 %v3869, 0.5
        %v3966 = vmul.f32 %v3870, 0.5
        %v3967 = vmul.f32 %v3871, 0.5
        %v3968 = vmul.f32 %v3872, 0.5
        %v3969 = vmul.f32 %v3873, 0.5
        %v3970 = vmul.f32 %v3874, 0.5
        %v3971 = vmul.f32 %v3875, 0.5
        %v3972 = vmul.f32 %v3876, 0.5
        %v3973 = vmul.f32 %v3877, 0.5
        %v3974 = vmul.f32 %v3878, 0.5
        %v3975 = vmul.f32 %v3879, 0.5
        %v3976 = vmul.f32 %v3880, 0.5
        %v3977 = vmul.f32 %v3881, 0.5
        %v3978 = vmul.f32 %v3882, 0.5
        %v3979 = vmul.f32 %v3883, 0.5
        %v3980 = vmul.f32 %v3884, 0.5
        %v3981 = vmul.f32 %v3885, 0.5
        %v3982 = vmul.f32 %v3886, 0.5
        %v3983 = vmul.f32 %v3887, 0.5
        %v3984 = vmul.f32 %v3888, 0.5
        %v3985 = vmul.f32 %v3889, 0.5
        %v3986 = vmul.f32 %v3890, 0.5
        %v3987 = vmul.f32 %v3891, 0.5
        %v3988 = vmul.f32 %v3892, 0.5
        %v3989 = vmul.f32 %v3893, 0.5
        %v3990 = vmul.f32 %v3894, 0.5
        %v3991 = vmul.f32 %v3895, 0.5
        %v3992 = vmul.f32 %v3896, 0.5
        %v3993 = vmul.f32 %v3897, 0.5
        %v3994 = vmul.f32 %v3898, 0.5
        %v3995 = vmul.f32 %v3899, 0.5
        %v3996 = vmul.f32 %v3900, 0.5
        %v3997 = vmul.f32 %v3965, %v3869
        %v3998 = vmul.f32 %v3966, %v3870
        %v3999 = vmul.f32 %v3967, %v3871
        %v4000 = vmul.f32 %v3968, %v3872
        %v4001 = vmul.f32 %v3969, %v3873
        %v4002 = vmul.f32 %v3970, %v3874
        %v4003 = vmul.f32 %v3971, %v3875
        %v4004 = vmul.f32 %v3972, %v3876
        %v4005 = vmul.f32 %v3973, %v3877
        %v4006 = vmul.f32 %v3974, %v3878
        %v4007 = vmul.f32 %v3975, %v3879
        %v4008 = vmul.f32 %v3976, %v3880
        %v4009 = vmul.f32 %v3977, %v3881
        %v4010 = vmul.f32 %v3978, %v3882
        %v4011 = vmul.f32 %v3979, %v3883
        %v4012 = vmul.f32 %v3980, %v3884
        %v4013 = vmul.f32 %v3981, %v3885
        %v4014 = vmul.f32 %v3982, %v3886
        %v4015 = vmul.f32 %v3983, %v3887
        %v4016 = vmul.f32 %v3984, %v3888
        %v4017 = vmul.f32 %v3985, %v3889
        %v4018 = vmul.f32 %v3986, %v3890
        %v4019 = vmul.f32 %v3987, %v3891
        %v4020 = vmul.f32 %v3988, %v3892
        %v4021 = vmul.f32 %v3989, %v3893
        %v4022 = vmul.f32 %v3990, %v3894
        %v4023 = vmul.f32 %v3991, %v3895
        %v4024 = vmul.f32 %v3992, %v3896
        %v4025 = vmul.f32 %v3993, %v3897
        %v4026 = vmul.f32 %v3994, %v3898
        %v4027 = vmul.f32 %v3995, %v3899
        %v4028 = vmul.f32 %v3996, %v3900
        %v4029 = vsub.f32 %v3901, 0.5
        %v4030 = vsub.f32 %v3902, 0.5
        %v4031 = vsub.f32 %v3903, 0.5
        %v4032 = vsub.f32 %v3904, 0.5
        %v4033 = vsub.f32 %v3905, 0.5
        %v4034 = vsub.f32 %v3906, 0.5
        %v4035 = vsub.f32 %v3907, 0.5
        %v4036 = vsub.f32 %v3908, 0.5
        %v4037 = vsub.f32 %v3909, 0.5
        %v4038 = vsub.f32 %v3910, 0.5
        %v4039 = vsub.f32 %v3911, 0.5
        %v4040 = vsub.f32 %v3912, 0.5
        %v4041 = vsub.f32 %v3913, 0.5
        %v4042 = vsub.f32 %v3914, 0.5
        %v4043 = vsub.f32 %v3915, 0.5
        %v4044 = vsub.f32 %v3916, 0.5
        %v4045 = vsub.f32 %v3917, 0.5
        %v4046 = vsub.f32 %v3918, 0.5
        %v4047 = vsub.f32 %v3919, 0.5
        %v4048 = vsub.f32 %v3920, 0.5
        %v4049 = vsub.f32 %v3921, 0.5
        %v4050 = vsub.f32 %v3922, 0.5
        %v4051 = vsub.f32 %v3923, 0.5
        %v4052 = vsub.f32 %v3924, 0.5
        %v4053 = vsub.f32 %v3925, 0.5
        %v4054 = vsub.f32 %v3926, 0.5
        %v4055 = vsub.f32 %v3927, 0.5
        %v4056 = vsub.f32 %v3928, 0.5
        %v4057 = vsub.f32 %v3929, 0.5
        %v4058 = vsub.f32 %v3930, 0.5
        %v4059 = vsub.f32 %v3931, 0.5
        %v4060 = vsub.f32 %v3932, 0.5
        %v4061 = vsel %vm3933, %v3997, %v4029
        %v4062 = vsel %vm3934, %v3998, %v4030
        %v4063 = vsel %vm3935, %v3999, %v4031
        %v4064 = vsel %vm3936, %v4000, %v4032
        %v4065 = vsel %vm3937, %v4001, %v4033
        %v4066 = vsel %vm3938, %v4002, %v4034
        %v4067 = vsel %vm3939, %v4003, %v4035
        %v4068 = vsel %vm3940, %v4004, %v4036
        %v4069 = vsel %vm3941, %v4005, %v4037
        %v4070 = vsel %vm3942, %v4006, %v4038
        %v4071 = vsel %vm3943, %v4007, %v4039
        %v4072 = vsel %vm3944, %v4008, %v4040
        %v4073 = vsel %vm3945, %v4009, %v4041
        %v4074 = vsel %vm3946, %v4010, %v4042
        %v4075 = vsel %vm3947, %v4011, %v4043
        %v4076 = vsel %vm3948, %v4012, %v4044
        %v4077 = vsel %vm3949, %v4013, %v4045
        %v4078 = vsel %vm3950, %v4014, %v4046
        %v4079 = vsel %vm3951, %v4015, %v4047
        %v4080 = vsel %vm3952, %v4016, %v4048
        %v4081 = vsel %vm3953, %v4017, %v4049
        %v4082 = vsel %vm3954, %v4018, %v4050
        %v4083 = vsel %vm3955, %v4019, %v4051
        %v4084 = vsel %vm3956, %v4020, %v4052
        %v4085 = vsel %vm3957, %v4021, %v4053
        %v4086 = vsel %vm3958, %v4022, %v4054
        %v4087 = vsel %vm3959, %v4023, %v4055
        %v4088 = vsel %vm3960, %v4024, %v4056
        %v4089 = vsel %vm3961, %v4025, %v4057
        %v4090 = vsel %vm3962, %v4026, %v4058
        %v4091 = vsel %vm3963, %v4027, %v4059
        %v4092 = vsel %vm3964, %v4028, %v4060
        %v4093 = vadd.f32 %v3705, %v4061
        %v4094 = vadd.f32 %v3706, %v4062
        %v4095 = vadd.f32 %v3707, %v4063
        %v4096 = vadd.f32 %v3708, %v4064
        %v4097 = vadd.f32 %v3709, %v4065
        %v4098 = vadd.f32 %v3710, %v4066
        %v4099 = vadd.f32 %v3711, %v4067
        %v4100 = vadd.f32 %v3712, %v4068
        %v4101 = vadd.f32 %v3713, %v4069
        %v4102 = vadd.f32 %v3714, %v4070
        %v4103 = vadd.f32 %v3715, %v4071
        %v4104 = vadd.f32 %v3716, %v4072
        %v4105 = vadd.f32 %v3717, %v4073
        %v4106 = vadd.f32 %v3718, %v4074
        %v4107 = vadd.f32 %v3719, %v4075
        %v4108 = vadd.f32 %v3720, %v4076
        %v4109 = vadd.f32 %v3721, %v4077
        %v4110 = vadd.f32 %v3722, %v4078
        %v4111 = vadd.f32 %v3723, %v4079
        %v4112 = vadd.f32 %v3724, %v4080
        %v4113 = vadd.f32 %v3725, %v4081
        %v4114 = vadd.f32 %v3726, %v4082
        %v4115 = vadd.f32 %v3727, %v4083
        %v4116 = vadd.f32 %v3728, %v4084
        %v4117 = vadd.f32 %v3729, %v4085
        %v4118 = vadd.f32 %v3730, %v4086
        %v4119 = vadd.f32 %v3731, %v4087
        %v4120 = vadd.f32 %v3732, %v4088
        %v4121 = vadd.f32 %v3733, %v4089
        %v4122 = vadd.f32 %v3734, %v4090
        %v4123 = vadd.f32 %v3735, %v4091
        %v4124 = vadd.f32 %v3736, %v4092
        %v4125 = vmul.f32 %v4093, 0.33333334
        %v4126 = vmul.f32 %v4094, 0.33333334
        %v4127 = vmul.f32 %v4095, 0.33333334
        %v4128 = vmul.f32 %v4096, 0.33333334
        %v4129 = vmul.f32 %v4097, 0.33333334
        %v4130 = vmul.f32 %v4098, 0.33333334
        %v4131 = vmul.f32 %v4099, 0.33333334
        %v4132 = vmul.f32 %v4100, 0.33333334
        %v4133 = vmul.f32 %v4101, 0.33333334
        %v4134 = vmul.f32 %v4102, 0.33333334
        %v4135 = vmul.f32 %v4103, 0.33333334
        %v4136 = vmul.f32 %v4104, 0.33333334
        %v4137 = vmul.f32 %v4105, 0.33333334
        %v4138 = vmul.f32 %v4106, 0.33333334
        %v4139 = vmul.f32 %v4107, 0.33333334
        %v4140 = vmul.f32 %v4108, 0.33333334
        %v4141 = vmul.f32 %v4109, 0.33333334
        %v4142 = vmul.f32 %v4110, 0.33333334
        %v4143 = vmul.f32 %v4111, 0.33333334
        %v4144 = vmul.f32 %v4112, 0.33333334
        %v4145 = vmul.f32 %v4113, 0.33333334
        %v4146 = vmul.f32 %v4114, 0.33333334
        %v4147 = vmul.f32 %v4115, 0.33333334
        %v4148 = vmul.f32 %v4116, 0.33333334
        %v4149 = vmul.f32 %v4117, 0.33333334
        %v4150 = vmul.f32 %v4118, 0.33333334
        %v4151 = vmul.f32 %v4119, 0.33333334
        %v4152 = vmul.f32 %v4120, 0.33333334
        %v4153 = vmul.f32 %v4121, 0.33333334
        %v4154 = vmul.f32 %v4122, 0.33333334
        %v4155 = vmul.f32 %v4123, 0.33333334
        %v4156 = vmul.f32 %v4124, 0.33333334
        %v4157 = vadd.f32 %v2929, %v4125
        %v4158 = vadd.f32 %v2930, %v4126
        %v4159 = vadd.f32 %v2931, %v4127
        %v4160 = vadd.f32 %v2932, %v4128
        %v4161 = vadd.f32 %v2933, %v4129
        %v4162 = vadd.f32 %v2934, %v4130
        %v4163 = vadd.f32 %v2935, %v4131
        %v4164 = vadd.f32 %v2936, %v4132
        %v4165 = vadd.f32 %v2937, %v4133
        %v4166 = vadd.f32 %v2938, %v4134
        %v4167 = vadd.f32 %v2939, %v4135
        %v4168 = vadd.f32 %v2940, %v4136
        %v4169 = vadd.f32 %v2941, %v4137
        %v4170 = vadd.f32 %v2942, %v4138
        %v4171 = vadd.f32 %v2943, %v4139
        %v4172 = vadd.f32 %v2944, %v4140
        %v4173 = vadd.f32 %v2945, %v4141
        %v4174 = vadd.f32 %v2946, %v4142
        %v4175 = vadd.f32 %v2947, %v4143
        %v4176 = vadd.f32 %v2948, %v4144
        %v4177 = vadd.f32 %v2949, %v4145
        %v4178 = vadd.f32 %v2950, %v4146
        %v4179 = vadd.f32 %v2951, %v4147
        %v4180 = vadd.f32 %v2952, %v4148
        %v4181 = vadd.f32 %v2953, %v4149
        %v4182 = vadd.f32 %v2954, %v4150
        %v4183 = vadd.f32 %v2955, %v4151
        %v4184 = vadd.f32 %v2956, %v4152
        %v4185 = vadd.f32 %v2957, %v4153
        %v4186 = vadd.f32 %v2958, %v4154
        %v4187 = vadd.f32 %v2959, %v4155
        %v4188 = vadd.f32 %v2960, %v4156
        %4189 = vst [vmem:[#allocation4] sm:$0xff] %v4157
        %4190 = vst [vmem:[#allocation4 + $0x8] sm:$0xff] %v4158
        %4191 = vst [vmem:[#allocation4 + $0x10] sm:$0xff] %v4159
        %4192 = vst [vmem:[#allocation4 + $0x18] sm:$0xff] %v4160
        %4193 = vst [vmem:[#allocation4 + $0x20] sm:$0xff] %v4161
        %4194 = vst [vmem:[#allocation4 + $0x28] sm:$0xff] %v4162
        %4195 = vst [vmem:[#allocation4 + $0x30] sm:$0xff] %v4163
        %4196 = vst [vmem:[#allocation4 + $0x38] sm:$0xff] %v4164
        %4197 = vst [vmem:[#allocation4 + $0x40] sm:$0xff] %v4165
        %4198 = vst [vmem:[#allocation4 + $0x48] sm:$0xff] %v4166
        %4199 = vst [vmem:[#allocation4 + $0x50] sm:$0xff] %v4167
        %4200 = vst [vmem:[#allocation4 + $0x58] sm:$0xff] %v4168
        %4201 = vst [vmem:[#allocation4 + $0x60] sm:$0xff] %v4169
        %4202 = vst [vmem:[#allocation4 + $0x68] sm:$0xff] %v4170
        %4203 = vst [vmem:[#allocation4 + $0x70] sm:$0xff] %v4171
        %4204 = vst [vmem:[#allocation4 + $0x78] sm:$0xff] %v4172
        %4205 = vst [vmem:[#allocation4 + $0x80] sm:$0xff] %v4173
        %4206 = vst [vmem:[#allocation4 + $0x88] sm:$0xff] %v4174
        %4207 = vst [vmem:[#allocation4 + $0x90] sm:$0xff] %v4175
        %4208 = vst [vmem:[#allocation4 + $0x98] sm:$0xff] %v4176
        %4209 = vst [vmem:[#allocation4 + $0xa0] sm:$0xff] %v4177
        %4210 = vst [vmem:[#allocation4 + $0xa8] sm:$0xff] %v4178
        %4211 = vst [vmem:[#allocation4 + $0xb0] sm:$0xff] %v4179
        %4212 = vst [vmem:[#allocation4 + $0xb8] sm:$0xff] %v4180
        %4213 = vst [vmem:[#allocation4 + $0xc0] sm:$0xff] %v4181
        %4214 = vst [vmem:[#allocation4 + $0xc8] sm:$0xff] %v4182
        %4215 = vst [vmem:[#allocation4 + $0xd0] sm:$0xff] %v4183
        %4216 = vst [vmem:[#allocation4 + $0xd8] sm:$0xff] %v4184
        %4217 = vst [vmem:[#allocation4 + $0xe0] sm:$0xff] %v4185
        %4218 = vst [vmem:[#allocation4 + $0xe8] sm:$0xff] %v4186
        %4219 = vst [vmem:[#allocation4 + $0xf0] sm:$0xff] %v4187
        %4220 = vst [vmem:[#allocation4 + $0xf8] sm:$0xff] %v4188
        %4221 = vset.pattern.permute.xlu0 6
        %4222 = vperm.xlu0 %4221, %v418
        %v4223 = vpop.permute.xlu0 %4222
        %4225 = vset.pattern.permute.xlu0 6
        %4226 = vperm.xlu0 %4225, %v419
        %v4227 = vpop.permute.xlu0 %4226
        %4229 = vset.pattern.permute.xlu0 6
        %4230 = vperm.xlu0 %4229, %v420
        %v4231 = vpop.permute.xlu0 %4230
        %4233 = vset.pattern.permute.xlu0 6
        %4234 = vperm.xlu0 %4233, %v421
        %v4235 = vpop.permute.xlu0 %4234
        %4237 = vset.pattern.permute.xlu0 6
        %4238 = vperm.xlu0 %4237, %v422
        %v4239 = vpop.permute.xlu0 %4238
        %4241 = vset.pattern.permute.xlu0 6
        %4242 = vperm.xlu0 %4241, %v423
        %v4243 = vpop.permute.xlu0 %4242
        %4245 = vset.pattern.permute.xlu0 6
        %4246 = vperm.xlu0 %4245, %v424
        %v4247 = vpop.permute.xlu0 %4246
        %4249 = vset.pattern.permute.xlu0 6
        %4250 = vperm.xlu0 %4249, %v425
        %v4251 = vpop.permute.xlu0 %4250
        %4253 = vset.pattern.permute.xlu0 6
        %4254 = vperm.xlu0 %4253, %v426
        %v4255 = vpop.permute.xlu0 %4254
        %4257 = vset.pattern.permute.xlu0 6
        %4258 = vperm.xlu0 %4257, %v427
        %v4259 = vpop.permute.xlu0 %4258
        %4261 = vset.pattern.permute.xlu0 6
        %4262 = vperm.xlu0 %4261, %v428
        %v4263 = vpop.permute.xlu0 %4262
        %4265 = vset.pattern.permute.xlu0 6
        %4266 = vperm.xlu0 %4265, %v429
        %v4267 = vpop.permute.xlu0 %4266
        %4269 = vset.pattern.permute.xlu0 6
        %4270 = vperm.xlu0 %4269, %v430
        %v4271 = vpop.permute.xlu0 %4270
        %4273 = vset.pattern.permute.xlu0 6
        %4274 = vperm.xlu0 %4273, %v431
        %v4275 = vpop.permute.xlu0 %4274
        %4277 = vset.pattern.permute.xlu0 6
        %4278 = vperm.xlu0 %4277, %v432
        %v4279 = vpop.permute.xlu0 %4278
        %4281 = vset.pattern.permute.xlu0 6
        %4282 = vperm.xlu0 %4281, %v433
        %v4283 = vpop.permute.xlu0 %4282
        %4285 = vset.pattern.permute.xlu0 6
        %4286 = vperm.xlu0 %4285, %v434
        %v4287 = vpop.permute.xlu0 %4286
        %4289 = vset.pattern.permute.xlu0 6
        %4290 = vperm.xlu0 %4289, %v435
        %v4291 = vpop.permute.xlu0 %4290
        %4293 = vset.pattern.permute.xlu0 6
        %4294 = vperm.xlu0 %4293, %v436
        %v4295 = vpop.permute.xlu0 %4294
        %4297 = vset.pattern.permute.xlu0 6
        %4298 = vperm.xlu0 %4297, %v437
        %v4299 = vpop.permute.xlu0 %4298
        %4301 = vset.pattern.permute.xlu0 6
        %4302 = vperm.xlu0 %4301, %v438
        %v4303 = vpop.permute.xlu0 %4302
        %4305 = vset.pattern.permute.xlu0 6
        %4306 = vperm.xlu0 %4305, %v439
        %v4307 = vpop.permute.xlu0 %4306
        %4309 = vset.pattern.permute.xlu0 6
        %4310 = vperm.xlu0 %4309, %v440
        %v4311 = vpop.permute.xlu0 %4310
        %4313 = vset.pattern.permute.xlu0 6
        %4314 = vperm.xlu0 %4313, %v441
        %v4315 = vpop.permute.xlu0 %4314
        %4317 = vset.pattern.permute.xlu0 6
        %4318 = vperm.xlu0 %4317, %v442
        %v4319 = vpop.permute.xlu0 %4318
        %4321 = vset.pattern.permute.xlu0 6
        %4322 = vperm.xlu0 %4321, %v443
        %v4323 = vpop.permute.xlu0 %4322
        %4325 = vset.pattern.permute.xlu0 6
        %4326 = vperm.xlu0 %4325, %v444
        %v4327 = vpop.permute.xlu0 %4326
        %4329 = vset.pattern.permute.xlu0 6
        %4330 = vperm.xlu0 %4329, %v445
        %v4331 = vpop.permute.xlu0 %4330
        %4333 = vset.pattern.permute.xlu0 6
        %4334 = vperm.xlu0 %4333, %v446
        %v4335 = vpop.permute.xlu0 %4334
        %4337 = vset.pattern.permute.xlu0 6
        %4338 = vperm.xlu0 %4337, %v447
        %v4339 = vpop.permute.xlu0 %4338
        %4341 = vset.pattern.permute.xlu0 6
        %4342 = vperm.xlu0 %4341, %v448
        %v4343 = vpop.permute.xlu0 %4342
        %4345 = vset.pattern.permute.xlu0 6
        %4346 = vperm.xlu0 %4345, %v449
        %v4347 = vpop.permute.xlu0 %4346
        %v4349 = vlaneseq
        %v4350 = vshrl.u32 %v4349, 7
        %v4351 = vsub.s32 6, %v4350
        %v4352 = vrot.slane %v450, %v4351
        %v4353 = vsub.f32 %v4223, %v4352
        %v4354 = vsub.f32 %v4227, %v4352
        %v4355 = vsub.f32 %v4231, %v4352
        %v4356 = vsub.f32 %v4235, %v4352
        %v4357 = vsub.f32 %v4239, %v4352
        %v4358 = vsub.f32 %v4243, %v4352
        %v4359 = vsub.f32 %v4247, %v4352
        %v4360 = vsub.f32 %v4251, %v4352
        %v4361 = vsub.f32 %v4255, %v4352
        %v4362 = vsub.f32 %v4259, %v4352
        %v4363 = vsub.f32 %v4263, %v4352
        %v4364 = vsub.f32 %v4267, %v4352
        %v4365 = vsub.f32 %v4271, %v4352
        %v4366 = vsub.f32 %v4275, %v4352
        %v4367 = vsub.f32 %v4279, %v4352
        %v4368 = vsub.f32 %v4283, %v4352
        %v4369 = vsub.f32 %v4287, %v4352
        %v4370 = vsub.f32 %v4291, %v4352
        %v4371 = vsub.f32 %v4295, %v4352
        %v4372 = vsub.f32 %v4299, %v4352
        %v4373 = vsub.f32 %v4303, %v4352
        %v4374 = vsub.f32 %v4307, %v4352
        %v4375 = vsub.f32 %v4311, %v4352
        %v4376 = vsub.f32 %v4315, %v4352
        %v4377 = vsub.f32 %v4319, %v4352
        %v4378 = vsub.f32 %v4323, %v4352
        %v4379 = vsub.f32 %v4327, %v4352
        %v4380 = vsub.f32 %v4331, %v4352
        %v4381 = vsub.f32 %v4335, %v4352
        %v4382 = vsub.f32 %v4339, %v4352
        %v4383 = vsub.f32 %v4343, %v4352
        %v4384 = vsub.f32 %v4347, %v4352
        %v4385 = vand.u32 2147483647, %v4353
        %v4386 = vand.u32 2147483647, %v4354
        %v4387 = vand.u32 2147483647, %v4355
        %v4388 = vand.u32 2147483647, %v4356
        %v4389 = vand.u32 2147483647, %v4357
        %v4390 = vand.u32 2147483647, %v4358
        %v4391 = vand.u32 2147483647, %v4359
        %v4392 = vand.u32 2147483647, %v4360
        %v4393 = vand.u32 2147483647, %v4361
        %v4394 = vand.u32 2147483647, %v4362
        %v4395 = vand.u32 2147483647, %v4363
        %v4396 = vand.u32 2147483647, %v4364
        %v4397 = vand.u32 2147483647, %v4365
        %v4398 = vand.u32 2147483647, %v4366
        %v4399 = vand.u32 2147483647, %v4367
        %v4400 = vand.u32 2147483647, %v4368
        %v4401 = vand.u32 2147483647, %v4369
        %v4402 = vand.u32 2147483647, %v4370
        %v4403 = vand.u32 2147483647, %v4371
        %v4404 = vand.u32 2147483647, %v4372
        %v4405 = vand.u32 2147483647, %v4373
        %v4406 = vand.u32 2147483647, %v4374
        %v4407 = vand.u32 2147483647, %v4375
        %v4408 = vand.u32 2147483647, %v4376
        %v4409 = vand.u32 2147483647, %v4377
        %v4410 = vand.u32 2147483647, %v4378
        %v4411 = vand.u32 2147483647, %v4379
        %v4412 = vand.u32 2147483647, %v4380
        %v4413 = vand.u32 2147483647, %v4381
        %v4414 = vand.u32 2147483647, %v4382
        %v4415 = vand.u32 2147483647, %v4383
        %v4416 = vand.u32 2147483647, %v4384
        %vm4417 = vcmp.lt.f32.partialorder %v4385, 1.0
        %vm4418 = vcmp.lt.f32.partialorder %v4386, 1.0
        %vm4419 = vcmp.lt.f32.partialorder %v4387, 1.0
        %vm4420 = vcmp.lt.f32.partialorder %v4388, 1.0
        %vm4421 = vcmp.lt.f32.partialorder %v4389, 1.0
        %vm4422 = vcmp.lt.f32.partialorder %v4390, 1.0
        %vm4423 = vcmp.lt.f32.partialorder %v4391, 1.0
        %vm4424 = vcmp.lt.f32.partialorder %v4392, 1.0
        %vm4425 = vcmp.lt.f32.partialorder %v4393, 1.0
        %vm4426 = vcmp.lt.f32.partialorder %v4394, 1.0
        %vm4427 = vcmp.lt.f32.partialorder %v4395, 1.0
        %vm4428 = vcmp.lt.f32.partialorder %v4396, 1.0
        %vm4429 = vcmp.lt.f32.partialorder %v4397, 1.0
        %vm4430 = vcmp.lt.f32.partialorder %v4398, 1.0
        %vm4431 = vcmp.lt.f32.partialorder %v4399, 1.0
        %vm4432 = vcmp.lt.f32.partialorder %v4400, 1.0
        %vm4433 = vcmp.lt.f32.partialorder %v4401, 1.0
        %vm4434 = vcmp.lt.f32.partialorder %v4402, 1.0
        %vm4435 = vcmp.lt.f32.partialorder %v4403, 1.0
        %vm4436 = vcmp.lt.f32.partialorder %v4404, 1.0
        %vm4437 = vcmp.lt.f32.partialorder %v4405, 1.0
        %vm4438 = vcmp.lt.f32.partialorder %v4406, 1.0
        %vm4439 = vcmp.lt.f32.partialorder %v4407, 1.0
        %vm4440 = vcmp.lt.f32.partialorder %v4408, 1.0
        %vm4441 = vcmp.lt.f32.partialorder %v4409, 1.0
        %vm4442 = vcmp.lt.f32.partialorder %v4410, 1.0
        %vm4443 = vcmp.lt.f32.partialorder %v4411, 1.0
        %vm4444 = vcmp.lt.f32.partialorder %v4412, 1.0
        %vm4445 = vcmp.lt.f32.partialorder %v4413, 1.0
        %vm4446 = vcmp.lt.f32.partialorder %v4414, 1.0
        %vm4447 = vcmp.lt.f32.partialorder %v4415, 1.0
        %vm4448 = vcmp.lt.f32.partialorder %v4416, 1.0
        %v4449 = vmul.f32 %v4353, 0.5
        %v4450 = vmul.f32 %v4354, 0.5
        %v4451 = vmul.f32 %v4355, 0.5
        %v4452 = vmul.f32 %v4356, 0.5
        %v4453 = vmul.f32 %v4357, 0.5
        %v4454 = vmul.f32 %v4358, 0.5
        %v4455 = vmul.f32 %v4359, 0.5
        %v4456 = vmul.f32 %v4360, 0.5
        %v4457 = vmul.f32 %v4361, 0.5
        %v4458 = vmul.f32 %v4362, 0.5
        %v4459 = vmul.f32 %v4363, 0.5
        %v4460 = vmul.f32 %v4364, 0.5
        %v4461 = vmul.f32 %v4365, 0.5
        %v4462 = vmul.f32 %v4366, 0.5
        %v4463 = vmul.f32 %v4367, 0.5
        %v4464 = vmul.f32 %v4368, 0.5
        %v4465 = vmul.f32 %v4369, 0.5
        %v4466 = vmul.f32 %v4370, 0.5
        %v4467 = vmul.f32 %v4371, 0.5
        %v4468 = vmul.f32 %v4372, 0.5
        %v4469 = vmul.f32 %v4373, 0.5
        %v4470 = vmul.f32 %v4374, 0.5
        %v4471 = vmul.f32 %v4375, 0.5
        %v4472 = vmul.f32 %v4376, 0.5
        %v4473 = vmul.f32 %v4377, 0.5
        %v4474 = vmul.f32 %v4378, 0.5
        %v4475 = vmul.f32 %v4379, 0.5
        %v4476 = vmul.f32 %v4380, 0.5
        %v4477 = vmul.f32 %v4381, 0.5
        %v4478 = vmul.f32 %v4382, 0.5
        %v4479 = vmul.f32 %v4383, 0.5
        %v4480 = vmul.f32 %v4384, 0.5
        %v4481 = vmul.f32 %v4449, %v4353
        %v4482 = vmul.f32 %v4450, %v4354
        %v4483 = vmul.f32 %v4451, %v4355
        %v4484 = vmul.f32 %v4452, %v4356
        %v4485 = vmul.f32 %v4453, %v4357
        %v4486 = vmul.f32 %v4454, %v4358
        %v4487 = vmul.f32 %v4455, %v4359
        %v4488 = vmul.f32 %v4456, %v4360
        %v4489 = vmul.f32 %v4457, %v4361
        %v4490 = vmul.f32 %v4458, %v4362
        %v4491 = vmul.f32 %v4459, %v4363
        %v4492 = vmul.f32 %v4460, %v4364
        %v4493 = vmul.f32 %v4461, %v4365
        %v4494 = vmul.f32 %v4462, %v4366
        %v4495 = vmul.f32 %v4463, %v4367
        %v4496 = vmul.f32 %v4464, %v4368
        %v4497 = vmul.f32 %v4465, %v4369
        %v4498 = vmul.f32 %v4466, %v4370
        %v4499 = vmul.f32 %v4467, %v4371
        %v4500 = vmul.f32 %v4468, %v4372
        %v4501 = vmul.f32 %v4469, %v4373
        %v4502 = vmul.f32 %v4470, %v4374
        %v4503 = vmul.f32 %v4471, %v4375
        %v4504 = vmul.f32 %v4472, %v4376
        %v4505 = vmul.f32 %v4473, %v4377
        %v4506 = vmul.f32 %v4474, %v4378
        %v4507 = vmul.f32 %v4475, %v4379
        %v4508 = vmul.f32 %v4476, %v4380
        %v4509 = vmul.f32 %v4477, %v4381
        %v4510 = vmul.f32 %v4478, %v4382
        %v4511 = vmul.f32 %v4479, %v4383
        %v4512 = vmul.f32 %v4480, %v4384
        %v4513 = vsub.f32 %v4385, 0.5
        %v4514 = vsub.f32 %v4386, 0.5
        %v4515 = vsub.f32 %v4387, 0.5
        %v4516 = vsub.f32 %v4388, 0.5
        %v4517 = vsub.f32 %v4389, 0.5
        %v4518 = vsub.f32 %v4390, 0.5
        %v4519 = vsub.f32 %v4391, 0.5
        %v4520 = vsub.f32 %v4392, 0.5
        %v4521 = vsub.f32 %v4393, 0.5
        %v4522 = vsub.f32 %v4394, 0.5
        %v4523 = vsub.f32 %v4395, 0.5
        %v4524 = vsub.f32 %v4396, 0.5
        %v4525 = vsub.f32 %v4397, 0.5
        %v4526 = vsub.f32 %v4398, 0.5
        %v4527 = vsub.f32 %v4399, 0.5
        %v4528 = vsub.f32 %v4400, 0.5
        %v4529 = vsub.f32 %v4401, 0.5
        %v4530 = vsub.f32 %v4402, 0.5
        %v4531 = vsub.f32 %v4403, 0.5
        %v4532 = vsub.f32 %v4404, 0.5
        %v4533 = vsub.f32 %v4405, 0.5
        %v4534 = vsub.f32 %v4406, 0.5
        %v4535 = vsub.f32 %v4407, 0.5
        %v4536 = vsub.f32 %v4408, 0.5
        %v4537 = vsub.f32 %v4409, 0.5
        %v4538 = vsub.f32 %v4410, 0.5
        %v4539 = vsub.f32 %v4411, 0.5
        %v4540 = vsub.f32 %v4412, 0.5
        %v4541 = vsub.f32 %v4413, 0.5
        %v4542 = vsub.f32 %v4414, 0.5
        %v4543 = vsub.f32 %v4415, 0.5
        %v4544 = vsub.f32 %v4416, 0.5
        %v4545 = vsel %vm4417, %v4481, %v4513
        %v4546 = vsel %vm4418, %v4482, %v4514
        %v4547 = vsel %vm4419, %v4483, %v4515
        %v4548 = vsel %vm4420, %v4484, %v4516
        %v4549 = vsel %vm4421, %v4485, %v4517
        %v4550 = vsel %vm4422, %v4486, %v4518
        %v4551 = vsel %vm4423, %v4487, %v4519
        %v4552 = vsel %vm4424, %v4488, %v4520
        %v4553 = vsel %vm4425, %v4489, %v4521
        %v4554 = vsel %vm4426, %v4490, %v4522
        %v4555 = vsel %vm4427, %v4491, %v4523
        %v4556 = vsel %vm4428, %v4492, %v4524
        %v4557 = vsel %vm4429, %v4493, %v4525
        %v4558 = vsel %vm4430, %v4494, %v4526
        %v4559 = vsel %vm4431, %v4495, %v4527
        %v4560 = vsel %vm4432, %v4496, %v4528
        %v4561 = vsel %vm4433, %v4497, %v4529
        %v4562 = vsel %vm4434, %v4498, %v4530
        %v4563 = vsel %vm4435, %v4499, %v4531
        %v4564 = vsel %vm4436, %v4500, %v4532
        %v4565 = vsel %vm4437, %v4501, %v4533
        %v4566 = vsel %vm4438, %v4502, %v4534
        %v4567 = vsel %vm4439, %v4503, %v4535
        %v4568 = vsel %vm4440, %v4504, %v4536
        %v4569 = vsel %vm4441, %v4505, %v4537
        %v4570 = vsel %vm4442, %v4506, %v4538
        %v4571 = vsel %vm4443, %v4507, %v4539
        %v4572 = vsel %vm4444, %v4508, %v4540
        %v4573 = vsel %vm4445, %v4509, %v4541
        %v4574 = vsel %vm4446, %v4510, %v4542
        %v4575 = vsel %vm4447, %v4511, %v4543
        %v4576 = vsel %vm4448, %v4512, %v4544
        %v4577 = vadd.f32 %v4545, 0.0
        %v4578 = vadd.f32 %v4546, 0.0
        %v4579 = vadd.f32 %v4547, 0.0
        %v4580 = vadd.f32 %v4548, 0.0
        %v4581 = vadd.f32 %v4549, 0.0
        %v4582 = vadd.f32 %v4550, 0.0
        %v4583 = vadd.f32 %v4551, 0.0
        %v4584 = vadd.f32 %v4552, 0.0
        %v4585 = vadd.f32 %v4553, 0.0
        %v4586 = vadd.f32 %v4554, 0.0
        %v4587 = vadd.f32 %v4555, 0.0
        %v4588 = vadd.f32 %v4556, 0.0
        %v4589 = vadd.f32 %v4557, 0.0
        %v4590 = vadd.f32 %v4558, 0.0
        %v4591 = vadd.f32 %v4559, 0.0
        %v4592 = vadd.f32 %v4560, 0.0
        %v4593 = vadd.f32 %v4561, 0.0
        %v4594 = vadd.f32 %v4562, 0.0
        %v4595 = vadd.f32 %v4563, 0.0
        %v4596 = vadd.f32 %v4564, 0.0
        %v4597 = vadd.f32 %v4565, 0.0
        %v4598 = vadd.f32 %v4566, 0.0
        %v4599 = vadd.f32 %v4567, 0.0
        %v4600 = vadd.f32 %v4568, 0.0
        %v4601 = vadd.f32 %v4569, 0.0
        %v4602 = vadd.f32 %v4570, 0.0
        %v4603 = vadd.f32 %v4571, 0.0
        %v4604 = vadd.f32 %v4572, 0.0
        %v4605 = vadd.f32 %v4573, 0.0
        %v4606 = vadd.f32 %v4574, 0.0
        %v4607 = vadd.f32 %v4575, 0.0
        %v4608 = vadd.f32 %v4576, 0.0
        %4609 = vset.pattern.permute.xlu0 7
        %4610 = vperm.xlu0 %4609, %v418
        %v4611 = vpop.permute.xlu0 %4610
        %4613 = vset.pattern.permute.xlu0 7
        %4614 = vperm.xlu0 %4613, %v419
        %v4615 = vpop.permute.xlu0 %4614
        %4617 = vset.pattern.permute.xlu0 7
        %4618 = vperm.xlu0 %4617, %v420
        %v4619 = vpop.permute.xlu0 %4618
        %4621 = vset.pattern.permute.xlu0 7
        %4622 = vperm.xlu0 %4621, %v421
        %v4623 = vpop.permute.xlu0 %4622
        %4625 = vset.pattern.permute.xlu0 7
        %4626 = vperm.xlu0 %4625, %v422
        %v4627 = vpop.permute.xlu0 %4626
        %4629 = vset.pattern.permute.xlu0 7
        %4630 = vperm.xlu0 %4629, %v423
        %v4631 = vpop.permute.xlu0 %4630
        %4633 = vset.pattern.permute.xlu0 7
        %4634 = vperm.xlu0 %4633, %v424
        %v4635 = vpop.permute.xlu0 %4634
        %4637 = vset.pattern.permute.xlu0 7
        %4638 = vperm.xlu0 %4637, %v425
        %v4639 = vpop.permute.xlu0 %4638
        %4641 = vset.pattern.permute.xlu0 7
        %4642 = vperm.xlu0 %4641, %v426
        %v4643 = vpop.permute.xlu0 %4642
        %4645 = vset.pattern.permute.xlu0 7
        %4646 = vperm.xlu0 %4645, %v427
        %v4647 = vpop.permute.xlu0 %4646
        %4649 = vset.pattern.permute.xlu0 7
        %4650 = vperm.xlu0 %4649, %v428
        %v4651 = vpop.permute.xlu0 %4650
        %4653 = vset.pattern.permute.xlu0 7
        %4654 = vperm.xlu0 %4653, %v429
        %v4655 = vpop.permute.xlu0 %4654
        %4657 = vset.pattern.permute.xlu0 7
        %4658 = vperm.xlu0 %4657, %v430
        %v4659 = vpop.permute.xlu0 %4658
        %4661 = vset.pattern.permute.xlu0 7
        %4662 = vperm.xlu0 %4661, %v431
        %v4663 = vpop.permute.xlu0 %4662
        %4665 = vset.pattern.permute.xlu0 7
        %4666 = vperm.xlu0 %4665, %v432
        %v4667 = vpop.permute.xlu0 %4666
        %4669 = vset.pattern.permute.xlu0 7
        %4670 = vperm.xlu0 %4669, %v433
        %v4671 = vpop.permute.xlu0 %4670
        %4673 = vset.pattern.permute.xlu0 7
        %4674 = vperm.xlu0 %4673, %v434
        %v4675 = vpop.permute.xlu0 %4674
        %4677 = vset.pattern.permute.xlu0 7
        %4678 = vperm.xlu0 %4677, %v435
        %v4679 = vpop.permute.xlu0 %4678
        %4681 = vset.pattern.permute.xlu0 7
        %4682 = vperm.xlu0 %4681, %v436
        %v4683 = vpop.permute.xlu0 %4682
        %4685 = vset.pattern.permute.xlu0 7
        %4686 = vperm.xlu0 %4685, %v437
        %v4687 = vpop.permute.xlu0 %4686
        %4689 = vset.pattern.permute.xlu0 7
        %4690 = vperm.xlu0 %4689, %v438
        %v4691 = vpop.permute.xlu0 %4690
        %4693 = vset.pattern.permute.xlu0 7
        %4694 = vperm.xlu0 %4693, %v439
        %v4695 = vpop.permute.xlu0 %4694
        %4697 = vset.pattern.permute.xlu0 7
        %4698 = vperm.xlu0 %4697, %v440
        %v4699 = vpop.permute.xlu0 %4698
        %4701 = vset.pattern.permute.xlu0 7
        %4702 = vperm.xlu0 %4701, %v441
        %v4703 = vpop.permute.xlu0 %4702
        %4705 = vset.pattern.permute.xlu0 7
        %4706 = vperm.xlu0 %4705, %v442
        %v4707 = vpop.permute.xlu0 %4706
        %4709 = vset.pattern.permute.xlu0 7
        %4710 = vperm.xlu0 %4709, %v443
        %v4711 = vpop.permute.xlu0 %4710
        %4713 = vset.pattern.permute.xlu0 7
        %4714 = vperm.xlu0 %4713, %v444
        %v4715 = vpop.permute.xlu0 %4714
        %4717 = vset.pattern.permute.xlu0 7
        %4718 = vperm.xlu0 %4717, %v445
        %v4719 = vpop.permute.xlu0 %4718
        %4721 = vset.pattern.permute.xlu0 7
        %4722 = vperm.xlu0 %4721, %v446
        %v4723 = vpop.permute.xlu0 %4722
        %4725 = vset.pattern.permute.xlu0 7
        %4726 = vperm.xlu0 %4725, %v447
        %v4727 = vpop.permute.xlu0 %4726
        %4729 = vset.pattern.permute.xlu0 7
        %4730 = vperm.xlu0 %4729, %v448
        %v4731 = vpop.permute.xlu0 %4730
        %4733 = vset.pattern.permute.xlu0 7
        %4734 = vperm.xlu0 %4733, %v449
        %v4735 = vpop.permute.xlu0 %4734
        %v4737 = vlaneseq
        %v4738 = vshrl.u32 %v4737, 7
        %v4739 = vsub.s32 7, %v4738
        %v4740 = vrot.slane %v450, %v4739
        %v4741 = vsub.f32 %v4611, %v4740
        %v4742 = vsub.f32 %v4615, %v4740
        %v4743 = vsub.f32 %v4619, %v4740
        %v4744 = vsub.f32 %v4623, %v4740
        %v4745 = vsub.f32 %v4627, %v4740
        %v4746 = vsub.f32 %v4631, %v4740
        %v4747 = vsub.f32 %v4635, %v4740
        %v4748 = vsub.f32 %v4639, %v4740
        %v4749 = vsub.f32 %v4643, %v4740
        %v4750 = vsub.f32 %v4647, %v4740
        %v4751 = vsub.f32 %v4651, %v4740
        %v4752 = vsub.f32 %v4655, %v4740
        %v4753 = vsub.f32 %v4659, %v4740
        %v4754 = vsub.f32 %v4663, %v4740
        %v4755 = vsub.f32 %v4667, %v4740
        %v4756 = vsub.f32 %v4671, %v4740
        %v4757 = vsub.f32 %v4675, %v4740
        %v4758 = vsub.f32 %v4679, %v4740
        %v4759 = vsub.f32 %v4683, %v4740
        %v4760 = vsub.f32 %v4687, %v4740
        %v4761 = vsub.f32 %v4691, %v4740
        %v4762 = vsub.f32 %v4695, %v4740
        %v4763 = vsub.f32 %v4699, %v4740
        %v4764 = vsub.f32 %v4703, %v4740
        %v4765 = vsub.f32 %v4707, %v4740
        %v4766 = vsub.f32 %v4711, %v4740
        %v4767 = vsub.f32 %v4715, %v4740
        %v4768 = vsub.f32 %v4719, %v4740
        %v4769 = vsub.f32 %v4723, %v4740
        %v4770 = vsub.f32 %v4727, %v4740
        %v4771 = vsub.f32 %v4731, %v4740
        %v4772 = vsub.f32 %v4735, %v4740
        %v4773 = vand.u32 2147483647, %v4741
        %v4774 = vand.u32 2147483647, %v4742
        %v4775 = vand.u32 2147483647, %v4743
        %v4776 = vand.u32 2147483647, %v4744
        %v4777 = vand.u32 2147483647, %v4745
        %v4778 = vand.u32 2147483647, %v4746
        %v4779 = vand.u32 2147483647, %v4747
        %v4780 = vand.u32 2147483647, %v4748
        %v4781 = vand.u32 2147483647, %v4749
        %v4782 = vand.u32 2147483647, %v4750
        %v4783 = vand.u32 2147483647, %v4751
        %v4784 = vand.u32 2147483647, %v4752
        %v4785 = vand.u32 2147483647, %v4753
        %v4786 = vand.u32 2147483647, %v4754
        %v4787 = vand.u32 2147483647, %v4755
        %v4788 = vand.u32 2147483647, %v4756
        %v4789 = vand.u32 2147483647, %v4757
        %v4790 = vand.u32 2147483647, %v4758
        %v4791 = vand.u32 2147483647, %v4759
        %v4792 = vand.u32 2147483647, %v4760
        %v4793 = vand.u32 2147483647, %v4761
        %v4794 = vand.u32 2147483647, %v4762
        %v4795 = vand.u32 2147483647, %v4763
        %v4796 = vand.u32 2147483647, %v4764
        %v4797 = vand.u32 2147483647, %v4765
        %v4798 = vand.u32 2147483647, %v4766
        %v4799 = vand.u32 2147483647, %v4767
        %v4800 = vand.u32 2147483647, %v4768
        %v4801 = vand.u32 2147483647, %v4769
        %v4802 = vand.u32 2147483647, %v4770
        %v4803 = vand.u32 2147483647, %v4771
        %v4804 = vand.u32 2147483647, %v4772
        %vm4805 = vcmp.lt.f32.partialorder %v4773, 1.0
        %vm4806 = vcmp.lt.f32.partialorder %v4774, 1.0
        %vm4807 = vcmp.lt.f32.partialorder %v4775, 1.0
        %vm4808 = vcmp.lt.f32.partialorder %v4776, 1.0
        %vm4809 = vcmp.lt.f32.partialorder %v4777, 1.0
        %vm4810 = vcmp.lt.f32.partialorder %v4778, 1.0
        %vm4811 = vcmp.lt.f32.partialorder %v4779, 1.0
        %vm4812 = vcmp.lt.f32.partialorder %v4780, 1.0
        %vm4813 = vcmp.lt.f32.partialorder %v4781, 1.0
        %vm4814 = vcmp.lt.f32.partialorder %v4782, 1.0
        %vm4815 = vcmp.lt.f32.partialorder %v4783, 1.0
        %vm4816 = vcmp.lt.f32.partialorder %v4784, 1.0
        %vm4817 = vcmp.lt.f32.partialorder %v4785, 1.0
        %vm4818 = vcmp.lt.f32.partialorder %v4786, 1.0
        %vm4819 = vcmp.lt.f32.partialorder %v4787, 1.0
        %vm4820 = vcmp.lt.f32.partialorder %v4788, 1.0
        %vm4821 = vcmp.lt.f32.partialorder %v4789, 1.0
        %vm4822 = vcmp.lt.f32.partialorder %v4790, 1.0
        %vm4823 = vcmp.lt.f32.partialorder %v4791, 1.0
        %vm4824 = vcmp.lt.f32.partialorder %v4792, 1.0
        %vm4825 = vcmp.lt.f32.partialorder %v4793, 1.0
        %vm4826 = vcmp.lt.f32.partialorder %v4794, 1.0
        %vm4827 = vcmp.lt.f32.partialorder %v4795, 1.0
        %vm4828 = vcmp.lt.f32.partialorder %v4796, 1.0
        %vm4829 = vcmp.lt.f32.partialorder %v4797, 1.0
        %vm4830 = vcmp.lt.f32.partialorder %v4798, 1.0
        %vm4831 = vcmp.lt.f32.partialorder %v4799, 1.0
        %vm4832 = vcmp.lt.f32.partialorder %v4800, 1.0
        %vm4833 = vcmp.lt.f32.partialorder %v4801, 1.0
        %vm4834 = vcmp.lt.f32.partialorder %v4802, 1.0
        %vm4835 = vcmp.lt.f32.partialorder %v4803, 1.0
        %vm4836 = vcmp.lt.f32.partialorder %v4804, 1.0
        %v4837 = vmul.f32 %v4741, 0.5
        %v4838 = vmul.f32 %v4742, 0.5
        %v4839 = vmul.f32 %v4743, 0.5
        %v4840 = vmul.f32 %v4744, 0.5
        %v4841 = vmul.f32 %v4745, 0.5
        %v4842 = vmul.f32 %v4746, 0.5
        %v4843 = vmul.f32 %v4747, 0.5
        %v4844 = vmul.f32 %v4748, 0.5
        %v4845 = vmul.f32 %v4749, 0.5
        %v4846 = vmul.f32 %v4750, 0.5
        %v4847 = vmul.f32 %v4751, 0.5
        %v4848 = vmul.f32 %v4752, 0.5
        %v4849 = vmul.f32 %v4753, 0.5
        %v4850 = vmul.f32 %v4754, 0.5
        %v4851 = vmul.f32 %v4755, 0.5
        %v4852 = vmul.f32 %v4756, 0.5
        %v4853 = vmul.f32 %v4757, 0.5
        %v4854 = vmul.f32 %v4758, 0.5
        %v4855 = vmul.f32 %v4759, 0.5
        %v4856 = vmul.f32 %v4760, 0.5
        %v4857 = vmul.f32 %v4761, 0.5
        %v4858 = vmul.f32 %v4762, 0.5
        %v4859 = vmul.f32 %v4763, 0.5
        %v4860 = vmul.f32 %v4764, 0.5
        %v4861 = vmul.f32 %v4765, 0.5
        %v4862 = vmul.f32 %v4766, 0.5
        %v4863 = vmul.f32 %v4767, 0.5
        %v4864 = vmul.f32 %v4768, 0.5
        %v4865 = vmul.f32 %v4769, 0.5
        %v4866 = vmul.f32 %v4770, 0.5
        %v4867 = vmul.f32 %v4771, 0.5
        %v4868 = vmul.f32 %v4772, 0.5
        %v4869 = vmul.f32 %v4837, %v4741
        %v4870 = vmul.f32 %v4838, %v4742
        %v4871 = vmul.f32 %v4839, %v4743
        %v4872 = vmul.f32 %v4840, %v4744
        %v4873 = vmul.f32 %v4841, %v4745
        %v4874 = vmul.f32 %v4842, %v4746
        %v4875 = vmul.f32 %v4843, %v4747
        %v4876 = vmul.f32 %v4844, %v4748
        %v4877 = vmul.f32 %v4845, %v4749
        %v4878 = vmul.f32 %v4846, %v4750
        %v4879 = vmul.f32 %v4847, %v4751
        %v4880 = vmul.f32 %v4848, %v4752
        %v4881 = vmul.f32 %v4849, %v4753
        %v4882 = vmul.f32 %v4850, %v4754
        %v4883 = vmul.f32 %v4851, %v4755
        %v4884 = vmul.f32 %v4852, %v4756
        %v4885 = vmul.f32 %v4853, %v4757
        %v4886 = vmul.f32 %v4854, %v4758
        %v4887 = vmul.f32 %v4855, %v4759
        %v4888 = vmul.f32 %v4856, %v4760
        %v4889 = vmul.f32 %v4857, %v4761
        %v4890 = vmul.f32 %v4858, %v4762
        %v4891 = vmul.f32 %v4859, %v4763
        %v4892 = vmul.f32 %v4860, %v4764
        %v4893 = vmul.f32 %v4861, %v4765
        %v4894 = vmul.f32 %v4862, %v4766
        %v4895 = vmul.f32 %v4863, %v4767
        %v4896 = vmul.f32 %v4864, %v4768
        %v4897 = vmul.f32 %v4865, %v4769
        %v4898 = vmul.f32 %v4866, %v4770
        %v4899 = vmul.f32 %v4867, %v4771
        %v4900 = vmul.f32 %v4868, %v4772
        %v4901 = vsub.f32 %v4773, 0.5
        %v4902 = vsub.f32 %v4774, 0.5
        %v4903 = vsub.f32 %v4775, 0.5
        %v4904 = vsub.f32 %v4776, 0.5
        %v4905 = vsub.f32 %v4777, 0.5
        %v4906 = vsub.f32 %v4778, 0.5
        %v4907 = vsub.f32 %v4779, 0.5
        %v4908 = vsub.f32 %v4780, 0.5
        %v4909 = vsub.f32 %v4781, 0.5
        %v4910 = vsub.f32 %v4782, 0.5
        %v4911 = vsub.f32 %v4783, 0.5
        %v4912 = vsub.f32 %v4784, 0.5
        %v4913 = vsub.f32 %v4785, 0.5
        %v4914 = vsub.f32 %v4786, 0.5
        %v4915 = vsub.f32 %v4787, 0.5
        %v4916 = vsub.f32 %v4788, 0.5
        %v4917 = vsub.f32 %v4789, 0.5
        %v4918 = vsub.f32 %v4790, 0.5
        %v4919 = vsub.f32 %v4791, 0.5
        %v4920 = vsub.f32 %v4792, 0.5
        %v4921 = vsub.f32 %v4793, 0.5
        %v4922 = vsub.f32 %v4794, 0.5
        %v4923 = vsub.f32 %v4795, 0.5
        %v4924 = vsub.f32 %v4796, 0.5
        %v4925 = vsub.f32 %v4797, 0.5
        %v4926 = vsub.f32 %v4798, 0.5
        %v4927 = vsub.f32 %v4799, 0.5
        %v4928 = vsub.f32 %v4800, 0.5
        %v4929 = vsub.f32 %v4801, 0.5
        %v4930 = vsub.f32 %v4802, 0.5
        %v4931 = vsub.f32 %v4803, 0.5
        %v4932 = vsub.f32 %v4804, 0.5
        %v4933 = vsel %vm4805, %v4869, %v4901
        %v4934 = vsel %vm4806, %v4870, %v4902
        %v4935 = vsel %vm4807, %v4871, %v4903
        %v4936 = vsel %vm4808, %v4872, %v4904
        %v4937 = vsel %vm4809, %v4873, %v4905
        %v4938 = vsel %vm4810, %v4874, %v4906
        %v4939 = vsel %vm4811, %v4875, %v4907
        %v4940 = vsel %vm4812, %v4876, %v4908
        %v4941 = vsel %vm4813, %v4877, %v4909
        %v4942 = vsel %vm4814, %v4878, %v4910
        %v4943 = vsel %vm4815, %v4879, %v4911
        %v4944 = vsel %vm4816, %v4880, %v4912
        %v4945 = vsel %vm4817, %v4881, %v4913
        %v4946 = vsel %vm4818, %v4882, %v4914
        %v4947 = vsel %vm4819, %v4883, %v4915
        %v4948 = vsel %vm4820, %v4884, %v4916
        %v4949 = vsel %vm4821, %v4885, %v4917
        %v4950 = vsel %vm4822, %v4886, %v4918
        %v4951 = vsel %vm4823, %v4887, %v4919
        %v4952 = vsel %vm4824, %v4888, %v4920
        %v4953 = vsel %vm4825, %v4889, %v4921
        %v4954 = vsel %vm4826, %v4890, %v4922
        %v4955 = vsel %vm4827, %v4891, %v4923
        %v4956 = vsel %vm4828, %v4892, %v4924
        %v4957 = vsel %vm4829, %v4893, %v4925
        %v4958 = vsel %vm4830, %v4894, %v4926
        %v4959 = vsel %vm4831, %v4895, %v4927
        %v4960 = vsel %vm4832, %v4896, %v4928
        %v4961 = vsel %vm4833, %v4897, %v4929
        %v4962 = vsel %vm4834, %v4898, %v4930
        %v4963 = vsel %vm4835, %v4899, %v4931
        %v4964 = vsel %vm4836, %v4900, %v4932
        %v4965 = vadd.f32 %v4577, %v4933
        %v4966 = vadd.f32 %v4578, %v4934
        %v4967 = vadd.f32 %v4579, %v4935
        %v4968 = vadd.f32 %v4580, %v4936
        %v4969 = vadd.f32 %v4581, %v4937
        %v4970 = vadd.f32 %v4582, %v4938
        %v4971 = vadd.f32 %v4583, %v4939
        %v4972 = vadd.f32 %v4584, %v4940
        %v4973 = vadd.f32 %v4585, %v4941
        %v4974 = vadd.f32 %v4586, %v4942
        %v4975 = vadd.f32 %v4587, %v4943
        %v4976 = vadd.f32 %v4588, %v4944
        %v4977 = vadd.f32 %v4589, %v4945
        %v4978 = vadd.f32 %v4590, %v4946
        %v4979 = vadd.f32 %v4591, %v4947
        %v4980 = vadd.f32 %v4592, %v4948
        %v4981 = vadd.f32 %v4593, %v4949
        %v4982 = vadd.f32 %v4594, %v4950
        %v4983 = vadd.f32 %v4595, %v4951
        %v4984 = vadd.f32 %v4596, %v4952
        %v4985 = vadd.f32 %v4597, %v4953
        %v4986 = vadd.f32 %v4598, %v4954
        %v4987 = vadd.f32 %v4599, %v4955
        %v4988 = vadd.f32 %v4600, %v4956
        %v4989 = vadd.f32 %v4601, %v4957
        %v4990 = vadd.f32 %v4602, %v4958
        %v4991 = vadd.f32 %v4603, %v4959
        %v4992 = vadd.f32 %v4604, %v4960
        %v4993 = vadd.f32 %v4605, %v4961
        %v4994 = vadd.f32 %v4606, %v4962
        %v4995 = vadd.f32 %v4607, %v4963
        %v4996 = vadd.f32 %v4608, %v4964
        %4997 = vset.pattern.permute.xlu0 8
        %4998 = vperm.xlu0 %4997, %v418
        %v4999 = vpop.permute.xlu0 %4998
        %5001 = vset.pattern.permute.xlu0 8
        %5002 = vperm.xlu0 %5001, %v419
        %v5003 = vpop.permute.xlu0 %5002
        %5005 = vset.pattern.permute.xlu0 8
        %5006 = vperm.xlu0 %5005, %v420
        %v5007 = vpop.permute.xlu0 %5006
        %5009 = vset.pattern.permute.xlu0 8
        %5010 = vperm.xlu0 %5009, %v421
        %v5011 = vpop.permute.xlu0 %5010
        %5013 = vset.pattern.permute.xlu0 8
        %5014 = vperm.xlu0 %5013, %v422
        %v5015 = vpop.permute.xlu0 %5014
        %5017 = vset.pattern.permute.xlu0 8
        %5018 = vperm.xlu0 %5017, %v423
        %v5019 = vpop.permute.xlu0 %5018
        %5021 = vset.pattern.permute.xlu0 8
        %5022 = vperm.xlu0 %5021, %v424
        %v5023 = vpop.permute.xlu0 %5022
        %5025 = vset.pattern.permute.xlu0 8
        %5026 = vperm.xlu0 %5025, %v425
        %v5027 = vpop.permute.xlu0 %5026
        %5029 = vset.pattern.permute.xlu0 8
        %5030 = vperm.xlu0 %5029, %v426
        %v5031 = vpop.permute.xlu0 %5030
        %5033 = vset.pattern.permute.xlu0 8
        %5034 = vperm.xlu0 %5033, %v427
        %v5035 = vpop.permute.xlu0 %5034
        %5037 = vset.pattern.permute.xlu0 8
        %5038 = vperm.xlu0 %5037, %v428
        %v5039 = vpop.permute.xlu0 %5038
        %5041 = vset.pattern.permute.xlu0 8
        %5042 = vperm.xlu0 %5041, %v429
        %v5043 = vpop.permute.xlu0 %5042
        %5045 = vset.pattern.permute.xlu0 8
        %5046 = vperm.xlu0 %5045, %v430
        %v5047 = vpop.permute.xlu0 %5046
        %5049 = vset.pattern.permute.xlu0 8
        %5050 = vperm.xlu0 %5049, %v431
        %v5051 = vpop.permute.xlu0 %5050
        %5053 = vset.pattern.permute.xlu0 8
        %5054 = vperm.xlu0 %5053, %v432
        %v5055 = vpop.permute.xlu0 %5054
        %5057 = vset.pattern.permute.xlu0 8
        %5058 = vperm.xlu0 %5057, %v433
        %v5059 = vpop.permute.xlu0 %5058
        %5061 = vset.pattern.permute.xlu0 8
        %5062 = vperm.xlu0 %5061, %v434
        %v5063 = vpop.permute.xlu0 %5062
        %5065 = vset.pattern.permute.xlu0 8
        %5066 = vperm.xlu0 %5065, %v435
        %v5067 = vpop.permute.xlu0 %5066
        %5069 = vset.pattern.permute.xlu0 8
        %5070 = vperm.xlu0 %5069, %v436
        %v5071 = vpop.permute.xlu0 %5070
        %5073 = vset.pattern.permute.xlu0 8
        %5074 = vperm.xlu0 %5073, %v437
        %v5075 = vpop.permute.xlu0 %5074
        %5077 = vset.pattern.permute.xlu0 8
        %5078 = vperm.xlu0 %5077, %v438
        %v5079 = vpop.permute.xlu0 %5078
        %5081 = vset.pattern.permute.xlu0 8
        %5082 = vperm.xlu0 %5081, %v439
        %v5083 = vpop.permute.xlu0 %5082
        %5085 = vset.pattern.permute.xlu0 8
        %5086 = vperm.xlu0 %5085, %v440
        %v5087 = vpop.permute.xlu0 %5086
        %5089 = vset.pattern.permute.xlu0 8
        %5090 = vperm.xlu0 %5089, %v441
        %v5091 = vpop.permute.xlu0 %5090
        %5093 = vset.pattern.permute.xlu0 8
        %5094 = vperm.xlu0 %5093, %v442
        %v5095 = vpop.permute.xlu0 %5094
        %5097 = vset.pattern.permute.xlu0 8
        %5098 = vperm.xlu0 %5097, %v443
        %v5099 = vpop.permute.xlu0 %5098
        %5101 = vset.pattern.permute.xlu0 8
        %5102 = vperm.xlu0 %5101, %v444
        %v5103 = vpop.permute.xlu0 %5102
        %5105 = vset.pattern.permute.xlu0 8
        %5106 = vperm.xlu0 %5105, %v445
        %v5107 = vpop.permute.xlu0 %5106
        %5109 = vset.pattern.permute.xlu0 8
        %5110 = vperm.xlu0 %5109, %v446
        %v5111 = vpop.permute.xlu0 %5110
        %5113 = vset.pattern.permute.xlu0 8
        %5114 = vperm.xlu0 %5113, %v447
        %v5115 = vpop.permute.xlu0 %5114
        %5117 = vset.pattern.permute.xlu0 8
        %5118 = vperm.xlu0 %5117, %v448
        %v5119 = vpop.permute.xlu0 %5118
        %5121 = vset.pattern.permute.xlu0 8
        %5122 = vperm.xlu0 %5121, %v449
        %v5123 = vpop.permute.xlu0 %5122
        %v5125 = vlaneseq
        %v5126 = vshrl.u32 %v5125, 7
        %v5127 = vsub.s32 0, %v5126
        %v5128 = vrot.slane %v451, %v5127
        %v5129 = vsub.f32 %v4999, %v5128
        %v5130 = vsub.f32 %v5003, %v5128
        %v5131 = vsub.f32 %v5007, %v5128
        %v5132 = vsub.f32 %v5011, %v5128
        %v5133 = vsub.f32 %v5015, %v5128
        %v5134 = vsub.f32 %v5019, %v5128
        %v5135 = vsub.f32 %v5023, %v5128
        %v5136 = vsub.f32 %v5027, %v5128
        %v5137 = vsub.f32 %v5031, %v5128
        %v5138 = vsub.f32 %v5035, %v5128
        %v5139 = vsub.f32 %v5039, %v5128
        %v5140 = vsub.f32 %v5043, %v5128
        %v5141 = vsub.f32 %v5047, %v5128
        %v5142 = vsub.f32 %v5051, %v5128
        %v5143 = vsub.f32 %v5055, %v5128
        %v5144 = vsub.f32 %v5059, %v5128
        %v5145 = vsub.f32 %v5063, %v5128
        %v5146 = vsub.f32 %v5067, %v5128
        %v5147 = vsub.f32 %v5071, %v5128
        %v5148 = vsub.f32 %v5075, %v5128
        %v5149 = vsub.f32 %v5079, %v5128
        %v5150 = vsub.f32 %v5083, %v5128
        %v5151 = vsub.f32 %v5087, %v5128
        %v5152 = vsub.f32 %v5091, %v5128
        %v5153 = vsub.f32 %v5095, %v5128
        %v5154 = vsub.f32 %v5099, %v5128
        %v5155 = vsub.f32 %v5103, %v5128
        %v5156 = vsub.f32 %v5107, %v5128
        %v5157 = vsub.f32 %v5111, %v5128
        %v5158 = vsub.f32 %v5115, %v5128
        %v5159 = vsub.f32 %v5119, %v5128
        %v5160 = vsub.f32 %v5123, %v5128
        %v5161 = vand.u32 2147483647, %v5129
        %v5162 = vand.u32 2147483647, %v5130
        %v5163 = vand.u32 2147483647, %v5131
        %v5164 = vand.u32 2147483647, %v5132
        %v5165 = vand.u32 2147483647, %v5133
        %v5166 = vand.u32 2147483647, %v5134
        %v5167 = vand.u32 2147483647, %v5135
        %v5168 = vand.u32 2147483647, %v5136
        %v5169 = vand.u32 2147483647, %v5137
        %v5170 = vand.u32 2147483647, %v5138
        %v5171 = vand.u32 2147483647, %v5139
        %v5172 = vand.u32 2147483647, %v5140
        %v5173 = vand.u32 2147483647, %v5141
        %v5174 = vand.u32 2147483647, %v5142
        %v5175 = vand.u32 2147483647, %v5143
        %v5176 = vand.u32 2147483647, %v5144
        %v5177 = vand.u32 2147483647, %v5145
        %v5178 = vand.u32 2147483647, %v5146
        %v5179 = vand.u32 2147483647, %v5147
        %v5180 = vand.u32 2147483647, %v5148
        %v5181 = vand.u32 2147483647, %v5149
        %v5182 = vand.u32 2147483647, %v5150
        %v5183 = vand.u32 2147483647, %v5151
        %v5184 = vand.u32 2147483647, %v5152
        %v5185 = vand.u32 2147483647, %v5153
        %v5186 = vand.u32 2147483647, %v5154
        %v5187 = vand.u32 2147483647, %v5155
        %v5188 = vand.u32 2147483647, %v5156
        %v5189 = vand.u32 2147483647, %v5157
        %v5190 = vand.u32 2147483647, %v5158
        %v5191 = vand.u32 2147483647, %v5159
        %v5192 = vand.u32 2147483647, %v5160
        %vm5193 = vcmp.lt.f32.partialorder %v5161, 1.0
        %vm5194 = vcmp.lt.f32.partialorder %v5162, 1.0
        %vm5195 = vcmp.lt.f32.partialorder %v5163, 1.0
        %vm5196 = vcmp.lt.f32.partialorder %v5164, 1.0
        %vm5197 = vcmp.lt.f32.partialorder %v5165, 1.0
        %vm5198 = vcmp.lt.f32.partialorder %v5166, 1.0
        %vm5199 = vcmp.lt.f32.partialorder %v5167, 1.0
        %vm5200 = vcmp.lt.f32.partialorder %v5168, 1.0
        %vm5201 = vcmp.lt.f32.partialorder %v5169, 1.0
        %vm5202 = vcmp.lt.f32.partialorder %v5170, 1.0
        %vm5203 = vcmp.lt.f32.partialorder %v5171, 1.0
        %vm5204 = vcmp.lt.f32.partialorder %v5172, 1.0
        %vm5205 = vcmp.lt.f32.partialorder %v5173, 1.0
        %vm5206 = vcmp.lt.f32.partialorder %v5174, 1.0
        %vm5207 = vcmp.lt.f32.partialorder %v5175, 1.0
        %vm5208 = vcmp.lt.f32.partialorder %v5176, 1.0
        %vm5209 = vcmp.lt.f32.partialorder %v5177, 1.0
        %vm5210 = vcmp.lt.f32.partialorder %v5178, 1.0
        %vm5211 = vcmp.lt.f32.partialorder %v5179, 1.0
        %vm5212 = vcmp.lt.f32.partialorder %v5180, 1.0
        %vm5213 = vcmp.lt.f32.partialorder %v5181, 1.0
        %vm5214 = vcmp.lt.f32.partialorder %v5182, 1.0
        %vm5215 = vcmp.lt.f32.partialorder %v5183, 1.0
        %vm5216 = vcmp.lt.f32.partialorder %v5184, 1.0
        %vm5217 = vcmp.lt.f32.partialorder %v5185, 1.0
        %vm5218 = vcmp.lt.f32.partialorder %v5186, 1.0
        %vm5219 = vcmp.lt.f32.partialorder %v5187, 1.0
        %vm5220 = vcmp.lt.f32.partialorder %v5188, 1.0
        %vm5221 = vcmp.lt.f32.partialorder %v5189, 1.0
        %vm5222 = vcmp.lt.f32.partialorder %v5190, 1.0
        %vm5223 = vcmp.lt.f32.partialorder %v5191, 1.0
        %vm5224 = vcmp.lt.f32.partialorder %v5192, 1.0
        %v5225 = vmul.f32 %v5129, 0.5
        %v5226 = vmul.f32 %v5130, 0.5
        %v5227 = vmul.f32 %v5131, 0.5
        %v5228 = vmul.f32 %v5132, 0.5
        %v5229 = vmul.f32 %v5133, 0.5
        %v5230 = vmul.f32 %v5134, 0.5
        %v5231 = vmul.f32 %v5135, 0.5
        %v5232 = vmul.f32 %v5136, 0.5
        %v5233 = vmul.f32 %v5137, 0.5
        %v5234 = vmul.f32 %v5138, 0.5
        %v5235 = vmul.f32 %v5139, 0.5
        %v5236 = vmul.f32 %v5140, 0.5
        %v5237 = vmul.f32 %v5141, 0.5
        %v5238 = vmul.f32 %v5142, 0.5
        %v5239 = vmul.f32 %v5143, 0.5
        %v5240 = vmul.f32 %v5144, 0.5
        %v5241 = vmul.f32 %v5145, 0.5
        %v5242 = vmul.f32 %v5146, 0.5
        %v5243 = vmul.f32 %v5147, 0.5
        %v5244 = vmul.f32 %v5148, 0.5
        %v5245 = vmul.f32 %v5149, 0.5
        %v5246 = vmul.f32 %v5150, 0.5
        %v5247 = vmul.f32 %v5151, 0.5
        %v5248 = vmul.f32 %v5152, 0.5
        %v5249 = vmul.f32 %v5153, 0.5
        %v5250 = vmul.f32 %v5154, 0.5
        %v5251 = vmul.f32 %v5155, 0.5
        %v5252 = vmul.f32 %v5156, 0.5
        %v5253 = vmul.f32 %v5157, 0.5
        %v5254 = vmul.f32 %v5158, 0.5
        %v5255 = vmul.f32 %v5159, 0.5
        %v5256 = vmul.f32 %v5160, 0.5
        %v5257 = vmul.f32 %v5225, %v5129
        %v5258 = vmul.f32 %v5226, %v5130
        %v5259 = vmul.f32 %v5227, %v5131
        %v5260 = vmul.f32 %v5228, %v5132
        %v5261 = vmul.f32 %v5229, %v5133
        %v5262 = vmul.f32 %v5230, %v5134
        %v5263 = vmul.f32 %v5231, %v5135
        %v5264 = vmul.f32 %v5232, %v5136
        %v5265 = vmul.f32 %v5233, %v5137
        %v5266 = vmul.f32 %v5234, %v5138
        %v5267 = vmul.f32 %v5235, %v5139
        %v5268 = vmul.f32 %v5236, %v5140
        %v5269 = vmul.f32 %v5237, %v5141
        %v5270 = vmul.f32 %v5238, %v5142
        %v5271 = vmul.f32 %v5239, %v5143
        %v5272 = vmul.f32 %v5240, %v5144
        %v5273 = vmul.f32 %v5241, %v5145
        %v5274 = vmul.f32 %v5242, %v5146
        %v5275 = vmul.f32 %v5243, %v5147
        %v5276 = vmul.f32 %v5244, %v5148
        %v5277 = vmul.f32 %v5245, %v5149
        %v5278 = vmul.f32 %v5246, %v5150
        %v5279 = vmul.f32 %v5247, %v5151
        %v5280 = vmul.f32 %v5248, %v5152
        %v5281 = vmul.f32 %v5249, %v5153
        %v5282 = vmul.f32 %v5250, %v5154
        %v5283 = vmul.f32 %v5251, %v5155
        %v5284 = vmul.f32 %v5252, %v5156
        %v5285 = vmul.f32 %v5253, %v5157
        %v5286 = vmul.f32 %v5254, %v5158
        %v5287 = vmul.f32 %v5255, %v5159
        %v5288 = vmul.f32 %v5256, %v5160
        %v5289 = vsub.f32 %v5161, 0.5
        %v5290 = vsub.f32 %v5162, 0.5
        %v5291 = vsub.f32 %v5163, 0.5
        %v5292 = vsub.f32 %v5164, 0.5
        %v5293 = vsub.f32 %v5165, 0.5
        %v5294 = vsub.f32 %v5166, 0.5
        %v5295 = vsub.f32 %v5167, 0.5
        %v5296 = vsub.f32 %v5168, 0.5
        %v5297 = vsub.f32 %v5169, 0.5
        %v5298 = vsub.f32 %v5170, 0.5
        %v5299 = vsub.f32 %v5171, 0.5
        %v5300 = vsub.f32 %v5172, 0.5
        %v5301 = vsub.f32 %v5173, 0.5
        %v5302 = vsub.f32 %v5174, 0.5
        %v5303 = vsub.f32 %v5175, 0.5
        %v5304 = vsub.f32 %v5176, 0.5
        %v5305 = vsub.f32 %v5177, 0.5
        %v5306 = vsub.f32 %v5178, 0.5
        %v5307 = vsub.f32 %v5179, 0.5
        %v5308 = vsub.f32 %v5180, 0.5
        %v5309 = vsub.f32 %v5181, 0.5
        %v5310 = vsub.f32 %v5182, 0.5
        %v5311 = vsub.f32 %v5183, 0.5
        %v5312 = vsub.f32 %v5184, 0.5
        %v5313 = vsub.f32 %v5185, 0.5
        %v5314 = vsub.f32 %v5186, 0.5
        %v5315 = vsub.f32 %v5187, 0.5
        %v5316 = vsub.f32 %v5188, 0.5
        %v5317 = vsub.f32 %v5189, 0.5
        %v5318 = vsub.f32 %v5190, 0.5
        %v5319 = vsub.f32 %v5191, 0.5
        %v5320 = vsub.f32 %v5192, 0.5
        %v5321 = vsel %vm5193, %v5257, %v5289
        %v5322 = vsel %vm5194, %v5258, %v5290
        %v5323 = vsel %vm5195, %v5259, %v5291
        %v5324 = vsel %vm5196, %v5260, %v5292
        %v5325 = vsel %vm5197, %v5261, %v5293
        %v5326 = vsel %vm5198, %v5262, %v5294
        %v5327 = vsel %vm5199, %v5263, %v5295
        %v5328 = vsel %vm5200, %v5264, %v5296
        %v5329 = vsel %vm5201, %v5265, %v5297
        %v5330 = vsel %vm5202, %v5266, %v5298
        %v5331 = vsel %vm5203, %v5267, %v5299
        %v5332 = vsel %vm5204, %v5268, %v5300
        %v5333 = vsel %vm5205, %v5269, %v5301
        %v5334 = vsel %vm5206, %v5270, %v5302
        %v5335 = vsel %vm5207, %v5271, %v5303
        %v5336 = vsel %vm5208, %v5272, %v5304
        %v5337 = vsel %vm5209, %v5273, %v5305
        %v5338 = vsel %vm5210, %v5274, %v5306
        %v5339 = vsel %vm5211, %v5275, %v5307
        %v5340 = vsel %vm5212, %v5276, %v5308
        %v5341 = vsel %vm5213, %v5277, %v5309
        %v5342 = vsel %vm5214, %v5278, %v5310
        %v5343 = vsel %vm5215, %v5279, %v5311
        %v5344 = vsel %vm5216, %v5280, %v5312
        %v5345 = vsel %vm5217, %v5281, %v5313
        %v5346 = vsel %vm5218, %v5282, %v5314
        %v5347 = vsel %vm5219, %v5283, %v5315
        %v5348 = vsel %vm5220, %v5284, %v5316
        %v5349 = vsel %vm5221, %v5285, %v5317
        %v5350 = vsel %vm5222, %v5286, %v5318
        %v5351 = vsel %vm5223, %v5287, %v5319
        %v5352 = vsel %vm5224, %v5288, %v5320
        %v5353 = vadd.f32 %v4965, %v5321
        %v5354 = vadd.f32 %v4966, %v5322
        %v5355 = vadd.f32 %v4967, %v5323
        %v5356 = vadd.f32 %v4968, %v5324
        %v5357 = vadd.f32 %v4969, %v5325
        %v5358 = vadd.f32 %v4970, %v5326
        %v5359 = vadd.f32 %v4971, %v5327
        %v5360 = vadd.f32 %v4972, %v5328
        %v5361 = vadd.f32 %v4973, %v5329
        %v5362 = vadd.f32 %v4974, %v5330
        %v5363 = vadd.f32 %v4975, %v5331
        %v5364 = vadd.f32 %v4976, %v5332
        %v5365 = vadd.f32 %v4977, %v5333
        %v5366 = vadd.f32 %v4978, %v5334
        %v5367 = vadd.f32 %v4979, %v5335
        %v5368 = vadd.f32 %v4980, %v5336
        %v5369 = vadd.f32 %v4981, %v5337
        %v5370 = vadd.f32 %v4982, %v5338
        %v5371 = vadd.f32 %v4983, %v5339
        %v5372 = vadd.f32 %v4984, %v5340
        %v5373 = vadd.f32 %v4985, %v5341
        %v5374 = vadd.f32 %v4986, %v5342
        %v5375 = vadd.f32 %v4987, %v5343
        %v5376 = vadd.f32 %v4988, %v5344
        %v5377 = vadd.f32 %v4989, %v5345
        %v5378 = vadd.f32 %v4990, %v5346
        %v5379 = vadd.f32 %v4991, %v5347
        %v5380 = vadd.f32 %v4992, %v5348
        %v5381 = vadd.f32 %v4993, %v5349
        %v5382 = vadd.f32 %v4994, %v5350
        %v5383 = vadd.f32 %v4995, %v5351
        %v5384 = vadd.f32 %v4996, %v5352
        %v5385 = vmul.f32 %v5353, 0.33333334
        %v5386 = vmul.f32 %v5354, 0.33333334
        %v5387 = vmul.f32 %v5355, 0.33333334
        %v5388 = vmul.f32 %v5356, 0.33333334
        %v5389 = vmul.f32 %v5357, 0.33333334
        %v5390 = vmul.f32 %v5358, 0.33333334
        %v5391 = vmul.f32 %v5359, 0.33333334
        %v5392 = vmul.f32 %v5360, 0.33333334
        %v5393 = vmul.f32 %v5361, 0.33333334
        %v5394 = vmul.f32 %v5362, 0.33333334
        %v5395 = vmul.f32 %v5363, 0.33333334
        %v5396 = vmul.f32 %v5364, 0.33333334
        %v5397 = vmul.f32 %v5365, 0.33333334
        %v5398 = vmul.f32 %v5366, 0.33333334
        %v5399 = vmul.f32 %v5367, 0.33333334
        %v5400 = vmul.f32 %v5368, 0.33333334
        %v5401 = vmul.f32 %v5369, 0.33333334
        %v5402 = vmul.f32 %v5370, 0.33333334
        %v5403 = vmul.f32 %v5371, 0.33333334
        %v5404 = vmul.f32 %v5372, 0.33333334
        %v5405 = vmul.f32 %v5373, 0.33333334
        %v5406 = vmul.f32 %v5374, 0.33333334
        %v5407 = vmul.f32 %v5375, 0.33333334
        %v5408 = vmul.f32 %v5376, 0.33333334
        %v5409 = vmul.f32 %v5377, 0.33333334
        %v5410 = vmul.f32 %v5378, 0.33333334
        %v5411 = vmul.f32 %v5379, 0.33333334
        %v5412 = vmul.f32 %v5380, 0.33333334
        %v5413 = vmul.f32 %v5381, 0.33333334
        %v5414 = vmul.f32 %v5382, 0.33333334
        %v5415 = vmul.f32 %v5383, 0.33333334
        %v5416 = vmul.f32 %v5384, 0.33333334
        %5417 = vst [vmem:[#allocation5] sm:$0xff] %v5385
        %5418 = vst [vmem:[#allocation5 + $0x8] sm:$0xff] %v5386
        %5419 = vst [vmem:[#allocation5 + $0x10] sm:$0xff] %v5387
        %5420 = vst [vmem:[#allocation5 + $0x18] sm:$0xff] %v5388
        %5421 = vst [vmem:[#allocation5 + $0x20] sm:$0xff] %v5389
        %5422 = vst [vmem:[#allocation5 + $0x28] sm:$0xff] %v5390
        %5423 = vst [vmem:[#allocation5 + $0x30] sm:$0xff] %v5391
        %5424 = vst [vmem:[#allocation5 + $0x38] sm:$0xff] %v5392
        %5425 = vst [vmem:[#allocation5 + $0x40] sm:$0xff] %v5393
        %5426 = vst [vmem:[#allocation5 + $0x48] sm:$0xff] %v5394
        %5427 = vst [vmem:[#allocation5 + $0x50] sm:$0xff] %v5395
        %5428 = vst [vmem:[#allocation5 + $0x58] sm:$0xff] %v5396
        %5429 = vst [vmem:[#allocation5 + $0x60] sm:$0xff] %v5397
        %5430 = vst [vmem:[#allocation5 + $0x68] sm:$0xff] %v5398
        %5431 = vst [vmem:[#allocation5 + $0x70] sm:$0xff] %v5399
        %5432 = vst [vmem:[#allocation5 + $0x78] sm:$0xff] %v5400
        %5433 = vst [vmem:[#allocation5 + $0x80] sm:$0xff] %v5401
        %5434 = vst [vmem:[#allocation5 + $0x88] sm:$0xff] %v5402
        %5435 = vst [vmem:[#allocation5 + $0x90] sm:$0xff] %v5403
        %5436 = vst [vmem:[#allocation5 + $0x98] sm:$0xff] %v5404
        %5437 = vst [vmem:[#allocation5 + $0xa0] sm:$0xff] %v5405
        %5438 = vst [vmem:[#allocation5 + $0xa8] sm:$0xff] %v5406
        %5439 = vst [vmem:[#allocation5 + $0xb0] sm:$0xff] %v5407
        %5440 = vst [vmem:[#allocation5 + $0xb8] sm:$0xff] %v5408
        %5441 = vst [vmem:[#allocation5 + $0xc0] sm:$0xff] %v5409
        %5442 = vst [vmem:[#allocation5 + $0xc8] sm:$0xff] %v5410
        %5443 = vst [vmem:[#allocation5 + $0xd0] sm:$0xff] %v5411
        %5444 = vst [vmem:[#allocation5 + $0xd8] sm:$0xff] %v5412
        %5445 = vst [vmem:[#allocation5 + $0xe0] sm:$0xff] %v5413
        %5446 = vst [vmem:[#allocation5 + $0xe8] sm:$0xff] %v5414
        %5447 = vst [vmem:[#allocation5 + $0xf0] sm:$0xff] %v5415
        %5448 = vst [vmem:[#allocation5 + $0xf8] sm:$0xff] %v5416
        %vm5449 = vcmp.lt.s32.totalorder %v1540, 256
        loop: start=0, step=1, limit=4
        $region117: #{tpu_custom_call.1} parent=107 // loop_pre_header
          _
        $region118: #{tpu_custom_call.1} parent=107 // loop_header
          %s5451 = sphi 0, %s5455
          %p5452 = scmp.ge.s32.totalorder %s5451, 4
          %v5456 = vphi 0.0, %v6136
        $region119: #{tpu_custom_call.1} parent=107 // loop_header_branch
          %5454 = sbr.rel (%p5452) target = $region123
        $region120: #{tpu_custom_call.1} parent=107 // loop_body
          %s5457 = smul.u32 %s5451, 64
          %s5458 = scalar_lea.vmem [#allocation4], %s5457
          %v5459 = vld [vmem:[%s5458] sm:$0xff]
          %v5460 = vld [vmem:[%s5458 + $0x8] sm:$0xff]
          %v5461 = vld [vmem:[%s5458 + $0x10] sm:$0xff]
          %v5462 = vld [vmem:[%s5458 + $0x18] sm:$0xff]
          %v5463 = vld [vmem:[%s5458 + $0x20] sm:$0xff]
          %v5464 = vld [vmem:[%s5458 + $0x28] sm:$0xff]
          %v5465 = vld [vmem:[%s5458 + $0x30] sm:$0xff]
          %v5466 = vld [vmem:[%s5458 + $0x38] sm:$0xff]
          %s5467 = scalar_lea.vmem [#allocation5], %s5457
          %v5468 = vld [vmem:[%s5467] sm:$0xff]
          %v5469 = vld [vmem:[%s5467 + $0x8] sm:$0xff]
          %v5470 = vld [vmem:[%s5467 + $0x10] sm:$0xff]
          %v5471 = vld [vmem:[%s5467 + $0x18] sm:$0xff]
          %v5472 = vld [vmem:[%s5467 + $0x20] sm:$0xff]
          %v5473 = vld [vmem:[%s5467 + $0x28] sm:$0xff]
          %v5474 = vld [vmem:[%s5467 + $0x30] sm:$0xff]
          %v5475 = vld [vmem:[%s5467 + $0x38] sm:$0xff]
          loop: start=0, step=1, limit=32
          $region124: #{tpu_custom_call.1} parent=120 // loop_pre_header
            _
          $region125: #{tpu_custom_call.1} parent=120 // loop_header
            %s5477 = sphi 0, %s5481
            %p5478 = scmp.ge.s32.totalorder %s5477, 32
            %v5482 = vphi 0.0, %v5949
            %v5483 = vphi 0.0, %v5950
            %v5484 = vphi 0.0, %v5951
            %v5485 = vphi 0.0, %v5952
            %v5486 = vphi 0.0, %v5953
            %v5487 = vphi 0.0, %v5954
            %v5488 = vphi 0.0, %v5955
            %v5489 = vphi 0.0, %v5956
            %v5490 = vphi 0.0, %v5977
            %v5491 = vphi 0.0, %v5978
            %v5492 = vphi 0.0, %v5979
            %v5493 = vphi 0.0, %v5980
            %v5494 = vphi 0.0, %v5981
            %v5495 = vphi 0.0, %v5982
            %v5496 = vphi 0.0, %v5983
            %v5497 = vphi 0.0, %v5984
          $region126: #{tpu_custom_call.1} parent=120 // loop_header_branch
            %5480 = sbr.rel (%p5478) target = $region130
          $region127: #{tpu_custom_call.1} parent=120 // loop_body
            %s5498 = smul.u32 %s5477, 8
            %s5499 = scalar_lea.vmem [#allocation4], %s5498
            %v5500 = vld [vmem:[%s5499] sm:$0xff]
            %s5501 = scalar_lea.vmem [#allocation5], %s5498
            %v5502 = vld [vmem:[%s5501] sm:$0xff]
            %s5503 = scalar_lea.vmem [#allocation3], %s5498
            %v5504 = vld [vmem:[%s5503] sm:$0xff]
            %v5505 = vlaneseq
            %v5506 = vshrl.u32 %v5505, 7
            %v5507 = vsub.s32 0, %v5506
            %v5508 = vrot.slane %v5500, %v5507
            %vm5509 = vcmp.le.f32.partialorder %v5459, %v5508
            %vm5510 = vcmp.le.f32.partialorder %v5460, %v5508
            %vm5511 = vcmp.le.f32.partialorder %v5461, %v5508
            %vm5512 = vcmp.le.f32.partialorder %v5462, %v5508
            %vm5513 = vcmp.le.f32.partialorder %v5463, %v5508
            %vm5514 = vcmp.le.f32.partialorder %v5464, %v5508
            %vm5515 = vcmp.le.f32.partialorder %v5465, %v5508
            %vm5516 = vcmp.le.f32.partialorder %v5466, %v5508
            %v5517 = vlaneseq
            %v5518 = vshrl.u32 %v5517, 7
            %v5519 = vsub.s32 0, %v5518
            %v5520 = vrot.slane %v5504, %v5519
            %v5521 = vsel %vm5509, %v5520, 0.0
            %v5522 = vsel %vm5510, %v5520, 0.0
            %v5523 = vsel %vm5511, %v5520, 0.0
            %v5524 = vsel %vm5512, %v5520, 0.0
            %v5525 = vsel %vm5513, %v5520, 0.0
            %v5526 = vsel %vm5514, %v5520, 0.0
            %v5527 = vsel %vm5515, %v5520, 0.0
            %v5528 = vsel %vm5516, %v5520, 0.0
            %v5529 = vadd.f32 %v5482, %v5521
            %v5530 = vadd.f32 %v5483, %v5522
            %v5531 = vadd.f32 %v5484, %v5523
            %v5532 = vadd.f32 %v5485, %v5524
            %v5533 = vadd.f32 %v5486, %v5525
            %v5534 = vadd.f32 %v5487, %v5526
            %v5535 = vadd.f32 %v5488, %v5527
            %v5536 = vadd.f32 %v5489, %v5528
            %v5537 = vlaneseq
            %v5538 = vshrl.u32 %v5537, 7
            %v5539 = vsub.s32 0, %v5538
            %v5540 = vrot.slane %v5502, %v5539
            %vm5541 = vcmp.le.f32.partialorder %v5468, %v5540
            %vm5542 = vcmp.le.f32.partialorder %v5469, %v5540
            %vm5543 = vcmp.le.f32.partialorder %v5470, %v5540
            %vm5544 = vcmp.le.f32.partialorder %v5471, %v5540
            %vm5545 = vcmp.le.f32.partialorder %v5472, %v5540
            %vm5546 = vcmp.le.f32.partialorder %v5473, %v5540
            %vm5547 = vcmp.le.f32.partialorder %v5474, %v5540
            %vm5548 = vcmp.le.f32.partialorder %v5475, %v5540
            %v5549 = vsel %vm5541, %v5521, 0.0
            %v5550 = vsel %vm5542, %v5522, 0.0
            %v5551 = vsel %vm5543, %v5523, 0.0
            %v5552 = vsel %vm5544, %v5524, 0.0
            %v5553 = vsel %vm5545, %v5525, 0.0
            %v5554 = vsel %vm5546, %v5526, 0.0
            %v5555 = vsel %vm5547, %v5527, 0.0
            %v5556 = vsel %vm5548, %v5528, 0.0
            %v5557 = vadd.f32 %v5490, %v5549
            %v5558 = vadd.f32 %v5491, %v5550
            %v5559 = vadd.f32 %v5492, %v5551
            %v5560 = vadd.f32 %v5493, %v5552
            %v5561 = vadd.f32 %v5494, %v5553
            %v5562 = vadd.f32 %v5495, %v5554
            %v5563 = vadd.f32 %v5496, %v5555
            %v5564 = vadd.f32 %v5497, %v5556
            %v5565 = vlaneseq
            %v5566 = vshrl.u32 %v5565, 7
            %v5567 = vsub.s32 1, %v5566
            %v5568 = vrot.slane %v5500, %v5567
            %vm5569 = vcmp.le.f32.partialorder %v5459, %v5568
            %vm5570 = vcmp.le.f32.partialorder %v5460, %v5568
            %vm5571 = vcmp.le.f32.partialorder %v5461, %v5568
            %vm5572 = vcmp.le.f32.partialorder %v5462, %v5568
            %vm5573 = vcmp.le.f32.partialorder %v5463, %v5568
            %vm5574 = vcmp.le.f32.partialorder %v5464, %v5568
            %vm5575 = vcmp.le.f32.partialorder %v5465, %v5568
            %vm5576 = vcmp.le.f32.partialorder %v5466, %v5568
            %v5577 = vlaneseq
            %v5578 = vshrl.u32 %v5577, 7
            %v5579 = vsub.s32 1, %v5578
            %v5580 = vrot.slane %v5504, %v5579
            %v5581 = vsel %vm5569, %v5580, 0.0
            %v5582 = vsel %vm5570, %v5580, 0.0
            %v5583 = vsel %vm5571, %v5580, 0.0
            %v5584 = vsel %vm5572, %v5580, 0.0
            %v5585 = vsel %vm5573, %v5580, 0.0
            %v5586 = vsel %vm5574, %v5580, 0.0
            %v5587 = vsel %vm5575, %v5580, 0.0
            %v5588 = vsel %vm5576, %v5580, 0.0
            %v5589 = vadd.f32 %v5529, %v5581
            %v5590 = vadd.f32 %v5530, %v5582
            %v5591 = vadd.f32 %v5531, %v5583
            %v5592 = vadd.f32 %v5532, %v5584
            %v5593 = vadd.f32 %v5533, %v5585
            %v5594 = vadd.f32 %v5534, %v5586
            %v5595 = vadd.f32 %v5535, %v5587
            %v5596 = vadd.f32 %v5536, %v5588
            %v5597 = vlaneseq
            %v5598 = vshrl.u32 %v5597, 7
            %v5599 = vsub.s32 1, %v5598
            %v5600 = vrot.slane %v5502, %v5599
            %vm5601 = vcmp.le.f32.partialorder %v5468, %v5600
            %vm5602 = vcmp.le.f32.partialorder %v5469, %v5600
            %vm5603 = vcmp.le.f32.partialorder %v5470, %v5600
            %vm5604 = vcmp.le.f32.partialorder %v5471, %v5600
            %vm5605 = vcmp.le.f32.partialorder %v5472, %v5600
            %vm5606 = vcmp.le.f32.partialorder %v5473, %v5600
            %vm5607 = vcmp.le.f32.partialorder %v5474, %v5600
            %vm5608 = vcmp.le.f32.partialorder %v5475, %v5600
            %v5609 = vsel %vm5601, %v5581, 0.0
            %v5610 = vsel %vm5602, %v5582, 0.0
            %v5611 = vsel %vm5603, %v5583, 0.0
            %v5612 = vsel %vm5604, %v5584, 0.0
            %v5613 = vsel %vm5605, %v5585, 0.0
            %v5614 = vsel %vm5606, %v5586, 0.0
            %v5615 = vsel %vm5607, %v5587, 0.0
            %v5616 = vsel %vm5608, %v5588, 0.0
            %v5617 = vadd.f32 %v5557, %v5609
            %v5618 = vadd.f32 %v5558, %v5610
            %v5619 = vadd.f32 %v5559, %v5611
            %v5620 = vadd.f32 %v5560, %v5612
            %v5621 = vadd.f32 %v5561, %v5613
            %v5622 = vadd.f32 %v5562, %v5614
            %v5623 = vadd.f32 %v5563, %v5615
            %v5624 = vadd.f32 %v5564, %v5616
            %v5625 = vlaneseq
            %v5626 = vshrl.u32 %v5625, 7
            %v5627 = vsub.s32 2, %v5626
            %v5628 = vrot.slane %v5500, %v5627
            %vm5629 = vcmp.le.f32.partialorder %v5459, %v5628
            %vm5630 = vcmp.le.f32.partialorder %v5460, %v5628
            %vm5631 = vcmp.le.f32.partialorder %v5461, %v5628
            %vm5632 = vcmp.le.f32.partialorder %v5462, %v5628
            %vm5633 = vcmp.le.f32.partialorder %v5463, %v5628
            %vm5634 = vcmp.le.f32.partialorder %v5464, %v5628
            %vm5635 = vcmp.le.f32.partialorder %v5465, %v5628
            %vm5636 = vcmp.le.f32.partialorder %v5466, %v5628
            %v5637 = vlaneseq
            %v5638 = vshrl.u32 %v5637, 7
            %v5639 = vsub.s32 2, %v5638
            %v5640 = vrot.slane %v5504, %v5639
            %v5641 = vsel %vm5629, %v5640, 0.0
            %v5642 = vsel %vm5630, %v5640, 0.0
            %v5643 = vsel %vm5631, %v5640, 0.0
            %v5644 = vsel %vm5632, %v5640, 0.0
            %v5645 = vsel %vm5633, %v5640, 0.0
            %v5646 = vsel %vm5634, %v5640, 0.0
            %v5647 = vsel %vm5635, %v5640, 0.0
            %v5648 = vsel %vm5636, %v5640, 0.0
            %v5649 = vadd.f32 %v5589, %v5641
            %v5650 = vadd.f32 %v5590, %v5642
            %v5651 = vadd.f32 %v5591, %v5643
            %v5652 = vadd.f32 %v5592, %v5644
            %v5653 = vadd.f32 %v5593, %v5645
            %v5654 = vadd.f32 %v5594, %v5646
            %v5655 = vadd.f32 %v5595, %v5647
            %v5656 = vadd.f32 %v5596, %v5648
            %v5657 = vlaneseq
            %v5658 = vshrl.u32 %v5657, 7
            %v5659 = vsub.s32 2, %v5658
            %v5660 = vrot.slane %v5502, %v5659
            %vm5661 = vcmp.le.f32.partialorder %v5468, %v5660
            %vm5662 = vcmp.le.f32.partialorder %v5469, %v5660
            %vm5663 = vcmp.le.f32.partialorder %v5470, %v5660
            %vm5664 = vcmp.le.f32.partialorder %v5471, %v5660
            %vm5665 = vcmp.le.f32.partialorder %v5472, %v5660
            %vm5666 = vcmp.le.f32.partialorder %v5473, %v5660
            %vm5667 = vcmp.le.f32.partialorder %v5474, %v5660
            %vm5668 = vcmp.le.f32.partialorder %v5475, %v5660
            %v5669 = vsel %vm5661, %v5641, 0.0
            %v5670 = vsel %vm5662, %v5642, 0.0
            %v5671 = vsel %vm5663, %v5643, 0.0
            %v5672 = vsel %vm5664, %v5644, 0.0
            %v5673 = vsel %vm5665, %v5645, 0.0
            %v5674 = vsel %vm5666, %v5646, 0.0
            %v5675 = vsel %vm5667, %v5647, 0.0
            %v5676 = vsel %vm5668, %v5648, 0.0
            %v5677 = vadd.f32 %v5617, %v5669
            %v5678 = vadd.f32 %v5618, %v5670
            %v5679 = vadd.f32 %v5619, %v5671
            %v5680 = vadd.f32 %v5620, %v5672
            %v5681 = vadd.f32 %v5621, %v5673
            %v5682 = vadd.f32 %v5622, %v5674
            %v5683 = vadd.f32 %v5623, %v5675
            %v5684 = vadd.f32 %v5624, %v5676
            %v5685 = vlaneseq
            %v5686 = vshrl.u32 %v5685, 7
            %v5687 = vsub.s32 3, %v5686
            %v5688 = vrot.slane %v5500, %v5687
            %vm5689 = vcmp.le.f32.partialorder %v5459, %v5688
            %vm5690 = vcmp.le.f32.partialorder %v5460, %v5688
            %vm5691 = vcmp.le.f32.partialorder %v5461, %v5688
            %vm5692 = vcmp.le.f32.partialorder %v5462, %v5688
            %vm5693 = vcmp.le.f32.partialorder %v5463, %v5688
            %vm5694 = vcmp.le.f32.partialorder %v5464, %v5688
            %vm5695 = vcmp.le.f32.partialorder %v5465, %v5688
            %vm5696 = vcmp.le.f32.partialorder %v5466, %v5688
            %v5697 = vlaneseq
            %v5698 = vshrl.u32 %v5697, 7
            %v5699 = vsub.s32 3, %v5698
            %v5700 = vrot.slane %v5504, %v5699
            %v5701 = vsel %vm5689, %v5700, 0.0
            %v5702 = vsel %vm5690, %v5700, 0.0
            %v5703 = vsel %vm5691, %v5700, 0.0
            %v5704 = vsel %vm5692, %v5700, 0.0
            %v5705 = vsel %vm5693, %v5700, 0.0
            %v5706 = vsel %vm5694, %v5700, 0.0
            %v5707 = vsel %vm5695, %v5700, 0.0
            %v5708 = vsel %vm5696, %v5700, 0.0
            %v5709 = vadd.f32 %v5649, %v5701
            %v5710 = vadd.f32 %v5650, %v5702
            %v5711 = vadd.f32 %v5651, %v5703
            %v5712 = vadd.f32 %v5652, %v5704
            %v5713 = vadd.f32 %v5653, %v5705
            %v5714 = vadd.f32 %v5654, %v5706
            %v5715 = vadd.f32 %v5655, %v5707
            %v5716 = vadd.f32 %v5656, %v5708
            %v5717 = vlaneseq
            %v5718 = vshrl.u32 %v5717, 7
            %v5719 = vsub.s32 3, %v5718
            %v5720 = vrot.slane %v5502, %v5719
            %vm5721 = vcmp.le.f32.partialorder %v5468, %v5720
            %vm5722 = vcmp.le.f32.partialorder %v5469, %v5720
            %vm5723 = vcmp.le.f32.partialorder %v5470, %v5720
            %vm5724 = vcmp.le.f32.partialorder %v5471, %v5720
            %vm5725 = vcmp.le.f32.partialorder %v5472, %v5720
            %vm5726 = vcmp.le.f32.partialorder %v5473, %v5720
            %vm5727 = vcmp.le.f32.partialorder %v5474, %v5720
            %vm5728 = vcmp.le.f32.partialorder %v5475, %v5720
            %v5729 = vsel %vm5721, %v5701, 0.0
            %v5730 = vsel %vm5722, %v5702, 0.0
            %v5731 = vsel %vm5723, %v5703, 0.0
            %v5732 = vsel %vm5724, %v5704, 0.0
            %v5733 = vsel %vm5725, %v5705, 0.0
            %v5734 = vsel %vm5726, %v5706, 0.0
            %v5735 = vsel %vm5727, %v5707, 0.0
            %v5736 = vsel %vm5728, %v5708, 0.0
            %v5737 = vadd.f32 %v5677, %v5729
            %v5738 = vadd.f32 %v5678, %v5730
            %v5739 = vadd.f32 %v5679, %v5731
            %v5740 = vadd.f32 %v5680, %v5732
            %v5741 = vadd.f32 %v5681, %v5733
            %v5742 = vadd.f32 %v5682, %v5734
            %v5743 = vadd.f32 %v5683, %v5735
            %v5744 = vadd.f32 %v5684, %v5736
            %v5745 = vlaneseq
            %v5746 = vshrl.u32 %v5745, 7
            %v5747 = vsub.s32 4, %v5746
            %v5748 = vrot.slane %v5500, %v5747
            %vm5749 = vcmp.le.f32.partialorder %v5459, %v5748
            %vm5750 = vcmp.le.f32.partialorder %v5460, %v5748
            %vm5751 = vcmp.le.f32.partialorder %v5461, %v5748
            %vm5752 = vcmp.le.f32.partialorder %v5462, %v5748
            %vm5753 = vcmp.le.f32.partialorder %v5463, %v5748
            %vm5754 = vcmp.le.f32.partialorder %v5464, %v5748
            %vm5755 = vcmp.le.f32.partialorder %v5465, %v5748
            %vm5756 = vcmp.le.f32.partialorder %v5466, %v5748
            %v5757 = vlaneseq
            %v5758 = vshrl.u32 %v5757, 7
            %v5759 = vsub.s32 4, %v5758
            %v5760 = vrot.slane %v5504, %v5759
            %v5761 = vsel %vm5749, %v5760, 0.0
            %v5762 = vsel %vm5750, %v5760, 0.0
            %v5763 = vsel %vm5751, %v5760, 0.0
            %v5764 = vsel %vm5752, %v5760, 0.0
            %v5765 = vsel %vm5753, %v5760, 0.0
            %v5766 = vsel %vm5754, %v5760, 0.0
            %v5767 = vsel %vm5755, %v5760, 0.0
            %v5768 = vsel %vm5756, %v5760, 0.0
            %v5769 = vadd.f32 %v5709, %v5761
            %v5770 = vadd.f32 %v5710, %v5762
            %v5771 = vadd.f32 %v5711, %v5763
            %v5772 = vadd.f32 %v5712, %v5764
            %v5773 = vadd.f32 %v5713, %v5765
            %v5774 = vadd.f32 %v5714, %v5766
            %v5775 = vadd.f32 %v5715, %v5767
            %v5776 = vadd.f32 %v5716, %v5768
            %v5777 = vlaneseq
            %v5778 = vshrl.u32 %v5777, 7
            %v5779 = vsub.s32 4, %v5778
            %v5780 = vrot.slane %v5502, %v5779
            %vm5781 = vcmp.le.f32.partialorder %v5468, %v5780
            %vm5782 = vcmp.le.f32.partialorder %v5469, %v5780
            %vm5783 = vcmp.le.f32.partialorder %v5470, %v5780
            %vm5784 = vcmp.le.f32.partialorder %v5471, %v5780
            %vm5785 = vcmp.le.f32.partialorder %v5472, %v5780
            %vm5786 = vcmp.le.f32.partialorder %v5473, %v5780
            %vm5787 = vcmp.le.f32.partialorder %v5474, %v5780
            %vm5788 = vcmp.le.f32.partialorder %v5475, %v5780
            %v5789 = vsel %vm5781, %v5761, 0.0
            %v5790 = vsel %vm5782, %v5762, 0.0
            %v5791 = vsel %vm5783, %v5763, 0.0
            %v5792 = vsel %vm5784, %v5764, 0.0
            %v5793 = vsel %vm5785, %v5765, 0.0
            %v5794 = vsel %vm5786, %v5766, 0.0
            %v5795 = vsel %vm5787, %v5767, 0.0
            %v5796 = vsel %vm5788, %v5768, 0.0
            %v5797 = vadd.f32 %v5737, %v5789
            %v5798 = vadd.f32 %v5738, %v5790
            %v5799 = vadd.f32 %v5739, %v5791
            %v5800 = vadd.f32 %v5740, %v5792
            %v5801 = vadd.f32 %v5741, %v5793
            %v5802 = vadd.f32 %v5742, %v5794
            %v5803 = vadd.f32 %v5743, %v5795
            %v5804 = vadd.f32 %v5744, %v5796
            %v5805 = vlaneseq
            %v5806 = vshrl.u32 %v5805, 7
            %v5807 = vsub.s32 5, %v5806
            %v5808 = vrot.slane %v5500, %v5807
            %vm5809 = vcmp.le.f32.partialorder %v5459, %v5808
            %vm5810 = vcmp.le.f32.partialorder %v5460, %v5808
            %vm5811 = vcmp.le.f32.partialorder %v5461, %v5808
            %vm5812 = vcmp.le.f32.partialorder %v5462, %v5808
            %vm5813 = vcmp.le.f32.partialorder %v5463, %v5808
            %vm5814 = vcmp.le.f32.partialorder %v5464, %v5808
            %vm5815 = vcmp.le.f32.partialorder %v5465, %v5808
            %vm5816 = vcmp.le.f32.partialorder %v5466, %v5808
            %v5817 = vlaneseq
            %v5818 = vshrl.u32 %v5817, 7
            %v5819 = vsub.s32 5, %v5818
            %v5820 = vrot.slane %v5504, %v5819
            %v5821 = vsel %vm5809, %v5820, 0.0
            %v5822 = vsel %vm5810, %v5820, 0.0
            %v5823 = vsel %vm5811, %v5820, 0.0
            %v5824 = vsel %vm5812, %v5820, 0.0
            %v5825 = vsel %vm5813, %v5820, 0.0
            %v5826 = vsel %vm5814, %v5820, 0.0
            %v5827 = vsel %vm5815, %v5820, 0.0
            %v5828 = vsel %vm5816, %v5820, 0.0
            %v5829 = vadd.f32 %v5769, %v5821
            %v5830 = vadd.f32 %v5770, %v5822
            %v5831 = vadd.f32 %v5771, %v5823
            %v5832 = vadd.f32 %v5772, %v5824
            %v5833 = vadd.f32 %v5773, %v5825
            %v5834 = vadd.f32 %v5774, %v5826
            %v5835 = vadd.f32 %v5775, %v5827
            %v5836 = vadd.f32 %v5776, %v5828
            %v5837 = vlaneseq
            %v5838 = vshrl.u32 %v5837, 7
            %v5839 = vsub.s32 5, %v5838
            %v5840 = vrot.slane %v5502, %v5839
            %vm5841 = vcmp.le.f32.partialorder %v5468, %v5840
            %vm5842 = vcmp.le.f32.partialorder %v5469, %v5840
            %vm5843 = vcmp.le.f32.partialorder %v5470, %v5840
            %vm5844 = vcmp.le.f32.partialorder %v5471, %v5840
            %vm5845 = vcmp.le.f32.partialorder %v5472, %v5840
            %vm5846 = vcmp.le.f32.partialorder %v5473, %v5840
            %vm5847 = vcmp.le.f32.partialorder %v5474, %v5840
            %vm5848 = vcmp.le.f32.partialorder %v5475, %v5840
            %v5849 = vsel %vm5841, %v5821, 0.0
            %v5850 = vsel %vm5842, %v5822, 0.0
            %v5851 = vsel %vm5843, %v5823, 0.0
            %v5852 = vsel %vm5844, %v5824, 0.0
            %v5853 = vsel %vm5845, %v5825, 0.0
            %v5854 = vsel %vm5846, %v5826, 0.0
            %v5855 = vsel %vm5847, %v5827, 0.0
            %v5856 = vsel %vm5848, %v5828, 0.0
            %v5857 = vadd.f32 %v5797, %v5849
            %v5858 = vadd.f32 %v5798, %v5850
            %v5859 = vadd.f32 %v5799, %v5851
            %v5860 = vadd.f32 %v5800, %v5852
            %v5861 = vadd.f32 %v5801, %v5853
            %v5862 = vadd.f32 %v5802, %v5854
            %v5863 = vadd.f32 %v5803, %v5855
            %v5864 = vadd.f32 %v5804, %v5856
            %v5865 = vlaneseq
            %v5866 = vshrl.u32 %v5865, 7
            %v5867 = vsub.s32 6, %v5866
            %v5868 = vrot.slane %v5500, %v5867
            %vm5869 = vcmp.le.f32.partialorder %v5459, %v5868
            %vm5870 = vcmp.le.f32.partialorder %v5460, %v5868
            %vm5871 = vcmp.le.f32.partialorder %v5461, %v5868
            %vm5872 = vcmp.le.f32.partialorder %v5462, %v5868
            %vm5873 = vcmp.le.f32.partialorder %v5463, %v5868
            %vm5874 = vcmp.le.f32.partialorder %v5464, %v5868
            %vm5875 = vcmp.le.f32.partialorder %v5465, %v5868
            %vm5876 = vcmp.le.f32.partialorder %v5466, %v5868
            %v5877 = vlaneseq
            %v5878 = vshrl.u32 %v5877, 7
            %v5879 = vsub.s32 6, %v5878
            %v5880 = vrot.slane %v5504, %v5879
            %v5881 = vsel %vm5869, %v5880, 0.0
            %v5882 = vsel %vm5870, %v5880, 0.0
            %v5883 = vsel %vm5871, %v5880, 0.0
            %v5884 = vsel %vm5872, %v5880, 0.0
            %v5885 = vsel %vm5873, %v5880, 0.0
            %v5886 = vsel %vm5874, %v5880, 0.0
            %v5887 = vsel %vm5875, %v5880, 0.0
            %v5888 = vsel %vm5876, %v5880, 0.0
            %v5889 = vadd.f32 %v5829, %v5881
            %v5890 = vadd.f32 %v5830, %v5882
            %v5891 = vadd.f32 %v5831, %v5883
            %v5892 = vadd.f32 %v5832, %v5884
            %v5893 = vadd.f32 %v5833, %v5885
            %v5894 = vadd.f32 %v5834, %v5886
            %v5895 = vadd.f32 %v5835, %v5887
            %v5896 = vadd.f32 %v5836, %v5888
            %v5897 = vlaneseq
            %v5898 = vshrl.u32 %v5897, 7
            %v5899 = vsub.s32 6, %v5898
            %v5900 = vrot.slane %v5502, %v5899
            %vm5901 = vcmp.le.f32.partialorder %v5468, %v5900
            %vm5902 = vcmp.le.f32.partialorder %v5469, %v5900
            %vm5903 = vcmp.le.f32.partialorder %v5470, %v5900
            %vm5904 = vcmp.le.f32.partialorder %v5471, %v5900
            %vm5905 = vcmp.le.f32.partialorder %v5472, %v5900
            %vm5906 = vcmp.le.f32.partialorder %v5473, %v5900
            %vm5907 = vcmp.le.f32.partialorder %v5474, %v5900
            %vm5908 = vcmp.le.f32.partialorder %v5475, %v5900
            %v5909 = vsel %vm5901, %v5881, 0.0
            %v5910 = vsel %vm5902, %v5882, 0.0
            %v5911 = vsel %vm5903, %v5883, 0.0
            %v5912 = vsel %vm5904, %v5884, 0.0
            %v5913 = vsel %vm5905, %v5885, 0.0
            %v5914 = vsel %vm5906, %v5886, 0.0
            %v5915 = vsel %vm5907, %v5887, 0.0
            %v5916 = vsel %vm5908, %v5888, 0.0
            %v5917 = vadd.f32 %v5857, %v5909
            %v5918 = vadd.f32 %v5858, %v5910
            %v5919 = vadd.f32 %v5859, %v5911
            %v5920 = vadd.f32 %v5860, %v5912
            %v5921 = vadd.f32 %v5861, %v5913
            %v5922 = vadd.f32 %v5862, %v5914
            %v5923 = vadd.f32 %v5863, %v5915
            %v5924 = vadd.f32 %v5864, %v5916
            %v5925 = vlaneseq
            %v5926 = vshrl.u32 %v5925, 7
            %v5927 = vsub.s32 7, %v5926
            %v5928 = vrot.slane %v5500, %v5927
            %vm5929 = vcmp.le.f32.partialorder %v5459, %v5928
            %vm5930 = vcmp.le.f32.partialorder %v5460, %v5928
            %vm5931 = vcmp.le.f32.partialorder %v5461, %v5928
            %vm5932 = vcmp.le.f32.partialorder %v5462, %v5928
            %vm5933 = vcmp.le.f32.partialorder %v5463, %v5928
            %vm5934 = vcmp.le.f32.partialorder %v5464, %v5928
            %vm5935 = vcmp.le.f32.partialorder %v5465, %v5928
            %vm5936 = vcmp.le.f32.partialorder %v5466, %v5928
            %v5937 = vlaneseq
            %v5938 = vshrl.u32 %v5937, 7
            %v5939 = vsub.s32 7, %v5938
            %v5940 = vrot.slane %v5504, %v5939
            %v5941 = vsel %vm5929, %v5940, 0.0
            %v5942 = vsel %vm5930, %v5940, 0.0
            %v5943 = vsel %vm5931, %v5940, 0.0
            %v5944 = vsel %vm5932, %v5940, 0.0
            %v5945 = vsel %vm5933, %v5940, 0.0
            %v5946 = vsel %vm5934, %v5940, 0.0
            %v5947 = vsel %vm5935, %v5940, 0.0
            %v5948 = vsel %vm5936, %v5940, 0.0
            %v5949 = vadd.f32 %v5889, %v5941
            %v5950 = vadd.f32 %v5890, %v5942
            %v5951 = vadd.f32 %v5891, %v5943
            %v5952 = vadd.f32 %v5892, %v5944
            %v5953 = vadd.f32 %v5893, %v5945
            %v5954 = vadd.f32 %v5894, %v5946
            %v5955 = vadd.f32 %v5895, %v5947
            %v5956 = vadd.f32 %v5896, %v5948
            %v5957 = vlaneseq
            %v5958 = vshrl.u32 %v5957, 7
            %v5959 = vsub.s32 7, %v5958
            %v5960 = vrot.slane %v5502, %v5959
            %vm5961 = vcmp.le.f32.partialorder %v5468, %v5960
            %vm5962 = vcmp.le.f32.partialorder %v5469, %v5960
            %vm5963 = vcmp.le.f32.partialorder %v5470, %v5960
            %vm5964 = vcmp.le.f32.partialorder %v5471, %v5960
            %vm5965 = vcmp.le.f32.partialorder %v5472, %v5960
            %vm5966 = vcmp.le.f32.partialorder %v5473, %v5960
            %vm5967 = vcmp.le.f32.partialorder %v5474, %v5960
            %vm5968 = vcmp.le.f32.partialorder %v5475, %v5960
            %v5969 = vsel %vm5961, %v5941, 0.0
            %v5970 = vsel %vm5962, %v5942, 0.0
            %v5971 = vsel %vm5963, %v5943, 0.0
            %v5972 = vsel %vm5964, %v5944, 0.0
            %v5973 = vsel %vm5965, %v5945, 0.0
            %v5974 = vsel %vm5966, %v5946, 0.0
            %v5975 = vsel %vm5967, %v5947, 0.0
            %v5976 = vsel %vm5968, %v5948, 0.0
            %v5977 = vadd.f32 %v5917, %v5969
            %v5978 = vadd.f32 %v5918, %v5970
            %v5979 = vadd.f32 %v5919, %v5971
            %v5980 = vadd.f32 %v5920, %v5972
            %v5981 = vadd.f32 %v5921, %v5973
            %v5982 = vadd.f32 %v5922, %v5974
            %v5983 = vadd.f32 %v5923, %v5975
            %v5984 = vadd.f32 %v5924, %v5976
          $region128: #{tpu_custom_call.1} parent=120 // loop_footer
            %s5481 = sadd.s32 1, %s5477
          $region129: #{tpu_custom_call.1} parent=120 // loop_footer_branch
            %5476 = sbr.rel target = $region125
          $region130: #{tpu_custom_call.1} parent=120 // loop_exit
            _
          %s5985 = scalar_lea.vmem [#allocation2], %s5457
          %v5986 = vld [vmem:[%s5985] sm:$0xff]
          %v5987 = vld [vmem:[%s5985 + $0x8] sm:$0xff]
          %v5988 = vld [vmem:[%s5985 + $0x10] sm:$0xff]
          %v5989 = vld [vmem:[%s5985 + $0x18] sm:$0xff]
          %v5990 = vld [vmem:[%s5985 + $0x20] sm:$0xff]
          %v5991 = vld [vmem:[%s5985 + $0x28] sm:$0xff]
          %v5992 = vld [vmem:[%s5985 + $0x30] sm:$0xff]
          %v5993 = vld [vmem:[%s5985 + $0x38] sm:$0xff]
          %v5994 = vadd.f32 %v5490, 1e-07
          %v5995 = vadd.f32 %v5491, 1e-07
          %v5996 = vadd.f32 %v5492, 1e-07
          %v5997 = vadd.f32 %v5493, 1e-07
          %v5998 = vadd.f32 %v5494, 1e-07
          %v5999 = vadd.f32 %v5495, 1e-07
          %v6000 = vadd.f32 %v5496, 1e-07
          %v6001 = vadd.f32 %v5497, 1e-07
          %v6002 = vlog2.pop %v5994
          %v6003 = vmul.f32 %v6002, 0.6931472
          %v6004 = vlog2.pop %v5995
          %v6005 = vmul.f32 %v6004, 0.6931472
          %v6006 = vlog2.pop %v5996
          %v6007 = vmul.f32 %v6006, 0.6931472
          %v6008 = vlog2.pop %v5997
          %v6009 = vmul.f32 %v6008, 0.6931472
          %v6010 = vlog2.pop %v5998
          %v6011 = vmul.f32 %v6010, 0.6931472
          %v6012 = vlog2.pop %v5999
          %v6013 = vmul.f32 %v6012, 0.6931472
          %v6014 = vlog2.pop %v6000
          %v6015 = vmul.f32 %v6014, 0.6931472
          %v6016 = vlog2.pop %v6001
          %v6017 = vmul.f32 %v6016, 0.6931472
          %v6018 = vsub.f32 %v5986, %v6003
          %v6019 = vsub.f32 %v5987, %v6005
          %v6020 = vsub.f32 %v5988, %v6007
          %v6021 = vsub.f32 %v5989, %v6009
          %v6022 = vsub.f32 %v5990, %v6011
          %v6023 = vsub.f32 %v5991, %v6013
          %v6024 = vsub.f32 %v5992, %v6015
          %v6025 = vsub.f32 %v5993, %v6017
          %v6026 = vadd.f32 %v5482, 1e-07
          %v6027 = vadd.f32 %v5483, 1e-07
          %v6028 = vadd.f32 %v5484, 1e-07
          %v6029 = vadd.f32 %v5485, 1e-07
          %v6030 = vadd.f32 %v5486, 1e-07
          %v6031 = vadd.f32 %v5487, 1e-07
          %v6032 = vadd.f32 %v5488, 1e-07
          %v6033 = vadd.f32 %v5489, 1e-07
          %v6034 = vlog2.pop %v6026
          %v6035 = vmul.f32 %v6034, 0.6931472
          %v6036 = vlog2.pop %v6027
          %v6037 = vmul.f32 %v6036, 0.6931472
          %v6038 = vlog2.pop %v6028
          %v6039 = vmul.f32 %v6038, 0.6931472
          %v6040 = vlog2.pop %v6029
          %v6041 = vmul.f32 %v6040, 0.6931472
          %v6042 = vlog2.pop %v6030
          %v6043 = vmul.f32 %v6042, 0.6931472
          %v6044 = vlog2.pop %v6031
          %v6045 = vmul.f32 %v6044, 0.6931472
          %v6046 = vlog2.pop %v6032
          %v6047 = vmul.f32 %v6046, 0.6931472
          %v6048 = vlog2.pop %v6033
          %v6049 = vmul.f32 %v6048, 0.6931472
          %v6050 = vsub.f32 %v5986, %v6035
          %v6051 = vsub.f32 %v5987, %v6037
          %v6052 = vsub.f32 %v5988, %v6039
          %v6053 = vsub.f32 %v5989, %v6041
          %v6054 = vsub.f32 %v5990, %v6043
          %v6055 = vsub.f32 %v5991, %v6045
          %v6056 = vsub.f32 %v5992, %v6047
          %v6057 = vsub.f32 %v5993, %v6049
          %v6058 = vmul.f32 %v6050, 0.9
          %v6059 = vmul.f32 %v6051, 0.9
          %v6060 = vmul.f32 %v6052, 0.9
          %v6061 = vmul.f32 %v6053, 0.9
          %v6062 = vmul.f32 %v6054, 0.9
          %v6063 = vmul.f32 %v6055, 0.9
          %v6064 = vmul.f32 %v6056, 0.9
          %v6065 = vmul.f32 %v6057, 0.9
          %v6066 = vadd.f32 %v6018, %v6058
          %v6067 = vadd.f32 %v6019, %v6059
          %v6068 = vadd.f32 %v6020, %v6060
          %v6069 = vadd.f32 %v6021, %v6061
          %v6070 = vadd.f32 %v6022, %v6062
          %v6071 = vadd.f32 %v6023, %v6063
          %v6072 = vadd.f32 %v6024, %v6064
          %v6073 = vadd.f32 %v6025, %v6065
          %v6074 = vstv %s5457
          %v6075 = vadd.s32 %v1505, %v6074
          %v6076 = vadd.s32 %v1506, %v6074
          %v6077 = vadd.s32 %v1507, %v6074
          %v6078 = vadd.s32 %v1508, %v6074
          %v6079 = vadd.s32 %v1509, %v6074
          %v6080 = vadd.s32 %v1510, %v6074
          %v6081 = vadd.s32 %v1511, %v6074
          %v6082 = vadd.s32 %v1512, %v6074
          %vm6083 = vcmp.ne.s32.totalorder %v6075, %v1540
          %vm6084 = vcmp.ne.s32.totalorder %v6076, %v1540
          %vm6085 = vcmp.ne.s32.totalorder %v6077, %v1540
          %vm6086 = vcmp.ne.s32.totalorder %v6078, %v1540
          %vm6087 = vcmp.ne.s32.totalorder %v6079, %v1540
          %vm6088 = vcmp.ne.s32.totalorder %v6080, %v1540
          %vm6089 = vcmp.ne.s32.totalorder %v6081, %v1540
          %vm6090 = vcmp.ne.s32.totalorder %v6082, %v1540
          %vm6091 = vcmp.lt.s32.totalorder %v6075, 256
          %vm6092 = vcmp.lt.s32.totalorder %v6076, 256
          %vm6093 = vcmp.lt.s32.totalorder %v6077, 256
          %vm6094 = vcmp.lt.s32.totalorder %v6078, 256
          %vm6095 = vcmp.lt.s32.totalorder %v6079, 256
          %vm6096 = vcmp.lt.s32.totalorder %v6080, 256
          %vm6097 = vcmp.lt.s32.totalorder %v6081, 256
          %vm6098 = vcmp.lt.s32.totalorder %v6082, 256
          %vm6099 = vmand %vm6083, %vm6091
          %vm6100 = vmand %vm6084, %vm6092
          %vm6101 = vmand %vm6085, %vm6093
          %vm6102 = vmand %vm6086, %vm6094
          %vm6103 = vmand %vm6087, %vm6095
          %vm6104 = vmand %vm6088, %vm6096
          %vm6105 = vmand %vm6089, %vm6097
          %vm6106 = vmand %vm6090, %vm6098
          %vm6107 = vmand %vm6099, %vm5449
          %vm6108 = vmand %vm6100, %vm5449
          %vm6109 = vmand %vm6101, %vm5449
          %vm6110 = vmand %vm6102, %vm5449
          %vm6111 = vmand %vm6103, %vm5449
          %vm6112 = vmand %vm6104, %vm5449
          %vm6113 = vmand %vm6105, %vm5449
          %vm6114 = vmand %vm6106, %vm5449
          %v6115 = vsel %vm6107, %v6066, 0.0
          %v6116 = vsel %vm6108, %v6067, 0.0
          %v6117 = vsel %vm6109, %v6068, 0.0
          %v6118 = vsel %vm6110, %v6069, 0.0
          %v6119 = vsel %vm6111, %v6070, 0.0
          %v6120 = vsel %vm6112, %v6071, 0.0
          %v6121 = vsel %vm6113, %v6072, 0.0
          %v6122 = vsel %vm6114, %v6073, 0.0
          %v6123 = vadd.f32 %v6115, %v6116
          %v6124 = vadd.f32 %v6123, %v6117
          %v6125 = vadd.f32 %v6124, %v6118
          %v6126 = vadd.f32 %v6125, %v6119
          %v6127 = vadd.f32 %v6126, %v6120
          %v6128 = vadd.f32 %v6127, %v6121
          %v6129 = vadd.f32 %v6128, %v6122
          %v6130 = vrot.slane %v6129, 4
          %v6131 = vadd.f32 %v6129, %v6130
          %v6132 = vrot.slane %v6131, 2
          %v6133 = vadd.f32 %v6131, %v6132
          %v6134 = vrot.slane %v6133, 1
          %v6135 = vadd.f32 %v6133, %v6134
          %v6136 = vadd.f32 %v5456, %v6135
        $region121: #{tpu_custom_call.1} parent=107 // loop_footer
          %s5455 = sadd.s32 1, %s5451
        $region122: #{tpu_custom_call.1} parent=107 // loop_footer_branch
          %5450 = sbr.rel target = $region118
        $region123: #{tpu_custom_call.1} parent=107 // loop_exit
          _
        %vm6137 = vcmask 1040384
        %v6138 = vsel %vm6137, %v5456, 0.0
        %6139 = vadd.xlane.f32.xlu0 %v6138
        %v6140 = vpop.xlane.xlu0 %6139
        %v6141 = vrot.slane %v6140, 4
        %v6142 = vadd.f32 %v6140, %v6141
        %v6143 = vrot.slane %v6142, 2
        %v6144 = vadd.f32 %v6142, %v6143
        %v6145 = vrot.slane %v6144, 1
        %v6146 = vadd.f32 %v6144, %v6145
        %s6147 = vtos %v6146
        %s6148 = smul.f32 %s6147, -1.5318628e-05
        %v6149 = vstv %s6148
        %v6150 = vadd.f32 %v6149, 0.0
        %6151 = vst [vmem:[%s344] sm:$0xff] %v6150
        %s6152 = sand.u32 %s142, 1
        %s6153 = scalar_lea.sflag [#allocation9], %s6152
        %s6154 = sand.u32 %s142, 1
        %s6155 = smul.addr %s6154, 8
        %s6156 = scalar_lea.vmem [#allocation8], %s6155
        // Predicated region
        $region131: #{tpu_custom_call.1} parent=107 // pred_check
          %p6157 = pneg %p152
        $region132: #{tpu_custom_call.1} parent=107 // pred_check_branch
          %6159 = sbr.rel (%p6157) target = $region134
        $region133: #{tpu_custom_call.1} parent=107 // pred_region
          %s6161 = ssub.s32 128, 128
          %6162 = vsyncadd %s6153, %s6161
          %s6163 = smul.addr %s19, 128
          %s6164 = scalar_lea.hbm %s5, %s6163
          %s6166 = sshll.u32 %s6156, 4
          %s6167 = int_to_ptr.vmem [resolvable:$true] %s6166
          %6169 = dma.vmem_to_hbm [thread:$0]  %s6167, 128, %s6164, %s6153
        $region134: #{tpu_custom_call.1} parent=107 // pred_fallthru
          _
      $region108: #{tpu_custom_call.1} parent=5 // pred_fallthru
        _
      %p6170 = scmp.le.s32.totalorder 2, %s14
      // Predicated region
      $region135: #{tpu_custom_call.1} parent=5 // pred_check
        %p6171 = pneg %p6170
      $region136: #{tpu_custom_call.1} parent=5 // pred_check_branch
        %6173 = sbr.rel (%p6171) target = $region138
      $region137: #{tpu_custom_call.1} parent=5 // pred_region
        %s6174 = ssub.s32 %s14, 2
        // Predicated region
        $region139: #{tpu_custom_call.1} parent=137 // pred_check
          %p6175 = pneg %p158
        $region140: #{tpu_custom_call.1} parent=137 // pred_check_branch
          %6177 = sbr.rel (%p6175) target = $region142
        $region141: #{tpu_custom_call.1} parent=137 // pred_region
          %s6178 = sand.u32 %s143, 1
          %s6179 = scalar_lea.sflag [#allocation9], %s6178
          %s6180 = sand.u32 %s143, 1
          %s6181 = smul.addr %s6180, 8
          %s6182 = scalar_lea.vmem [#allocation8], %s6181
          %6183 = dma.done %s6179, 128
        $region142: #{tpu_custom_call.1} parent=137 // pred_fallthru
          _
      $region138: #{tpu_custom_call.1} parent=5 // pred_fallthru
        _
    $region6: #{tpu_custom_call.1} parent=1 // loop_footer
      %s18 = sadd.s32 1, %s14
    $region7: #{tpu_custom_call.1} parent=1 // loop_footer_branch
      %13 = sbr.rel target = $region3
    $region8: #{tpu_custom_call.1} parent=1 // loop_exit
      _
    %6184 = vsyncpa [#allocation9], 1
    %s6185 = scalar_lea.sflag [#allocation9], 1
    %6186 = vsyncpa %s6185, 1

</llo_original>
